<compile_context>
chip_gen: v6e
topology: v6e:2x2x1
jax: 0.10.0
libtpu: 0.0.40
codegen_flags: <defaults>
</compile_context>

<pallas_src>
import jax
import jax.numpy as jnp
from jax.experimental import pallas as pl
from jax.experimental.pallas import tpu as pltpu

# ----------------------------- model sizes ---------------------------------
B        = 8    # images per call (>=8 so matmul M rows populate sublanes usefully)
C_IN     = 4    # image channels
HW       = 16   # spatial H == W
KSIZE    = 3    # conv kernel size
CKK      = KSIZE * KSIZE * C_IN   # 36 real im2col columns
CKK_PAD  = 128                    # lane-dense contraction depth (zero padded)
D_MODEL  = 128  # CNN feature dim == transformer d_model  (orig 512 / 2048; lane-dense)
N_HEAD   = 8    # transformer heads (irrelevant to the output at seq_len == 1)
D_FF     = 256  # transformer feed-forward dim            (orig 2048)
N_LAYERS = 6    # transformer encoder layers
H_GRU    = 128  # GRU hidden size                         (orig 300; lane-dense)
D_OUT    = 128  # final linear out features               (orig 300; lane-dense)

VMEM_SPEC = pl.BlockSpec(memory_space=pltpu.MemorySpace.VMEM)


def _layernorm(x, w, b, eps=1e-5):
    mu = jnp.mean(x, axis=-1, keepdims=True)
    var = jnp.mean(jnp.square(x - mu), axis=-1, keepdims=True)
    return (x - mu) * jax.lax.rsqrt(var + eps) * w + b


# ----------------------- shared model math (arrays) -------------------------
# Used verbatim by both the Pallas kernel (on VMEM-loaded values) and the pure
# JAX reference, so the kernel is structurally identical to its check.
def _model_math(patches, conv_w, wvo, w1, w2, enc_b, gwx, gwh, fc_w, misc, bsz):
    n_layers, d_model = wvo.shape[0], wvo.shape[1]
    h_gru = gwh.shape[0]
    rows_per_img = patches.shape[0] // bsz

    # misc slab rows: 0 conv_b | 1 fc_b | 2-4 gru bx (r,z,n) | 5-7 gru bh (r,z,n)
    conv_b, fc_b = misc[0:1, :], misc[1:2, :]
    bx_r, bx_z, bx_n = misc[2:3, :], misc[3:4, :], misc[4:5, :]
    bh_r, bh_z, bh_n = misc[5:6, :], misc[6:7, :], misc[7:8, :]

    # ---- CNN: one lane-dense (B*H*W, 128)@(128, D) matmul + ReLU, then per-image
    # global average pool via reshape (no slice loop, no concatenate).
    h = jnp.dot(patches, conv_w, preferred_element_type=jnp.float32) + conv_b
    h = jnp.maximum(h, 0.0)                                           # (B*H*W, D) f32
    x = jnp.mean(h.reshape(bsz, rows_per_img, d_model), axis=1)       # (B, D) f32

    # ---- Transformer encoder (6 layers, static unroll over stacked weights).
    # seq_len == 1 -> softmax over a single key position == 1 for every head, so
    # MHA(x) == x @ (Wv@Wo) + (bv@Wo + bo).  Wq/Wk drop out entirely and the two
    # remaining projections were pre-fused in f32 at init into wvo / bvo.
    for l in range(n_layers):
        eb = enc_b[l]                                 # (8, D_FF) packed bias slab
        bvo, b2 = eb[0:1, 0:d_model], eb[1:2, 0:d_model]
        ln1w, ln1b = eb[2:3, 0:d_model], eb[3:4, 0:d_model]
        ln2w, ln2b = eb[4:5, 0:d_model], eb[5:6, 0:d_model]
        b1 = eb[6:7, :]

        sa = jnp.dot(x.astype(jnp.bfloat16), wvo[l],
                     preferred_element_type=jnp.float32) + bvo
        y = _layernorm(x + sa, ln1w, ln1b)            # post-norm, dropout = identity
        hf = jnp.maximum(
            jnp.dot(y.astype(jnp.bfloat16), w1[l],
                    preferred_element_type=jnp.float32) + b1, 0.0)
        ff = jnp.dot(hf.astype(jnp.bfloat16), w2[l],
                     preferred_element_type=jnp.float32) + b2
        x = _layernorm(y + ff, ln2w, ln2b)

    # ---- GRU over (batch=1, seq=B, feat=D), h0 = 0.  Input projection for all
    # timesteps hoisted into one (B, D)@(D, 3H) matmul; only h @ (H, 3H) remains
    # inside the recurrence, and t == 0 skips it entirely because h0 == 0.
    xp = jnp.dot(x.astype(jnp.bfloat16), gwx, preferred_element_type=jnp.float32)
    h_t = None
    rows = []
    for t in range(bsz):                              # static unroll (seq == B)
        xt = xp[t:t + 1, :]
        if t == 0:
            hp_r, hp_z, hp_n = bh_r, bh_z, bh_n       # h0 == 0 -> matmul elided
        else:
            hp = jnp.dot(h_t.astype(jnp.bfloat16), gwh,
                         preferred_element_type=jnp.float32)
            hp_r = hp[:, 0:h_gru] + bh_r
            hp_z = hp[:, h_gru:2 * h_gru] + bh_z
            hp_n = hp[:, 2 * h_gru:3 * h_gru] + bh_n
        r = jax.nn.sigmoid(xt[:, 0:h_gru] + bx_r + hp_r)
        z = jax.nn.sigmoid(xt[:, h_gru:2 * h_gru] + bx_z + hp_z)
        # PyTorch GRU: b_hn stays inside r * ( . )
        n = jnp.tanh(xt[:, 2 * h_gru:3 * h_gru] + bx_n + r * hp_n)
        h_t = (1.0 - z) * n if t == 0 else (1.0 - z) * n + z * h_t
        rows.append(h_t)
    gru_out = jnp.concatenate(rows, axis=0)           # (B, H_GRU)

    # ---- final Linear (lane-dense (B, 128) output).
    return jnp.dot(gru_out.astype(jnp.bfloat16), fc_w,
                   preferred_element_type=jnp.float32) + fc_b


# --------------------------- single fused kernel ----------------------------
# TODO(synk): at original scale (d_model=2048, d_ff=2048) the whole-weight-in-VMEM
# strategy exceeds v7x's 64 MiB VMEM (~192 MiB of stacked bf16 weights); that path
# needs a layer grid axis ("arbitrary") with per-layer, double-buffered weight
# BlockSpecs (index_map=lambda l: (l, 0, 0), pipeline_mode=pl.Buffered(2)) and an
# explicit vmem_limit_bytes.  At this scaled-down size (~2 MiB) everything fits.
# TODO(synk): on v7x the second TensorCore is idle; with larger batches the CNN +
# encoder stages could take a leading "parallel" grid axis over image blocks.
def fused_kernel(patches_ref, conv_w_ref, wvo_ref, w1_ref, w2_ref, enc_b_ref,
                 gwx_ref, gwh_ref, fc_w_ref, misc_ref, o_ref):
    o_ref[...] = _model_math(
        patches_ref[...], conv_w_ref[...], wvo_ref[...], w1_ref[...], w2_ref[...],
        enc_b_ref[...], gwx_ref[...], gwh_ref[...], fc_w_ref[...], misc_ref[...],
        o_ref.shape[0])


# ------------------------------ im2col wrapper ------------------------------
# TODO(synk): pretrained ResNet18 backbone replaced by conv3x3 + ReLU + global
# average pool; at real image sizes (especially on v5e's ~820 GB/s HBM) patches
# should be built inside the kernel from a VMEM-resident NHWC tile via shifted
# slices to avoid the 9x HBM read amplification of wrapper-side im2col.
def im2col(images_nchw):
    x = jnp.transpose(images_nchw, (0, 2, 3, 1)).astype(jnp.float32)  # NCHW -> NHWC
    Bn, H, W, C = x.shape
    pad = KSIZE // 2
    xp = jnp.pad(x, ((0, 0), (pad, pad), (pad, pad), (0, 0)))
    cols = [xp[:, di:di + H, dj:dj + W, :]
            for di in range(KSIZE) for dj in range(KSIZE)]
    patches = jnp.stack(cols, axis=3).reshape(Bn * H * W, KSIZE * KSIZE * C)
    patches = jnp.pad(patches, ((0, 0), (0, CKK_PAD - CKK)))   # lane-dense K
    return patches.astype(jnp.bfloat16)


# ------------------------------ parameters ----------------------------------
def init_params(key):
    keys = iter(jax.random.split(key, 64))

    def nrm(shape, scale=0.05):
        return scale * jax.random.normal(next(keys), shape, jnp.float32)

    L, D, F, H3 = N_LAYERS, D_MODEL, D_FF, 3 * H_GRU

    # CNN (contraction depth zero-padded to CKK_PAD for lane density)
    conv_w = jnp.zeros((CKK_PAD, D), jnp.float32).at[:CKK].set(nrm((CKK, D)))
    conv_b = nrm((1, D))

    # encoder: generate Wv/Wo/bv/bo in f32 and PRE-FUSE (valid because seq_len==1)
    wv, wo = nrm((L, D, D)), nrm((L, D, D))
    bv, bo = nrm((L, 1, D)), nrm((L, 1, D))
    wvo = jnp.einsum('lij,ljk->lik', wv, wo)              # f32 product, cast later
    bvo = jnp.einsum('lij,ljk->lik', bv, wo) + bo
    w1, b1 = nrm((L, D, F)), nrm((L, 1, F))
    w2, b2 = nrm((L, F, D)), nrm((L, 1, D))
    ln1w, ln1b = jnp.ones((L, 1, D)), jnp.zeros((L, 1, D))
    ln2w, ln2b = jnp.ones((L, 1, D)), jnp.zeros((L, 1, D))

    # packed per-layer bias/LN slab (L, 8, D_FF) f32 -- one DMA instead of ~8
    enc_b = jnp.zeros((L, 8, F), jnp.float32)
    enc_b = enc_b.at[:, 0:1, 0:D].set(bvo)
    enc_b = enc_b.at[:, 1:2, 0:D].set(b2)
    enc_b = enc_b.at[:, 2:3, 0:D].set(ln1w)
    enc_b = enc_b.at[:, 3:4, 0:D].set(ln1b)
    enc_b = enc_b.at[:, 4:5, 0:D].set(ln2w)
    enc_b = enc_b.at[:, 5:6, 0:D].set(ln2b)
    enc_b = enc_b.at[:, 6:7, :].set(b1)

    # GRU with packed gates (r|z|n) + final linear
    gru_wx, gru_wh = nrm((D, H3)), nrm((H_GRU, H3))
    gru_bx, gru_bh = nrm((1, H3)), nrm((1, H3))
    fc_w, fc_b = nrm((H_GRU, D_OUT)), nrm((1, D_OUT))

    # packed misc bias slab (8, 128) f32 -- exactly 8 sublanes, one DMA
    misc = jnp.zeros((8, 128), jnp.float32)
    misc = misc.at[0:1, :].set(conv_b)
    misc = misc.at[1:2, :].set(fc_b)
    misc = misc.at[2:3, :].set(gru_bx[:, 0:H_GRU])
    misc = misc.at[3:4, :].set(gru_bx[:, H_GRU:2 * H_GRU])
    misc = misc.at[4:5, :].set(gru_bx[:, 2 * H_GRU:])
    misc = misc.at[5:6, :].set(gru_bh[:, 0:H_GRU])
    misc = misc.at[6:7, :].set(gru_bh[:, H_GRU:2 * H_GRU])
    misc = misc.at[7:8, :].set(gru_bh[:, 2 * H_GRU:])

    return {
        "conv_w": conv_w.astype(jnp.bfloat16),
        "wvo": wvo.astype(jnp.bfloat16),
        "w1": w1.astype(jnp.bfloat16),
        "w2": w2.astype(jnp.bfloat16),
        "enc_b": enc_b,
        "gru_wx": gru_wx.astype(jnp.bfloat16),
        "gru_wh": gru_wh.astype(jnp.bfloat16),
        "fc_w": fc_w.astype(jnp.bfloat16),
        "misc": misc,
    }


# -------------------------------- forward -----------------------------------
@jax.jit
def forward(images_nchw, params):
    patches = im2col(images_nchw)                     # (B*H*W, CKK_PAD) bf16
    return pl.pallas_call(
        fused_kernel,
        in_specs=[VMEM_SPEC] * 10,
        out_specs=VMEM_SPEC,
        out_shape=jax.ShapeDtypeStruct((B, D_OUT), jnp.float32),
    )(patches,
      params["conv_w"], params["wvo"], params["w1"], params["w2"],
      params["enc_b"], params["gru_wx"], params["gru_wh"],
      params["fc_w"], params["misc"])


@jax.jit
def forward_ref(images_nchw, params):
    patches = im2col(images_nchw)
    return _model_math(patches,
                       params["conv_w"], params["wvo"], params["w1"], params["w2"],
                       params["enc_b"], params["gru_wx"], params["gru_wh"],
                       params["fc_w"], params["misc"], B)


if __name__ == "__main__":
    key = jax.random.PRNGKey(0)
    pkey, xkey = jax.random.split(key)
    params = init_params(pkey)
    images = jax.random.normal(xkey, (B, C_IN, HW, HW), jnp.float32)  # NCHW input

    out = jax.block_until_ready(forward(images, params))
    assert out.shape == (B, D_OUT), out.shape
    assert bool(jnp.all(jnp.isfinite(out)))

    ref = jax.block_until_ready(forward_ref(images, params))
    err = float(jnp.max(jnp.abs(out - ref)))
    assert err < 5e-2, f"kernel/reference mismatch: max|diff|={err}"

    print("KERNEL_OK")
</pallas_src>

<mosaic_0001>
module attributes {stable_mosaic.version = 11 : i64} {
  func.func @fused_kernel(%arg0: memref<2048x128xbf16, #tpu.memory_space<vmem>>, %arg1: memref<128x128xbf16, #tpu.memory_space<vmem>>, %arg2: memref<6x128x128xbf16, #tpu.memory_space<vmem>>, %arg3: memref<6x128x256xbf16, #tpu.memory_space<vmem>>, %arg4: memref<6x256x128xbf16, #tpu.memory_space<vmem>>, %arg5: memref<6x8x256xf32, #tpu.memory_space<vmem>>, %arg6: memref<128x384xbf16, #tpu.memory_space<vmem>>, %arg7: memref<128x384xbf16, #tpu.memory_space<vmem>>, %arg8: memref<128x128xbf16, #tpu.memory_space<vmem>>, %arg9: memref<8x128xf32, #tpu.memory_space<vmem>>, %arg10: memref<8x128xf32, #tpu.memory_space<vmem>>) attributes {dimension_semantics = [], scalar_prefetch = 0 : i64, scratch_operands = 0 : i64, tpu.core_type = #tpu.core_type<tc>} {
    %c0 = arith.constant 0 : index
    %c0_0 = arith.constant 0 : index
    %0 = vector.load %arg0[%c0, %c0_0] : memref<2048x128xbf16, #tpu.memory_space<vmem>>, vector<2048x128xbf16>
    %c0_1 = arith.constant 0 : index
    %c0_2 = arith.constant 0 : index
    %1 = vector.load %arg1[%c0_1, %c0_2] : memref<128x128xbf16, #tpu.memory_space<vmem>>, vector<128x128xbf16>
    %c0_3 = arith.constant 0 : index
    %c0_4 = arith.constant 0 : index
    %c0_5 = arith.constant 0 : index
    %2 = vector.load %arg2[%c0_3, %c0_4, %c0_5] : memref<6x128x128xbf16, #tpu.memory_space<vmem>>, vector<6x128x128xbf16>
    %c0_6 = arith.constant 0 : index
    %c0_7 = arith.constant 0 : index
    %c0_8 = arith.constant 0 : index
    %3 = vector.load %arg3[%c0_6, %c0_7, %c0_8] : memref<6x128x256xbf16, #tpu.memory_space<vmem>>, vector<6x128x256xbf16>
    %c0_9 = arith.constant 0 : index
    %c0_10 = arith.constant 0 : index
    %c0_11 = arith.constant 0 : index
    %4 = vector.load %arg4[%c0_9, %c0_10, %c0_11] : memref<6x256x128xbf16, #tpu.memory_space<vmem>>, vector<6x256x128xbf16>
    %c0_12 = arith.constant 0 : index
    %c0_13 = arith.constant 0 : index
    %c0_14 = arith.constant 0 : index
    %5 = vector.load %arg5[%c0_12, %c0_13, %c0_14] : memref<6x8x256xf32, #tpu.memory_space<vmem>>, vector<6x8x256xf32>
    %c0_15 = arith.constant 0 : index
    %c0_16 = arith.constant 0 : index
    %6 = vector.load %arg6[%c0_15, %c0_16] : memref<128x384xbf16, #tpu.memory_space<vmem>>, vector<128x384xbf16>
    %c0_17 = arith.constant 0 : index
    %c0_18 = arith.constant 0 : index
    %7 = vector.load %arg7[%c0_17, %c0_18] : memref<128x384xbf16, #tpu.memory_space<vmem>>, vector<128x384xbf16>
    %c0_19 = arith.constant 0 : index
    %c0_20 = arith.constant 0 : index
    %8 = vector.load %arg8[%c0_19, %c0_20] : memref<128x128xbf16, #tpu.memory_space<vmem>>, vector<128x128xbf16>
    %c0_21 = arith.constant 0 : index
    %c0_22 = arith.constant 0 : index
    %9 = vector.load %arg9[%c0_21, %c0_22] : memref<8x128xf32, #tpu.memory_space<vmem>>, vector<8x128xf32>
    %10 = vector.extract_strided_slice %9 {offsets = [0, 0], sizes = [1, 128], strides = [1, 1]} : vector<8x128xf32> to vector<1x128xf32>
    %11 = vector.extract_strided_slice %9 {offsets = [1, 0], sizes = [1, 128], strides = [1, 1]} : vector<8x128xf32> to vector<1x128xf32>
    %12 = vector.extract_strided_slice %9 {offsets = [2, 0], sizes = [1, 128], strides = [1, 1]} : vector<8x128xf32> to vector<1x128xf32>
    %13 = vector.extract_strided_slice %9 {offsets = [3, 0], sizes = [1, 128], strides = [1, 1]} : vector<8x128xf32> to vector<1x128xf32>
    %14 = vector.extract_strided_slice %9 {offsets = [4, 0], sizes = [1, 128], strides = [1, 1]} : vector<8x128xf32> to vector<1x128xf32>
    %15 = vector.extract_strided_slice %9 {offsets = [5, 0], sizes = [1, 128], strides = [1, 1]} : vector<8x128xf32> to vector<1x128xf32>
    %16 = vector.extract_strided_slice %9 {offsets = [6, 0], sizes = [1, 128], strides = [1, 1]} : vector<8x128xf32> to vector<1x128xf32>
    %17 = vector.extract_strided_slice %9 {offsets = [7, 0], sizes = [1, 128], strides = [1, 1]} : vector<8x128xf32> to vector<1x128xf32>
    %cst = arith.constant dense<0.000000e+00> : vector<2048x128xf32>
    %18 = tpu.matmul %0, %1, %cst {dimension_numbers = #tpu.dot_dimension_numbers<[1], [0], [0], [1], [0, 0, 1, 1], [], []>} : vector<2048x128xbf16>, vector<128x128xbf16>, vector<2048x128xf32> -> vector<2048x128xf32>
    %19 = vector.broadcast %10 : vector<1x128xf32> to vector<2048x128xf32>
    %20 = arith.addf %18, %19 : vector<2048x128xf32>
    %cst_23 = arith.constant 0.000000e+00 : f32
    %21 = vector.broadcast %cst_23 : f32 to vector<2048x128xf32>
    %22 = arith.maximumf %20, %21 : vector<2048x128xf32>
    %23 = vector.shape_cast %22 : vector<2048x128xf32> to vector<8x256x128xf32>
    %cst_24 = arith.constant dense<0.000000e+00> : vector<8x128xf32>
    %24 = vector.multi_reduction <add>, %23, %cst_24 [1] : vector<8x256x128xf32> to vector<8x128xf32>
    %cst_25 = arith.constant 2.560000e+02 : f32
    %25 = vector.broadcast %cst_25 : f32 to vector<8x128xf32>
    %26 = arith.divf %24, %25 : vector<8x128xf32>
    %27 = vector.extract_strided_slice %5 {offsets = [0, 0, 0], sizes = [1, 8, 256], strides = [1, 1, 1]} : vector<6x8x256xf32> to vector<1x8x256xf32>
    %28 = vector.shape_cast %27 : vector<1x8x256xf32> to vector<8x256xf32>
    %29 = vector.extract_strided_slice %28 {offsets = [0, 0], sizes = [1, 128], strides = [1, 1]} : vector<8x256xf32> to vector<1x128xf32>
    %30 = vector.extract_strided_slice %28 {offsets = [1, 0], sizes = [1, 128], strides = [1, 1]} : vector<8x256xf32> to vector<1x128xf32>
    %31 = vector.extract_strided_slice %28 {offsets = [2, 0], sizes = [1, 128], strides = [1, 1]} : vector<8x256xf32> to vector<1x128xf32>
    %32 = vector.extract_strided_slice %28 {offsets = [3, 0], sizes = [1, 128], strides = [1, 1]} : vector<8x256xf32> to vector<1x128xf32>
    %33 = vector.extract_strided_slice %28 {offsets = [4, 0], sizes = [1, 128], strides = [1, 1]} : vector<8x256xf32> to vector<1x128xf32>
    %34 = vector.extract_strided_slice %28 {offsets = [5, 0], sizes = [1, 128], strides = [1, 1]} : vector<8x256xf32> to vector<1x128xf32>
    %35 = vector.extract_strided_slice %28 {offsets = [6, 0], sizes = [1, 256], strides = [1, 1]} : vector<8x256xf32> to vector<1x256xf32>
    %36 = arith.truncf %26 : vector<8x128xf32> to vector<8x128xbf16>
    %37 = vector.extract_strided_slice %2 {offsets = [0, 0, 0], sizes = [1, 128, 128], strides = [1, 1, 1]} : vector<6x128x128xbf16> to vector<1x128x128xbf16>
    %38 = vector.shape_cast %37 : vector<1x128x128xbf16> to vector<128x128xbf16>
    %cst_26 = arith.constant dense<0.000000e+00> : vector<8x128xf32>
    %39 = tpu.matmul %36, %38, %cst_26 {dimension_numbers = #tpu.dot_dimension_numbers<[1], [0], [0], [1], [0, 0, 1, 1], [], []>} : vector<8x128xbf16>, vector<128x128xbf16>, vector<8x128xf32> -> vector<8x128xf32>
    %40 = vector.broadcast %29 : vector<1x128xf32> to vector<8x128xf32>
    %41 = arith.addf %39, %40 : vector<8x128xf32>
    %42 = arith.addf %26, %41 : vector<8x128xf32>
    %cst_27 = arith.constant dense<0.000000e+00> : vector<8xf32>
    %43 = vector.multi_reduction <add>, %42, %cst_27 [1] : vector<8x128xf32> to vector<8xf32>
    %44 = vector.shape_cast %43 : vector<8xf32> to vector<8x1xf32>
    %cst_28 = arith.constant 1.280000e+02 : f32
    %45 = vector.broadcast %cst_28 : f32 to vector<8x1xf32>
    %46 = arith.divf %44, %45 : vector<8x1xf32>
    %47 = vector.broadcast %46 : vector<8x1xf32> to vector<8x128xf32>
    %48 = arith.subf %42, %47 : vector<8x128xf32>
    %49 = arith.mulf %48, %48 : vector<8x128xf32>
    %cst_29 = arith.constant dense<0.000000e+00> : vector<8xf32>
    %50 = vector.multi_reduction <add>, %49, %cst_29 [1] : vector<8x128xf32> to vector<8xf32>
    %51 = vector.shape_cast %50 : vector<8xf32> to vector<8x1xf32>
    %cst_30 = arith.constant 1.280000e+02 : f32
    %52 = vector.broadcast %cst_30 : f32 to vector<8x1xf32>
    %53 = arith.divf %51, %52 : vector<8x1xf32>
    %54 = vector.broadcast %46 : vector<8x1xf32> to vector<8x128xf32>
    %55 = arith.subf %42, %54 : vector<8x128xf32>
    %cst_31 = arith.constant 9.99999974E-6 : f32
    %56 = vector.broadcast %cst_31 : f32 to vector<8x1xf32>
    %57 = arith.addf %53, %56 : vector<8x1xf32>
    %58 = math.rsqrt %57 : vector<8x1xf32>
    %59 = vector.broadcast %58 : vector<8x1xf32> to vector<8x128xf32>
    %60 = arith.mulf %55, %59 : vector<8x128xf32>
    %61 = vector.broadcast %31 : vector<1x128xf32> to vector<8x128xf32>
    %62 = arith.mulf %60, %61 : vector<8x128xf32>
    %63 = vector.broadcast %32 : vector<1x128xf32> to vector<8x128xf32>
    %64 = arith.addf %62, %63 : vector<8x128xf32>
    %65 = arith.truncf %64 : vector<8x128xf32> to vector<8x128xbf16>
    %66 = vector.extract_strided_slice %3 {offsets = [0, 0, 0], sizes = [1, 128, 256], strides = [1, 1, 1]} : vector<6x128x256xbf16> to vector<1x128x256xbf16>
    %67 = vector.shape_cast %66 : vector<1x128x256xbf16> to vector<128x256xbf16>
    %cst_32 = arith.constant dense<0.000000e+00> : vector<8x256xf32>
    %68 = tpu.matmul %65, %67, %cst_32 {dimension_numbers = #tpu.dot_dimension_numbers<[1], [0], [0], [1], [0, 0, 1, 1], [], []>} : vector<8x128xbf16>, vector<128x256xbf16>, vector<8x256xf32> -> vector<8x256xf32>
    %69 = vector.broadcast %35 : vector<1x256xf32> to vector<8x256xf32>
    %70 = arith.addf %68, %69 : vector<8x256xf32>
    %cst_33 = arith.constant 0.000000e+00 : f32
    %71 = vector.broadcast %cst_33 : f32 to vector<8x256xf32>
    %72 = arith.maximumf %70, %71 : vector<8x256xf32>
    %73 = arith.truncf %72 : vector<8x256xf32> to vector<8x256xbf16>
    %74 = vector.extract_strided_slice %4 {offsets = [0, 0, 0], sizes = [1, 256, 128], strides = [1, 1, 1]} : vector<6x256x128xbf16> to vector<1x256x128xbf16>
    %75 = vector.shape_cast %74 : vector<1x256x128xbf16> to vector<256x128xbf16>
    %cst_34 = arith.constant dense<0.000000e+00> : vector<8x128xf32>
    %76 = tpu.matmul %73, %75, %cst_34 {dimension_numbers = #tpu.dot_dimension_numbers<[1], [0], [0], [1], [0, 0, 1, 1], [], []>} : vector<8x256xbf16>, vector<256x128xbf16>, vector<8x128xf32> -> vector<8x128xf32>
    %77 = vector.broadcast %30 : vector<1x128xf32> to vector<8x128xf32>
    %78 = arith.addf %76, %77 : vector<8x128xf32>
    %79 = arith.addf %64, %78 : vector<8x128xf32>
    %cst_35 = arith.constant dense<0.000000e+00> : vector<8xf32>
    %80 = vector.multi_reduction <add>, %79, %cst_35 [1] : vector<8x128xf32> to vector<8xf32>
    %81 = vector.shape_cast %80 : vector<8xf32> to vector<8x1xf32>
    %cst_36 = arith.constant 1.280000e+02 : f32
    %82 = vector.broadcast %cst_36 : f32 to vector<8x1xf32>
    %83 = arith.divf %81, %82 : vector<8x1xf32>
    %84 = vector.broadcast %83 : vector<8x1xf32> to vector<8x128xf32>
    %85 = arith.subf %79, %84 : vector<8x128xf32>
    %86 = arith.mulf %85, %85 : vector<8x128xf32>
    %cst_37 = arith.constant dense<0.000000e+00> : vector<8xf32>
    %87 = vector.multi_reduction <add>, %86, %cst_37 [1] : vector<8x128xf32> to vector<8xf32>
    %88 = vector.shape_cast %87 : vector<8xf32> to vector<8x1xf32>
    %cst_38 = arith.constant 1.280000e+02 : f32
    %89 = vector.broadcast %cst_38 : f32 to vector<8x1xf32>
    %90 = arith.divf %88, %89 : vector<8x1xf32>
    %91 = vector.broadcast %83 : vector<8x1xf32> to vector<8x128xf32>
    %92 = arith.subf %79, %91 : vector<8x128xf32>
    %cst_39 = arith.constant 9.99999974E-6 : f32
    %93 = vector.broadcast %cst_39 : f32 to vector<8x1xf32>
    %94 = arith.addf %90, %93 : vector<8x1xf32>
    %95 = math.rsqrt %94 : vector<8x1xf32>
    %96 = vector.broadcast %95 : vector<8x1xf32> to vector<8x128xf32>
    %97 = arith.mulf %92, %96 : vector<8x128xf32>
    %98 = vector.broadcast %33 : vector<1x128xf32> to vector<8x128xf32>
    %99 = arith.mulf %97, %98 : vector<8x128xf32>
    %100 = vector.broadcast %34 : vector<1x128xf32> to vector<8x128xf32>
    %101 = arith.addf %99, %100 : vector<8x128xf32>
    %102 = vector.extract_strided_slice %5 {offsets = [1, 0, 0], sizes = [1, 8, 256], strides = [1, 1, 1]} : vector<6x8x256xf32> to vector<1x8x256xf32>
    %103 = vector.shape_cast %102 : vector<1x8x256xf32> to vector<8x256xf32>
    %104 = vector.extract_strided_slice %103 {offsets = [0, 0], sizes = [1, 128], strides = [1, 1]} : vector<8x256xf32> to vector<1x128xf32>
    %105 = vector.extract_strided_slice %103 {offsets = [1, 0], sizes = [1, 128], strides = [1, 1]} : vector<8x256xf32> to vector<1x128xf32>
    %106 = vector.extract_strided_slice %103 {offsets = [2, 0], sizes = [1, 128], strides = [1, 1]} : vector<8x256xf32> to vector<1x128xf32>
    %107 = vector.extract_strided_slice %103 {offsets = [3, 0], sizes = [1, 128], strides = [1, 1]} : vector<8x256xf32> to vector<1x128xf32>
    %108 = vector.extract_strided_slice %103 {offsets = [4, 0], sizes = [1, 128], strides = [1, 1]} : vector<8x256xf32> to vector<1x128xf32>
    %109 = vector.extract_strided_slice %103 {offsets = [5, 0], sizes = [1, 128], strides = [1, 1]} : vector<8x256xf32> to vector<1x128xf32>
    %110 = vector.extract_strided_slice %103 {offsets = [6, 0], sizes = [1, 256], strides = [1, 1]} : vector<8x256xf32> to vector<1x256xf32>
    %111 = arith.truncf %101 : vector<8x128xf32> to vector<8x128xbf16>
    %112 = vector.extract_strided_slice %2 {offsets = [1, 0, 0], sizes = [1, 128, 128], strides = [1, 1, 1]} : vector<6x128x128xbf16> to vector<1x128x128xbf16>
    %113 = vector.shape_cast %112 : vector<1x128x128xbf16> to vector<128x128xbf16>
    %cst_40 = arith.constant dense<0.000000e+00> : vector<8x128xf32>
    %114 = tpu.matmul %111, %113, %cst_40 {dimension_numbers = #tpu.dot_dimension_numbers<[1], [0], [0], [1], [0, 0, 1, 1], [], []>} : vector<8x128xbf16>, vector<128x128xbf16>, vector<8x128xf32> -> vector<8x128xf32>
    %115 = vector.broadcast %104 : vector<1x128xf32> to vector<8x128xf32>
    %116 = arith.addf %114, %115 : vector<8x128xf32>
    %117 = arith.addf %101, %116 : vector<8x128xf32>
    %cst_41 = arith.constant dense<0.000000e+00> : vector<8xf32>
    %118 = vector.multi_reduction <add>, %117, %cst_41 [1] : vector<8x128xf32> to vector<8xf32>
    %119 = vector.shape_cast %118 : vector<8xf32> to vector<8x1xf32>
    %cst_42 = arith.constant 1.280000e+02 : f32
    %120 = vector.broadcast %cst_42 : f32 to vector<8x1xf32>
    %121 = arith.divf %119, %120 : vector<8x1xf32>
    %122 = vector.broadcast %121 : vector<8x1xf32> to vector<8x128xf32>
    %123 = arith.subf %117, %122 : vector<8x128xf32>
    %124 = arith.mulf %123, %123 : vector<8x128xf32>
    %cst_43 = arith.constant dense<0.000000e+00> : vector<8xf32>
    %125 = vector.multi_reduction <add>, %124, %cst_43 [1] : vector<8x128xf32> to vector<8xf32>
    %126 = vector.shape_cast %125 : vector<8xf32> to vector<8x1xf32>
    %cst_44 = arith.constant 1.280000e+02 : f32
    %127 = vector.broadcast %cst_44 : f32 to vector<8x1xf32>
    %128 = arith.divf %126, %127 : vector<8x1xf32>
    %129 = vector.broadcast %121 : vector<8x1xf32> to vector<8x128xf32>
    %130 = arith.subf %117, %129 : vector<8x128xf32>
    %cst_45 = arith.constant 9.99999974E-6 : f32
    %131 = vector.broadcast %cst_45 : f32 to vector<8x1xf32>
    %132 = arith.addf %128, %131 : vector<8x1xf32>
    %133 = math.rsqrt %132 : vector<8x1xf32>
    %134 = vector.broadcast %133 : vector<8x1xf32> to vector<8x128xf32>
    %135 = arith.mulf %130, %134 : vector<8x128xf32>
    %136 = vector.broadcast %106 : vector<1x128xf32> to vector<8x128xf32>
    %137 = arith.mulf %135, %136 : vector<8x128xf32>
    %138 = vector.broadcast %107 : vector<1x128xf32> to vector<8x128xf32>
    %139 = arith.addf %137, %138 : vector<8x128xf32>
    %140 = arith.truncf %139 : vector<8x128xf32> to vector<8x128xbf16>
    %141 = vector.extract_strided_slice %3 {offsets = [1, 0, 0], sizes = [1, 128, 256], strides = [1, 1, 1]} : vector<6x128x256xbf16> to vector<1x128x256xbf16>
    %142 = vector.shape_cast %141 : vector<1x128x256xbf16> to vector<128x256xbf16>
    %cst_46 = arith.constant dense<0.000000e+00> : vector<8x256xf32>
    %143 = tpu.matmul %140, %142, %cst_46 {dimension_numbers = #tpu.dot_dimension_numbers<[1], [0], [0], [1], [0, 0, 1, 1], [], []>} : vector<8x128xbf16>, vector<128x256xbf16>, vector<8x256xf32> -> vector<8x256xf32>
    %144 = vector.broadcast %110 : vector<1x256xf32> to vector<8x256xf32>
    %145 = arith.addf %143, %144 : vector<8x256xf32>
    %cst_47 = arith.constant 0.000000e+00 : f32
    %146 = vector.broadcast %cst_47 : f32 to vector<8x256xf32>
    %147 = arith.maximumf %145, %146 : vector<8x256xf32>
    %148 = arith.truncf %147 : vector<8x256xf32> to vector<8x256xbf16>
    %149 = vector.extract_strided_slice %4 {offsets = [1, 0, 0], sizes = [1, 256, 128], strides = [1, 1, 1]} : vector<6x256x128xbf16> to vector<1x256x128xbf16>
    %150 = vector.shape_cast %149 : vector<1x256x128xbf16> to vector<256x128xbf16>
    %cst_48 = arith.constant dense<0.000000e+00> : vector<8x128xf32>
    %151 = tpu.matmul %148, %150, %cst_48 {dimension_numbers = #tpu.dot_dimension_numbers<[1], [0], [0], [1], [0, 0, 1, 1], [], []>} : vector<8x256xbf16>, vector<256x128xbf16>, vector<8x128xf32> -> vector<8x128xf32>
    %152 = vector.broadcast %105 : vector<1x128xf32> to vector<8x128xf32>
    %153 = arith.addf %151, %152 : vector<8x128xf32>
    %154 = arith.addf %139, %153 : vector<8x128xf32>
    %cst_49 = arith.constant dense<0.000000e+00> : vector<8xf32>
    %155 = vector.multi_reduction <add>, %154, %cst_49 [1] : vector<8x128xf32> to vector<8xf32>
    %156 = vector.shape_cast %155 : vector<8xf32> to vector<8x1xf32>
    %cst_50 = arith.constant 1.280000e+02 : f32
    %157 = vector.broadcast %cst_50 : f32 to vector<8x1xf32>
    %158 = arith.divf %156, %157 : vector<8x1xf32>
    %159 = vector.broadcast %158 : vector<8x1xf32> to vector<8x128xf32>
    %160 = arith.subf %154, %159 : vector<8x128xf32>
    %161 = arith.mulf %160, %160 : vector<8x128xf32>
    %cst_51 = arith.constant dense<0.000000e+00> : vector<8xf32>
    %162 = vector.multi_reduction <add>, %161, %cst_51 [1] : vector<8x128xf32> to vector<8xf32>
    %163 = vector.shape_cast %162 : vector<8xf32> to vector<8x1xf32>
    %cst_52 = arith.constant 1.280000e+02 : f32
    %164 = vector.broadcast %cst_52 : f32 to vector<8x1xf32>
    %165 = arith.divf %163, %164 : vector<8x1xf32>
    %166 = vector.broadcast %158 : vector<8x1xf32> to vector<8x128xf32>
    %167 = arith.subf %154, %166 : vector<8x128xf32>
    %cst_53 = arith.constant 9.99999974E-6 : f32
    %168 = vector.broadcast %cst_53 : f32 to vector<8x1xf32>
    %169 = arith.addf %165, %168 : vector<8x1xf32>
    %170 = math.rsqrt %169 : vector<8x1xf32>
    %171 = vector.broadcast %170 : vector<8x1xf32> to vector<8x128xf32>
    %172 = arith.mulf %167, %171 : vector<8x128xf32>
    %173 = vector.broadcast %108 : vector<1x128xf32> to vector<8x128xf32>
    %174 = arith.mulf %172, %173 : vector<8x128xf32>
    %175 = vector.broadcast %109 : vector<1x128xf32> to vector<8x128xf32>
    %176 = arith.addf %174, %175 : vector<8x128xf32>
    %177 = vector.extract_strided_slice %5 {offsets = [2, 0, 0], sizes = [1, 8, 256], strides = [1, 1, 1]} : vector<6x8x256xf32> to vector<1x8x256xf32>
    %178 = vector.shape_cast %177 : vector<1x8x256xf32> to vector<8x256xf32>
    %179 = vector.extract_strided_slice %178 {offsets = [0, 0], sizes = [1, 128], strides = [1, 1]} : vector<8x256xf32> to vector<1x128xf32>
    %180 = vector.extract_strided_slice %178 {offsets = [1, 0], sizes = [1, 128], strides = [1, 1]} : vector<8x256xf32> to vector<1x128xf32>
    %181 = vector.extract_strided_slice %178 {offsets = [2, 0], sizes = [1, 128], strides = [1, 1]} : vector<8x256xf32> to vector<1x128xf32>
    %182 = vector.extract_strided_slice %178 {offsets = [3, 0], sizes = [1, 128], strides = [1, 1]} : vector<8x256xf32> to vector<1x128xf32>
    %183 = vector.extract_strided_slice %178 {offsets = [4, 0], sizes = [1, 128], strides = [1, 1]} : vector<8x256xf32> to vector<1x128xf32>
    %184 = vector.extract_strided_slice %178 {offsets = [5, 0], sizes = [1, 128], strides = [1, 1]} : vector<8x256xf32> to vector<1x128xf32>
    %185 = vector.extract_strided_slice %178 {offsets = [6, 0], sizes = [1, 256], strides = [1, 1]} : vector<8x256xf32> to vector<1x256xf32>
    %186 = arith.truncf %176 : vector<8x128xf32> to vector<8x128xbf16>
    %187 = vector.extract_strided_slice %2 {offsets = [2, 0, 0], sizes = [1, 128, 128], strides = [1, 1, 1]} : vector<6x128x128xbf16> to vector<1x128x128xbf16>
    %188 = vector.shape_cast %187 : vector<1x128x128xbf16> to vector<128x128xbf16>
    %cst_54 = arith.constant dense<0.000000e+00> : vector<8x128xf32>
    %189 = tpu.matmul %186, %188, %cst_54 {dimension_numbers = #tpu.dot_dimension_numbers<[1], [0], [0], [1], [0, 0, 1, 1], [], []>} : vector<8x128xbf16>, vector<128x128xbf16>, vector<8x128xf32> -> vector<8x128xf32>
    %190 = vector.broadcast %179 : vector<1x128xf32> to vector<8x128xf32>
    %191 = arith.addf %189, %190 : vector<8x128xf32>
    %192 = arith.addf %176, %191 : vector<8x128xf32>
    %cst_55 = arith.constant dense<0.000000e+00> : vector<8xf32>
    %193 = vector.multi_reduction <add>, %192, %cst_55 [1] : vector<8x128xf32> to vector<8xf32>
    %194 = vector.shape_cast %193 : vector<8xf32> to vector<8x1xf32>
    %cst_56 = arith.constant 1.280000e+02 : f32
    %195 = vector.broadcast %cst_56 : f32 to vector<8x1xf32>
    %196 = arith.divf %194, %195 : vector<8x1xf32>
    %197 = vector.broadcast %196 : vector<8x1xf32> to vector<8x128xf32>
    %198 = arith.subf %192, %197 : vector<8x128xf32>
    %199 = arith.mulf %198, %198 : vector<8x128xf32>
    %cst_57 = arith.constant dense<0.000000e+00> : vector<8xf32>
    %200 = vector.multi_reduction <add>, %199, %cst_57 [1] : vector<8x128xf32> to vector<8xf32>
    %201 = vector.shape_cast %200 : vector<8xf32> to vector<8x1xf32>
    %cst_58 = arith.constant 1.280000e+02 : f32
    %202 = vector.broadcast %cst_58 : f32 to vector<8x1xf32>
    %203 = arith.divf %201, %202 : vector<8x1xf32>
    %204 = vector.broadcast %196 : vector<8x1xf32> to vector<8x128xf32>
    %205 = arith.subf %192, %204 : vector<8x128xf32>
    %cst_59 = arith.constant 9.99999974E-6 : f32
    %206 = vector.broadcast %cst_59 : f32 to vector<8x1xf32>
    %207 = arith.addf %203, %206 : vector<8x1xf32>
    %208 = math.rsqrt %207 : vector<8x1xf32>
    %209 = vector.broadcast %208 : vector<8x1xf32> to vector<8x128xf32>
    %210 = arith.mulf %205, %209 : vector<8x128xf32>
    %211 = vector.broadcast %181 : vector<1x128xf32> to vector<8x128xf32>
    %212 = arith.mulf %210, %211 : vector<8x128xf32>
    %213 = vector.broadcast %182 : vector<1x128xf32> to vector<8x128xf32>
    %214 = arith.addf %212, %213 : vector<8x128xf32>
    %215 = arith.truncf %214 : vector<8x128xf32> to vector<8x128xbf16>
    %216 = vector.extract_strided_slice %3 {offsets = [2, 0, 0], sizes = [1, 128, 256], strides = [1, 1, 1]} : vector<6x128x256xbf16> to vector<1x128x256xbf16>
    %217 = vector.shape_cast %216 : vector<1x128x256xbf16> to vector<128x256xbf16>
    %cst_60 = arith.constant dense<0.000000e+00> : vector<8x256xf32>
    %218 = tpu.matmul %215, %217, %cst_60 {dimension_numbers = #tpu.dot_dimension_numbers<[1], [0], [0], [1], [0, 0, 1, 1], [], []>} : vector<8x128xbf16>, vector<128x256xbf16>, vector<8x256xf32> -> vector<8x256xf32>
    %219 = vector.broadcast %185 : vector<1x256xf32> to vector<8x256xf32>
    %220 = arith.addf %218, %219 : vector<8x256xf32>
    %cst_61 = arith.constant 0.000000e+00 : f32
    %221 = vector.broadcast %cst_61 : f32 to vector<8x256xf32>
    %222 = arith.maximumf %220, %221 : vector<8x256xf32>
    %223 = arith.truncf %222 : vector<8x256xf32> to vector<8x256xbf16>
    %224 = vector.extract_strided_slice %4 {offsets = [2, 0, 0], sizes = [1, 256, 128], strides = [1, 1, 1]} : vector<6x256x128xbf16> to vector<1x256x128xbf16>
    %225 = vector.shape_cast %224 : vector<1x256x128xbf16> to vector<256x128xbf16>
    %cst_62 = arith.constant dense<0.000000e+00> : vector<8x128xf32>
    %226 = tpu.matmul %223, %225, %cst_62 {dimension_numbers = #tpu.dot_dimension_numbers<[1], [0], [0], [1], [0, 0, 1, 1], [], []>} : vector<8x256xbf16>, vector<256x128xbf16>, vector<8x128xf32> -> vector<8x128xf32>
    %227 = vector.broadcast %180 : vector<1x128xf32> to vector<8x128xf32>
    %228 = arith.addf %226, %227 : vector<8x128xf32>
    %229 = arith.addf %214, %228 : vector<8x128xf32>
    %cst_63 = arith.constant dense<0.000000e+00> : vector<8xf32>
    %230 = vector.multi_reduction <add>, %229, %cst_63 [1] : vector<8x128xf32> to vector<8xf32>
    %231 = vector.shape_cast %230 : vector<8xf32> to vector<8x1xf32>
    %cst_64 = arith.constant 1.280000e+02 : f32
    %232 = vector.broadcast %cst_64 : f32 to vector<8x1xf32>
    %233 = arith.divf %231, %232 : vector<8x1xf32>
    %234 = vector.broadcast %233 : vector<8x1xf32> to vector<8x128xf32>
    %235 = arith.subf %229, %234 : vector<8x128xf32>
    %236 = arith.mulf %235, %235 : vector<8x128xf32>
    %cst_65 = arith.constant dense<0.000000e+00> : vector<8xf32>
    %237 = vector.multi_reduction <add>, %236, %cst_65 [1] : vector<8x128xf32> to vector<8xf32>
    %238 = vector.shape_cast %237 : vector<8xf32> to vector<8x1xf32>
    %cst_66 = arith.constant 1.280000e+02 : f32
    %239 = vector.broadcast %cst_66 : f32 to vector<8x1xf32>
    %240 = arith.divf %238, %239 : vector<8x1xf32>
    %241 = vector.broadcast %233 : vector<8x1xf32> to vector<8x128xf32>
    %242 = arith.subf %229, %241 : vector<8x128xf32>
    %cst_67 = arith.constant 9.99999974E-6 : f32
    %243 = vector.broadcast %cst_67 : f32 to vector<8x1xf32>
    %244 = arith.addf %240, %243 : vector<8x1xf32>
    %245 = math.rsqrt %244 : vector<8x1xf32>
    %246 = vector.broadcast %245 : vector<8x1xf32> to vector<8x128xf32>
    %247 = arith.mulf %242, %246 : vector<8x128xf32>
    %248 = vector.broadcast %183 : vector<1x128xf32> to vector<8x128xf32>
    %249 = arith.mulf %247, %248 : vector<8x128xf32>
    %250 = vector.broadcast %184 : vector<1x128xf32> to vector<8x128xf32>
    %251 = arith.addf %249, %250 : vector<8x128xf32>
    %252 = vector.extract_strided_slice %5 {offsets = [3, 0, 0], sizes = [1, 8, 256], strides = [1, 1, 1]} : vector<6x8x256xf32> to vector<1x8x256xf32>
    %253 = vector.shape_cast %252 : vector<1x8x256xf32> to vector<8x256xf32>
    %254 = vector.extract_strided_slice %253 {offsets = [0, 0], sizes = [1, 128], strides = [1, 1]} : vector<8x256xf32> to vector<1x128xf32>
    %255 = vector.extract_strided_slice %253 {offsets = [1, 0], sizes = [1, 128], strides = [1, 1]} : vector<8x256xf32> to vector<1x128xf32>
    %256 = vector.extract_strided_slice %253 {offsets = [2, 0], sizes = [1, 128], strides = [1, 1]} : vector<8x256xf32> to vector<1x128xf32>
    %257 = vector.extract_strided_slice %253 {offsets = [3, 0], sizes = [1, 128], strides = [1, 1]} : vector<8x256xf32> to vector<1x128xf32>
    %258 = vector.extract_strided_slice %253 {offsets = [4, 0], sizes = [1, 128], strides = [1, 1]} : vector<8x256xf32> to vector<1x128xf32>
    %259 = vector.extract_strided_slice %253 {offsets = [5, 0], sizes = [1, 128], strides = [1, 1]} : vector<8x256xf32> to vector<1x128xf32>
    %260 = vector.extract_strided_slice %253 {offsets = [6, 0], sizes = [1, 256], strides = [1, 1]} : vector<8x256xf32> to vector<1x256xf32>
    %261 = arith.truncf %251 : vector<8x128xf32> to vector<8x128xbf16>
    %262 = vector.extract_strided_slice %2 {offsets = [3, 0, 0], sizes = [1, 128, 128], strides = [1, 1, 1]} : vector<6x128x128xbf16> to vector<1x128x128xbf16>
    %263 = vector.shape_cast %262 : vector<1x128x128xbf16> to vector<128x128xbf16>
    %cst_68 = arith.constant dense<0.000000e+00> : vector<8x128xf32>
    %264 = tpu.matmul %261, %263, %cst_68 {dimension_numbers = #tpu.dot_dimension_numbers<[1], [0], [0], [1], [0, 0, 1, 1], [], []>} : vector<8x128xbf16>, vector<128x128xbf16>, vector<8x128xf32> -> vector<8x128xf32>
    %265 = vector.broadcast %254 : vector<1x128xf32> to vector<8x128xf32>
    %266 = arith.addf %264, %265 : vector<8x128xf32>
    %267 = arith.addf %251, %266 : vector<8x128xf32>
    %cst_69 = arith.constant dense<0.000000e+00> : vector<8xf32>
    %268 = vector.multi_reduction <add>, %267, %cst_69 [1] : vector<8x128xf32> to vector<8xf32>
    %269 = vector.shape_cast %268 : vector<8xf32> to vector<8x1xf32>
    %cst_70 = arith.constant 1.280000e+02 : f32
    %270 = vector.broadcast %cst_70 : f32 to vector<8x1xf32>
    %271 = arith.divf %269, %270 : vector<8x1xf32>
    %272 = vector.broadcast %271 : vector<8x1xf32> to vector<8x128xf32>
    %273 = arith.subf %267, %272 : vector<8x128xf32>
    %274 = arith.mulf %273, %273 : vector<8x128xf32>
    %cst_71 = arith.constant dense<0.000000e+00> : vector<8xf32>
    %275 = vector.multi_reduction <add>, %274, %cst_71 [1] : vector<8x128xf32> to vector<8xf32>
    %276 = vector.shape_cast %275 : vector<8xf32> to vector<8x1xf32>
    %cst_72 = arith.constant 1.280000e+02 : f32
    %277 = vector.broadcast %cst_72 : f32 to vector<8x1xf32>
    %278 = arith.divf %276, %277 : vector<8x1xf32>
    %279 = vector.broadcast %271 : vector<8x1xf32> to vector<8x128xf32>
    %280 = arith.subf %267, %279 : vector<8x128xf32>
    %cst_73 = arith.constant 9.99999974E-6 : f32
    %281 = vector.broadcast %cst_73 : f32 to vector<8x1xf32>
    %282 = arith.addf %278, %281 : vector<8x1xf32>
    %283 = math.rsqrt %282 : vector<8x1xf32>
    %284 = vector.broadcast %283 : vector<8x1xf32> to vector<8x128xf32>
    %285 = arith.mulf %280, %284 : vector<8x128xf32>
    %286 = vector.broadcast %256 : vector<1x128xf32> to vector<8x128xf32>
    %287 = arith.mulf %285, %286 : vector<8x128xf32>
    %288 = vector.broadcast %257 : vector<1x128xf32> to vector<8x128xf32>
    %289 = arith.addf %287, %288 : vector<8x128xf32>
    %290 = arith.truncf %289 : vector<8x128xf32> to vector<8x128xbf16>
    %291 = vector.extract_strided_slice %3 {offsets = [3, 0, 0], sizes = [1, 128, 256], strides = [1, 1, 1]} : vector<6x128x256xbf16> to vector<1x128x256xbf16>
    %292 = vector.shape_cast %291 : vector<1x128x256xbf16> to vector<128x256xbf16>
    %cst_74 = arith.constant dense<0.000000e+00> : vector<8x256xf32>
    %293 = tpu.matmul %290, %292, %cst_74 {dimension_numbers = #tpu.dot_dimension_numbers<[1], [0], [0], [1], [0, 0, 1, 1], [], []>} : vector<8x128xbf16>, vector<128x256xbf16>, vector<8x256xf32> -> vector<8x256xf32>
    %294 = vector.broadcast %260 : vector<1x256xf32> to vector<8x256xf32>
    %295 = arith.addf %293, %294 : vector<8x256xf32>
    %cst_75 = arith.constant 0.000000e+00 : f32
    %296 = vector.broadcast %cst_75 : f32 to vector<8x256xf32>
    %297 = arith.maximumf %295, %296 : vector<8x256xf32>
    %298 = arith.truncf %297 : vector<8x256xf32> to vector<8x256xbf16>
    %299 = vector.extract_strided_slice %4 {offsets = [3, 0, 0], sizes = [1, 256, 128], strides = [1, 1, 1]} : vector<6x256x128xbf16> to vector<1x256x128xbf16>
    %300 = vector.shape_cast %299 : vector<1x256x128xbf16> to vector<256x128xbf16>
    %cst_76 = arith.constant dense<0.000000e+00> : vector<8x128xf32>
    %301 = tpu.matmul %298, %300, %cst_76 {dimension_numbers = #tpu.dot_dimension_numbers<[1], [0], [0], [1], [0, 0, 1, 1], [], []>} : vector<8x256xbf16>, vector<256x128xbf16>, vector<8x128xf32> -> vector<8x128xf32>
    %302 = vector.broadcast %255 : vector<1x128xf32> to vector<8x128xf32>
    %303 = arith.addf %301, %302 : vector<8x128xf32>
    %304 = arith.addf %289, %303 : vector<8x128xf32>
    %cst_77 = arith.constant dense<0.000000e+00> : vector<8xf32>
    %305 = vector.multi_reduction <add>, %304, %cst_77 [1] : vector<8x128xf32> to vector<8xf32>
    %306 = vector.shape_cast %305 : vector<8xf32> to vector<8x1xf32>
    %cst_78 = arith.constant 1.280000e+02 : f32
    %307 = vector.broadcast %cst_78 : f32 to vector<8x1xf32>
    %308 = arith.divf %306, %307 : vector<8x1xf32>
    %309 = vector.broadcast %308 : vector<8x1xf32> to vector<8x128xf32>
    %310 = arith.subf %304, %309 : vector<8x128xf32>
    %311 = arith.mulf %310, %310 : vector<8x128xf32>
    %cst_79 = arith.constant dense<0.000000e+00> : vector<8xf32>
    %312 = vector.multi_reduction <add>, %311, %cst_79 [1] : vector<8x128xf32> to vector<8xf32>
    %313 = vector.shape_cast %312 : vector<8xf32> to vector<8x1xf32>
    %cst_80 = arith.constant 1.280000e+02 : f32
    %314 = vector.broadcast %cst_80 : f32 to vector<8x1xf32>
    %315 = arith.divf %313, %314 : vector<8x1xf32>
    %316 = vector.broadcast %308 : vector<8x1xf32> to vector<8x128xf32>
    %317 = arith.subf %304, %316 : vector<8x128xf32>
    %cst_81 = arith.constant 9.99999974E-6 : f32
    %318 = vector.broadcast %cst_81 : f32 to vector<8x1xf32>
    %319 = arith.addf %315, %318 : vector<8x1xf32>
    %320 = math.rsqrt %319 : vector<8x1xf32>
    %321 = vector.broadcast %320 : vector<8x1xf32> to vector<8x128xf32>
    %322 = arith.mulf %317, %321 : vector<8x128xf32>
    %323 = vector.broadcast %258 : vector<1x128xf32> to vector<8x128xf32>
    %324 = arith.mulf %322, %323 : vector<8x128xf32>
    %325 = vector.broadcast %259 : vector<1x128xf32> to vector<8x128xf32>
    %326 = arith.addf %324, %325 : vector<8x128xf32>
    %327 = vector.extract_strided_slice %5 {offsets = [4, 0, 0], sizes = [1, 8, 256], strides = [1, 1, 1]} : vector<6x8x256xf32> to vector<1x8x256xf32>
    %328 = vector.shape_cast %327 : vector<1x8x256xf32> to vector<8x256xf32>
    %329 = vector.extract_strided_slice %328 {offsets = [0, 0], sizes = [1, 128], strides = [1, 1]} : vector<8x256xf32> to vector<1x128xf32>
    %330 = vector.extract_strided_slice %328 {offsets = [1, 0], sizes = [1, 128], strides = [1, 1]} : vector<8x256xf32> to vector<1x128xf32>
    %331 = vector.extract_strided_slice %328 {offsets = [2, 0], sizes = [1, 128], strides = [1, 1]} : vector<8x256xf32> to vector<1x128xf32>
    %332 = vector.extract_strided_slice %328 {offsets = [3, 0], sizes = [1, 128], strides = [1, 1]} : vector<8x256xf32> to vector<1x128xf32>
    %333 = vector.extract_strided_slice %328 {offsets = [4, 0], sizes = [1, 128], strides = [1, 1]} : vector<8x256xf32> to vector<1x128xf32>
    %334 = vector.extract_strided_slice %328 {offsets = [5, 0], sizes = [1, 128], strides = [1, 1]} : vector<8x256xf32> to vector<1x128xf32>
    %335 = vector.extract_strided_slice %328 {offsets = [6, 0], sizes = [1, 256], strides = [1, 1]} : vector<8x256xf32> to vector<1x256xf32>
    %336 = arith.truncf %326 : vector<8x128xf32> to vector<8x128xbf16>
    %337 = vector.extract_strided_slice %2 {offsets = [4, 0, 0], sizes = [1, 128, 128], strides = [1, 1, 1]} : vector<6x128x128xbf16> to vector<1x128x128xbf16>
    %338 = vector.shape_cast %337 : vector<1x128x128xbf16> to vector<128x128xbf16>
    %cst_82 = arith.constant dense<0.000000e+00> : vector<8x128xf32>
    %339 = tpu.matmul %336, %338, %cst_82 {dimension_numbers = #tpu.dot_dimension_numbers<[1], [0], [0], [1], [0, 0, 1, 1], [], []>} : vector<8x128xbf16>, vector<128x128xbf16>, vector<8x128xf32> -> vector<8x128xf32>
    %340 = vector.broadcast %329 : vector<1x128xf32> to vector<8x128xf32>
    %341 = arith.addf %339, %340 : vector<8x128xf32>
    %342 = arith.addf %326, %341 : vector<8x128xf32>
    %cst_83 = arith.constant dense<0.000000e+00> : vector<8xf32>
    %343 = vector.multi_reduction <add>, %342, %cst_83 [1] : vector<8x128xf32> to vector<8xf32>
    %344 = vector.shape_cast %343 : vector<8xf32> to vector<8x1xf32>
    %cst_84 = arith.constant 1.280000e+02 : f32
    %345 = vector.broadcast %cst_84 : f32 to vector<8x1xf32>
    %346 = arith.divf %344, %345 : vector<8x1xf32>
    %347 = vector.broadcast %346 : vector<8x1xf32> to vector<8x128xf32>
    %348 = arith.subf %342, %347 : vector<8x128xf32>
    %349 = arith.mulf %348, %348 : vector<8x128xf32>
    %cst_85 = arith.constant dense<0.000000e+00> : vector<8xf32>
    %350 = vector.multi_reduction <add>, %349, %cst_85 [1] : vector<8x128xf32> to vector<8xf32>
    %351 = vector.shape_cast %350 : vector<8xf32> to vector<8x1xf32>
    %cst_86 = arith.constant 1.280000e+02 : f32
    %352 = vector.broadcast %cst_86 : f32 to vector<8x1xf32>
    %353 = arith.divf %351, %352 : vector<8x1xf32>
    %354 = vector.broadcast %346 : vector<8x1xf32> to vector<8x128xf32>
    %355 = arith.subf %342, %354 : vector<8x128xf32>
    %cst_87 = arith.constant 9.99999974E-6 : f32
    %356 = vector.broadcast %cst_87 : f32 to vector<8x1xf32>
    %357 = arith.addf %353, %356 : vector<8x1xf32>
    %358 = math.rsqrt %357 : vector<8x1xf32>
    %359 = vector.broadcast %358 : vector<8x1xf32> to vector<8x128xf32>
    %360 = arith.mulf %355, %359 : vector<8x128xf32>
    %361 = vector.broadcast %331 : vector<1x128xf32> to vector<8x128xf32>
    %362 = arith.mulf %360, %361 : vector<8x128xf32>
    %363 = vector.broadcast %332 : vector<1x128xf32> to vector<8x128xf32>
    %364 = arith.addf %362, %363 : vector<8x128xf32>
    %365 = arith.truncf %364 : vector<8x128xf32> to vector<8x128xbf16>
    %366 = vector.extract_strided_slice %3 {offsets = [4, 0, 0], sizes = [1, 128, 256], strides = [1, 1, 1]} : vector<6x128x256xbf16> to vector<1x128x256xbf16>
    %367 = vector.shape_cast %366 : vector<1x128x256xbf16> to vector<128x256xbf16>
    %cst_88 = arith.constant dense<0.000000e+00> : vector<8x256xf32>
    %368 = tpu.matmul %365, %367, %cst_88 {dimension_numbers = #tpu.dot_dimension_numbers<[1], [0], [0], [1], [0, 0, 1, 1], [], []>} : vector<8x128xbf16>, vector<128x256xbf16>, vector<8x256xf32> -> vector<8x256xf32>
    %369 = vector.broadcast %335 : vector<1x256xf32> to vector<8x256xf32>
    %370 = arith.addf %368, %369 : vector<8x256xf32>
    %cst_89 = arith.constant 0.000000e+00 : f32
    %371 = vector.broadcast %cst_89 : f32 to vector<8x256xf32>
    %372 = arith.maximumf %370, %371 : vector<8x256xf32>
    %373 = arith.truncf %372 : vector<8x256xf32> to vector<8x256xbf16>
    %374 = vector.extract_strided_slice %4 {offsets = [4, 0, 0], sizes = [1, 256, 128], strides = [1, 1, 1]} : vector<6x256x128xbf16> to vector<1x256x128xbf16>
    %375 = vector.shape_cast %374 : vector<1x256x128xbf16> to vector<256x128xbf16>
    %cst_90 = arith.constant dense<0.000000e+00> : vector<8x128xf32>
    %376 = tpu.matmul %373, %375, %cst_90 {dimension_numbers = #tpu.dot_dimension_numbers<[1], [0], [0], [1], [0, 0, 1, 1], [], []>} : vector<8x256xbf16>, vector<256x128xbf16>, vector<8x128xf32> -> vector<8x128xf32>
    %377 = vector.broadcast %330 : vector<1x128xf32> to vector<8x128xf32>
    %378 = arith.addf %376, %377 : vector<8x128xf32>
    %379 = arith.addf %364, %378 : vector<8x128xf32>
    %cst_91 = arith.constant dense<0.000000e+00> : vector<8xf32>
    %380 = vector.multi_reduction <add>, %379, %cst_91 [1] : vector<8x128xf32> to vector<8xf32>
    %381 = vector.shape_cast %380 : vector<8xf32> to vector<8x1xf32>
    %cst_92 = arith.constant 1.280000e+02 : f32
    %382 = vector.broadcast %cst_92 : f32 to vector<8x1xf32>
    %383 = arith.divf %381, %382 : vector<8x1xf32>
    %384 = vector.broadcast %383 : vector<8x1xf32> to vector<8x128xf32>
    %385 = arith.subf %379, %384 : vector<8x128xf32>
    %386 = arith.mulf %385, %385 : vector<8x128xf32>
    %cst_93 = arith.constant dense<0.000000e+00> : vector<8xf32>
    %387 = vector.multi_reduction <add>, %386, %cst_93 [1] : vector<8x128xf32> to vector<8xf32>
    %388 = vector.shape_cast %387 : vector<8xf32> to vector<8x1xf32>
    %cst_94 = arith.constant 1.280000e+02 : f32
    %389 = vector.broadcast %cst_94 : f32 to vector<8x1xf32>
    %390 = arith.divf %388, %389 : vector<8x1xf32>
    %391 = vector.broadcast %383 : vector<8x1xf32> to vector<8x128xf32>
    %392 = arith.subf %379, %391 : vector<8x128xf32>
    %cst_95 = arith.constant 9.99999974E-6 : f32
    %393 = vector.broadcast %cst_95 : f32 to vector<8x1xf32>
    %394 = arith.addf %390, %393 : vector<8x1xf32>
    %395 = math.rsqrt %394 : vector<8x1xf32>
    %396 = vector.broadcast %395 : vector<8x1xf32> to vector<8x128xf32>
    %397 = arith.mulf %392, %396 : vector<8x128xf32>
    %398 = vector.broadcast %333 : vector<1x128xf32> to vector<8x128xf32>
    %399 = arith.mulf %397, %398 : vector<8x128xf32>
    %400 = vector.broadcast %334 : vector<1x128xf32> to vector<8x128xf32>
    %401 = arith.addf %399, %400 : vector<8x128xf32>
    %402 = vector.extract_strided_slice %5 {offsets = [5, 0, 0], sizes = [1, 8, 256], strides = [1, 1, 1]} : vector<6x8x256xf32> to vector<1x8x256xf32>
    %403 = vector.shape_cast %402 : vector<1x8x256xf32> to vector<8x256xf32>
    %404 = vector.extract_strided_slice %403 {offsets = [0, 0], sizes = [1, 128], strides = [1, 1]} : vector<8x256xf32> to vector<1x128xf32>
    %405 = vector.extract_strided_slice %403 {offsets = [1, 0], sizes = [1, 128], strides = [1, 1]} : vector<8x256xf32> to vector<1x128xf32>
    %406 = vector.extract_strided_slice %403 {offsets = [2, 0], sizes = [1, 128], strides = [1, 1]} : vector<8x256xf32> to vector<1x128xf32>
    %407 = vector.extract_strided_slice %403 {offsets = [3, 0], sizes = [1, 128], strides = [1, 1]} : vector<8x256xf32> to vector<1x128xf32>
    %408 = vector.extract_strided_slice %403 {offsets = [4, 0], sizes = [1, 128], strides = [1, 1]} : vector<8x256xf32> to vector<1x128xf32>
    %409 = vector.extract_strided_slice %403 {offsets = [5, 0], sizes = [1, 128], strides = [1, 1]} : vector<8x256xf32> to vector<1x128xf32>
    %410 = vector.extract_strided_slice %403 {offsets = [6, 0], sizes = [1, 256], strides = [1, 1]} : vector<8x256xf32> to vector<1x256xf32>
    %411 = arith.truncf %401 : vector<8x128xf32> to vector<8x128xbf16>
    %412 = vector.extract_strided_slice %2 {offsets = [5, 0, 0], sizes = [1, 128, 128], strides = [1, 1, 1]} : vector<6x128x128xbf16> to vector<1x128x128xbf16>
    %413 = vector.shape_cast %412 : vector<1x128x128xbf16> to vector<128x128xbf16>
    %cst_96 = arith.constant dense<0.000000e+00> : vector<8x128xf32>
    %414 = tpu.matmul %411, %413, %cst_96 {dimension_numbers = #tpu.dot_dimension_numbers<[1], [0], [0], [1], [0, 0, 1, 1], [], []>} : vector<8x128xbf16>, vector<128x128xbf16>, vector<8x128xf32> -> vector<8x128xf32>
    %415 = vector.broadcast %404 : vector<1x128xf32> to vector<8x128xf32>
    %416 = arith.addf %414, %415 : vector<8x128xf32>
    %417 = arith.addf %401, %416 : vector<8x128xf32>
    %cst_97 = arith.constant dense<0.000000e+00> : vector<8xf32>
    %418 = vector.multi_reduction <add>, %417, %cst_97 [1] : vector<8x128xf32> to vector<8xf32>
    %419 = vector.shape_cast %418 : vector<8xf32> to vector<8x1xf32>
    %cst_98 = arith.constant 1.280000e+02 : f32
    %420 = vector.broadcast %cst_98 : f32 to vector<8x1xf32>
    %421 = arith.divf %419, %420 : vector<8x1xf32>
    %422 = vector.broadcast %421 : vector<8x1xf32> to vector<8x128xf32>
    %423 = arith.subf %417, %422 : vector<8x128xf32>
    %424 = arith.mulf %423, %423 : vector<8x128xf32>
    %cst_99 = arith.constant dense<0.000000e+00> : vector<8xf32>
    %425 = vector.multi_reduction <add>, %424, %cst_99 [1] : vector<8x128xf32> to vector<8xf32>
    %426 = vector.shape_cast %425 : vector<8xf32> to vector<8x1xf32>
    %cst_100 = arith.constant 1.280000e+02 : f32
    %427 = vector.broadcast %cst_100 : f32 to vector<8x1xf32>
    %428 = arith.divf %426, %427 : vector<8x1xf32>
    %429 = vector.broadcast %421 : vector<8x1xf32> to vector<8x128xf32>
    %430 = arith.subf %417, %429 : vector<8x128xf32>
    %cst_101 = arith.constant 9.99999974E-6 : f32
    %431 = vector.broadcast %cst_101 : f32 to vector<8x1xf32>
    %432 = arith.addf %428, %431 : vector<8x1xf32>
    %433 = math.rsqrt %432 : vector<8x1xf32>
    %434 = vector.broadcast %433 : vector<8x1xf32> to vector<8x128xf32>
    %435 = arith.mulf %430, %434 : vector<8x128xf32>
    %436 = vector.broadcast %406 : vector<1x128xf32> to vector<8x128xf32>
    %437 = arith.mulf %435, %436 : vector<8x128xf32>
    %438 = vector.broadcast %407 : vector<1x128xf32> to vector<8x128xf32>
    %439 = arith.addf %437, %438 : vector<8x128xf32>
    %440 = arith.truncf %439 : vector<8x128xf32> to vector<8x128xbf16>
    %441 = vector.extract_strided_slice %3 {offsets = [5, 0, 0], sizes = [1, 128, 256], strides = [1, 1, 1]} : vector<6x128x256xbf16> to vector<1x128x256xbf16>
    %442 = vector.shape_cast %441 : vector<1x128x256xbf16> to vector<128x256xbf16>
    %cst_102 = arith.constant dense<0.000000e+00> : vector<8x256xf32>
    %443 = tpu.matmul %440, %442, %cst_102 {dimension_numbers = #tpu.dot_dimension_numbers<[1], [0], [0], [1], [0, 0, 1, 1], [], []>} : vector<8x128xbf16>, vector<128x256xbf16>, vector<8x256xf32> -> vector<8x256xf32>
    %444 = vector.broadcast %410 : vector<1x256xf32> to vector<8x256xf32>
    %445 = arith.addf %443, %444 : vector<8x256xf32>
    %cst_103 = arith.constant 0.000000e+00 : f32
    %446 = vector.broadcast %cst_103 : f32 to vector<8x256xf32>
    %447 = arith.maximumf %445, %446 : vector<8x256xf32>
    %448 = arith.truncf %447 : vector<8x256xf32> to vector<8x256xbf16>
    %449 = vector.extract_strided_slice %4 {offsets = [5, 0, 0], sizes = [1, 256, 128], strides = [1, 1, 1]} : vector<6x256x128xbf16> to vector<1x256x128xbf16>
    %450 = vector.shape_cast %449 : vector<1x256x128xbf16> to vector<256x128xbf16>
    %cst_104 = arith.constant dense<0.000000e+00> : vector<8x128xf32>
    %451 = tpu.matmul %448, %450, %cst_104 {dimension_numbers = #tpu.dot_dimension_numbers<[1], [0], [0], [1], [0, 0, 1, 1], [], []>} : vector<8x256xbf16>, vector<256x128xbf16>, vector<8x128xf32> -> vector<8x128xf32>
    %452 = vector.broadcast %405 : vector<1x128xf32> to vector<8x128xf32>
    %453 = arith.addf %451, %452 : vector<8x128xf32>
    %454 = arith.addf %439, %453 : vector<8x128xf32>
    %cst_105 = arith.constant dense<0.000000e+00> : vector<8xf32>
    %455 = vector.multi_reduction <add>, %454, %cst_105 [1] : vector<8x128xf32> to vector<8xf32>
    %456 = vector.shape_cast %455 : vector<8xf32> to vector<8x1xf32>
    %cst_106 = arith.constant 1.280000e+02 : f32
    %457 = vector.broadcast %cst_106 : f32 to vector<8x1xf32>
    %458 = arith.divf %456, %457 : vector<8x1xf32>
    %459 = vector.broadcast %458 : vector<8x1xf32> to vector<8x128xf32>
    %460 = arith.subf %454, %459 : vector<8x128xf32>
    %461 = arith.mulf %460, %460 : vector<8x128xf32>
    %cst_107 = arith.constant dense<0.000000e+00> : vector<8xf32>
    %462 = vector.multi_reduction <add>, %461, %cst_107 [1] : vector<8x128xf32> to vector<8xf32>
    %463 = vector.shape_cast %462 : vector<8xf32> to vector<8x1xf32>
    %cst_108 = arith.constant 1.280000e+02 : f32
    %464 = vector.broadcast %cst_108 : f32 to vector<8x1xf32>
    %465 = arith.divf %463, %464 : vector<8x1xf32>
    %466 = vector.broadcast %458 : vector<8x1xf32> to vector<8x128xf32>
    %467 = arith.subf %454, %466 : vector<8x128xf32>
    %cst_109 = arith.constant 9.99999974E-6 : f32
    %468 = vector.broadcast %cst_109 : f32 to vector<8x1xf32>
    %469 = arith.addf %465, %468 : vector<8x1xf32>
    %470 = math.rsqrt %469 : vector<8x1xf32>
    %471 = vector.broadcast %470 : vector<8x1xf32> to vector<8x128xf32>
    %472 = arith.mulf %467, %471 : vector<8x128xf32>
    %473 = vector.broadcast %408 : vector<1x128xf32> to vector<8x128xf32>
    %474 = arith.mulf %472, %473 : vector<8x128xf32>
    %475 = vector.broadcast %409 : vector<1x128xf32> to vector<8x128xf32>
    %476 = arith.addf %474, %475 : vector<8x128xf32>
    %477 = arith.truncf %476 : vector<8x128xf32> to vector<8x128xbf16>
    %cst_110 = arith.constant dense<0.000000e+00> : vector<8x384xf32>
    %478 = tpu.matmul %477, %6, %cst_110 {dimension_numbers = #tpu.dot_dimension_numbers<[1], [0], [0], [1], [0, 0, 1, 1], [], []>} : vector<8x128xbf16>, vector<128x384xbf16>, vector<8x384xf32> -> vector<8x384xf32>
    %479 = vector.extract_strided_slice %478 {offsets = [0, 0], sizes = [1, 384], strides = [1, 1]} : vector<8x384xf32> to vector<1x384xf32>
    %480 = vector.extract_strided_slice %479 {offsets = [0, 0], sizes = [1, 128], strides = [1, 1]} : vector<1x384xf32> to vector<1x128xf32>
    %481 = arith.addf %480, %12 : vector<1x128xf32>
    %482 = arith.addf %481, %15 : vector<1x128xf32>
    %483 = arith.negf %482 : vector<1x128xf32>
    %484 = math.exp %483 : vector<1x128xf32>
    %cst_111 = arith.constant 1.000000e+00 : f32
    %485 = vector.broadcast %cst_111 : f32 to vector<1x128xf32>
    %486 = arith.addf %485, %484 : vector<1x128xf32>
    %487 = arith.divf %485, %486 : vector<1x128xf32>
    %488 = vector.extract_strided_slice %479 {offsets = [0, 128], sizes = [1, 128], strides = [1, 1]} : vector<1x384xf32> to vector<1x128xf32>
    %489 = arith.addf %488, %13 : vector<1x128xf32>
    %490 = arith.addf %489, %16 : vector<1x128xf32>
    %491 = arith.negf %490 : vector<1x128xf32>
    %492 = math.exp %491 : vector<1x128xf32>
    %cst_112 = arith.constant 1.000000e+00 : f32
    %493 = vector.broadcast %cst_112 : f32 to vector<1x128xf32>
    %494 = arith.addf %493, %492 : vector<1x128xf32>
    %495 = arith.divf %493, %494 : vector<1x128xf32>
    %496 = vector.extract_strided_slice %479 {offsets = [0, 256], sizes = [1, 128], strides = [1, 1]} : vector<1x384xf32> to vector<1x128xf32>
    %497 = arith.addf %496, %14 : vector<1x128xf32>
    %498 = arith.mulf %487, %17 : vector<1x128xf32>
    %499 = arith.addf %497, %498 : vector<1x128xf32>
    %500 = math.tanh %499 : vector<1x128xf32>
    %cst_113 = arith.constant 1.000000e+00 : f32
    %501 = vector.broadcast %cst_113 : f32 to vector<1x128xf32>
    %502 = arith.subf %501, %495 : vector<1x128xf32>
    %503 = arith.mulf %502, %500 : vector<1x128xf32>
    %504 = vector.extract_strided_slice %478 {offsets = [1, 0], sizes = [1, 384], strides = [1, 1]} : vector<8x384xf32> to vector<1x384xf32>
    %505 = arith.truncf %503 : vector<1x128xf32> to vector<1x128xbf16>
    %cst_114 = arith.constant dense<0.000000e+00> : vector<1x384xf32>
    %506 = tpu.matmul %505, %7, %cst_114 {dimension_numbers = #tpu.dot_dimension_numbers<[1], [0], [0], [1], [0, 0, 1, 1], [], []>} : vector<1x128xbf16>, vector<128x384xbf16>, vector<1x384xf32> -> vector<1x384xf32>
    %507 = vector.extract_strided_slice %506 {offsets = [0, 0], sizes = [1, 128], strides = [1, 1]} : vector<1x384xf32> to vector<1x128xf32>
    %508 = arith.addf %507, %15 : vector<1x128xf32>
    %509 = vector.extract_strided_slice %506 {offsets = [0, 128], sizes = [1, 128], strides = [1, 1]} : vector<1x384xf32> to vector<1x128xf32>
    %510 = arith.addf %509, %16 : vector<1x128xf32>
    %511 = vector.extract_strided_slice %506 {offsets = [0, 256], sizes = [1, 128], strides = [1, 1]} : vector<1x384xf32> to vector<1x128xf32>
    %512 = arith.addf %511, %17 : vector<1x128xf32>
    %513 = vector.extract_strided_slice %504 {offsets = [0, 0], sizes = [1, 128], strides = [1, 1]} : vector<1x384xf32> to vector<1x128xf32>
    %514 = arith.addf %513, %12 : vector<1x128xf32>
    %515 = arith.addf %514, %508 : vector<1x128xf32>
    %516 = arith.negf %515 : vector<1x128xf32>
    %517 = math.exp %516 : vector<1x128xf32>
    %cst_115 = arith.constant 1.000000e+00 : f32
    %518 = vector.broadcast %cst_115 : f32 to vector<1x128xf32>
    %519 = arith.addf %518, %517 : vector<1x128xf32>
    %520 = arith.divf %518, %519 : vector<1x128xf32>
    %521 = vector.extract_strided_slice %504 {offsets = [0, 128], sizes = [1, 128], strides = [1, 1]} : vector<1x384xf32> to vector<1x128xf32>
    %522 = arith.addf %521, %13 : vector<1x128xf32>
    %523 = arith.addf %522, %510 : vector<1x128xf32>
    %524 = arith.negf %523 : vector<1x128xf32>
    %525 = math.exp %524 : vector<1x128xf32>
    %cst_116 = arith.constant 1.000000e+00 : f32
    %526 = vector.broadcast %cst_116 : f32 to vector<1x128xf32>
    %527 = arith.addf %526, %525 : vector<1x128xf32>
    %528 = arith.divf %526, %527 : vector<1x128xf32>
    %529 = vector.extract_strided_slice %504 {offsets = [0, 256], sizes = [1, 128], strides = [1, 1]} : vector<1x384xf32> to vector<1x128xf32>
    %530 = arith.addf %529, %14 : vector<1x128xf32>
    %531 = arith.mulf %520, %512 : vector<1x128xf32>
    %532 = arith.addf %530, %531 : vector<1x128xf32>
    %533 = math.tanh %532 : vector<1x128xf32>
    %cst_117 = arith.constant 1.000000e+00 : f32
    %534 = vector.broadcast %cst_117 : f32 to vector<1x128xf32>
    %535 = arith.subf %534, %528 : vector<1x128xf32>
    %536 = arith.mulf %535, %533 : vector<1x128xf32>
    %537 = arith.mulf %528, %503 : vector<1x128xf32>
    %538 = arith.addf %536, %537 : vector<1x128xf32>
    %539 = vector.extract_strided_slice %478 {offsets = [2, 0], sizes = [1, 384], strides = [1, 1]} : vector<8x384xf32> to vector<1x384xf32>
    %540 = arith.truncf %538 : vector<1x128xf32> to vector<1x128xbf16>
    %cst_118 = arith.constant dense<0.000000e+00> : vector<1x384xf32>
    %541 = tpu.matmul %540, %7, %cst_118 {dimension_numbers = #tpu.dot_dimension_numbers<[1], [0], [0], [1], [0, 0, 1, 1], [], []>} : vector<1x128xbf16>, vector<128x384xbf16>, vector<1x384xf32> -> vector<1x384xf32>
    %542 = vector.extract_strided_slice %541 {offsets = [0, 0], sizes = [1, 128], strides = [1, 1]} : vector<1x384xf32> to vector<1x128xf32>
    %543 = arith.addf %542, %15 : vector<1x128xf32>
    %544 = vector.extract_strided_slice %541 {offsets = [0, 128], sizes = [1, 128], strides = [1, 1]} : vector<1x384xf32> to vector<1x128xf32>
    %545 = arith.addf %544, %16 : vector<1x128xf32>
    %546 = vector.extract_strided_slice %541 {offsets = [0, 256], sizes = [1, 128], strides = [1, 1]} : vector<1x384xf32> to vector<1x128xf32>
    %547 = arith.addf %546, %17 : vector<1x128xf32>
    %548 = vector.extract_strided_slice %539 {offsets = [0, 0], sizes = [1, 128], strides = [1, 1]} : vector<1x384xf32> to vector<1x128xf32>
    %549 = arith.addf %548, %12 : vector<1x128xf32>
    %550 = arith.addf %549, %543 : vector<1x128xf32>
    %551 = arith.negf %550 : vector<1x128xf32>
    %552 = math.exp %551 : vector<1x128xf32>
    %cst_119 = arith.constant 1.000000e+00 : f32
    %553 = vector.broadcast %cst_119 : f32 to vector<1x128xf32>
    %554 = arith.addf %553, %552 : vector<1x128xf32>
    %555 = arith.divf %553, %554 : vector<1x128xf32>
    %556 = vector.extract_strided_slice %539 {offsets = [0, 128], sizes = [1, 128], strides = [1, 1]} : vector<1x384xf32> to vector<1x128xf32>
    %557 = arith.addf %556, %13 : vector<1x128xf32>
    %558 = arith.addf %557, %545 : vector<1x128xf32>
    %559 = arith.negf %558 : vector<1x128xf32>
    %560 = math.exp %559 : vector<1x128xf32>
    %cst_120 = arith.constant 1.000000e+00 : f32
    %561 = vector.broadcast %cst_120 : f32 to vector<1x128xf32>
    %562 = arith.addf %561, %560 : vector<1x128xf32>
    %563 = arith.divf %561, %562 : vector<1x128xf32>
    %564 = vector.extract_strided_slice %539 {offsets = [0, 256], sizes = [1, 128], strides = [1, 1]} : vector<1x384xf32> to vector<1x128xf32>
    %565 = arith.addf %564, %14 : vector<1x128xf32>
    %566 = arith.mulf %555, %547 : vector<1x128xf32>
    %567 = arith.addf %565, %566 : vector<1x128xf32>
    %568 = math.tanh %567 : vector<1x128xf32>
    %cst_121 = arith.constant 1.000000e+00 : f32
    %569 = vector.broadcast %cst_121 : f32 to vector<1x128xf32>
    %570 = arith.subf %569, %563 : vector<1x128xf32>
    %571 = arith.mulf %570, %568 : vector<1x128xf32>
    %572 = arith.mulf %563, %538 : vector<1x128xf32>
    %573 = arith.addf %571, %572 : vector<1x128xf32>
    %574 = vector.extract_strided_slice %478 {offsets = [3, 0], sizes = [1, 384], strides = [1, 1]} : vector<8x384xf32> to vector<1x384xf32>
    %575 = arith.truncf %573 : vector<1x128xf32> to vector<1x128xbf16>
    %cst_122 = arith.constant dense<0.000000e+00> : vector<1x384xf32>
    %576 = tpu.matmul %575, %7, %cst_122 {dimension_numbers = #tpu.dot_dimension_numbers<[1], [0], [0], [1], [0, 0, 1, 1], [], []>} : vector<1x128xbf16>, vector<128x384xbf16>, vector<1x384xf32> -> vector<1x384xf32>
    %577 = vector.extract_strided_slice %576 {offsets = [0, 0], sizes = [1, 128], strides = [1, 1]} : vector<1x384xf32> to vector<1x128xf32>
    %578 = arith.addf %577, %15 : vector<1x128xf32>
    %579 = vector.extract_strided_slice %576 {offsets = [0, 128], sizes = [1, 128], strides = [1, 1]} : vector<1x384xf32> to vector<1x128xf32>
    %580 = arith.addf %579, %16 : vector<1x128xf32>
    %581 = vector.extract_strided_slice %576 {offsets = [0, 256], sizes = [1, 128], strides = [1, 1]} : vector<1x384xf32> to vector<1x128xf32>
    %582 = arith.addf %581, %17 : vector<1x128xf32>
    %583 = vector.extract_strided_slice %574 {offsets = [0, 0], sizes = [1, 128], strides = [1, 1]} : vector<1x384xf32> to vector<1x128xf32>
    %584 = arith.addf %583, %12 : vector<1x128xf32>
    %585 = arith.addf %584, %578 : vector<1x128xf32>
    %586 = arith.negf %585 : vector<1x128xf32>
    %587 = math.exp %586 : vector<1x128xf32>
    %cst_123 = arith.constant 1.000000e+00 : f32
    %588 = vector.broadcast %cst_123 : f32 to vector<1x128xf32>
    %589 = arith.addf %588, %587 : vector<1x128xf32>
    %590 = arith.divf %588, %589 : vector<1x128xf32>
    %591 = vector.extract_strided_slice %574 {offsets = [0, 128], sizes = [1, 128], strides = [1, 1]} : vector<1x384xf32> to vector<1x128xf32>
    %592 = arith.addf %591, %13 : vector<1x128xf32>
    %593 = arith.addf %592, %580 : vector<1x128xf32>
    %594 = arith.negf %593 : vector<1x128xf32>
    %595 = math.exp %594 : vector<1x128xf32>
    %cst_124 = arith.constant 1.000000e+00 : f32
    %596 = vector.broadcast %cst_124 : f32 to vector<1x128xf32>
    %597 = arith.addf %596, %595 : vector<1x128xf32>
    %598 = arith.divf %596, %597 : vector<1x128xf32>
    %599 = vector.extract_strided_slice %574 {offsets = [0, 256], sizes = [1, 128], strides = [1, 1]} : vector<1x384xf32> to vector<1x128xf32>
    %600 = arith.addf %599, %14 : vector<1x128xf32>
    %601 = arith.mulf %590, %582 : vector<1x128xf32>
    %602 = arith.addf %600, %601 : vector<1x128xf32>
    %603 = math.tanh %602 : vector<1x128xf32>
    %cst_125 = arith.constant 1.000000e+00 : f32
    %604 = vector.broadcast %cst_125 : f32 to vector<1x128xf32>
    %605 = arith.subf %604, %598 : vector<1x128xf32>
    %606 = arith.mulf %605, %603 : vector<1x128xf32>
    %607 = arith.mulf %598, %573 : vector<1x128xf32>
    %608 = arith.addf %606, %607 : vector<1x128xf32>
    %609 = vector.extract_strided_slice %478 {offsets = [4, 0], sizes = [1, 384], strides = [1, 1]} : vector<8x384xf32> to vector<1x384xf32>
    %610 = arith.truncf %608 : vector<1x128xf32> to vector<1x128xbf16>
    %cst_126 = arith.constant dense<0.000000e+00> : vector<1x384xf32>
    %611 = tpu.matmul %610, %7, %cst_126 {dimension_numbers = #tpu.dot_dimension_numbers<[1], [0], [0], [1], [0, 0, 1, 1], [], []>} : vector<1x128xbf16>, vector<128x384xbf16>, vector<1x384xf32> -> vector<1x384xf32>
    %612 = vector.extract_strided_slice %611 {offsets = [0, 0], sizes = [1, 128], strides = [1, 1]} : vector<1x384xf32> to vector<1x128xf32>
    %613 = arith.addf %612, %15 : vector<1x128xf32>
    %614 = vector.extract_strided_slice %611 {offsets = [0, 128], sizes = [1, 128], strides = [1, 1]} : vector<1x384xf32> to vector<1x128xf32>
    %615 = arith.addf %614, %16 : vector<1x128xf32>
    %616 = vector.extract_strided_slice %611 {offsets = [0, 256], sizes = [1, 128], strides = [1, 1]} : vector<1x384xf32> to vector<1x128xf32>
    %617 = arith.addf %616, %17 : vector<1x128xf32>
    %618 = vector.extract_strided_slice %609 {offsets = [0, 0], sizes = [1, 128], strides = [1, 1]} : vector<1x384xf32> to vector<1x128xf32>
    %619 = arith.addf %618, %12 : vector<1x128xf32>
    %620 = arith.addf %619, %613 : vector<1x128xf32>
    %621 = arith.negf %620 : vector<1x128xf32>
    %622 = math.exp %621 : vector<1x128xf32>
    %cst_127 = arith.constant 1.000000e+00 : f32
    %623 = vector.broadcast %cst_127 : f32 to vector<1x128xf32>
    %624 = arith.addf %623, %622 : vector<1x128xf32>
    %625 = arith.divf %623, %624 : vector<1x128xf32>
    %626 = vector.extract_strided_slice %609 {offsets = [0, 128], sizes = [1, 128], strides = [1, 1]} : vector<1x384xf32> to vector<1x128xf32>
    %627 = arith.addf %626, %13 : vector<1x128xf32>
    %628 = arith.addf %627, %615 : vector<1x128xf32>
    %629 = arith.negf %628 : vector<1x128xf32>
    %630 = math.exp %629 : vector<1x128xf32>
    %cst_128 = arith.constant 1.000000e+00 : f32
    %631 = vector.broadcast %cst_128 : f32 to vector<1x128xf32>
    %632 = arith.addf %631, %630 : vector<1x128xf32>
    %633 = arith.divf %631, %632 : vector<1x128xf32>
    %634 = vector.extract_strided_slice %609 {offsets = [0, 256], sizes = [1, 128], strides = [1, 1]} : vector<1x384xf32> to vector<1x128xf32>
    %635 = arith.addf %634, %14 : vector<1x128xf32>
    %636 = arith.mulf %625, %617 : vector<1x128xf32>
    %637 = arith.addf %635, %636 : vector<1x128xf32>
    %638 = math.tanh %637 : vector<1x128xf32>
    %cst_129 = arith.constant 1.000000e+00 : f32
    %639 = vector.broadcast %cst_129 : f32 to vector<1x128xf32>
    %640 = arith.subf %639, %633 : vector<1x128xf32>
    %641 = arith.mulf %640, %638 : vector<1x128xf32>
    %642 = arith.mulf %633, %608 : vector<1x128xf32>
    %643 = arith.addf %641, %642 : vector<1x128xf32>
    %644 = vector.extract_strided_slice %478 {offsets = [5, 0], sizes = [1, 384], strides = [1, 1]} : vector<8x384xf32> to vector<1x384xf32>
    %645 = arith.truncf %643 : vector<1x128xf32> to vector<1x128xbf16>
    %cst_130 = arith.constant dense<0.000000e+00> : vector<1x384xf32>
    %646 = tpu.matmul %645, %7, %cst_130 {dimension_numbers = #tpu.dot_dimension_numbers<[1], [0], [0], [1], [0, 0, 1, 1], [], []>} : vector<1x128xbf16>, vector<128x384xbf16>, vector<1x384xf32> -> vector<1x384xf32>
    %647 = vector.extract_strided_slice %646 {offsets = [0, 0], sizes = [1, 128], strides = [1, 1]} : vector<1x384xf32> to vector<1x128xf32>
    %648 = arith.addf %647, %15 : vector<1x128xf32>
    %649 = vector.extract_strided_slice %646 {offsets = [0, 128], sizes = [1, 128], strides = [1, 1]} : vector<1x384xf32> to vector<1x128xf32>
    %650 = arith.addf %649, %16 : vector<1x128xf32>
    %651 = vector.extract_strided_slice %646 {offsets = [0, 256], sizes = [1, 128], strides = [1, 1]} : vector<1x384xf32> to vector<1x128xf32>
    %652 = arith.addf %651, %17 : vector<1x128xf32>
    %653 = vector.extract_strided_slice %644 {offsets = [0, 0], sizes = [1, 128], strides = [1, 1]} : vector<1x384xf32> to vector<1x128xf32>
    %654 = arith.addf %653, %12 : vector<1x128xf32>
    %655 = arith.addf %654, %648 : vector<1x128xf32>
    %656 = arith.negf %655 : vector<1x128xf32>
    %657 = math.exp %656 : vector<1x128xf32>
    %cst_131 = arith.constant 1.000000e+00 : f32
    %658 = vector.broadcast %cst_131 : f32 to vector<1x128xf32>
    %659 = arith.addf %658, %657 : vector<1x128xf32>
    %660 = arith.divf %658, %659 : vector<1x128xf32>
    %661 = vector.extract_strided_slice %644 {offsets = [0, 128], sizes = [1, 128], strides = [1, 1]} : vector<1x384xf32> to vector<1x128xf32>
    %662 = arith.addf %661, %13 : vector<1x128xf32>
    %663 = arith.addf %662, %650 : vector<1x128xf32>
    %664 = arith.negf %663 : vector<1x128xf32>
    %665 = math.exp %664 : vector<1x128xf32>
    %cst_132 = arith.constant 1.000000e+00 : f32
    %666 = vector.broadcast %cst_132 : f32 to vector<1x128xf32>
    %667 = arith.addf %666, %665 : vector<1x128xf32>
    %668 = arith.divf %666, %667 : vector<1x128xf32>
    %669 = vector.extract_strided_slice %644 {offsets = [0, 256], sizes = [1, 128], strides = [1, 1]} : vector<1x384xf32> to vector<1x128xf32>
    %670 = arith.addf %669, %14 : vector<1x128xf32>
    %671 = arith.mulf %660, %652 : vector<1x128xf32>
    %672 = arith.addf %670, %671 : vector<1x128xf32>
    %673 = math.tanh %672 : vector<1x128xf32>
    %cst_133 = arith.constant 1.000000e+00 : f32
    %674 = vector.broadcast %cst_133 : f32 to vector<1x128xf32>
    %675 = arith.subf %674, %668 : vector<1x128xf32>
    %676 = arith.mulf %675, %673 : vector<1x128xf32>
    %677 = arith.mulf %668, %643 : vector<1x128xf32>
    %678 = arith.addf %676, %677 : vector<1x128xf32>
    %679 = vector.extract_strided_slice %478 {offsets = [6, 0], sizes = [1, 384], strides = [1, 1]} : vector<8x384xf32> to vector<1x384xf32>
    %680 = arith.truncf %678 : vector<1x128xf32> to vector<1x128xbf16>
    %cst_134 = arith.constant dense<0.000000e+00> : vector<1x384xf32>
    %681 = tpu.matmul %680, %7, %cst_134 {dimension_numbers = #tpu.dot_dimension_numbers<[1], [0], [0], [1], [0, 0, 1, 1], [], []>} : vector<1x128xbf16>, vector<128x384xbf16>, vector<1x384xf32> -> vector<1x384xf32>
    %682 = vector.extract_strided_slice %681 {offsets = [0, 0], sizes = [1, 128], strides = [1, 1]} : vector<1x384xf32> to vector<1x128xf32>
    %683 = arith.addf %682, %15 : vector<1x128xf32>
    %684 = vector.extract_strided_slice %681 {offsets = [0, 128], sizes = [1, 128], strides = [1, 1]} : vector<1x384xf32> to vector<1x128xf32>
    %685 = arith.addf %684, %16 : vector<1x128xf32>
    %686 = vector.extract_strided_slice %681 {offsets = [0, 256], sizes = [1, 128], strides = [1, 1]} : vector<1x384xf32> to vector<1x128xf32>
    %687 = arith.addf %686, %17 : vector<1x128xf32>
    %688 = vector.extract_strided_slice %679 {offsets = [0, 0], sizes = [1, 128], strides = [1, 1]} : vector<1x384xf32> to vector<1x128xf32>
    %689 = arith.addf %688, %12 : vector<1x128xf32>
    %690 = arith.addf %689, %683 : vector<1x128xf32>
    %691 = arith.negf %690 : vector<1x128xf32>
    %692 = math.exp %691 : vector<1x128xf32>
    %cst_135 = arith.constant 1.000000e+00 : f32
    %693 = vector.broadcast %cst_135 : f32 to vector<1x128xf32>
    %694 = arith.addf %693, %692 : vector<1x128xf32>
    %695 = arith.divf %693, %694 : vector<1x128xf32>
    %696 = vector.extract_strided_slice %679 {offsets = [0, 128], sizes = [1, 128], strides = [1, 1]} : vector<1x384xf32> to vector<1x128xf32>
    %697 = arith.addf %696, %13 : vector<1x128xf32>
    %698 = arith.addf %697, %685 : vector<1x128xf32>
    %699 = arith.negf %698 : vector<1x128xf32>
    %700 = math.exp %699 : vector<1x128xf32>
    %cst_136 = arith.constant 1.000000e+00 : f32
    %701 = vector.broadcast %cst_136 : f32 to vector<1x128xf32>
    %702 = arith.addf %701, %700 : vector<1x128xf32>
    %703 = arith.divf %701, %702 : vector<1x128xf32>
    %704 = vector.extract_strided_slice %679 {offsets = [0, 256], sizes = [1, 128], strides = [1, 1]} : vector<1x384xf32> to vector<1x128xf32>
    %705 = arith.addf %704, %14 : vector<1x128xf32>
    %706 = arith.mulf %695, %687 : vector<1x128xf32>
    %707 = arith.addf %705, %706 : vector<1x128xf32>
    %708 = math.tanh %707 : vector<1x128xf32>
    %cst_137 = arith.constant 1.000000e+00 : f32
    %709 = vector.broadcast %cst_137 : f32 to vector<1x128xf32>
    %710 = arith.subf %709, %703 : vector<1x128xf32>
    %711 = arith.mulf %710, %708 : vector<1x128xf32>
    %712 = arith.mulf %703, %678 : vector<1x128xf32>
    %713 = arith.addf %711, %712 : vector<1x128xf32>
    %714 = vector.extract_strided_slice %478 {offsets = [7, 0], sizes = [1, 384], strides = [1, 1]} : vector<8x384xf32> to vector<1x384xf32>
    %715 = arith.truncf %713 : vector<1x128xf32> to vector<1x128xbf16>
    %cst_138 = arith.constant dense<0.000000e+00> : vector<1x384xf32>
    %716 = tpu.matmul %715, %7, %cst_138 {dimension_numbers = #tpu.dot_dimension_numbers<[1], [0], [0], [1], [0, 0, 1, 1], [], []>} : vector<1x128xbf16>, vector<128x384xbf16>, vector<1x384xf32> -> vector<1x384xf32>
    %717 = vector.extract_strided_slice %716 {offsets = [0, 0], sizes = [1, 128], strides = [1, 1]} : vector<1x384xf32> to vector<1x128xf32>
    %718 = arith.addf %717, %15 : vector<1x128xf32>
    %719 = vector.extract_strided_slice %716 {offsets = [0, 128], sizes = [1, 128], strides = [1, 1]} : vector<1x384xf32> to vector<1x128xf32>
    %720 = arith.addf %719, %16 : vector<1x128xf32>
    %721 = vector.extract_strided_slice %716 {offsets = [0, 256], sizes = [1, 128], strides = [1, 1]} : vector<1x384xf32> to vector<1x128xf32>
    %722 = arith.addf %721, %17 : vector<1x128xf32>
    %723 = vector.extract_strided_slice %714 {offsets = [0, 0], sizes = [1, 128], strides = [1, 1]} : vector<1x384xf32> to vector<1x128xf32>
    %724 = arith.addf %723, %12 : vector<1x128xf32>
    %725 = arith.addf %724, %718 : vector<1x128xf32>
    %726 = arith.negf %725 : vector<1x128xf32>
    %727 = math.exp %726 : vector<1x128xf32>
    %cst_139 = arith.constant 1.000000e+00 : f32
    %728 = vector.broadcast %cst_139 : f32 to vector<1x128xf32>
    %729 = arith.addf %728, %727 : vector<1x128xf32>
    %730 = arith.divf %728, %729 : vector<1x128xf32>
    %731 = vector.extract_strided_slice %714 {offsets = [0, 128], sizes = [1, 128], strides = [1, 1]} : vector<1x384xf32> to vector<1x128xf32>
    %732 = arith.addf %731, %13 : vector<1x128xf32>
    %733 = arith.addf %732, %720 : vector<1x128xf32>
    %734 = arith.negf %733 : vector<1x128xf32>
    %735 = math.exp %734 : vector<1x128xf32>
    %cst_140 = arith.constant 1.000000e+00 : f32
    %736 = vector.broadcast %cst_140 : f32 to vector<1x128xf32>
    %737 = arith.addf %736, %735 : vector<1x128xf32>
    %738 = arith.divf %736, %737 : vector<1x128xf32>
    %739 = vector.extract_strided_slice %714 {offsets = [0, 256], sizes = [1, 128], strides = [1, 1]} : vector<1x384xf32> to vector<1x128xf32>
    %740 = arith.addf %739, %14 : vector<1x128xf32>
    %741 = arith.mulf %730, %722 : vector<1x128xf32>
    %742 = arith.addf %740, %741 : vector<1x128xf32>
    %743 = math.tanh %742 : vector<1x128xf32>
    %cst_141 = arith.constant 1.000000e+00 : f32
    %744 = vector.broadcast %cst_141 : f32 to vector<1x128xf32>
    %745 = arith.subf %744, %738 : vector<1x128xf32>
    %746 = arith.mulf %745, %743 : vector<1x128xf32>
    %747 = arith.mulf %738, %713 : vector<1x128xf32>
    %748 = arith.addf %746, %747 : vector<1x128xf32>
    %749 = tpu.concatenate %503, %538, %573, %608, %643, %678, %713, %748 in 0 : vector<1x128xf32>, vector<1x128xf32>, vector<1x128xf32>, vector<1x128xf32>, vector<1x128xf32>, vector<1x128xf32>, vector<1x128xf32>, vector<1x128xf32> -> vector<8x128xf32>
    %750 = arith.truncf %749 : vector<8x128xf32> to vector<8x128xbf16>
    %cst_142 = arith.constant dense<0.000000e+00> : vector<8x128xf32>
    %751 = tpu.matmul %750, %8, %cst_142 {dimension_numbers = #tpu.dot_dimension_numbers<[1], [0], [0], [1], [0, 0, 1, 1], [], []>} : vector<8x128xbf16>, vector<128x128xbf16>, vector<8x128xf32> -> vector<8x128xf32>
    %752 = vector.broadcast %11 : vector<1x128xf32> to vector<8x128xf32>
    %753 = arith.addf %751, %752 : vector<8x128xf32>
    %c0_143 = arith.constant 0 : index
    %c0_144 = arith.constant 0 : index
    %754 = vector.load %arg10[%c0_143, %c0_144] : memref<8x128xf32, #tpu.memory_space<vmem>>, vector<8x128xf32>
    tpu.vector_store %arg10[%c0_143, %c0_144], %753 {strides = array<i32>} : memref<8x128xf32, #tpu.memory_space<vmem>>, vector<8x128xf32>,
    return
  }
}

</mosaic_0001>

<llo_original>
// kernel: forward.1
$region0: #{forward.1}
  #allocation0 [shape = 'u32[]', space=smem, size = 0x4, offset = 0x4, fixed_abs, tag = 'smem constant byte address 0x4 - core index']
  #allocation1 [shape = 'u32[144,128]{1,0:T(1,128)}', space=vmem, size = 0x12000, scoped, tag = 'internal scratch']
  %s0 = inlined_call_operand.vmem [shape: bf16[2048,128], index: 0, kind: input, shape index: {}]
  %s1 = inlined_call_operand.vmem [shape: bf16[128,128], index: 1, kind: input, shape index: {}]
  %s2 = inlined_call_operand.vmem [shape: bf16[6,128,128], index: 2, kind: input, shape index: {}]
  %s3 = inlined_call_operand.vmem [shape: bf16[6,128,256], index: 3, kind: input, shape index: {}]
  %s4 = inlined_call_operand.vmem [shape: bf16[6,256,128], index: 4, kind: input, shape index: {}]
  %s5 = inlined_call_operand.vmem [shape: f32[6,8,256], index: 5, kind: input, shape index: {}]
  %s6 = inlined_call_operand.vmem [shape: bf16[128,384], index: 6, kind: input, shape index: {}]
  %s7 = inlined_call_operand.vmem [shape: bf16[128,384], index: 7, kind: input, shape index: {}]
  %s8 = inlined_call_operand.vmem [shape: bf16[128,128], index: 8, kind: input, shape index: {}]
  %s9 = inlined_call_operand.vmem [shape: f32[8,128], index: 9, kind: input, shape index: {}]
  %s10 = inlined_call_operand.hbm [shape: f32[8,128], index: 10, kind: output, shape index: {}]
  %s11 = sld [smem:[#allocation0]]
  $region50: #{forward.1} parent=0
    _
  %s13 = ssub.s32 1, %s11
  %s14 = scalar_select 0, %s13, %s11
  $region1: #{forward.1} parent=0
    #allocation2 [shape = 'u8[4096]{0}', space=vmem, size = 0x1000, scoped, tag = 'output window, operand 0, single buffered']
    #allocation3 [shape = 's32[1]{0}', space=sflag, size = 0x4, scoped, tag = 'scoped memory for forward.1']
    %15 = vsyncpa [#allocation3], 0
    // Predicated region
    $region2: #{forward.1} parent=1 // pred_check
      _
    $region3: #{forward.1} parent=1 // pred_check_branch
      %17 = sbr.rel (0) target = $region5
    $region4: #{forward.1} parent=1 // pred_region
      _
    $region5: #{forward.1} parent=1 // pred_fallthru
      _
    // Predicated region
    $region6: #{forward.1} parent=1 // pred_check
      _
    $region7: #{forward.1} parent=1 // pred_check_branch
      %19 = sbr.rel (0) target = $region9
    $region8: #{forward.1} parent=1 // pred_region
      _
    $region9: #{forward.1} parent=1 // pred_fallthru
      _
    // Predicated region
    $region10: #{forward.1} parent=1 // pred_check
      _
    $region11: #{forward.1} parent=1 // pred_check_branch
      %21 = sbr.rel (0) target = $region13
    $region12: #{forward.1} parent=1 // pred_region
      _
    $region13: #{forward.1} parent=1 // pred_fallthru
      _
    // Predicated region
    $region14: #{forward.1} parent=1 // pred_check
      _
    $region15: #{forward.1} parent=1 // pred_check_branch
      %23 = sbr.rel (0) target = $region17
    $region16: #{forward.1} parent=1 // pred_region
      _
    $region17: #{forward.1} parent=1 // pred_fallthru
      _
    // Predicated region
    $region18: #{forward.1} parent=1 // pred_check
      _
    $region19: #{forward.1} parent=1 // pred_check_branch
      %25 = sbr.rel (0) target = $region21
    $region20: #{forward.1} parent=1 // pred_region
      _
    $region21: #{forward.1} parent=1 // pred_fallthru
      _
    // Predicated region
    $region22: #{forward.1} parent=1 // pred_check
      _
    $region23: #{forward.1} parent=1 // pred_check_branch
      %27 = sbr.rel (0) target = $region25
    $region24: #{forward.1} parent=1 // pred_region
      _
    $region25: #{forward.1} parent=1 // pred_fallthru
      _
    // Predicated region
    $region26: #{forward.1} parent=1 // pred_check
      _
    $region27: #{forward.1} parent=1 // pred_check_branch
      %29 = sbr.rel (0) target = $region29
    $region28: #{forward.1} parent=1 // pred_region
      _
    $region29: #{forward.1} parent=1 // pred_fallthru
      _
    // Predicated region
    $region30: #{forward.1} parent=1 // pred_check
      _
    $region31: #{forward.1} parent=1 // pred_check_branch
      %31 = sbr.rel (0) target = $region33
    $region32: #{forward.1} parent=1 // pred_region
      _
    $region33: #{forward.1} parent=1 // pred_fallthru
      _
    // Predicated region
    $region34: #{forward.1} parent=1 // pred_check
      _
    $region35: #{forward.1} parent=1 // pred_check_branch
      %33 = sbr.rel (0) target = $region37
    $region36: #{forward.1} parent=1 // pred_region
      _
    $region37: #{forward.1} parent=1 // pred_fallthru
      _
    // Predicated region
    $region38: #{forward.1} parent=1 // pred_check
      _
    $region39: #{forward.1} parent=1 // pred_check_branch
      %35 = sbr.rel (0) target = $region41
    $region40: #{forward.1} parent=1 // pred_region
      _
    $region41: #{forward.1} parent=1 // pred_fallthru
      _
    %v37 = vld [vmem:[%s0] sm:$0xf]
    %v38 = vld [vmem:[%s0 + $0x4] sm:$0xf]
    %v39 = vld [vmem:[%s0 + $0x8] sm:$0xf]
    %v40 = vld [vmem:[%s0 + $0xc] sm:$0xf]
    %v41 = vld [vmem:[%s0 + $0x10] sm:$0xf]
    %v42 = vld [vmem:[%s0 + $0x14] sm:$0xf]
    %v43 = vld [vmem:[%s0 + $0x18] sm:$0xf]
    %v44 = vld [vmem:[%s0 + $0x1c] sm:$0xf]
    %v45 = vld [vmem:[%s0 + $0x20] sm:$0xf]
    %v46 = vld [vmem:[%s0 + $0x24] sm:$0xf]
    %v47 = vld [vmem:[%s0 + $0x28] sm:$0xf]
    %v48 = vld [vmem:[%s0 + $0x2c] sm:$0xf]
    %v49 = vld [vmem:[%s0 + $0x30] sm:$0xf]
    %v50 = vld [vmem:[%s0 + $0x34] sm:$0xf]
    %v51 = vld [vmem:[%s0 + $0x38] sm:$0xf]
    %v52 = vld [vmem:[%s0 + $0x3c] sm:$0xf]
    %v53 = vld [vmem:[%s0 + $0x40] sm:$0xf]
    %v54 = vld [vmem:[%s0 + $0x44] sm:$0xf]
    %v55 = vld [vmem:[%s0 + $0x48] sm:$0xf]
    %v56 = vld [vmem:[%s0 + $0x4c] sm:$0xf]
    %v57 = vld [vmem:[%s0 + $0x50] sm:$0xf]
    %v58 = vld [vmem:[%s0 + $0x54] sm:$0xf]
    %v59 = vld [vmem:[%s0 + $0x58] sm:$0xf]
    %v60 = vld [vmem:[%s0 + $0x5c] sm:$0xf]
    %v61 = vld [vmem:[%s0 + $0x60] sm:$0xf]
    %v62 = vld [vmem:[%s0 + $0x64] sm:$0xf]
    %v63 = vld [vmem:[%s0 + $0x68] sm:$0xf]
    %v64 = vld [vmem:[%s0 + $0x6c] sm:$0xf]
    %v65 = vld [vmem:[%s0 + $0x70] sm:$0xf]
    %v66 = vld [vmem:[%s0 + $0x74] sm:$0xf]
    %v67 = vld [vmem:[%s0 + $0x78] sm:$0xf]
    %v68 = vld [vmem:[%s0 + $0x7c] sm:$0xf]
    %v69 = vld [vmem:[%s0 + $0x80] sm:$0xf]
    %v70 = vld [vmem:[%s0 + $0x84] sm:$0xf]
    %v71 = vld [vmem:[%s0 + $0x88] sm:$0xf]
    %v72 = vld [vmem:[%s0 + $0x8c] sm:$0xf]
    %v73 = vld [vmem:[%s0 + $0x90] sm:$0xf]
    %v74 = vld [vmem:[%s0 + $0x94] sm:$0xf]
    %v75 = vld [vmem:[%s0 + $0x98] sm:$0xf]
    %v76 = vld [vmem:[%s0 + $0x9c] sm:$0xf]
    %v77 = vld [vmem:[%s0 + $0xa0] sm:$0xf]
    %v78 = vld [vmem:[%s0 + $0xa4] sm:$0xf]
    %v79 = vld [vmem:[%s0 + $0xa8] sm:$0xf]
    %v80 = vld [vmem:[%s0 + $0xac] sm:$0xf]
    %v81 = vld [vmem:[%s0 + $0xb0] sm:$0xf]
    %v82 = vld [vmem:[%s0 + $0xb4] sm:$0xf]
    %v83 = vld [vmem:[%s0 + $0xb8] sm:$0xf]
    %v84 = vld [vmem:[%s0 + $0xbc] sm:$0xf]
    %v85 = vld [vmem:[%s0 + $0xc0] sm:$0xf]
    %v86 = vld [vmem:[%s0 + $0xc4] sm:$0xf]
    %v87 = vld [vmem:[%s0 + $0xc8] sm:$0xf]
    %v88 = vld [vmem:[%s0 + $0xcc] sm:$0xf]
    %v89 = vld [vmem:[%s0 + $0xd0] sm:$0xf]
    %v90 = vld [vmem:[%s0 + $0xd4] sm:$0xf]
    %v91 = vld [vmem:[%s0 + $0xd8] sm:$0xf]
    %v92 = vld [vmem:[%s0 + $0xdc] sm:$0xf]
    %v93 = vld [vmem:[%s0 + $0xe0] sm:$0xf]
    %v94 = vld [vmem:[%s0 + $0xe4] sm:$0xf]
    %v95 = vld [vmem:[%s0 + $0xe8] sm:$0xf]
    %v96 = vld [vmem:[%s0 + $0xec] sm:$0xf]
    %v97 = vld [vmem:[%s0 + $0xf0] sm:$0xf]
    %v98 = vld [vmem:[%s0 + $0xf4] sm:$0xf]
    %v99 = vld [vmem:[%s0 + $0xf8] sm:$0xf]
    %v100 = vld [vmem:[%s0 + $0xfc] sm:$0xf]
    %v101 = vld [vmem:[%s0 + $0x100] sm:$0xf]
    %v102 = vld [vmem:[%s0 + $0x104] sm:$0xf]
    %v103 = vld [vmem:[%s0 + $0x108] sm:$0xf]
    %v104 = vld [vmem:[%s0 + $0x10c] sm:$0xf]
    %v105 = vld [vmem:[%s0 + $0x110] sm:$0xf]
    %v106 = vld [vmem:[%s0 + $0x114] sm:$0xf]
    %v107 = vld [vmem:[%s0 + $0x118] sm:$0xf]
    %v108 = vld [vmem:[%s0 + $0x11c] sm:$0xf]
    %v109 = vld [vmem:[%s0 + $0x120] sm:$0xf]
    %v110 = vld [vmem:[%s0 + $0x124] sm:$0xf]
    %v111 = vld [vmem:[%s0 + $0x128] sm:$0xf]
    %v112 = vld [vmem:[%s0 + $0x12c] sm:$0xf]
    %v113 = vld [vmem:[%s0 + $0x130] sm:$0xf]
    %v114 = vld [vmem:[%s0 + $0x134] sm:$0xf]
    %v115 = vld [vmem:[%s0 + $0x138] sm:$0xf]
    %v116 = vld [vmem:[%s0 + $0x13c] sm:$0xf]
    %v117 = vld [vmem:[%s0 + $0x140] sm:$0xf]
    %v118 = vld [vmem:[%s0 + $0x144] sm:$0xf]
    %v119 = vld [vmem:[%s0 + $0x148] sm:$0xf]
    %v120 = vld [vmem:[%s0 + $0x14c] sm:$0xf]
    %v121 = vld [vmem:[%s0 + $0x150] sm:$0xf]
    %v122 = vld [vmem:[%s0 + $0x154] sm:$0xf]
    %v123 = vld [vmem:[%s0 + $0x158] sm:$0xf]
    %v124 = vld [vmem:[%s0 + $0x15c] sm:$0xf]
    %v125 = vld [vmem:[%s0 + $0x160] sm:$0xf]
    %v126 = vld [vmem:[%s0 + $0x164] sm:$0xf]
    %v127 = vld [vmem:[%s0 + $0x168] sm:$0xf]
    %v128 = vld [vmem:[%s0 + $0x16c] sm:$0xf]
    %v129 = vld [vmem:[%s0 + $0x170] sm:$0xf]
    %v130 = vld [vmem:[%s0 + $0x174] sm:$0xf]
    %v131 = vld [vmem:[%s0 + $0x178] sm:$0xf]
    %v132 = vld [vmem:[%s0 + $0x17c] sm:$0xf]
    %v133 = vld [vmem:[%s0 + $0x180] sm:$0xf]
    %v134 = vld [vmem:[%s0 + $0x184] sm:$0xf]
    %v135 = vld [vmem:[%s0 + $0x188] sm:$0xf]
    %v136 = vld [vmem:[%s0 + $0x18c] sm:$0xf]
    %v137 = vld [vmem:[%s0 + $0x190] sm:$0xf]
    %v138 = vld [vmem:[%s0 + $0x194] sm:$0xf]
    %v139 = vld [vmem:[%s0 + $0x198] sm:$0xf]
    %v140 = vld [vmem:[%s0 + $0x19c] sm:$0xf]
    %v141 = vld [vmem:[%s0 + $0x1a0] sm:$0xf]
    %v142 = vld [vmem:[%s0 + $0x1a4] sm:$0xf]
    %v143 = vld [vmem:[%s0 + $0x1a8] sm:$0xf]
    %v144 = vld [vmem:[%s0 + $0x1ac] sm:$0xf]
    %v145 = vld [vmem:[%s0 + $0x1b0] sm:$0xf]
    %v146 = vld [vmem:[%s0 + $0x1b4] sm:$0xf]
    %v147 = vld [vmem:[%s0 + $0x1b8] sm:$0xf]
    %v148 = vld [vmem:[%s0 + $0x1bc] sm:$0xf]
    %v149 = vld [vmem:[%s0 + $0x1c0] sm:$0xf]
    %v150 = vld [vmem:[%s0 + $0x1c4] sm:$0xf]
    %v151 = vld [vmem:[%s0 + $0x1c8] sm:$0xf]
    %v152 = vld [vmem:[%s0 + $0x1cc] sm:$0xf]
    %v153 = vld [vmem:[%s0 + $0x1d0] sm:$0xf]
    %v154 = vld [vmem:[%s0 + $0x1d4] sm:$0xf]
    %v155 = vld [vmem:[%s0 + $0x1d8] sm:$0xf]
    %v156 = vld [vmem:[%s0 + $0x1dc] sm:$0xf]
    %v157 = vld [vmem:[%s0 + $0x1e0] sm:$0xf]
    %v158 = vld [vmem:[%s0 + $0x1e4] sm:$0xf]
    %v159 = vld [vmem:[%s0 + $0x1e8] sm:$0xf]
    %v160 = vld [vmem:[%s0 + $0x1ec] sm:$0xf]
    %v161 = vld [vmem:[%s0 + $0x1f0] sm:$0xf]
    %v162 = vld [vmem:[%s0 + $0x1f4] sm:$0xf]
    %v163 = vld [vmem:[%s0 + $0x1f8] sm:$0xf]
    %v164 = vld [vmem:[%s0 + $0x1fc] sm:$0xf]
    %v165 = vld [vmem:[%s0 + $0x200] sm:$0xf]
    %v166 = vld [vmem:[%s0 + $0x204] sm:$0xf]
    %v167 = vld [vmem:[%s0 + $0x208] sm:$0xf]
    %v168 = vld [vmem:[%s0 + $0x20c] sm:$0xf]
    %v169 = vld [vmem:[%s0 + $0x210] sm:$0xf]
    %v170 = vld [vmem:[%s0 + $0x214] sm:$0xf]
    %v171 = vld [vmem:[%s0 + $0x218] sm:$0xf]
    %v172 = vld [vmem:[%s0 + $0x21c] sm:$0xf]
    %v173 = vld [vmem:[%s0 + $0x220] sm:$0xf]
    %v174 = vld [vmem:[%s0 + $0x224] sm:$0xf]
    %v175 = vld [vmem:[%s0 + $0x228] sm:$0xf]
    %v176 = vld [vmem:[%s0 + $0x22c] sm:$0xf]
    %v177 = vld [vmem:[%s0 + $0x230] sm:$0xf]
    %v178 = vld [vmem:[%s0 + $0x234] sm:$0xf]
    %v179 = vld [vmem:[%s0 + $0x238] sm:$0xf]
    %v180 = vld [vmem:[%s0 + $0x23c] sm:$0xf]
    %v181 = vld [vmem:[%s0 + $0x240] sm:$0xf]
    %v182 = vld [vmem:[%s0 + $0x244] sm:$0xf]
    %v183 = vld [vmem:[%s0 + $0x248] sm:$0xf]
    %v184 = vld [vmem:[%s0 + $0x24c] sm:$0xf]
    %v185 = vld [vmem:[%s0 + $0x250] sm:$0xf]
    %v186 = vld [vmem:[%s0 + $0x254] sm:$0xf]
    %v187 = vld [vmem:[%s0 + $0x258] sm:$0xf]
    %v188 = vld [vmem:[%s0 + $0x25c] sm:$0xf]
    %v189 = vld [vmem:[%s0 + $0x260] sm:$0xf]
    %v190 = vld [vmem:[%s0 + $0x264] sm:$0xf]
    %v191 = vld [vmem:[%s0 + $0x268] sm:$0xf]
    %v192 = vld [vmem:[%s0 + $0x26c] sm:$0xf]
    %v193 = vld [vmem:[%s0 + $0x270] sm:$0xf]
    %v194 = vld [vmem:[%s0 + $0x274] sm:$0xf]
    %v195 = vld [vmem:[%s0 + $0x278] sm:$0xf]
    %v196 = vld [vmem:[%s0 + $0x27c] sm:$0xf]
    %v197 = vld [vmem:[%s0 + $0x280] sm:$0xf]
    %v198 = vld [vmem:[%s0 + $0x284] sm:$0xf]
    %v199 = vld [vmem:[%s0 + $0x288] sm:$0xf]
    %v200 = vld [vmem:[%s0 + $0x28c] sm:$0xf]
    %v201 = vld [vmem:[%s0 + $0x290] sm:$0xf]
    %v202 = vld [vmem:[%s0 + $0x294] sm:$0xf]
    %v203 = vld [vmem:[%s0 + $0x298] sm:$0xf]
    %v204 = vld [vmem:[%s0 + $0x29c] sm:$0xf]
    %v205 = vld [vmem:[%s0 + $0x2a0] sm:$0xf]
    %v206 = vld [vmem:[%s0 + $0x2a4] sm:$0xf]
    %v207 = vld [vmem:[%s0 + $0x2a8] sm:$0xf]
    %v208 = vld [vmem:[%s0 + $0x2ac] sm:$0xf]
    %v209 = vld [vmem:[%s0 + $0x2b0] sm:$0xf]
    %v210 = vld [vmem:[%s0 + $0x2b4] sm:$0xf]
    %v211 = vld [vmem:[%s0 + $0x2b8] sm:$0xf]
    %v212 = vld [vmem:[%s0 + $0x2bc] sm:$0xf]
    %v213 = vld [vmem:[%s0 + $0x2c0] sm:$0xf]
    %v214 = vld [vmem:[%s0 + $0x2c4] sm:$0xf]
    %v215 = vld [vmem:[%s0 + $0x2c8] sm:$0xf]
    %v216 = vld [vmem:[%s0 + $0x2cc] sm:$0xf]
    %v217 = vld [vmem:[%s0 + $0x2d0] sm:$0xf]
    %v218 = vld [vmem:[%s0 + $0x2d4] sm:$0xf]
    %v219 = vld [vmem:[%s0 + $0x2d8] sm:$0xf]
    %v220 = vld [vmem:[%s0 + $0x2dc] sm:$0xf]
    %v221 = vld [vmem:[%s0 + $0x2e0] sm:$0xf]
    %v222 = vld [vmem:[%s0 + $0x2e4] sm:$0xf]
    %v223 = vld [vmem:[%s0 + $0x2e8] sm:$0xf]
    %v224 = vld [vmem:[%s0 + $0x2ec] sm:$0xf]
    %v225 = vld [vmem:[%s0 + $0x2f0] sm:$0xf]
    %v226 = vld [vmem:[%s0 + $0x2f4] sm:$0xf]
    %v227 = vld [vmem:[%s0 + $0x2f8] sm:$0xf]
    %v228 = vld [vmem:[%s0 + $0x2fc] sm:$0xf]
    %v229 = vld [vmem:[%s0 + $0x300] sm:$0xf]
    %v230 = vld [vmem:[%s0 + $0x304] sm:$0xf]
    %v231 = vld [vmem:[%s0 + $0x308] sm:$0xf]
    %v232 = vld [vmem:[%s0 + $0x30c] sm:$0xf]
    %v233 = vld [vmem:[%s0 + $0x310] sm:$0xf]
    %v234 = vld [vmem:[%s0 + $0x314] sm:$0xf]
    %v235 = vld [vmem:[%s0 + $0x318] sm:$0xf]
    %v236 = vld [vmem:[%s0 + $0x31c] sm:$0xf]
    %v237 = vld [vmem:[%s0 + $0x320] sm:$0xf]
    %v238 = vld [vmem:[%s0 + $0x324] sm:$0xf]
    %v239 = vld [vmem:[%s0 + $0x328] sm:$0xf]
    %v240 = vld [vmem:[%s0 + $0x32c] sm:$0xf]
    %v241 = vld [vmem:[%s0 + $0x330] sm:$0xf]
    %v242 = vld [vmem:[%s0 + $0x334] sm:$0xf]
    %v243 = vld [vmem:[%s0 + $0x338] sm:$0xf]
    %v244 = vld [vmem:[%s0 + $0x33c] sm:$0xf]
    %v245 = vld [vmem:[%s0 + $0x340] sm:$0xf]
    %v246 = vld [vmem:[%s0 + $0x344] sm:$0xf]
    %v247 = vld [vmem:[%s0 + $0x348] sm:$0xf]
    %v248 = vld [vmem:[%s0 + $0x34c] sm:$0xf]
    %v249 = vld [vmem:[%s0 + $0x350] sm:$0xf]
    %v250 = vld [vmem:[%s0 + $0x354] sm:$0xf]
    %v251 = vld [vmem:[%s0 + $0x358] sm:$0xf]
    %v252 = vld [vmem:[%s0 + $0x35c] sm:$0xf]
    %v253 = vld [vmem:[%s0 + $0x360] sm:$0xf]
    %v254 = vld [vmem:[%s0 + $0x364] sm:$0xf]
    %v255 = vld [vmem:[%s0 + $0x368] sm:$0xf]
    %v256 = vld [vmem:[%s0 + $0x36c] sm:$0xf]
    %v257 = vld [vmem:[%s0 + $0x370] sm:$0xf]
    %v258 = vld [vmem:[%s0 + $0x374] sm:$0xf]
    %v259 = vld [vmem:[%s0 + $0x378] sm:$0xf]
    %v260 = vld [vmem:[%s0 + $0x37c] sm:$0xf]
    %v261 = vld [vmem:[%s0 + $0x380] sm:$0xf]
    %v262 = vld [vmem:[%s0 + $0x384] sm:$0xf]
    %v263 = vld [vmem:[%s0 + $0x388] sm:$0xf]
    %v264 = vld [vmem:[%s0 + $0x38c] sm:$0xf]
    %v265 = vld [vmem:[%s0 + $0x390] sm:$0xf]
    %v266 = vld [vmem:[%s0 + $0x394] sm:$0xf]
    %v267 = vld [vmem:[%s0 + $0x398] sm:$0xf]
    %v268 = vld [vmem:[%s0 + $0x39c] sm:$0xf]
    %v269 = vld [vmem:[%s0 + $0x3a0] sm:$0xf]
    %v270 = vld [vmem:[%s0 + $0x3a4] sm:$0xf]
    %v271 = vld [vmem:[%s0 + $0x3a8] sm:$0xf]
    %v272 = vld [vmem:[%s0 + $0x3ac] sm:$0xf]
    %v273 = vld [vmem:[%s0 + $0x3b0] sm:$0xf]
    %v274 = vld [vmem:[%s0 + $0x3b4] sm:$0xf]
    %v275 = vld [vmem:[%s0 + $0x3b8] sm:$0xf]
    %v276 = vld [vmem:[%s0 + $0x3bc] sm:$0xf]
    %v277 = vld [vmem:[%s0 + $0x3c0] sm:$0xf]
    %v278 = vld [vmem:[%s0 + $0x3c4] sm:$0xf]
    %v279 = vld [vmem:[%s0 + $0x3c8] sm:$0xf]
    %v280 = vld [vmem:[%s0 + $0x3cc] sm:$0xf]
    %v281 = vld [vmem:[%s0 + $0x3d0] sm:$0xf]
    %v282 = vld [vmem:[%s0 + $0x3d4] sm:$0xf]
    %v283 = vld [vmem:[%s0 + $0x3d8] sm:$0xf]
    %v284 = vld [vmem:[%s0 + $0x3dc] sm:$0xf]
    %v285 = vld [vmem:[%s0 + $0x3e0] sm:$0xf]
    %v286 = vld [vmem:[%s0 + $0x3e4] sm:$0xf]
    %v287 = vld [vmem:[%s0 + $0x3e8] sm:$0xf]
    %v288 = vld [vmem:[%s0 + $0x3ec] sm:$0xf]
    %v289 = vld [vmem:[%s0 + $0x3f0] sm:$0xf]
    %v290 = vld [vmem:[%s0 + $0x3f4] sm:$0xf]
    %v291 = vld [vmem:[%s0 + $0x3f8] sm:$0xf]
    %v292 = vld [vmem:[%s0 + $0x3fc] sm:$0xf]
    %v293 = vld [vmem:[%s1] sm:$0xf]
    %v294 = vld [vmem:[%s1 + $0x4] sm:$0xf]
    %v295 = vld [vmem:[%s1 + $0x8] sm:$0xf]
    %v296 = vld [vmem:[%s1 + $0xc] sm:$0xf]
    %v297 = vld [vmem:[%s1 + $0x10] sm:$0xf]
    %v298 = vld [vmem:[%s1 + $0x14] sm:$0xf]
    %v299 = vld [vmem:[%s1 + $0x18] sm:$0xf]
    %v300 = vld [vmem:[%s1 + $0x1c] sm:$0xf]
    %v301 = vld [vmem:[%s1 + $0x20] sm:$0xf]
    %v302 = vld [vmem:[%s1 + $0x24] sm:$0xf]
    %v303 = vld [vmem:[%s1 + $0x28] sm:$0xf]
    %v304 = vld [vmem:[%s1 + $0x2c] sm:$0xf]
    %v305 = vld [vmem:[%s1 + $0x30] sm:$0xf]
    %v306 = vld [vmem:[%s1 + $0x34] sm:$0xf]
    %v307 = vld [vmem:[%s1 + $0x38] sm:$0xf]
    %v308 = vld [vmem:[%s1 + $0x3c] sm:$0xf]
    %v309 = vld [vmem:[%s2] sm:$0xf]
    %v310 = vld [vmem:[%s2 + $0x4] sm:$0xf]
    %v311 = vld [vmem:[%s2 + $0x8] sm:$0xf]
    %v312 = vld [vmem:[%s2 + $0xc] sm:$0xf]
    %v313 = vld [vmem:[%s2 + $0x10] sm:$0xf]
    %v314 = vld [vmem:[%s2 + $0x14] sm:$0xf]
    %v315 = vld [vmem:[%s2 + $0x18] sm:$0xf]
    %v316 = vld [vmem:[%s2 + $0x1c] sm:$0xf]
    %v317 = vld [vmem:[%s2 + $0x20] sm:$0xf]
    %v318 = vld [vmem:[%s2 + $0x24] sm:$0xf]
    %v319 = vld [vmem:[%s2 + $0x28] sm:$0xf]
    %v320 = vld [vmem:[%s2 + $0x2c] sm:$0xf]
    %v321 = vld [vmem:[%s2 + $0x30] sm:$0xf]
    %v322 = vld [vmem:[%s2 + $0x34] sm:$0xf]
    %v323 = vld [vmem:[%s2 + $0x38] sm:$0xf]
    %v324 = vld [vmem:[%s2 + $0x3c] sm:$0xf]
    %v325 = vld [vmem:[%s2 + $0x40] sm:$0xf]
    %v326 = vld [vmem:[%s2 + $0x44] sm:$0xf]
    %v327 = vld [vmem:[%s2 + $0x48] sm:$0xf]
    %v328 = vld [vmem:[%s2 + $0x4c] sm:$0xf]
    %v329 = vld [vmem:[%s2 + $0x50] sm:$0xf]
    %v330 = vld [vmem:[%s2 + $0x54] sm:$0xf]
    %v331 = vld [vmem:[%s2 + $0x58] sm:$0xf]
    %v332 = vld [vmem:[%s2 + $0x5c] sm:$0xf]
    %v333 = vld [vmem:[%s2 + $0x60] sm:$0xf]
    %v334 = vld [vmem:[%s2 + $0x64] sm:$0xf]
    %v335 = vld [vmem:[%s2 + $0x68] sm:$0xf]
    %v336 = vld [vmem:[%s2 + $0x6c] sm:$0xf]
    %v337 = vld [vmem:[%s2 + $0x70] sm:$0xf]
    %v338 = vld [vmem:[%s2 + $0x74] sm:$0xf]
    %v339 = vld [vmem:[%s2 + $0x78] sm:$0xf]
    %v340 = vld [vmem:[%s2 + $0x7c] sm:$0xf]
    %v341 = vld [vmem:[%s2 + $0x80] sm:$0xf]
    %v342 = vld [vmem:[%s2 + $0x84] sm:$0xf]
    %v343 = vld [vmem:[%s2 + $0x88] sm:$0xf]
    %v344 = vld [vmem:[%s2 + $0x8c] sm:$0xf]
    %v345 = vld [vmem:[%s2 + $0x90] sm:$0xf]
    %v346 = vld [vmem:[%s2 + $0x94] sm:$0xf]
    %v347 = vld [vmem:[%s2 + $0x98] sm:$0xf]
    %v348 = vld [vmem:[%s2 + $0x9c] sm:$0xf]
    %v349 = vld [vmem:[%s2 + $0xa0] sm:$0xf]
    %v350 = vld [vmem:[%s2 + $0xa4] sm:$0xf]
    %v351 = vld [vmem:[%s2 + $0xa8] sm:$0xf]
    %v352 = vld [vmem:[%s2 + $0xac] sm:$0xf]
    %v353 = vld [vmem:[%s2 + $0xb0] sm:$0xf]
    %v354 = vld [vmem:[%s2 + $0xb4] sm:$0xf]
    %v355 = vld [vmem:[%s2 + $0xb8] sm:$0xf]
    %v356 = vld [vmem:[%s2 + $0xbc] sm:$0xf]
    %v357 = vld [vmem:[%s2 + $0xc0] sm:$0xf]
    %v358 = vld [vmem:[%s2 + $0xc4] sm:$0xf]
    %v359 = vld [vmem:[%s2 + $0xc8] sm:$0xf]
    %v360 = vld [vmem:[%s2 + $0xcc] sm:$0xf]
    %v361 = vld [vmem:[%s2 + $0xd0] sm:$0xf]
    %v362 = vld [vmem:[%s2 + $0xd4] sm:$0xf]
    %v363 = vld [vmem:[%s2 + $0xd8] sm:$0xf]
    %v364 = vld [vmem:[%s2 + $0xdc] sm:$0xf]
    %v365 = vld [vmem:[%s2 + $0xe0] sm:$0xf]
    %v366 = vld [vmem:[%s2 + $0xe4] sm:$0xf]
    %v367 = vld [vmem:[%s2 + $0xe8] sm:$0xf]
    %v368 = vld [vmem:[%s2 + $0xec] sm:$0xf]
    %v369 = vld [vmem:[%s2 + $0xf0] sm:$0xf]
    %v370 = vld [vmem:[%s2 + $0xf4] sm:$0xf]
    %v371 = vld [vmem:[%s2 + $0xf8] sm:$0xf]
    %v372 = vld [vmem:[%s2 + $0xfc] sm:$0xf]
    %v373 = vld [vmem:[%s2 + $0x100] sm:$0xf]
    %v374 = vld [vmem:[%s2 + $0x104] sm:$0xf]
    %v375 = vld [vmem:[%s2 + $0x108] sm:$0xf]
    %v376 = vld [vmem:[%s2 + $0x10c] sm:$0xf]
    %v377 = vld [vmem:[%s2 + $0x110] sm:$0xf]
    %v378 = vld [vmem:[%s2 + $0x114] sm:$0xf]
    %v379 = vld [vmem:[%s2 + $0x118] sm:$0xf]
    %v380 = vld [vmem:[%s2 + $0x11c] sm:$0xf]
    %v381 = vld [vmem:[%s2 + $0x120] sm:$0xf]
    %v382 = vld [vmem:[%s2 + $0x124] sm:$0xf]
    %v383 = vld [vmem:[%s2 + $0x128] sm:$0xf]
    %v384 = vld [vmem:[%s2 + $0x12c] sm:$0xf]
    %v385 = vld [vmem:[%s2 + $0x130] sm:$0xf]
    %v386 = vld [vmem:[%s2 + $0x134] sm:$0xf]
    %v387 = vld [vmem:[%s2 + $0x138] sm:$0xf]
    %v388 = vld [vmem:[%s2 + $0x13c] sm:$0xf]
    %v389 = vld [vmem:[%s2 + $0x140] sm:$0xf]
    %v390 = vld [vmem:[%s2 + $0x144] sm:$0xf]
    %v391 = vld [vmem:[%s2 + $0x148] sm:$0xf]
    %v392 = vld [vmem:[%s2 + $0x14c] sm:$0xf]
    %v393 = vld [vmem:[%s2 + $0x150] sm:$0xf]
    %v394 = vld [vmem:[%s2 + $0x154] sm:$0xf]
    %v395 = vld [vmem:[%s2 + $0x158] sm:$0xf]
    %v396 = vld [vmem:[%s2 + $0x15c] sm:$0xf]
    %v397 = vld [vmem:[%s2 + $0x160] sm:$0xf]
    %v398 = vld [vmem:[%s2 + $0x164] sm:$0xf]
    %v399 = vld [vmem:[%s2 + $0x168] sm:$0xf]
    %v400 = vld [vmem:[%s2 + $0x16c] sm:$0xf]
    %v401 = vld [vmem:[%s2 + $0x170] sm:$0xf]
    %v402 = vld [vmem:[%s2 + $0x174] sm:$0xf]
    %v403 = vld [vmem:[%s2 + $0x178] sm:$0xf]
    %v404 = vld [vmem:[%s2 + $0x17c] sm:$0xf]
    %v405 = vld [vmem:[%s3] sm:$0xff]
    %v406 = vld [vmem:[%s3 + $0x8] sm:$0xff]
    %v407 = vld [vmem:[%s3 + $0x10] sm:$0xff]
    %v408 = vld [vmem:[%s3 + $0x18] sm:$0xff]
    %v409 = vld [vmem:[%s3 + $0x20] sm:$0xff]
    %v410 = vld [vmem:[%s3 + $0x28] sm:$0xff]
    %v411 = vld [vmem:[%s3 + $0x30] sm:$0xff]
    %v412 = vld [vmem:[%s3 + $0x38] sm:$0xff]
    %v413 = vld [vmem:[%s3 + $0x40] sm:$0xff]
    %v414 = vld [vmem:[%s3 + $0x48] sm:$0xff]
    %v415 = vld [vmem:[%s3 + $0x50] sm:$0xff]
    %v416 = vld [vmem:[%s3 + $0x58] sm:$0xff]
    %v417 = vld [vmem:[%s3 + $0x60] sm:$0xff]
    %v418 = vld [vmem:[%s3 + $0x68] sm:$0xff]
    %v419 = vld [vmem:[%s3 + $0x70] sm:$0xff]
    %v420 = vld [vmem:[%s3 + $0x78] sm:$0xff]
    %v421 = vld [vmem:[%s3 + $0x80] sm:$0xff]
    %v422 = vld [vmem:[%s3 + $0x88] sm:$0xff]
    %v423 = vld [vmem:[%s3 + $0x90] sm:$0xff]
    %v424 = vld [vmem:[%s3 + $0x98] sm:$0xff]
    %v425 = vld [vmem:[%s3 + $0xa0] sm:$0xff]
    %v426 = vld [vmem:[%s3 + $0xa8] sm:$0xff]
    %v427 = vld [vmem:[%s3 + $0xb0] sm:$0xff]
    %v428 = vld [vmem:[%s3 + $0xb8] sm:$0xff]
    %v429 = vld [vmem:[%s3 + $0xc0] sm:$0xff]
    %v430 = vld [vmem:[%s3 + $0xc8] sm:$0xff]
    %v431 = vld [vmem:[%s3 + $0xd0] sm:$0xff]
    %v432 = vld [vmem:[%s3 + $0xd8] sm:$0xff]
    %v433 = vld [vmem:[%s3 + $0xe0] sm:$0xff]
    %v434 = vld [vmem:[%s3 + $0xe8] sm:$0xff]
    %v435 = vld [vmem:[%s3 + $0xf0] sm:$0xff]
    %v436 = vld [vmem:[%s3 + $0xf8] sm:$0xff]
    %v437 = vld [vmem:[%s3 + $0x100] sm:$0xff]
    %v438 = vld [vmem:[%s3 + $0x108] sm:$0xff]
    %v439 = vld [vmem:[%s3 + $0x110] sm:$0xff]
    %v440 = vld [vmem:[%s3 + $0x118] sm:$0xff]
    %v441 = vld [vmem:[%s3 + $0x120] sm:$0xff]
    %v442 = vld [vmem:[%s3 + $0x128] sm:$0xff]
    %v443 = vld [vmem:[%s3 + $0x130] sm:$0xff]
    %v444 = vld [vmem:[%s3 + $0x138] sm:$0xff]
    %v445 = vld [vmem:[%s3 + $0x140] sm:$0xff]
    %v446 = vld [vmem:[%s3 + $0x148] sm:$0xff]
    %v447 = vld [vmem:[%s3 + $0x150] sm:$0xff]
    %v448 = vld [vmem:[%s3 + $0x158] sm:$0xff]
    %v449 = vld [vmem:[%s3 + $0x160] sm:$0xff]
    %v450 = vld [vmem:[%s3 + $0x168] sm:$0xff]
    %v451 = vld [vmem:[%s3 + $0x170] sm:$0xff]
    %v452 = vld [vmem:[%s3 + $0x178] sm:$0xff]
    %v453 = vld [vmem:[%s3 + $0x180] sm:$0xff]
    %v454 = vld [vmem:[%s3 + $0x188] sm:$0xff]
    %v455 = vld [vmem:[%s3 + $0x190] sm:$0xff]
    %v456 = vld [vmem:[%s3 + $0x198] sm:$0xff]
    %v457 = vld [vmem:[%s3 + $0x1a0] sm:$0xff]
    %v458 = vld [vmem:[%s3 + $0x1a8] sm:$0xff]
    %v459 = vld [vmem:[%s3 + $0x1b0] sm:$0xff]
    %v460 = vld [vmem:[%s3 + $0x1b8] sm:$0xff]
    %v461 = vld [vmem:[%s3 + $0x1c0] sm:$0xff]
    %v462 = vld [vmem:[%s3 + $0x1c8] sm:$0xff]
    %v463 = vld [vmem:[%s3 + $0x1d0] sm:$0xff]
    %v464 = vld [vmem:[%s3 + $0x1d8] sm:$0xff]
    %v465 = vld [vmem:[%s3 + $0x1e0] sm:$0xff]
    %v466 = vld [vmem:[%s3 + $0x1e8] sm:$0xff]
    %v467 = vld [vmem:[%s3 + $0x1f0] sm:$0xff]
    %v468 = vld [vmem:[%s3 + $0x1f8] sm:$0xff]
    %v469 = vld [vmem:[%s3 + $0x200] sm:$0xff]
    %v470 = vld [vmem:[%s3 + $0x208] sm:$0xff]
    %v471 = vld [vmem:[%s3 + $0x210] sm:$0xff]
    %v472 = vld [vmem:[%s3 + $0x218] sm:$0xff]
    %v473 = vld [vmem:[%s3 + $0x220] sm:$0xff]
    %v474 = vld [vmem:[%s3 + $0x228] sm:$0xff]
    %v475 = vld [vmem:[%s3 + $0x230] sm:$0xff]
    %v476 = vld [vmem:[%s3 + $0x238] sm:$0xff]
    %v477 = vld [vmem:[%s3 + $0x240] sm:$0xff]
    %v478 = vld [vmem:[%s3 + $0x248] sm:$0xff]
    %v479 = vld [vmem:[%s3 + $0x250] sm:$0xff]
    %v480 = vld [vmem:[%s3 + $0x258] sm:$0xff]
    %v481 = vld [vmem:[%s3 + $0x260] sm:$0xff]
    %v482 = vld [vmem:[%s3 + $0x268] sm:$0xff]
    %v483 = vld [vmem:[%s3 + $0x270] sm:$0xff]
    %v484 = vld [vmem:[%s3 + $0x278] sm:$0xff]
    %v485 = vld [vmem:[%s3 + $0x280] sm:$0xff]
    %v486 = vld [vmem:[%s3 + $0x288] sm:$0xff]
    %v487 = vld [vmem:[%s3 + $0x290] sm:$0xff]
    %v488 = vld [vmem:[%s3 + $0x298] sm:$0xff]
    %v489 = vld [vmem:[%s3 + $0x2a0] sm:$0xff]
    %v490 = vld [vmem:[%s3 + $0x2a8] sm:$0xff]
    %v491 = vld [vmem:[%s3 + $0x2b0] sm:$0xff]
    %v492 = vld [vmem:[%s3 + $0x2b8] sm:$0xff]
    %v493 = vld [vmem:[%s3 + $0x2c0] sm:$0xff]
    %v494 = vld [vmem:[%s3 + $0x2c8] sm:$0xff]
    %v495 = vld [vmem:[%s3 + $0x2d0] sm:$0xff]
    %v496 = vld [vmem:[%s3 + $0x2d8] sm:$0xff]
    %v497 = vld [vmem:[%s3 + $0x2e0] sm:$0xff]
    %v498 = vld [vmem:[%s3 + $0x2e8] sm:$0xff]
    %v499 = vld [vmem:[%s3 + $0x2f0] sm:$0xff]
    %v500 = vld [vmem:[%s3 + $0x2f8] sm:$0xff]
    %v501 = vld [vmem:[%s4] sm:$0xf]
    %v502 = vld [vmem:[%s4 + $0x4] sm:$0xf]
    %v503 = vld [vmem:[%s4 + $0x8] sm:$0xf]
    %v504 = vld [vmem:[%s4 + $0xc] sm:$0xf]
    %v505 = vld [vmem:[%s4 + $0x10] sm:$0xf]
    %v506 = vld [vmem:[%s4 + $0x14] sm:$0xf]
    %v507 = vld [vmem:[%s4 + $0x18] sm:$0xf]
    %v508 = vld [vmem:[%s4 + $0x1c] sm:$0xf]
    %v509 = vld [vmem:[%s4 + $0x20] sm:$0xf]
    %v510 = vld [vmem:[%s4 + $0x24] sm:$0xf]
    %v511 = vld [vmem:[%s4 + $0x28] sm:$0xf]
    %v512 = vld [vmem:[%s4 + $0x2c] sm:$0xf]
    %v513 = vld [vmem:[%s4 + $0x30] sm:$0xf]
    %v514 = vld [vmem:[%s4 + $0x34] sm:$0xf]
    %v515 = vld [vmem:[%s4 + $0x38] sm:$0xf]
    %v516 = vld [vmem:[%s4 + $0x3c] sm:$0xf]
    %v517 = vld [vmem:[%s4 + $0x40] sm:$0xf]
    %v518 = vld [vmem:[%s4 + $0x44] sm:$0xf]
    %v519 = vld [vmem:[%s4 + $0x48] sm:$0xf]
    %v520 = vld [vmem:[%s4 + $0x4c] sm:$0xf]
    %v521 = vld [vmem:[%s4 + $0x50] sm:$0xf]
    %v522 = vld [vmem:[%s4 + $0x54] sm:$0xf]
    %v523 = vld [vmem:[%s4 + $0x58] sm:$0xf]
    %v524 = vld [vmem:[%s4 + $0x5c] sm:$0xf]
    %v525 = vld [vmem:[%s4 + $0x60] sm:$0xf]
    %v526 = vld [vmem:[%s4 + $0x64] sm:$0xf]
    %v527 = vld [vmem:[%s4 + $0x68] sm:$0xf]
    %v528 = vld [vmem:[%s4 + $0x6c] sm:$0xf]
    %v529 = vld [vmem:[%s4 + $0x70] sm:$0xf]
    %v530 = vld [vmem:[%s4 + $0x74] sm:$0xf]
    %v531 = vld [vmem:[%s4 + $0x78] sm:$0xf]
    %v532 = vld [vmem:[%s4 + $0x7c] sm:$0xf]
    %v533 = vld [vmem:[%s4 + $0x80] sm:$0xf]
    %v534 = vld [vmem:[%s4 + $0x84] sm:$0xf]
    %v535 = vld [vmem:[%s4 + $0x88] sm:$0xf]
    %v536 = vld [vmem:[%s4 + $0x8c] sm:$0xf]
    %v537 = vld [vmem:[%s4 + $0x90] sm:$0xf]
    %v538 = vld [vmem:[%s4 + $0x94] sm:$0xf]
    %v539 = vld [vmem:[%s4 + $0x98] sm:$0xf]
    %v540 = vld [vmem:[%s4 + $0x9c] sm:$0xf]
    %v541 = vld [vmem:[%s4 + $0xa0] sm:$0xf]
    %v542 = vld [vmem:[%s4 + $0xa4] sm:$0xf]
    %v543 = vld [vmem:[%s4 + $0xa8] sm:$0xf]
    %v544 = vld [vmem:[%s4 + $0xac] sm:$0xf]
    %v545 = vld [vmem:[%s4 + $0xb0] sm:$0xf]
    %v546 = vld [vmem:[%s4 + $0xb4] sm:$0xf]
    %v547 = vld [vmem:[%s4 + $0xb8] sm:$0xf]
    %v548 = vld [vmem:[%s4 + $0xbc] sm:$0xf]
    %v549 = vld [vmem:[%s4 + $0xc0] sm:$0xf]
    %v550 = vld [vmem:[%s4 + $0xc4] sm:$0xf]
    %v551 = vld [vmem:[%s4 + $0xc8] sm:$0xf]
    %v552 = vld [vmem:[%s4 + $0xcc] sm:$0xf]
    %v553 = vld [vmem:[%s4 + $0xd0] sm:$0xf]
    %v554 = vld [vmem:[%s4 + $0xd4] sm:$0xf]
    %v555 = vld [vmem:[%s4 + $0xd8] sm:$0xf]
    %v556 = vld [vmem:[%s4 + $0xdc] sm:$0xf]
    %v557 = vld [vmem:[%s4 + $0xe0] sm:$0xf]
    %v558 = vld [vmem:[%s4 + $0xe4] sm:$0xf]
    %v559 = vld [vmem:[%s4 + $0xe8] sm:$0xf]
    %v560 = vld [vmem:[%s4 + $0xec] sm:$0xf]
    %v561 = vld [vmem:[%s4 + $0xf0] sm:$0xf]
    %v562 = vld [vmem:[%s4 + $0xf4] sm:$0xf]
    %v563 = vld [vmem:[%s4 + $0xf8] sm:$0xf]
    %v564 = vld [vmem:[%s4 + $0xfc] sm:$0xf]
    %v565 = vld [vmem:[%s4 + $0x100] sm:$0xf]
    %v566 = vld [vmem:[%s4 + $0x104] sm:$0xf]
    %v567 = vld [vmem:[%s4 + $0x108] sm:$0xf]
    %v568 = vld [vmem:[%s4 + $0x10c] sm:$0xf]
    %v569 = vld [vmem:[%s4 + $0x110] sm:$0xf]
    %v570 = vld [vmem:[%s4 + $0x114] sm:$0xf]
    %v571 = vld [vmem:[%s4 + $0x118] sm:$0xf]
    %v572 = vld [vmem:[%s4 + $0x11c] sm:$0xf]
    %v573 = vld [vmem:[%s4 + $0x120] sm:$0xf]
    %v574 = vld [vmem:[%s4 + $0x124] sm:$0xf]
    %v575 = vld [vmem:[%s4 + $0x128] sm:$0xf]
    %v576 = vld [vmem:[%s4 + $0x12c] sm:$0xf]
    %v577 = vld [vmem:[%s4 + $0x130] sm:$0xf]
    %v578 = vld [vmem:[%s4 + $0x134] sm:$0xf]
    %v579 = vld [vmem:[%s4 + $0x138] sm:$0xf]
    %v580 = vld [vmem:[%s4 + $0x13c] sm:$0xf]
    %v581 = vld [vmem:[%s4 + $0x140] sm:$0xf]
    %v582 = vld [vmem:[%s4 + $0x144] sm:$0xf]
    %v583 = vld [vmem:[%s4 + $0x148] sm:$0xf]
    %v584 = vld [vmem:[%s4 + $0x14c] sm:$0xf]
    %v585 = vld [vmem:[%s4 + $0x150] sm:$0xf]
    %v586 = vld [vmem:[%s4 + $0x154] sm:$0xf]
    %v587 = vld [vmem:[%s4 + $0x158] sm:$0xf]
    %v588 = vld [vmem:[%s4 + $0x15c] sm:$0xf]
    %v589 = vld [vmem:[%s4 + $0x160] sm:$0xf]
    %v590 = vld [vmem:[%s4 + $0x164] sm:$0xf]
    %v591 = vld [vmem:[%s4 + $0x168] sm:$0xf]
    %v592 = vld [vmem:[%s4 + $0x16c] sm:$0xf]
    %v593 = vld [vmem:[%s4 + $0x170] sm:$0xf]
    %v594 = vld [vmem:[%s4 + $0x174] sm:$0xf]
    %v595 = vld [vmem:[%s4 + $0x178] sm:$0xf]
    %v596 = vld [vmem:[%s4 + $0x17c] sm:$0xf]
    %v597 = vld [vmem:[%s4 + $0x180] sm:$0xf]
    %v598 = vld [vmem:[%s4 + $0x184] sm:$0xf]
    %v599 = vld [vmem:[%s4 + $0x188] sm:$0xf]
    %v600 = vld [vmem:[%s4 + $0x18c] sm:$0xf]
    %v601 = vld [vmem:[%s4 + $0x190] sm:$0xf]
    %v602 = vld [vmem:[%s4 + $0x194] sm:$0xf]
    %v603 = vld [vmem:[%s4 + $0x198] sm:$0xf]
    %v604 = vld [vmem:[%s4 + $0x19c] sm:$0xf]
    %v605 = vld [vmem:[%s4 + $0x1a0] sm:$0xf]
    %v606 = vld [vmem:[%s4 + $0x1a4] sm:$0xf]
    %v607 = vld [vmem:[%s4 + $0x1a8] sm:$0xf]
    %v608 = vld [vmem:[%s4 + $0x1ac] sm:$0xf]
    %v609 = vld [vmem:[%s4 + $0x1b0] sm:$0xf]
    %v610 = vld [vmem:[%s4 + $0x1b4] sm:$0xf]
    %v611 = vld [vmem:[%s4 + $0x1b8] sm:$0xf]
    %v612 = vld [vmem:[%s4 + $0x1bc] sm:$0xf]
    %v613 = vld [vmem:[%s4 + $0x1c0] sm:$0xf]
    %v614 = vld [vmem:[%s4 + $0x1c4] sm:$0xf]
    %v615 = vld [vmem:[%s4 + $0x1c8] sm:$0xf]
    %v616 = vld [vmem:[%s4 + $0x1cc] sm:$0xf]
    %v617 = vld [vmem:[%s4 + $0x1d0] sm:$0xf]
    %v618 = vld [vmem:[%s4 + $0x1d4] sm:$0xf]
    %v619 = vld [vmem:[%s4 + $0x1d8] sm:$0xf]
    %v620 = vld [vmem:[%s4 + $0x1dc] sm:$0xf]
    %v621 = vld [vmem:[%s4 + $0x1e0] sm:$0xf]
    %v622 = vld [vmem:[%s4 + $0x1e4] sm:$0xf]
    %v623 = vld [vmem:[%s4 + $0x1e8] sm:$0xf]
    %v624 = vld [vmem:[%s4 + $0x1ec] sm:$0xf]
    %v625 = vld [vmem:[%s4 + $0x1f0] sm:$0xf]
    %v626 = vld [vmem:[%s4 + $0x1f4] sm:$0xf]
    %v627 = vld [vmem:[%s4 + $0x1f8] sm:$0xf]
    %v628 = vld [vmem:[%s4 + $0x1fc] sm:$0xf]
    %v629 = vld [vmem:[%s4 + $0x200] sm:$0xf]
    %v630 = vld [vmem:[%s4 + $0x204] sm:$0xf]
    %v631 = vld [vmem:[%s4 + $0x208] sm:$0xf]
    %v632 = vld [vmem:[%s4 + $0x20c] sm:$0xf]
    %v633 = vld [vmem:[%s4 + $0x210] sm:$0xf]
    %v634 = vld [vmem:[%s4 + $0x214] sm:$0xf]
    %v635 = vld [vmem:[%s4 + $0x218] sm:$0xf]
    %v636 = vld [vmem:[%s4 + $0x21c] sm:$0xf]
    %v637 = vld [vmem:[%s4 + $0x220] sm:$0xf]
    %v638 = vld [vmem:[%s4 + $0x224] sm:$0xf]
    %v639 = vld [vmem:[%s4 + $0x228] sm:$0xf]
    %v640 = vld [vmem:[%s4 + $0x22c] sm:$0xf]
    %v641 = vld [vmem:[%s4 + $0x230] sm:$0xf]
    %v642 = vld [vmem:[%s4 + $0x234] sm:$0xf]
    %v643 = vld [vmem:[%s4 + $0x238] sm:$0xf]
    %v644 = vld [vmem:[%s4 + $0x23c] sm:$0xf]
    %v645 = vld [vmem:[%s4 + $0x240] sm:$0xf]
    %v646 = vld [vmem:[%s4 + $0x244] sm:$0xf]
    %v647 = vld [vmem:[%s4 + $0x248] sm:$0xf]
    %v648 = vld [vmem:[%s4 + $0x24c] sm:$0xf]
    %v649 = vld [vmem:[%s4 + $0x250] sm:$0xf]
    %v650 = vld [vmem:[%s4 + $0x254] sm:$0xf]
    %v651 = vld [vmem:[%s4 + $0x258] sm:$0xf]
    %v652 = vld [vmem:[%s4 + $0x25c] sm:$0xf]
    %v653 = vld [vmem:[%s4 + $0x260] sm:$0xf]
    %v654 = vld [vmem:[%s4 + $0x264] sm:$0xf]
    %v655 = vld [vmem:[%s4 + $0x268] sm:$0xf]
    %v656 = vld [vmem:[%s4 + $0x26c] sm:$0xf]
    %v657 = vld [vmem:[%s4 + $0x270] sm:$0xf]
    %v658 = vld [vmem:[%s4 + $0x274] sm:$0xf]
    %v659 = vld [vmem:[%s4 + $0x278] sm:$0xf]
    %v660 = vld [vmem:[%s4 + $0x27c] sm:$0xf]
    %v661 = vld [vmem:[%s4 + $0x280] sm:$0xf]
    %v662 = vld [vmem:[%s4 + $0x284] sm:$0xf]
    %v663 = vld [vmem:[%s4 + $0x288] sm:$0xf]
    %v664 = vld [vmem:[%s4 + $0x28c] sm:$0xf]
    %v665 = vld [vmem:[%s4 + $0x290] sm:$0xf]
    %v666 = vld [vmem:[%s4 + $0x294] sm:$0xf]
    %v667 = vld [vmem:[%s4 + $0x298] sm:$0xf]
    %v668 = vld [vmem:[%s4 + $0x29c] sm:$0xf]
    %v669 = vld [vmem:[%s4 + $0x2a0] sm:$0xf]
    %v670 = vld [vmem:[%s4 + $0x2a4] sm:$0xf]
    %v671 = vld [vmem:[%s4 + $0x2a8] sm:$0xf]
    %v672 = vld [vmem:[%s4 + $0x2ac] sm:$0xf]
    %v673 = vld [vmem:[%s4 + $0x2b0] sm:$0xf]
    %v674 = vld [vmem:[%s4 + $0x2b4] sm:$0xf]
    %v675 = vld [vmem:[%s4 + $0x2b8] sm:$0xf]
    %v676 = vld [vmem:[%s4 + $0x2bc] sm:$0xf]
    %v677 = vld [vmem:[%s4 + $0x2c0] sm:$0xf]
    %v678 = vld [vmem:[%s4 + $0x2c4] sm:$0xf]
    %v679 = vld [vmem:[%s4 + $0x2c8] sm:$0xf]
    %v680 = vld [vmem:[%s4 + $0x2cc] sm:$0xf]
    %v681 = vld [vmem:[%s4 + $0x2d0] sm:$0xf]
    %v682 = vld [vmem:[%s4 + $0x2d4] sm:$0xf]
    %v683 = vld [vmem:[%s4 + $0x2d8] sm:$0xf]
    %v684 = vld [vmem:[%s4 + $0x2dc] sm:$0xf]
    %v685 = vld [vmem:[%s4 + $0x2e0] sm:$0xf]
    %v686 = vld [vmem:[%s4 + $0x2e4] sm:$0xf]
    %v687 = vld [vmem:[%s4 + $0x2e8] sm:$0xf]
    %v688 = vld [vmem:[%s4 + $0x2ec] sm:$0xf]
    %v689 = vld [vmem:[%s4 + $0x2f0] sm:$0xf]
    %v690 = vld [vmem:[%s4 + $0x2f4] sm:$0xf]
    %v691 = vld [vmem:[%s4 + $0x2f8] sm:$0xf]
    %v692 = vld [vmem:[%s4 + $0x2fc] sm:$0xf]
    %v693 = vld [vmem:[%s5] sm:$0xff]
    %v694 = vld [vmem:[%s5 + $0x8] sm:$0xff]
    %v695 = vld [vmem:[%s5 + $0x10] sm:$0xff]
    %v696 = vld [vmem:[%s5 + $0x18] sm:$0xff]
    %v697 = vld [vmem:[%s5 + $0x20] sm:$0xff]
    %v698 = vld [vmem:[%s5 + $0x28] sm:$0xff]
    %v699 = vld [vmem:[%s5 + $0x30] sm:$0xff]
    %v700 = vld [vmem:[%s5 + $0x38] sm:$0xff]
    %v701 = vld [vmem:[%s5 + $0x40] sm:$0xff]
    %v702 = vld [vmem:[%s5 + $0x48] sm:$0xff]
    %v703 = vld [vmem:[%s5 + $0x50] sm:$0xff]
    %v704 = vld [vmem:[%s5 + $0x58] sm:$0xff]
    %v705 = vld [vmem:[%s6] sm:$0xff]
    %v706 = vld [vmem:[%s6 + $0x8] sm:$0xf]
    %v707 = vld [vmem:[%s6 + $0xc] sm:$0xff]
    %v708 = vld [vmem:[%s6 + $0x14] sm:$0xf]
    %v709 = vld [vmem:[%s6 + $0x18] sm:$0xff]
    %v710 = vld [vmem:[%s6 + $0x20] sm:$0xf]
    %v711 = vld [vmem:[%s6 + $0x24] sm:$0xff]
    %v712 = vld [vmem:[%s6 + $0x2c] sm:$0xf]
    %v713 = vld [vmem:[%s6 + $0x30] sm:$0xff]
    %v714 = vld [vmem:[%s6 + $0x38] sm:$0xf]
    %v715 = vld [vmem:[%s6 + $0x3c] sm:$0xff]
    %v716 = vld [vmem:[%s6 + $0x44] sm:$0xf]
    %v717 = vld [vmem:[%s6 + $0x48] sm:$0xff]
    %v718 = vld [vmem:[%s6 + $0x50] sm:$0xf]
    %v719 = vld [vmem:[%s6 + $0x54] sm:$0xff]
    %v720 = vld [vmem:[%s6 + $0x5c] sm:$0xf]
    %v721 = vld [vmem:[%s6 + $0x60] sm:$0xff]
    %v722 = vld [vmem:[%s6 + $0x68] sm:$0xf]
    %v723 = vld [vmem:[%s6 + $0x6c] sm:$0xff]
    %v724 = vld [vmem:[%s6 + $0x74] sm:$0xf]
    %v725 = vld [vmem:[%s6 + $0x78] sm:$0xff]
    %v726 = vld [vmem:[%s6 + $0x80] sm:$0xf]
    %v727 = vld [vmem:[%s6 + $0x84] sm:$0xff]
    %v728 = vld [vmem:[%s6 + $0x8c] sm:$0xf]
    %v729 = vld [vmem:[%s6 + $0x90] sm:$0xff]
    %v730 = vld [vmem:[%s6 + $0x98] sm:$0xf]
    %v731 = vld [vmem:[%s6 + $0x9c] sm:$0xff]
    %v732 = vld [vmem:[%s6 + $0xa4] sm:$0xf]
    %v733 = vld [vmem:[%s6 + $0xa8] sm:$0xff]
    %v734 = vld [vmem:[%s6 + $0xb0] sm:$0xf]
    %v735 = vld [vmem:[%s6 + $0xb4] sm:$0xff]
    %v736 = vld [vmem:[%s6 + $0xbc] sm:$0xf]
    %v737 = vld [vmem:[%s7] sm:$0xff]
    %v738 = vld [vmem:[%s7 + $0x8] sm:$0xf]
    %v739 = vld [vmem:[%s7 + $0xc] sm:$0xff]
    %v740 = vld [vmem:[%s7 + $0x14] sm:$0xf]
    %v741 = vld [vmem:[%s7 + $0x18] sm:$0xff]
    %v742 = vld [vmem:[%s7 + $0x20] sm:$0xf]
    %v743 = vld [vmem:[%s7 + $0x24] sm:$0xff]
    %v744 = vld [vmem:[%s7 + $0x2c] sm:$0xf]
    %v745 = vld [vmem:[%s7 + $0x30] sm:$0xff]
    %v746 = vld [vmem:[%s7 + $0x38] sm:$0xf]
    %v747 = vld [vmem:[%s7 + $0x3c] sm:$0xff]
    %v748 = vld [vmem:[%s7 + $0x44] sm:$0xf]
    %v749 = vld [vmem:[%s7 + $0x48] sm:$0xff]
    %v750 = vld [vmem:[%s7 + $0x50] sm:$0xf]
    %v751 = vld [vmem:[%s7 + $0x54] sm:$0xff]
    %v752 = vld [vmem:[%s7 + $0x5c] sm:$0xf]
    %v753 = vld [vmem:[%s7 + $0x60] sm:$0xff]
    %v754 = vld [vmem:[%s7 + $0x68] sm:$0xf]
    %v755 = vld [vmem:[%s7 + $0x6c] sm:$0xff]
    %v756 = vld [vmem:[%s7 + $0x74] sm:$0xf]
    %v757 = vld [vmem:[%s7 + $0x78] sm:$0xff]
    %v758 = vld [vmem:[%s7 + $0x80] sm:$0xf]
    %v759 = vld [vmem:[%s7 + $0x84] sm:$0xff]
    %v760 = vld [vmem:[%s7 + $0x8c] sm:$0xf]
    %v761 = vld [vmem:[%s7 + $0x90] sm:$0xff]
    %v762 = vld [vmem:[%s7 + $0x98] sm:$0xf]
    %v763 = vld [vmem:[%s7 + $0x9c] sm:$0xff]
    %v764 = vld [vmem:[%s7 + $0xa4] sm:$0xf]
    %v765 = vld [vmem:[%s7 + $0xa8] sm:$0xff]
    %v766 = vld [vmem:[%s7 + $0xb0] sm:$0xf]
    %v767 = vld [vmem:[%s7 + $0xb4] sm:$0xff]
    %v768 = vld [vmem:[%s7 + $0xbc] sm:$0xf]
    %v769 = vld [vmem:[%s8] sm:$0xf]
    %v770 = vld [vmem:[%s8 + $0x4] sm:$0xf]
    %v771 = vld [vmem:[%s8 + $0x8] sm:$0xf]
    %v772 = vld [vmem:[%s8 + $0xc] sm:$0xf]
    %v773 = vld [vmem:[%s8 + $0x10] sm:$0xf]
    %v774 = vld [vmem:[%s8 + $0x14] sm:$0xf]
    %v775 = vld [vmem:[%s8 + $0x18] sm:$0xf]
    %v776 = vld [vmem:[%s8 + $0x1c] sm:$0xf]
    %v777 = vld [vmem:[%s8 + $0x20] sm:$0xf]
    %v778 = vld [vmem:[%s8 + $0x24] sm:$0xf]
    %v779 = vld [vmem:[%s8 + $0x28] sm:$0xf]
    %v780 = vld [vmem:[%s8 + $0x2c] sm:$0xf]
    %v781 = vld [vmem:[%s8 + $0x30] sm:$0xf]
    %v782 = vld [vmem:[%s8 + $0x34] sm:$0xf]
    %v783 = vld [vmem:[%s8 + $0x38] sm:$0xf]
    %v784 = vld [vmem:[%s8 + $0x3c] sm:$0xf]
    %v785 = vld [vmem:[%s9] sm:$0xff]
    %v786 = vlaneseq
    %v787 = vshrl.u32 %v786, 7
    %v788 = vsub.s32 0, %v787
    %v789 = vrot.slane %v785, %v788
    %v1046 = vunpack.c.l.b16 %v37
    %v1047 = vunpack.c.l.b16 %v38
    %v1048 = vunpack.c.l.b16 %v39
    %v1049 = vunpack.c.l.b16 %v40
    %v1050 = vunpack.c.l.b16 %v41
    %v1051 = vunpack.c.l.b16 %v42
    %v1052 = vunpack.c.l.b16 %v43
    %v1053 = vunpack.c.l.b16 %v44
    %v1054 = vunpack.c.l.b16 %v45
    %v1055 = vunpack.c.l.b16 %v46
    %v1056 = vunpack.c.l.b16 %v47
    %v1057 = vunpack.c.l.b16 %v48
    %v1058 = vunpack.c.l.b16 %v49
    %v1059 = vunpack.c.l.b16 %v50
    %v1060 = vunpack.c.l.b16 %v51
    %v1061 = vunpack.c.l.b16 %v52
    %v1062 = vunpack.c.l.b16 %v53
    %v1063 = vunpack.c.l.b16 %v54
    %v1064 = vunpack.c.l.b16 %v55
    %v1065 = vunpack.c.l.b16 %v56
    %v1066 = vunpack.c.l.b16 %v57
    %v1067 = vunpack.c.l.b16 %v58
    %v1068 = vunpack.c.l.b16 %v59
    %v1069 = vunpack.c.l.b16 %v60
    %v1070 = vunpack.c.l.b16 %v61
    %v1071 = vunpack.c.l.b16 %v62
    %v1072 = vunpack.c.l.b16 %v63
    %v1073 = vunpack.c.l.b16 %v64
    %v1074 = vunpack.c.l.b16 %v65
    %v1075 = vunpack.c.l.b16 %v66
    %v1076 = vunpack.c.l.b16 %v67
    %v1077 = vunpack.c.l.b16 %v68
    %v1078 = vunpack.c.l.b16 %v69
    %v1079 = vunpack.c.l.b16 %v70
    %v1080 = vunpack.c.l.b16 %v71
    %v1081 = vunpack.c.l.b16 %v72
    %v1082 = vunpack.c.l.b16 %v73
    %v1083 = vunpack.c.l.b16 %v74
    %v1084 = vunpack.c.l.b16 %v75
    %v1085 = vunpack.c.l.b16 %v76
    %v1086 = vunpack.c.l.b16 %v77
    %v1087 = vunpack.c.l.b16 %v78
    %v1088 = vunpack.c.l.b16 %v79
    %v1089 = vunpack.c.l.b16 %v80
    %v1090 = vunpack.c.l.b16 %v81
    %v1091 = vunpack.c.l.b16 %v82
    %v1092 = vunpack.c.l.b16 %v83
    %v1093 = vunpack.c.l.b16 %v84
    %v1094 = vunpack.c.l.b16 %v85
    %v1095 = vunpack.c.l.b16 %v86
    %v1096 = vunpack.c.l.b16 %v87
    %v1097 = vunpack.c.l.b16 %v88
    %v1098 = vunpack.c.l.b16 %v89
    %v1099 = vunpack.c.l.b16 %v90
    %v1100 = vunpack.c.l.b16 %v91
    %v1101 = vunpack.c.l.b16 %v92
    %v1102 = vunpack.c.l.b16 %v93
    %v1103 = vunpack.c.l.b16 %v94
    %v1104 = vunpack.c.l.b16 %v95
    %v1105 = vunpack.c.l.b16 %v96
    %v1106 = vunpack.c.l.b16 %v97
    %v1107 = vunpack.c.l.b16 %v98
    %v1108 = vunpack.c.l.b16 %v99
    %v1109 = vunpack.c.l.b16 %v100
    %v1110 = vunpack.c.l.b16 %v101
    %v1111 = vunpack.c.l.b16 %v102
    %v1112 = vunpack.c.l.b16 %v103
    %v1113 = vunpack.c.l.b16 %v104
    %v1114 = vunpack.c.l.b16 %v105
    %v1115 = vunpack.c.l.b16 %v106
    %v1116 = vunpack.c.l.b16 %v107
    %v1117 = vunpack.c.l.b16 %v108
    %v1118 = vunpack.c.l.b16 %v109
    %v1119 = vunpack.c.l.b16 %v110
    %v1120 = vunpack.c.l.b16 %v111
    %v1121 = vunpack.c.l.b16 %v112
    %v1122 = vunpack.c.l.b16 %v113
    %v1123 = vunpack.c.l.b16 %v114
    %v1124 = vunpack.c.l.b16 %v115
    %v1125 = vunpack.c.l.b16 %v116
    %v1126 = vunpack.c.l.b16 %v117
    %v1127 = vunpack.c.l.b16 %v118
    %v1128 = vunpack.c.l.b16 %v119
    %v1129 = vunpack.c.l.b16 %v120
    %v1130 = vunpack.c.l.b16 %v121
    %v1131 = vunpack.c.l.b16 %v122
    %v1132 = vunpack.c.l.b16 %v123
    %v1133 = vunpack.c.l.b16 %v124
    %v1134 = vunpack.c.l.b16 %v125
    %v1135 = vunpack.c.l.b16 %v126
    %v1136 = vunpack.c.l.b16 %v127
    %v1137 = vunpack.c.l.b16 %v128
    %v1138 = vunpack.c.l.b16 %v129
    %v1139 = vunpack.c.l.b16 %v130
    %v1140 = vunpack.c.l.b16 %v131
    %v1141 = vunpack.c.l.b16 %v132
    %v1142 = vunpack.c.l.b16 %v133
    %v1143 = vunpack.c.l.b16 %v134
    %v1144 = vunpack.c.l.b16 %v135
    %v1145 = vunpack.c.l.b16 %v136
    %v1146 = vunpack.c.l.b16 %v137
    %v1147 = vunpack.c.l.b16 %v138
    %v1148 = vunpack.c.l.b16 %v139
    %v1149 = vunpack.c.l.b16 %v140
    %v1150 = vunpack.c.l.b16 %v141
    %v1151 = vunpack.c.l.b16 %v142
    %v1152 = vunpack.c.l.b16 %v143
    %v1153 = vunpack.c.l.b16 %v144
    %v1154 = vunpack.c.l.b16 %v145
    %v1155 = vunpack.c.l.b16 %v146
    %v1156 = vunpack.c.l.b16 %v147
    %v1157 = vunpack.c.l.b16 %v148
    %v1158 = vunpack.c.l.b16 %v149
    %v1159 = vunpack.c.l.b16 %v150
    %v1160 = vunpack.c.l.b16 %v151
    %v1161 = vunpack.c.l.b16 %v152
    %v1162 = vunpack.c.l.b16 %v153
    %v1163 = vunpack.c.l.b16 %v154
    %v1164 = vunpack.c.l.b16 %v155
    %v1165 = vunpack.c.l.b16 %v156
    %v1166 = vunpack.c.l.b16 %v157
    %v1167 = vunpack.c.l.b16 %v158
    %v1168 = vunpack.c.l.b16 %v159
    %v1169 = vunpack.c.l.b16 %v160
    %v1170 = vunpack.c.l.b16 %v161
    %v1171 = vunpack.c.l.b16 %v162
    %v1172 = vunpack.c.l.b16 %v163
    %v1173 = vunpack.c.l.b16 %v164
    %v1174 = vunpack.c.l.b16 %v165
    %v1175 = vunpack.c.l.b16 %v166
    %v1176 = vunpack.c.l.b16 %v167
    %v1177 = vunpack.c.l.b16 %v168
    %v1178 = vunpack.c.l.b16 %v169
    %v1179 = vunpack.c.l.b16 %v170
    %v1180 = vunpack.c.l.b16 %v171
    %v1181 = vunpack.c.l.b16 %v172
    %v1182 = vunpack.c.l.b16 %v173
    %v1183 = vunpack.c.l.b16 %v174
    %v1184 = vunpack.c.l.b16 %v175
    %v1185 = vunpack.c.l.b16 %v176
    %v1186 = vunpack.c.l.b16 %v177
    %v1187 = vunpack.c.l.b16 %v178
    %v1188 = vunpack.c.l.b16 %v179
    %v1189 = vunpack.c.l.b16 %v180
    %v1190 = vunpack.c.l.b16 %v181
    %v1191 = vunpack.c.l.b16 %v182
    %v1192 = vunpack.c.l.b16 %v183
    %v1193 = vunpack.c.l.b16 %v184
    %v1194 = vunpack.c.l.b16 %v185
    %v1195 = vunpack.c.l.b16 %v186
    %v1196 = vunpack.c.l.b16 %v187
    %v1197 = vunpack.c.l.b16 %v188
    %v1198 = vunpack.c.l.b16 %v189
    %v1199 = vunpack.c.l.b16 %v190
    %v1200 = vunpack.c.l.b16 %v191
    %v1201 = vunpack.c.l.b16 %v192
    %v1202 = vunpack.c.l.b16 %v193
    %v1203 = vunpack.c.l.b16 %v194
    %v1204 = vunpack.c.l.b16 %v195
    %v1205 = vunpack.c.l.b16 %v196
    %v1206 = vunpack.c.l.b16 %v197
    %v1207 = vunpack.c.l.b16 %v198
    %v1208 = vunpack.c.l.b16 %v199
    %v1209 = vunpack.c.l.b16 %v200
    %v1210 = vunpack.c.l.b16 %v201
    %v1211 = vunpack.c.l.b16 %v202
    %v1212 = vunpack.c.l.b16 %v203
    %v1213 = vunpack.c.l.b16 %v204
    %v1214 = vunpack.c.l.b16 %v205
    %v1215 = vunpack.c.l.b16 %v206
    %v1216 = vunpack.c.l.b16 %v207
    %v1217 = vunpack.c.l.b16 %v208
    %v1218 = vunpack.c.l.b16 %v209
    %v1219 = vunpack.c.l.b16 %v210
    %v1220 = vunpack.c.l.b16 %v211
    %v1221 = vunpack.c.l.b16 %v212
    %v1222 = vunpack.c.l.b16 %v213
    %v1223 = vunpack.c.l.b16 %v214
    %v1224 = vunpack.c.l.b16 %v215
    %v1225 = vunpack.c.l.b16 %v216
    %v1226 = vunpack.c.l.b16 %v217
    %v1227 = vunpack.c.l.b16 %v218
    %v1228 = vunpack.c.l.b16 %v219
    %v1229 = vunpack.c.l.b16 %v220
    %v1230 = vunpack.c.l.b16 %v221
    %v1231 = vunpack.c.l.b16 %v222
    %v1232 = vunpack.c.l.b16 %v223
    %v1233 = vunpack.c.l.b16 %v224
    %v1234 = vunpack.c.l.b16 %v225
    %v1235 = vunpack.c.l.b16 %v226
    %v1236 = vunpack.c.l.b16 %v227
    %v1237 = vunpack.c.l.b16 %v228
    %v1238 = vunpack.c.l.b16 %v229
    %v1239 = vunpack.c.l.b16 %v230
    %v1240 = vunpack.c.l.b16 %v231
    %v1241 = vunpack.c.l.b16 %v232
    %v1242 = vunpack.c.l.b16 %v233
    %v1243 = vunpack.c.l.b16 %v234
    %v1244 = vunpack.c.l.b16 %v235
    %v1245 = vunpack.c.l.b16 %v236
    %v1246 = vunpack.c.l.b16 %v237
    %v1247 = vunpack.c.l.b16 %v238
    %v1248 = vunpack.c.l.b16 %v239
    %v1249 = vunpack.c.l.b16 %v240
    %v1250 = vunpack.c.l.b16 %v241
    %v1251 = vunpack.c.l.b16 %v242
    %v1252 = vunpack.c.l.b16 %v243
    %v1253 = vunpack.c.l.b16 %v244
    %v1254 = vunpack.c.l.b16 %v245
    %v1255 = vunpack.c.l.b16 %v246
    %v1256 = vunpack.c.l.b16 %v247
    %v1257 = vunpack.c.l.b16 %v248
    %v1258 = vunpack.c.l.b16 %v249
    %v1259 = vunpack.c.l.b16 %v250
    %v1260 = vunpack.c.l.b16 %v251
    %v1261 = vunpack.c.l.b16 %v252
    %v1262 = vunpack.c.l.b16 %v253
    %v1263 = vunpack.c.l.b16 %v254
    %v1264 = vunpack.c.l.b16 %v255
    %v1265 = vunpack.c.l.b16 %v256
    %v1266 = vunpack.c.l.b16 %v257
    %v1267 = vunpack.c.l.b16 %v258
    %v1268 = vunpack.c.l.b16 %v259
    %v1269 = vunpack.c.l.b16 %v260
    %v1270 = vunpack.c.l.b16 %v261
    %v1271 = vunpack.c.l.b16 %v262
    %v1272 = vunpack.c.l.b16 %v263
    %v1273 = vunpack.c.l.b16 %v264
    %v1274 = vunpack.c.l.b16 %v265
    %v1275 = vunpack.c.l.b16 %v266
    %v1276 = vunpack.c.l.b16 %v267
    %v1277 = vunpack.c.l.b16 %v268
    %v1278 = vunpack.c.l.b16 %v269
    %v1279 = vunpack.c.l.b16 %v270
    %v1280 = vunpack.c.l.b16 %v271
    %v1281 = vunpack.c.l.b16 %v272
    %v1282 = vunpack.c.l.b16 %v273
    %v1283 = vunpack.c.l.b16 %v274
    %v1284 = vunpack.c.l.b16 %v275
    %v1285 = vunpack.c.l.b16 %v276
    %v1286 = vunpack.c.l.b16 %v277
    %v1287 = vunpack.c.l.b16 %v278
    %v1288 = vunpack.c.l.b16 %v279
    %v1289 = vunpack.c.l.b16 %v280
    %v1290 = vunpack.c.l.b16 %v281
    %v1291 = vunpack.c.l.b16 %v282
    %v1292 = vunpack.c.l.b16 %v283
    %v1293 = vunpack.c.l.b16 %v284
    %v1294 = vunpack.c.l.b16 %v285
    %v1295 = vunpack.c.l.b16 %v286
    %v1296 = vunpack.c.l.b16 %v287
    %v1297 = vunpack.c.l.b16 %v288
    %v1298 = vunpack.c.l.b16 %v289
    %v1299 = vunpack.c.l.b16 %v290
    %v1300 = vunpack.c.l.b16 %v291
    %v1301 = vunpack.c.l.b16 %v292
    %v1302 = vpack.c.b16 %v1047, %v1046
    %v1303 = vpack.c.b16 %v1049, %v1048
    %v1304 = vpack.c.b16 %v1051, %v1050
    %v1305 = vpack.c.b16 %v1053, %v1052
    %v1306 = vpack.c.b16 %v1055, %v1054
    %v1307 = vpack.c.b16 %v1057, %v1056
    %v1308 = vpack.c.b16 %v1059, %v1058
    %v1309 = vpack.c.b16 %v1061, %v1060
    %v1310 = vpack.c.b16 %v1063, %v1062
    %v1311 = vpack.c.b16 %v1065, %v1064
    %v1312 = vpack.c.b16 %v1067, %v1066
    %v1313 = vpack.c.b16 %v1069, %v1068
    %v1314 = vpack.c.b16 %v1071, %v1070
    %v1315 = vpack.c.b16 %v1073, %v1072
    %v1316 = vpack.c.b16 %v1075, %v1074
    %v1317 = vpack.c.b16 %v1077, %v1076
    %v1318 = vpack.c.b16 %v1079, %v1078
    %v1319 = vpack.c.b16 %v1081, %v1080
    %v1320 = vpack.c.b16 %v1083, %v1082
    %v1321 = vpack.c.b16 %v1085, %v1084
    %v1322 = vpack.c.b16 %v1087, %v1086
    %v1323 = vpack.c.b16 %v1089, %v1088
    %v1324 = vpack.c.b16 %v1091, %v1090
    %v1325 = vpack.c.b16 %v1093, %v1092
    %v1326 = vpack.c.b16 %v1095, %v1094
    %v1327 = vpack.c.b16 %v1097, %v1096
    %v1328 = vpack.c.b16 %v1099, %v1098
    %v1329 = vpack.c.b16 %v1101, %v1100
    %v1330 = vpack.c.b16 %v1103, %v1102
    %v1331 = vpack.c.b16 %v1105, %v1104
    %v1332 = vpack.c.b16 %v1107, %v1106
    %v1333 = vpack.c.b16 %v1109, %v1108
    %v1334 = vpack.c.b16 %v1111, %v1110
    %v1335 = vpack.c.b16 %v1113, %v1112
    %v1336 = vpack.c.b16 %v1115, %v1114
    %v1337 = vpack.c.b16 %v1117, %v1116
    %v1338 = vpack.c.b16 %v1119, %v1118
    %v1339 = vpack.c.b16 %v1121, %v1120
    %v1340 = vpack.c.b16 %v1123, %v1122
    %v1341 = vpack.c.b16 %v1125, %v1124
    %v1342 = vpack.c.b16 %v1127, %v1126
    %v1343 = vpack.c.b16 %v1129, %v1128
    %v1344 = vpack.c.b16 %v1131, %v1130
    %v1345 = vpack.c.b16 %v1133, %v1132
    %v1346 = vpack.c.b16 %v1135, %v1134
    %v1347 = vpack.c.b16 %v1137, %v1136
    %v1348 = vpack.c.b16 %v1139, %v1138
    %v1349 = vpack.c.b16 %v1141, %v1140
    %v1350 = vpack.c.b16 %v1143, %v1142
    %v1351 = vpack.c.b16 %v1145, %v1144
    %v1352 = vpack.c.b16 %v1147, %v1146
    %v1353 = vpack.c.b16 %v1149, %v1148
    %v1354 = vpack.c.b16 %v1151, %v1150
    %v1355 = vpack.c.b16 %v1153, %v1152
    %v1356 = vpack.c.b16 %v1155, %v1154
    %v1357 = vpack.c.b16 %v1157, %v1156
    %v1358 = vpack.c.b16 %v1159, %v1158
    %v1359 = vpack.c.b16 %v1161, %v1160
    %v1360 = vpack.c.b16 %v1163, %v1162
    %v1361 = vpack.c.b16 %v1165, %v1164
    %v1362 = vpack.c.b16 %v1167, %v1166
    %v1363 = vpack.c.b16 %v1169, %v1168
    %v1364 = vpack.c.b16 %v1171, %v1170
    %v1365 = vpack.c.b16 %v1173, %v1172
    %v1366 = vpack.c.b16 %v1175, %v1174
    %v1367 = vpack.c.b16 %v1177, %v1176
    %v1368 = vpack.c.b16 %v1179, %v1178
    %v1369 = vpack.c.b16 %v1181, %v1180
    %v1370 = vpack.c.b16 %v1183, %v1182
    %v1371 = vpack.c.b16 %v1185, %v1184
    %v1372 = vpack.c.b16 %v1187, %v1186
    %v1373 = vpack.c.b16 %v1189, %v1188
    %v1374 = vpack.c.b16 %v1191, %v1190
    %v1375 = vpack.c.b16 %v1193, %v1192
    %v1376 = vpack.c.b16 %v1195, %v1194
    %v1377 = vpack.c.b16 %v1197, %v1196
    %v1378 = vpack.c.b16 %v1199, %v1198
    %v1379 = vpack.c.b16 %v1201, %v1200
    %v1380 = vpack.c.b16 %v1203, %v1202
    %v1381 = vpack.c.b16 %v1205, %v1204
    %v1382 = vpack.c.b16 %v1207, %v1206
    %v1383 = vpack.c.b16 %v1209, %v1208
    %v1384 = vpack.c.b16 %v1211, %v1210
    %v1385 = vpack.c.b16 %v1213, %v1212
    %v1386 = vpack.c.b16 %v1215, %v1214
    %v1387 = vpack.c.b16 %v1217, %v1216
    %v1388 = vpack.c.b16 %v1219, %v1218
    %v1389 = vpack.c.b16 %v1221, %v1220
    %v1390 = vpack.c.b16 %v1223, %v1222
    %v1391 = vpack.c.b16 %v1225, %v1224
    %v1392 = vpack.c.b16 %v1227, %v1226
    %v1393 = vpack.c.b16 %v1229, %v1228
    %v1394 = vpack.c.b16 %v1231, %v1230
    %v1395 = vpack.c.b16 %v1233, %v1232
    %v1396 = vpack.c.b16 %v1235, %v1234
    %v1397 = vpack.c.b16 %v1237, %v1236
    %v1398 = vpack.c.b16 %v1239, %v1238
    %v1399 = vpack.c.b16 %v1241, %v1240
    %v1400 = vpack.c.b16 %v1243, %v1242
    %v1401 = vpack.c.b16 %v1245, %v1244
    %v1402 = vpack.c.b16 %v1247, %v1246
    %v1403 = vpack.c.b16 %v1249, %v1248
    %v1404 = vpack.c.b16 %v1251, %v1250
    %v1405 = vpack.c.b16 %v1253, %v1252
    %v1406 = vpack.c.b16 %v1255, %v1254
    %v1407 = vpack.c.b16 %v1257, %v1256
    %v1408 = vpack.c.b16 %v1259, %v1258
    %v1409 = vpack.c.b16 %v1261, %v1260
    %v1410 = vpack.c.b16 %v1263, %v1262
    %v1411 = vpack.c.b16 %v1265, %v1264
    %v1412 = vpack.c.b16 %v1267, %v1266
    %v1413 = vpack.c.b16 %v1269, %v1268
    %v1414 = vpack.c.b16 %v1271, %v1270
    %v1415 = vpack.c.b16 %v1273, %v1272
    %v1416 = vpack.c.b16 %v1275, %v1274
    %v1417 = vpack.c.b16 %v1277, %v1276
    %v1418 = vpack.c.b16 %v1279, %v1278
    %v1419 = vpack.c.b16 %v1281, %v1280
    %v1420 = vpack.c.b16 %v1283, %v1282
    %v1421 = vpack.c.b16 %v1285, %v1284
    %v1422 = vpack.c.b16 %v1287, %v1286
    %v1423 = vpack.c.b16 %v1289, %v1288
    %v1424 = vpack.c.b16 %v1291, %v1290
    %v1425 = vpack.c.b16 %v1293, %v1292
    %v1426 = vpack.c.b16 %v1295, %v1294
    %v1427 = vpack.c.b16 %v1297, %v1296
    %v1428 = vpack.c.b16 %v1299, %v1298
    %v1429 = vpack.c.b16 %v1301, %v1300
    %v1574 = vunpack.c.l.b16 %v293
    %v1575 = vunpack.c.l.b16 %v294
    %v1576 = vunpack.c.l.b16 %v295
    %v1577 = vunpack.c.l.b16 %v296
    %v1578 = vunpack.c.l.b16 %v297
    %v1579 = vunpack.c.l.b16 %v298
    %v1580 = vunpack.c.l.b16 %v299
    %v1581 = vunpack.c.l.b16 %v300
    %v1582 = vunpack.c.l.b16 %v301
    %v1583 = vunpack.c.l.b16 %v302
    %v1584 = vunpack.c.l.b16 %v303
    %v1585 = vunpack.c.l.b16 %v304
    %v1586 = vunpack.c.l.b16 %v305
    %v1587 = vunpack.c.l.b16 %v306
    %v1588 = vunpack.c.l.b16 %v307
    %v1589 = vunpack.c.l.b16 %v308
    %v1590 = vpack.c.b16 %v1575, %v1574
    %v1591 = vpack.c.b16 %v1577, %v1576
    %v1592 = vpack.c.b16 %v1579, %v1578
    %v1593 = vpack.c.b16 %v1581, %v1580
    %v1594 = vpack.c.b16 %v1583, %v1582
    %v1595 = vpack.c.b16 %v1585, %v1584
    %v1596 = vpack.c.b16 %v1587, %v1586
    %v1597 = vpack.c.b16 %v1589, %v1588
    %1606 = vmatprep.subr.bf16.mxu0 0
    %1607 = vmatpush1.bf16.msra.mxu0 %v1597
    %1608 = vmatprep.subr.bf16.mxu0 0
    %1609 = vmatpush1.bf16.msra.mxu0 %v1596
    %1610 = vmatprep.subr.bf16.mxu0 0
    %1611 = vmatpush1.bf16.msra.mxu0 %v1595
    %1612 = vmatprep.subr.bf16.mxu0 0
    %1613 = vmatpush1.bf16.msra.mxu0 %v1594
    %1614 = vmatprep.subr.bf16.mxu0 0
    %1615 = vmatpush1.bf16.msra.mxu0 %v1593
    %1616 = vmatprep.subr.bf16.mxu0 0
    %1617 = vmatpush1.bf16.msra.mxu0 %v1592
    %1618 = vmatprep.subr.bf16.mxu0 0
    %1619 = vmatpush1.bf16.msra.mxu0 %v1591
    %1620 = vmatprep.subr.bf16.mxu0 0
    %1621 = vmatpush1.bf16.msra.mxu0 %v1590
    %1622 = vmatprep.subr.bf16.mxu0 0
    %1623 = vmatpush2.bf16.msra.mxu0 0
    %1624 = vmatprep.subr.bf16.mxu0 0
    %1625 = vmatpush2.bf16.msra.mxu0 0
    %1626 = vmatprep.subr.bf16.mxu0 0
    %1627 = vmatpush2.bf16.msra.mxu0 0
    %1628 = vmatprep.subr.bf16.mxu0 0
    %1629 = vmatpush2.bf16.msra.mxu0 0
    %1630 = vmatprep.subr.bf16.mxu0 0
    %1631 = vmatpush2.bf16.msra.mxu0 0
    %1632 = vmatprep.subr.bf16.mxu0 0
    %1633 = vmatpush2.bf16.msra.mxu0 0
    %1634 = vmatprep.subr.bf16.mxu0 0
    %1635 = vmatpush2.bf16.msra.mxu0 0
    %1636 = vmatprep.subr.bf16.mxu0 0
    %1637 = vmatpush2.bf16.msra.mxu0 0
    %1638 = vmatprep.mubr.bf16.mxu0 0
    %1639 = vmatmul.mubr.bf16.gmra.mxu0 %v1302
    %v1640 = vpop.f32.mrf.mxu0
    %v1641 = vadd.f32 %v789, %v1640
    %v1642 = vpop.f32.mrf.mxu0
    %v1643 = vpop.f32.mrf.mxu0
    %v1644 = vadd.f32 %v789, %v1643
    %v1645 = vpop.f32.mrf.mxu0
    %1646 = vmatprep.mubr.bf16.mxu0 0
    %1647 = vmatmul.mubr.bf16.gmra.mxu0 %v1303
    %v1648 = vpop.f32.mrf.mxu0
    %v1649 = vadd.f32 %v789, %v1648
    %v1650 = vpop.f32.mrf.mxu0
    %v1651 = vpop.f32.mrf.mxu0
    %v1652 = vadd.f32 %v789, %v1651
    %v1653 = vpop.f32.mrf.mxu0
    %1654 = vmatprep.mubr.bf16.mxu0 0
    %1655 = vmatmul.mubr.bf16.gmra.mxu0 %v1304
    %v1656 = vpop.f32.mrf.mxu0
    %v1657 = vadd.f32 %v789, %v1656
    %v1658 = vpop.f32.mrf.mxu0
    %v1659 = vpop.f32.mrf.mxu0
    %v1660 = vadd.f32 %v789, %v1659
    %v1661 = vpop.f32.mrf.mxu0
    %1662 = vmatprep.mubr.bf16.mxu0 0
    %1663 = vmatmul.mubr.bf16.gmra.mxu0 %v1305
    %v1664 = vpop.f32.mrf.mxu0
    %v1665 = vadd.f32 %v789, %v1664
    %v1666 = vpop.f32.mrf.mxu0
    %v1667 = vpop.f32.mrf.mxu0
    %v1668 = vadd.f32 %v789, %v1667
    %v1669 = vpop.f32.mrf.mxu0
    %1670 = vmatprep.mubr.bf16.mxu0 0
    %1671 = vmatmul.mubr.bf16.gmra.mxu0 %v1306
    %v1672 = vpop.f32.mrf.mxu0
    %v1673 = vadd.f32 %v789, %v1672
    %v1674 = vpop.f32.mrf.mxu0
    %v1675 = vpop.f32.mrf.mxu0
    %v1676 = vadd.f32 %v789, %v1675
    %v1677 = vpop.f32.mrf.mxu0
    %1678 = vmatprep.mubr.bf16.mxu0 0
    %1679 = vmatmul.mubr.bf16.gmra.mxu0 %v1307
    %v1680 = vpop.f32.mrf.mxu0
    %v1681 = vadd.f32 %v789, %v1680
    %v1682 = vpop.f32.mrf.mxu0
    %v1683 = vpop.f32.mrf.mxu0
    %v1684 = vadd.f32 %v789, %v1683
    %v1685 = vpop.f32.mrf.mxu0
    %1686 = vmatprep.mubr.bf16.mxu0 0
    %1687 = vmatmul.mubr.bf16.gmra.mxu0 %v1308
    %v1688 = vpop.f32.mrf.mxu0
    %v1689 = vadd.f32 %v789, %v1688
    %v1690 = vpop.f32.mrf.mxu0
    %v1691 = vpop.f32.mrf.mxu0
    %v1692 = vadd.f32 %v789, %v1691
    %v1693 = vpop.f32.mrf.mxu0
    %1694 = vmatprep.mubr.bf16.mxu0 0
    %1695 = vmatmul.mubr.bf16.gmra.mxu0 %v1309
    %v1696 = vpop.f32.mrf.mxu0
    %v1697 = vadd.f32 %v789, %v1696
    %v1698 = vpop.f32.mrf.mxu0
    %v1699 = vpop.f32.mrf.mxu0
    %v1700 = vadd.f32 %v789, %v1699
    %v1701 = vpop.f32.mrf.mxu0
    %1702 = vmatprep.mubr.bf16.mxu0 0
    %1703 = vmatmul.mubr.bf16.gmra.mxu0 %v1310
    %v1704 = vpop.f32.mrf.mxu0
    %v1705 = vadd.f32 %v789, %v1704
    %v1706 = vpop.f32.mrf.mxu0
    %v1707 = vpop.f32.mrf.mxu0
    %v1708 = vadd.f32 %v789, %v1707
    %v1709 = vpop.f32.mrf.mxu0
    %1710 = vmatprep.mubr.bf16.mxu0 0
    %1711 = vmatmul.mubr.bf16.gmra.mxu0 %v1311
    %v1712 = vpop.f32.mrf.mxu0
    %v1713 = vadd.f32 %v789, %v1712
    %v1714 = vpop.f32.mrf.mxu0
    %v1715 = vpop.f32.mrf.mxu0
    %v1716 = vadd.f32 %v789, %v1715
    %v1717 = vpop.f32.mrf.mxu0
    %1718 = vmatprep.mubr.bf16.mxu0 0
    %1719 = vmatmul.mubr.bf16.gmra.mxu0 %v1312
    %v1720 = vpop.f32.mrf.mxu0
    %v1721 = vadd.f32 %v789, %v1720
    %v1722 = vpop.f32.mrf.mxu0
    %v1723 = vpop.f32.mrf.mxu0
    %v1724 = vadd.f32 %v789, %v1723
    %v1725 = vpop.f32.mrf.mxu0
    %1726 = vmatprep.mubr.bf16.mxu0 0
    %1727 = vmatmul.mubr.bf16.gmra.mxu0 %v1313
    %v1728 = vpop.f32.mrf.mxu0
    %v1729 = vadd.f32 %v789, %v1728
    %v1730 = vpop.f32.mrf.mxu0
    %v1731 = vpop.f32.mrf.mxu0
    %v1732 = vadd.f32 %v789, %v1731
    %v1733 = vpop.f32.mrf.mxu0
    %1734 = vmatprep.mubr.bf16.mxu0 0
    %1735 = vmatmul.mubr.bf16.gmra.mxu0 %v1314
    %v1736 = vpop.f32.mrf.mxu0
    %v1737 = vadd.f32 %v789, %v1736
    %v1738 = vpop.f32.mrf.mxu0
    %v1739 = vpop.f32.mrf.mxu0
    %v1740 = vadd.f32 %v789, %v1739
    %v1741 = vpop.f32.mrf.mxu0
    %1742 = vmatprep.mubr.bf16.mxu0 0
    %1743 = vmatmul.mubr.bf16.gmra.mxu0 %v1315
    %v1744 = vpop.f32.mrf.mxu0
    %v1745 = vadd.f32 %v789, %v1744
    %v1746 = vpop.f32.mrf.mxu0
    %v1747 = vpop.f32.mrf.mxu0
    %v1748 = vadd.f32 %v789, %v1747
    %v1749 = vpop.f32.mrf.mxu0
    %1750 = vmatprep.mubr.bf16.mxu0 0
    %1751 = vmatmul.mubr.bf16.gmra.mxu0 %v1316
    %v1752 = vpop.f32.mrf.mxu0
    %v1753 = vadd.f32 %v789, %v1752
    %v1754 = vpop.f32.mrf.mxu0
    %v1755 = vpop.f32.mrf.mxu0
    %v1756 = vadd.f32 %v789, %v1755
    %v1757 = vpop.f32.mrf.mxu0
    %1758 = vmatprep.mubr.bf16.mxu0 0
    %1759 = vmatmul.mubr.bf16.gmra.mxu0 %v1317
    %v1760 = vpop.f32.mrf.mxu0
    %v1761 = vadd.f32 %v789, %v1760
    %v1762 = vpop.f32.mrf.mxu0
    %v1763 = vpop.f32.mrf.mxu0
    %v1764 = vadd.f32 %v789, %v1763
    %v1765 = vpop.f32.mrf.mxu0
    %1766 = vmatprep.mubr.bf16.mxu0 0
    %1767 = vmatmul.mubr.bf16.gmra.mxu0 %v1318
    %v1768 = vpop.f32.mrf.mxu0
    %v1769 = vadd.f32 %v789, %v1768
    %v1770 = vpop.f32.mrf.mxu0
    %v1771 = vpop.f32.mrf.mxu0
    %v1772 = vadd.f32 %v789, %v1771
    %v1773 = vpop.f32.mrf.mxu0
    %1774 = vmatprep.mubr.bf16.mxu0 0
    %1775 = vmatmul.mubr.bf16.gmra.mxu0 %v1319
    %v1776 = vpop.f32.mrf.mxu0
    %v1777 = vadd.f32 %v789, %v1776
    %v1778 = vpop.f32.mrf.mxu0
    %v1779 = vpop.f32.mrf.mxu0
    %v1780 = vadd.f32 %v789, %v1779
    %v1781 = vpop.f32.mrf.mxu0
    %1782 = vmatprep.mubr.bf16.mxu0 0
    %1783 = vmatmul.mubr.bf16.gmra.mxu0 %v1320
    %v1784 = vpop.f32.mrf.mxu0
    %v1785 = vadd.f32 %v789, %v1784
    %v1786 = vpop.f32.mrf.mxu0
    %v1787 = vpop.f32.mrf.mxu0
    %v1788 = vadd.f32 %v789, %v1787
    %v1789 = vpop.f32.mrf.mxu0
    %1790 = vmatprep.mubr.bf16.mxu0 0
    %1791 = vmatmul.mubr.bf16.gmra.mxu0 %v1321
    %v1792 = vpop.f32.mrf.mxu0
    %v1793 = vadd.f32 %v789, %v1792
    %v1794 = vpop.f32.mrf.mxu0
    %v1795 = vpop.f32.mrf.mxu0
    %v1796 = vadd.f32 %v789, %v1795
    %v1797 = vpop.f32.mrf.mxu0
    %1798 = vmatprep.mubr.bf16.mxu0 0
    %1799 = vmatmul.mubr.bf16.gmra.mxu0 %v1322
    %v1800 = vpop.f32.mrf.mxu0
    %v1801 = vadd.f32 %v789, %v1800
    %v1802 = vpop.f32.mrf.mxu0
    %v1803 = vpop.f32.mrf.mxu0
    %v1804 = vadd.f32 %v789, %v1803
    %v1805 = vpop.f32.mrf.mxu0
    %1806 = vmatprep.mubr.bf16.mxu0 0
    %1807 = vmatmul.mubr.bf16.gmra.mxu0 %v1323
    %v1808 = vpop.f32.mrf.mxu0
    %v1809 = vadd.f32 %v789, %v1808
    %v1810 = vpop.f32.mrf.mxu0
    %v1811 = vpop.f32.mrf.mxu0
    %v1812 = vadd.f32 %v789, %v1811
    %v1813 = vpop.f32.mrf.mxu0
    %1814 = vmatprep.mubr.bf16.mxu0 0
    %1815 = vmatmul.mubr.bf16.gmra.mxu0 %v1324
    %v1816 = vpop.f32.mrf.mxu0
    %v1817 = vadd.f32 %v789, %v1816
    %v1818 = vpop.f32.mrf.mxu0
    %v1819 = vpop.f32.mrf.mxu0
    %v1820 = vadd.f32 %v789, %v1819
    %v1821 = vpop.f32.mrf.mxu0
    %1822 = vmatprep.mubr.bf16.mxu0 0
    %1823 = vmatmul.mubr.bf16.gmra.mxu0 %v1325
    %v1824 = vpop.f32.mrf.mxu0
    %v1825 = vadd.f32 %v789, %v1824
    %v1826 = vpop.f32.mrf.mxu0
    %v1827 = vpop.f32.mrf.mxu0
    %v1828 = vadd.f32 %v789, %v1827
    %v1829 = vpop.f32.mrf.mxu0
    %1830 = vmatprep.mubr.bf16.mxu0 0
    %1831 = vmatmul.mubr.bf16.gmra.mxu0 %v1326
    %v1832 = vpop.f32.mrf.mxu0
    %v1833 = vadd.f32 %v789, %v1832
    %v1834 = vpop.f32.mrf.mxu0
    %v1835 = vpop.f32.mrf.mxu0
    %v1836 = vadd.f32 %v789, %v1835
    %v1837 = vpop.f32.mrf.mxu0
    %1838 = vmatprep.mubr.bf16.mxu0 0
    %1839 = vmatmul.mubr.bf16.gmra.mxu0 %v1327
    %v1840 = vpop.f32.mrf.mxu0
    %v1841 = vadd.f32 %v789, %v1840
    %v1842 = vpop.f32.mrf.mxu0
    %v1843 = vpop.f32.mrf.mxu0
    %v1844 = vadd.f32 %v789, %v1843
    %v1845 = vpop.f32.mrf.mxu0
    %1846 = vmatprep.mubr.bf16.mxu0 0
    %1847 = vmatmul.mubr.bf16.gmra.mxu0 %v1328
    %v1848 = vpop.f32.mrf.mxu0
    %v1849 = vadd.f32 %v789, %v1848
    %v1850 = vpop.f32.mrf.mxu0
    %v1851 = vpop.f32.mrf.mxu0
    %v1852 = vadd.f32 %v789, %v1851
    %v1853 = vpop.f32.mrf.mxu0
    %1854 = vmatprep.mubr.bf16.mxu0 0
    %1855 = vmatmul.mubr.bf16.gmra.mxu0 %v1329
    %v1856 = vpop.f32.mrf.mxu0
    %v1857 = vadd.f32 %v789, %v1856
    %v1858 = vpop.f32.mrf.mxu0
    %v1859 = vpop.f32.mrf.mxu0
    %v1860 = vadd.f32 %v789, %v1859
    %v1861 = vpop.f32.mrf.mxu0
    %1862 = vmatprep.mubr.bf16.mxu0 0
    %1863 = vmatmul.mubr.bf16.gmra.mxu0 %v1330
    %v1864 = vpop.f32.mrf.mxu0
    %v1865 = vadd.f32 %v789, %v1864
    %v1866 = vpop.f32.mrf.mxu0
    %v1867 = vpop.f32.mrf.mxu0
    %v1868 = vadd.f32 %v789, %v1867
    %v1869 = vpop.f32.mrf.mxu0
    %1870 = vmatprep.mubr.bf16.mxu0 0
    %1871 = vmatmul.mubr.bf16.gmra.mxu0 %v1331
    %v1872 = vpop.f32.mrf.mxu0
    %v1873 = vadd.f32 %v789, %v1872
    %v1874 = vpop.f32.mrf.mxu0
    %v1875 = vpop.f32.mrf.mxu0
    %v1876 = vadd.f32 %v789, %v1875
    %v1877 = vpop.f32.mrf.mxu0
    %1878 = vmatprep.mubr.bf16.mxu0 0
    %1879 = vmatmul.mubr.bf16.gmra.mxu0 %v1332
    %v1880 = vpop.f32.mrf.mxu0
    %v1881 = vadd.f32 %v789, %v1880
    %v1882 = vpop.f32.mrf.mxu0
    %v1883 = vpop.f32.mrf.mxu0
    %v1884 = vadd.f32 %v789, %v1883
    %v1885 = vpop.f32.mrf.mxu0
    %1886 = vmatprep.mubr.bf16.mxu0 0
    %1887 = vmatmul.mubr.bf16.gmra.mxu0 %v1333
    %v1888 = vpop.f32.mrf.mxu0
    %v1889 = vadd.f32 %v789, %v1888
    %v1890 = vpop.f32.mrf.mxu0
    %v1891 = vpop.f32.mrf.mxu0
    %v1892 = vadd.f32 %v789, %v1891
    %v1893 = vpop.f32.mrf.mxu0
    %1894 = vmatprep.mubr.bf16.mxu0 0
    %1895 = vmatmul.mubr.bf16.gmra.mxu0 %v1334
    %v1896 = vpop.f32.mrf.mxu0
    %v1897 = vadd.f32 %v789, %v1896
    %v1898 = vpop.f32.mrf.mxu0
    %v1899 = vpop.f32.mrf.mxu0
    %v1900 = vadd.f32 %v789, %v1899
    %v1901 = vpop.f32.mrf.mxu0
    %1902 = vmatprep.mubr.bf16.mxu0 0
    %1903 = vmatmul.mubr.bf16.gmra.mxu0 %v1335
    %v1904 = vpop.f32.mrf.mxu0
    %v1905 = vadd.f32 %v789, %v1904
    %v1906 = vpop.f32.mrf.mxu0
    %v1907 = vpop.f32.mrf.mxu0
    %v1908 = vadd.f32 %v789, %v1907
    %v1909 = vpop.f32.mrf.mxu0
    %1910 = vmatprep.mubr.bf16.mxu0 0
    %1911 = vmatmul.mubr.bf16.gmra.mxu0 %v1336
    %v1912 = vpop.f32.mrf.mxu0
    %v1913 = vadd.f32 %v789, %v1912
    %v1914 = vpop.f32.mrf.mxu0
    %v1915 = vpop.f32.mrf.mxu0
    %v1916 = vadd.f32 %v789, %v1915
    %v1917 = vpop.f32.mrf.mxu0
    %1918 = vmatprep.mubr.bf16.mxu0 0
    %1919 = vmatmul.mubr.bf16.gmra.mxu0 %v1337
    %v1920 = vpop.f32.mrf.mxu0
    %v1921 = vadd.f32 %v789, %v1920
    %v1922 = vpop.f32.mrf.mxu0
    %v1923 = vpop.f32.mrf.mxu0
    %v1924 = vadd.f32 %v789, %v1923
    %v1925 = vpop.f32.mrf.mxu0
    %1926 = vmatprep.mubr.bf16.mxu0 0
    %1927 = vmatmul.mubr.bf16.gmra.mxu0 %v1338
    %v1928 = vpop.f32.mrf.mxu0
    %v1929 = vadd.f32 %v789, %v1928
    %v1930 = vpop.f32.mrf.mxu0
    %v1931 = vpop.f32.mrf.mxu0
    %v1932 = vadd.f32 %v789, %v1931
    %v1933 = vpop.f32.mrf.mxu0
    %1934 = vmatprep.mubr.bf16.mxu0 0
    %1935 = vmatmul.mubr.bf16.gmra.mxu0 %v1339
    %v1936 = vpop.f32.mrf.mxu0
    %v1937 = vadd.f32 %v789, %v1936
    %v1938 = vpop.f32.mrf.mxu0
    %v1939 = vpop.f32.mrf.mxu0
    %v1940 = vadd.f32 %v789, %v1939
    %v1941 = vpop.f32.mrf.mxu0
    %1942 = vmatprep.mubr.bf16.mxu0 0
    %1943 = vmatmul.mubr.bf16.gmra.mxu0 %v1340
    %v1944 = vpop.f32.mrf.mxu0
    %v1945 = vadd.f32 %v789, %v1944
    %v1946 = vpop.f32.mrf.mxu0
    %v1947 = vpop.f32.mrf.mxu0
    %v1948 = vadd.f32 %v789, %v1947
    %v1949 = vpop.f32.mrf.mxu0
    %1950 = vmatprep.mubr.bf16.mxu0 0
    %1951 = vmatmul.mubr.bf16.gmra.mxu0 %v1341
    %v1952 = vpop.f32.mrf.mxu0
    %v1953 = vadd.f32 %v789, %v1952
    %v1954 = vpop.f32.mrf.mxu0
    %v1955 = vpop.f32.mrf.mxu0
    %v1956 = vadd.f32 %v789, %v1955
    %v1957 = vpop.f32.mrf.mxu0
    %1958 = vmatprep.mubr.bf16.mxu0 0
    %1959 = vmatmul.mubr.bf16.gmra.mxu0 %v1342
    %v1960 = vpop.f32.mrf.mxu0
    %v1961 = vadd.f32 %v789, %v1960
    %v1962 = vpop.f32.mrf.mxu0
    %v1963 = vpop.f32.mrf.mxu0
    %v1964 = vadd.f32 %v789, %v1963
    %v1965 = vpop.f32.mrf.mxu0
    %1966 = vmatprep.mubr.bf16.mxu0 0
    %1967 = vmatmul.mubr.bf16.gmra.mxu0 %v1343
    %v1968 = vpop.f32.mrf.mxu0
    %v1969 = vadd.f32 %v789, %v1968
    %v1970 = vpop.f32.mrf.mxu0
    %v1971 = vpop.f32.mrf.mxu0
    %v1972 = vadd.f32 %v789, %v1971
    %v1973 = vpop.f32.mrf.mxu0
    %1974 = vmatprep.mubr.bf16.mxu0 0
    %1975 = vmatmul.mubr.bf16.gmra.mxu0 %v1344
    %v1976 = vpop.f32.mrf.mxu0
    %v1977 = vadd.f32 %v789, %v1976
    %v1978 = vpop.f32.mrf.mxu0
    %v1979 = vpop.f32.mrf.mxu0
    %v1980 = vadd.f32 %v789, %v1979
    %v1981 = vpop.f32.mrf.mxu0
    %1982 = vmatprep.mubr.bf16.mxu0 0
    %1983 = vmatmul.mubr.bf16.gmra.mxu0 %v1345
    %v1984 = vpop.f32.mrf.mxu0
    %v1985 = vadd.f32 %v789, %v1984
    %v1986 = vpop.f32.mrf.mxu0
    %v1987 = vpop.f32.mrf.mxu0
    %v1988 = vadd.f32 %v789, %v1987
    %v1989 = vpop.f32.mrf.mxu0
    %1990 = vmatprep.mubr.bf16.mxu0 0
    %1991 = vmatmul.mubr.bf16.gmra.mxu0 %v1346
    %v1992 = vpop.f32.mrf.mxu0
    %v1993 = vadd.f32 %v789, %v1992
    %v1994 = vpop.f32.mrf.mxu0
    %v1995 = vpop.f32.mrf.mxu0
    %v1996 = vadd.f32 %v789, %v1995
    %v1997 = vpop.f32.mrf.mxu0
    %1998 = vmatprep.mubr.bf16.mxu0 0
    %1999 = vmatmul.mubr.bf16.gmra.mxu0 %v1347
    %v2000 = vpop.f32.mrf.mxu0
    %v2001 = vadd.f32 %v789, %v2000
    %v2002 = vpop.f32.mrf.mxu0
    %v2003 = vpop.f32.mrf.mxu0
    %v2004 = vadd.f32 %v789, %v2003
    %v2005 = vpop.f32.mrf.mxu0
    %2006 = vmatprep.mubr.bf16.mxu0 0
    %2007 = vmatmul.mubr.bf16.gmra.mxu0 %v1348
    %v2008 = vpop.f32.mrf.mxu0
    %v2009 = vadd.f32 %v789, %v2008
    %v2010 = vpop.f32.mrf.mxu0
    %v2011 = vpop.f32.mrf.mxu0
    %v2012 = vadd.f32 %v789, %v2011
    %v2013 = vpop.f32.mrf.mxu0
    %2014 = vmatprep.mubr.bf16.mxu0 0
    %2015 = vmatmul.mubr.bf16.gmra.mxu0 %v1349
    %v2016 = vpop.f32.mrf.mxu0
    %v2017 = vadd.f32 %v789, %v2016
    %v2018 = vpop.f32.mrf.mxu0
    %v2019 = vpop.f32.mrf.mxu0
    %v2020 = vadd.f32 %v789, %v2019
    %v2021 = vpop.f32.mrf.mxu0
    %2022 = vmatprep.mubr.bf16.mxu0 0
    %2023 = vmatmul.mubr.bf16.gmra.mxu0 %v1350
    %v2024 = vpop.f32.mrf.mxu0
    %v2025 = vadd.f32 %v789, %v2024
    %v2026 = vpop.f32.mrf.mxu0
    %v2027 = vpop.f32.mrf.mxu0
    %v2028 = vadd.f32 %v789, %v2027
    %v2029 = vpop.f32.mrf.mxu0
    %2030 = vmatprep.mubr.bf16.mxu0 0
    %2031 = vmatmul.mubr.bf16.gmra.mxu0 %v1351
    %v2032 = vpop.f32.mrf.mxu0
    %v2033 = vadd.f32 %v789, %v2032
    %v2034 = vpop.f32.mrf.mxu0
    %v2035 = vpop.f32.mrf.mxu0
    %v2036 = vadd.f32 %v789, %v2035
    %v2037 = vpop.f32.mrf.mxu0
    %2038 = vmatprep.mubr.bf16.mxu0 0
    %2039 = vmatmul.mubr.bf16.gmra.mxu0 %v1352
    %v2040 = vpop.f32.mrf.mxu0
    %v2041 = vadd.f32 %v789, %v2040
    %v2042 = vpop.f32.mrf.mxu0
    %v2043 = vpop.f32.mrf.mxu0
    %v2044 = vadd.f32 %v789, %v2043
    %v2045 = vpop.f32.mrf.mxu0
    %2046 = vmatprep.mubr.bf16.mxu0 0
    %2047 = vmatmul.mubr.bf16.gmra.mxu0 %v1353
    %v2048 = vpop.f32.mrf.mxu0
    %v2049 = vadd.f32 %v789, %v2048
    %v2050 = vpop.f32.mrf.mxu0
    %v2051 = vpop.f32.mrf.mxu0
    %v2052 = vadd.f32 %v789, %v2051
    %v2053 = vpop.f32.mrf.mxu0
    %2054 = vmatprep.mubr.bf16.mxu0 0
    %2055 = vmatmul.mubr.bf16.gmra.mxu0 %v1354
    %v2056 = vpop.f32.mrf.mxu0
    %v2057 = vadd.f32 %v789, %v2056
    %v2058 = vpop.f32.mrf.mxu0
    %v2059 = vpop.f32.mrf.mxu0
    %v2060 = vadd.f32 %v789, %v2059
    %v2061 = vpop.f32.mrf.mxu0
    %2062 = vmatprep.mubr.bf16.mxu0 0
    %2063 = vmatmul.mubr.bf16.gmra.mxu0 %v1355
    %v2064 = vpop.f32.mrf.mxu0
    %v2065 = vadd.f32 %v789, %v2064
    %v2066 = vpop.f32.mrf.mxu0
    %v2067 = vpop.f32.mrf.mxu0
    %v2068 = vadd.f32 %v789, %v2067
    %v2069 = vpop.f32.mrf.mxu0
    %2070 = vmatprep.mubr.bf16.mxu0 0
    %2071 = vmatmul.mubr.bf16.gmra.mxu0 %v1356
    %v2072 = vpop.f32.mrf.mxu0
    %v2073 = vadd.f32 %v789, %v2072
    %v2074 = vpop.f32.mrf.mxu0
    %v2075 = vpop.f32.mrf.mxu0
    %v2076 = vadd.f32 %v789, %v2075
    %v2077 = vpop.f32.mrf.mxu0
    %2078 = vmatprep.mubr.bf16.mxu0 0
    %2079 = vmatmul.mubr.bf16.gmra.mxu0 %v1357
    %v2080 = vpop.f32.mrf.mxu0
    %v2081 = vadd.f32 %v789, %v2080
    %v2082 = vpop.f32.mrf.mxu0
    %v2083 = vpop.f32.mrf.mxu0
    %v2084 = vadd.f32 %v789, %v2083
    %v2085 = vpop.f32.mrf.mxu0
    %2086 = vmatprep.mubr.bf16.mxu0 0
    %2087 = vmatmul.mubr.bf16.gmra.mxu0 %v1358
    %v2088 = vpop.f32.mrf.mxu0
    %v2089 = vadd.f32 %v789, %v2088
    %v2090 = vpop.f32.mrf.mxu0
    %v2091 = vpop.f32.mrf.mxu0
    %v2092 = vadd.f32 %v789, %v2091
    %v2093 = vpop.f32.mrf.mxu0
    %2094 = vmatprep.mubr.bf16.mxu0 0
    %2095 = vmatmul.mubr.bf16.gmra.mxu0 %v1359
    %v2096 = vpop.f32.mrf.mxu0
    %v2097 = vadd.f32 %v789, %v2096
    %v2098 = vpop.f32.mrf.mxu0
    %v2099 = vpop.f32.mrf.mxu0
    %v2100 = vadd.f32 %v789, %v2099
    %v2101 = vpop.f32.mrf.mxu0
    %2102 = vmatprep.mubr.bf16.mxu0 0
    %2103 = vmatmul.mubr.bf16.gmra.mxu0 %v1360
    %v2104 = vpop.f32.mrf.mxu0
    %v2105 = vadd.f32 %v789, %v2104
    %v2106 = vpop.f32.mrf.mxu0
    %v2107 = vpop.f32.mrf.mxu0
    %v2108 = vadd.f32 %v789, %v2107
    %v2109 = vpop.f32.mrf.mxu0
    %2110 = vmatprep.mubr.bf16.mxu0 0
    %2111 = vmatmul.mubr.bf16.gmra.mxu0 %v1361
    %v2112 = vpop.f32.mrf.mxu0
    %v2113 = vadd.f32 %v789, %v2112
    %v2114 = vpop.f32.mrf.mxu0
    %v2115 = vpop.f32.mrf.mxu0
    %v2116 = vadd.f32 %v789, %v2115
    %v2117 = vpop.f32.mrf.mxu0
    %2118 = vmatprep.mubr.bf16.mxu0 0
    %2119 = vmatmul.mubr.bf16.gmra.mxu0 %v1362
    %v2120 = vpop.f32.mrf.mxu0
    %v2121 = vadd.f32 %v789, %v2120
    %v2122 = vpop.f32.mrf.mxu0
    %v2123 = vpop.f32.mrf.mxu0
    %v2124 = vadd.f32 %v789, %v2123
    %v2125 = vpop.f32.mrf.mxu0
    %2126 = vmatprep.mubr.bf16.mxu0 0
    %2127 = vmatmul.mubr.bf16.gmra.mxu0 %v1363
    %v2128 = vpop.f32.mrf.mxu0
    %v2129 = vadd.f32 %v789, %v2128
    %v2130 = vpop.f32.mrf.mxu0
    %v2131 = vpop.f32.mrf.mxu0
    %v2132 = vadd.f32 %v789, %v2131
    %v2133 = vpop.f32.mrf.mxu0
    %2134 = vmatprep.mubr.bf16.mxu0 0
    %2135 = vmatmul.mubr.bf16.gmra.mxu0 %v1364
    %v2136 = vpop.f32.mrf.mxu0
    %v2137 = vadd.f32 %v789, %v2136
    %v2138 = vpop.f32.mrf.mxu0
    %v2139 = vpop.f32.mrf.mxu0
    %v2140 = vadd.f32 %v789, %v2139
    %v2141 = vpop.f32.mrf.mxu0
    %2142 = vmatprep.mubr.bf16.mxu0 0
    %2143 = vmatmul.mubr.bf16.gmra.mxu0 %v1365
    %v2144 = vpop.f32.mrf.mxu0
    %v2145 = vadd.f32 %v789, %v2144
    %v2146 = vpop.f32.mrf.mxu0
    %v2147 = vpop.f32.mrf.mxu0
    %v2148 = vadd.f32 %v789, %v2147
    %v2149 = vpop.f32.mrf.mxu0
    %2150 = vmatprep.mubr.bf16.mxu0 0
    %2151 = vmatmul.mubr.bf16.gmra.mxu0 %v1366
    %v2152 = vpop.f32.mrf.mxu0
    %v2153 = vadd.f32 %v789, %v2152
    %v2154 = vpop.f32.mrf.mxu0
    %v2155 = vpop.f32.mrf.mxu0
    %v2156 = vadd.f32 %v789, %v2155
    %v2157 = vpop.f32.mrf.mxu0
    %2158 = vmatprep.mubr.bf16.mxu0 0
    %2159 = vmatmul.mubr.bf16.gmra.mxu0 %v1367
    %v2160 = vpop.f32.mrf.mxu0
    %v2161 = vadd.f32 %v789, %v2160
    %v2162 = vpop.f32.mrf.mxu0
    %v2163 = vpop.f32.mrf.mxu0
    %v2164 = vadd.f32 %v789, %v2163
    %v2165 = vpop.f32.mrf.mxu0
    %2166 = vmatprep.mubr.bf16.mxu0 0
    %2167 = vmatmul.mubr.bf16.gmra.mxu0 %v1368
    %v2168 = vpop.f32.mrf.mxu0
    %v2169 = vadd.f32 %v789, %v2168
    %v2170 = vpop.f32.mrf.mxu0
    %v2171 = vpop.f32.mrf.mxu0
    %v2172 = vadd.f32 %v789, %v2171
    %v2173 = vpop.f32.mrf.mxu0
    %2174 = vmatprep.mubr.bf16.mxu0 0
    %2175 = vmatmul.mubr.bf16.gmra.mxu0 %v1369
    %v2176 = vpop.f32.mrf.mxu0
    %v2177 = vadd.f32 %v789, %v2176
    %v2178 = vpop.f32.mrf.mxu0
    %v2179 = vpop.f32.mrf.mxu0
    %v2180 = vadd.f32 %v789, %v2179
    %v2181 = vpop.f32.mrf.mxu0
    %2182 = vmatprep.mubr.bf16.mxu0 0
    %2183 = vmatmul.mubr.bf16.gmra.mxu0 %v1370
    %v2184 = vpop.f32.mrf.mxu0
    %v2185 = vadd.f32 %v789, %v2184
    %v2186 = vpop.f32.mrf.mxu0
    %v2187 = vpop.f32.mrf.mxu0
    %v2188 = vadd.f32 %v789, %v2187
    %v2189 = vpop.f32.mrf.mxu0
    %2190 = vmatprep.mubr.bf16.mxu0 0
    %2191 = vmatmul.mubr.bf16.gmra.mxu0 %v1371
    %v2192 = vpop.f32.mrf.mxu0
    %v2193 = vadd.f32 %v789, %v2192
    %v2194 = vpop.f32.mrf.mxu0
    %v2195 = vpop.f32.mrf.mxu0
    %v2196 = vadd.f32 %v789, %v2195
    %v2197 = vpop.f32.mrf.mxu0
    %2198 = vmatprep.mubr.bf16.mxu0 0
    %2199 = vmatmul.mubr.bf16.gmra.mxu0 %v1372
    %v2200 = vpop.f32.mrf.mxu0
    %v2201 = vadd.f32 %v789, %v2200
    %v2202 = vpop.f32.mrf.mxu0
    %v2203 = vpop.f32.mrf.mxu0
    %v2204 = vadd.f32 %v789, %v2203
    %v2205 = vpop.f32.mrf.mxu0
    %2206 = vmatprep.mubr.bf16.mxu0 0
    %2207 = vmatmul.mubr.bf16.gmra.mxu0 %v1373
    %v2208 = vpop.f32.mrf.mxu0
    %v2209 = vadd.f32 %v789, %v2208
    %v2210 = vpop.f32.mrf.mxu0
    %v2211 = vpop.f32.mrf.mxu0
    %v2212 = vadd.f32 %v789, %v2211
    %v2213 = vpop.f32.mrf.mxu0
    %2214 = vmatprep.mubr.bf16.mxu0 0
    %2215 = vmatmul.mubr.bf16.gmra.mxu0 %v1374
    %v2216 = vpop.f32.mrf.mxu0
    %v2217 = vadd.f32 %v789, %v2216
    %v2218 = vpop.f32.mrf.mxu0
    %v2219 = vpop.f32.mrf.mxu0
    %v2220 = vadd.f32 %v789, %v2219
    %v2221 = vpop.f32.mrf.mxu0
    %2222 = vmatprep.mubr.bf16.mxu0 0
    %2223 = vmatmul.mubr.bf16.gmra.mxu0 %v1375
    %v2224 = vpop.f32.mrf.mxu0
    %v2225 = vadd.f32 %v789, %v2224
    %v2226 = vpop.f32.mrf.mxu0
    %v2227 = vpop.f32.mrf.mxu0
    %v2228 = vadd.f32 %v789, %v2227
    %v2229 = vpop.f32.mrf.mxu0
    %2230 = vmatprep.mubr.bf16.mxu0 0
    %2231 = vmatmul.mubr.bf16.gmra.mxu0 %v1376
    %v2232 = vpop.f32.mrf.mxu0
    %v2233 = vadd.f32 %v789, %v2232
    %v2234 = vpop.f32.mrf.mxu0
    %v2235 = vpop.f32.mrf.mxu0
    %v2236 = vadd.f32 %v789, %v2235
    %v2237 = vpop.f32.mrf.mxu0
    %2238 = vmatprep.mubr.bf16.mxu0 0
    %2239 = vmatmul.mubr.bf16.gmra.mxu0 %v1377
    %v2240 = vpop.f32.mrf.mxu0
    %v2241 = vadd.f32 %v789, %v2240
    %v2242 = vpop.f32.mrf.mxu0
    %v2243 = vpop.f32.mrf.mxu0
    %v2244 = vadd.f32 %v789, %v2243
    %v2245 = vpop.f32.mrf.mxu0
    %2246 = vmatprep.mubr.bf16.mxu0 0
    %2247 = vmatmul.mubr.bf16.gmra.mxu0 %v1378
    %v2248 = vpop.f32.mrf.mxu0
    %v2249 = vadd.f32 %v789, %v2248
    %v2250 = vpop.f32.mrf.mxu0
    %v2251 = vpop.f32.mrf.mxu0
    %v2252 = vadd.f32 %v789, %v2251
    %v2253 = vpop.f32.mrf.mxu0
    %2254 = vmatprep.mubr.bf16.mxu0 0
    %2255 = vmatmul.mubr.bf16.gmra.mxu0 %v1379
    %v2256 = vpop.f32.mrf.mxu0
    %v2257 = vadd.f32 %v789, %v2256
    %v2258 = vpop.f32.mrf.mxu0
    %v2259 = vpop.f32.mrf.mxu0
    %v2260 = vadd.f32 %v789, %v2259
    %v2261 = vpop.f32.mrf.mxu0
    %2262 = vmatprep.mubr.bf16.mxu0 0
    %2263 = vmatmul.mubr.bf16.gmra.mxu0 %v1380
    %v2264 = vpop.f32.mrf.mxu0
    %v2265 = vadd.f32 %v789, %v2264
    %v2266 = vpop.f32.mrf.mxu0
    %v2267 = vpop.f32.mrf.mxu0
    %v2268 = vadd.f32 %v789, %v2267
    %v2269 = vpop.f32.mrf.mxu0
    %2270 = vmatprep.mubr.bf16.mxu0 0
    %2271 = vmatmul.mubr.bf16.gmra.mxu0 %v1381
    %v2272 = vpop.f32.mrf.mxu0
    %v2273 = vadd.f32 %v789, %v2272
    %v2274 = vpop.f32.mrf.mxu0
    %v2275 = vpop.f32.mrf.mxu0
    %v2276 = vadd.f32 %v789, %v2275
    %v2277 = vpop.f32.mrf.mxu0
    %2278 = vmatprep.mubr.bf16.mxu0 0
    %2279 = vmatmul.mubr.bf16.gmra.mxu0 %v1382
    %v2280 = vpop.f32.mrf.mxu0
    %v2281 = vadd.f32 %v789, %v2280
    %v2282 = vpop.f32.mrf.mxu0
    %v2283 = vpop.f32.mrf.mxu0
    %v2284 = vadd.f32 %v789, %v2283
    %v2285 = vpop.f32.mrf.mxu0
    %2286 = vmatprep.mubr.bf16.mxu0 0
    %2287 = vmatmul.mubr.bf16.gmra.mxu0 %v1383
    %v2288 = vpop.f32.mrf.mxu0
    %v2289 = vadd.f32 %v789, %v2288
    %v2290 = vpop.f32.mrf.mxu0
    %v2291 = vpop.f32.mrf.mxu0
    %v2292 = vadd.f32 %v789, %v2291
    %v2293 = vpop.f32.mrf.mxu0
    %2294 = vmatprep.mubr.bf16.mxu0 0
    %2295 = vmatmul.mubr.bf16.gmra.mxu0 %v1384
    %v2296 = vpop.f32.mrf.mxu0
    %v2297 = vadd.f32 %v789, %v2296
    %v2298 = vpop.f32.mrf.mxu0
    %v2299 = vpop.f32.mrf.mxu0
    %v2300 = vadd.f32 %v789, %v2299
    %v2301 = vpop.f32.mrf.mxu0
    %2302 = vmatprep.mubr.bf16.mxu0 0
    %2303 = vmatmul.mubr.bf16.gmra.mxu0 %v1385
    %v2304 = vpop.f32.mrf.mxu0
    %v2305 = vadd.f32 %v789, %v2304
    %v2306 = vpop.f32.mrf.mxu0
    %v2307 = vpop.f32.mrf.mxu0
    %v2308 = vadd.f32 %v789, %v2307
    %v2309 = vpop.f32.mrf.mxu0
    %2310 = vmatprep.mubr.bf16.mxu0 0
    %2311 = vmatmul.mubr.bf16.gmra.mxu0 %v1386
    %v2312 = vpop.f32.mrf.mxu0
    %v2313 = vadd.f32 %v789, %v2312
    %v2314 = vpop.f32.mrf.mxu0
    %v2315 = vpop.f32.mrf.mxu0
    %v2316 = vadd.f32 %v789, %v2315
    %v2317 = vpop.f32.mrf.mxu0
    %2318 = vmatprep.mubr.bf16.mxu0 0
    %2319 = vmatmul.mubr.bf16.gmra.mxu0 %v1387
    %v2320 = vpop.f32.mrf.mxu0
    %v2321 = vadd.f32 %v789, %v2320
    %v2322 = vpop.f32.mrf.mxu0
    %v2323 = vpop.f32.mrf.mxu0
    %v2324 = vadd.f32 %v789, %v2323
    %v2325 = vpop.f32.mrf.mxu0
    %2326 = vmatprep.mubr.bf16.mxu0 0
    %2327 = vmatmul.mubr.bf16.gmra.mxu0 %v1388
    %v2328 = vpop.f32.mrf.mxu0
    %v2329 = vadd.f32 %v789, %v2328
    %v2330 = vpop.f32.mrf.mxu0
    %v2331 = vpop.f32.mrf.mxu0
    %v2332 = vadd.f32 %v789, %v2331
    %v2333 = vpop.f32.mrf.mxu0
    %2334 = vmatprep.mubr.bf16.mxu0 0
    %2335 = vmatmul.mubr.bf16.gmra.mxu0 %v1389
    %v2336 = vpop.f32.mrf.mxu0
    %v2337 = vadd.f32 %v789, %v2336
    %v2338 = vpop.f32.mrf.mxu0
    %v2339 = vpop.f32.mrf.mxu0
    %v2340 = vadd.f32 %v789, %v2339
    %v2341 = vpop.f32.mrf.mxu0
    %2342 = vmatprep.mubr.bf16.mxu0 0
    %2343 = vmatmul.mubr.bf16.gmra.mxu0 %v1390
    %v2344 = vpop.f32.mrf.mxu0
    %v2345 = vadd.f32 %v789, %v2344
    %v2346 = vpop.f32.mrf.mxu0
    %v2347 = vpop.f32.mrf.mxu0
    %v2348 = vadd.f32 %v789, %v2347
    %v2349 = vpop.f32.mrf.mxu0
    %2350 = vmatprep.mubr.bf16.mxu0 0
    %2351 = vmatmul.mubr.bf16.gmra.mxu0 %v1391
    %v2352 = vpop.f32.mrf.mxu0
    %v2353 = vadd.f32 %v789, %v2352
    %v2354 = vpop.f32.mrf.mxu0
    %v2355 = vpop.f32.mrf.mxu0
    %v2356 = vadd.f32 %v789, %v2355
    %v2357 = vpop.f32.mrf.mxu0
    %2358 = vmatprep.mubr.bf16.mxu0 0
    %2359 = vmatmul.mubr.bf16.gmra.mxu0 %v1392
    %v2360 = vpop.f32.mrf.mxu0
    %v2361 = vadd.f32 %v789, %v2360
    %v2362 = vpop.f32.mrf.mxu0
    %v2363 = vpop.f32.mrf.mxu0
    %v2364 = vadd.f32 %v789, %v2363
    %v2365 = vpop.f32.mrf.mxu0
    %2366 = vmatprep.mubr.bf16.mxu0 0
    %2367 = vmatmul.mubr.bf16.gmra.mxu0 %v1393
    %v2368 = vpop.f32.mrf.mxu0
    %v2369 = vadd.f32 %v789, %v2368
    %v2370 = vpop.f32.mrf.mxu0
    %v2371 = vpop.f32.mrf.mxu0
    %v2372 = vadd.f32 %v789, %v2371
    %v2373 = vpop.f32.mrf.mxu0
    %2374 = vmatprep.mubr.bf16.mxu0 0
    %2375 = vmatmul.mubr.bf16.gmra.mxu0 %v1394
    %v2376 = vpop.f32.mrf.mxu0
    %v2377 = vadd.f32 %v789, %v2376
    %v2378 = vpop.f32.mrf.mxu0
    %v2379 = vpop.f32.mrf.mxu0
    %v2380 = vadd.f32 %v789, %v2379
    %v2381 = vpop.f32.mrf.mxu0
    %2382 = vmatprep.mubr.bf16.mxu0 0
    %2383 = vmatmul.mubr.bf16.gmra.mxu0 %v1395
    %v2384 = vpop.f32.mrf.mxu0
    %v2385 = vadd.f32 %v789, %v2384
    %v2386 = vpop.f32.mrf.mxu0
    %v2387 = vpop.f32.mrf.mxu0
    %v2388 = vadd.f32 %v789, %v2387
    %v2389 = vpop.f32.mrf.mxu0
    %2390 = vmatprep.mubr.bf16.mxu0 0
    %2391 = vmatmul.mubr.bf16.gmra.mxu0 %v1396
    %v2392 = vpop.f32.mrf.mxu0
    %v2393 = vadd.f32 %v789, %v2392
    %v2394 = vpop.f32.mrf.mxu0
    %v2395 = vpop.f32.mrf.mxu0
    %v2396 = vadd.f32 %v789, %v2395
    %v2397 = vpop.f32.mrf.mxu0
    %2398 = vmatprep.mubr.bf16.mxu0 0
    %2399 = vmatmul.mubr.bf16.gmra.mxu0 %v1397
    %v2400 = vpop.f32.mrf.mxu0
    %v2401 = vadd.f32 %v789, %v2400
    %v2402 = vpop.f32.mrf.mxu0
    %v2403 = vpop.f32.mrf.mxu0
    %v2404 = vadd.f32 %v789, %v2403
    %v2405 = vpop.f32.mrf.mxu0
    %2406 = vmatprep.mubr.bf16.mxu0 0
    %2407 = vmatmul.mubr.bf16.gmra.mxu0 %v1398
    %v2408 = vpop.f32.mrf.mxu0
    %v2409 = vadd.f32 %v789, %v2408
    %v2410 = vpop.f32.mrf.mxu0
    %v2411 = vpop.f32.mrf.mxu0
    %v2412 = vadd.f32 %v789, %v2411
    %v2413 = vpop.f32.mrf.mxu0
    %2414 = vmatprep.mubr.bf16.mxu0 0
    %2415 = vmatmul.mubr.bf16.gmra.mxu0 %v1399
    %v2416 = vpop.f32.mrf.mxu0
    %v2417 = vadd.f32 %v789, %v2416
    %v2418 = vpop.f32.mrf.mxu0
    %v2419 = vpop.f32.mrf.mxu0
    %v2420 = vadd.f32 %v789, %v2419
    %v2421 = vpop.f32.mrf.mxu0
    %2422 = vmatprep.mubr.bf16.mxu0 0
    %2423 = vmatmul.mubr.bf16.gmra.mxu0 %v1400
    %v2424 = vpop.f32.mrf.mxu0
    %v2425 = vadd.f32 %v789, %v2424
    %v2426 = vpop.f32.mrf.mxu0
    %v2427 = vpop.f32.mrf.mxu0
    %v2428 = vadd.f32 %v789, %v2427
    %v2429 = vpop.f32.mrf.mxu0
    %2430 = vmatprep.mubr.bf16.mxu0 0
    %2431 = vmatmul.mubr.bf16.gmra.mxu0 %v1401
    %v2432 = vpop.f32.mrf.mxu0
    %v2433 = vadd.f32 %v789, %v2432
    %v2434 = vpop.f32.mrf.mxu0
    %v2435 = vpop.f32.mrf.mxu0
    %v2436 = vadd.f32 %v789, %v2435
    %v2437 = vpop.f32.mrf.mxu0
    %2438 = vmatprep.mubr.bf16.mxu0 0
    %2439 = vmatmul.mubr.bf16.gmra.mxu0 %v1402
    %v2440 = vpop.f32.mrf.mxu0
    %v2441 = vadd.f32 %v789, %v2440
    %v2442 = vpop.f32.mrf.mxu0
    %v2443 = vpop.f32.mrf.mxu0
    %v2444 = vadd.f32 %v789, %v2443
    %v2445 = vpop.f32.mrf.mxu0
    %2446 = vmatprep.mubr.bf16.mxu0 0
    %2447 = vmatmul.mubr.bf16.gmra.mxu0 %v1403
    %v2448 = vpop.f32.mrf.mxu0
    %v2449 = vadd.f32 %v789, %v2448
    %v2450 = vpop.f32.mrf.mxu0
    %v2451 = vpop.f32.mrf.mxu0
    %v2452 = vadd.f32 %v789, %v2451
    %v2453 = vpop.f32.mrf.mxu0
    %2454 = vmatprep.mubr.bf16.mxu0 0
    %2455 = vmatmul.mubr.bf16.gmra.mxu0 %v1404
    %v2456 = vpop.f32.mrf.mxu0
    %v2457 = vadd.f32 %v789, %v2456
    %v2458 = vpop.f32.mrf.mxu0
    %v2459 = vpop.f32.mrf.mxu0
    %v2460 = vadd.f32 %v789, %v2459
    %v2461 = vpop.f32.mrf.mxu0
    %2462 = vmatprep.mubr.bf16.mxu0 0
    %2463 = vmatmul.mubr.bf16.gmra.mxu0 %v1405
    %v2464 = vpop.f32.mrf.mxu0
    %v2465 = vadd.f32 %v789, %v2464
    %v2466 = vpop.f32.mrf.mxu0
    %v2467 = vpop.f32.mrf.mxu0
    %v2468 = vadd.f32 %v789, %v2467
    %v2469 = vpop.f32.mrf.mxu0
    %2470 = vmatprep.mubr.bf16.mxu0 0
    %2471 = vmatmul.mubr.bf16.gmra.mxu0 %v1406
    %v2472 = vpop.f32.mrf.mxu0
    %v2473 = vadd.f32 %v789, %v2472
    %v2474 = vpop.f32.mrf.mxu0
    %v2475 = vpop.f32.mrf.mxu0
    %v2476 = vadd.f32 %v789, %v2475
    %v2477 = vpop.f32.mrf.mxu0
    %2478 = vmatprep.mubr.bf16.mxu0 0
    %2479 = vmatmul.mubr.bf16.gmra.mxu0 %v1407
    %v2480 = vpop.f32.mrf.mxu0
    %v2481 = vadd.f32 %v789, %v2480
    %v2482 = vpop.f32.mrf.mxu0
    %v2483 = vpop.f32.mrf.mxu0
    %v2484 = vadd.f32 %v789, %v2483
    %v2485 = vpop.f32.mrf.mxu0
    %2486 = vmatprep.mubr.bf16.mxu0 0
    %2487 = vmatmul.mubr.bf16.gmra.mxu0 %v1408
    %v2488 = vpop.f32.mrf.mxu0
    %v2489 = vadd.f32 %v789, %v2488
    %v2490 = vpop.f32.mrf.mxu0
    %v2491 = vpop.f32.mrf.mxu0
    %v2492 = vadd.f32 %v789, %v2491
    %v2493 = vpop.f32.mrf.mxu0
    %2494 = vmatprep.mubr.bf16.mxu0 0
    %2495 = vmatmul.mubr.bf16.gmra.mxu0 %v1409
    %v2496 = vpop.f32.mrf.mxu0
    %v2497 = vadd.f32 %v789, %v2496
    %v2498 = vpop.f32.mrf.mxu0
    %v2499 = vpop.f32.mrf.mxu0
    %v2500 = vadd.f32 %v789, %v2499
    %v2501 = vpop.f32.mrf.mxu0
    %2502 = vmatprep.mubr.bf16.mxu0 0
    %2503 = vmatmul.mubr.bf16.gmra.mxu0 %v1410
    %v2504 = vpop.f32.mrf.mxu0
    %v2505 = vadd.f32 %v789, %v2504
    %v2506 = vpop.f32.mrf.mxu0
    %v2507 = vpop.f32.mrf.mxu0
    %v2508 = vadd.f32 %v789, %v2507
    %v2509 = vpop.f32.mrf.mxu0
    %2510 = vmatprep.mubr.bf16.mxu0 0
    %2511 = vmatmul.mubr.bf16.gmra.mxu0 %v1411
    %v2512 = vpop.f32.mrf.mxu0
    %v2513 = vadd.f32 %v789, %v2512
    %v2514 = vpop.f32.mrf.mxu0
    %v2515 = vpop.f32.mrf.mxu0
    %v2516 = vadd.f32 %v789, %v2515
    %v2517 = vpop.f32.mrf.mxu0
    %2518 = vmatprep.mubr.bf16.mxu0 0
    %2519 = vmatmul.mubr.bf16.gmra.mxu0 %v1412
    %v2520 = vpop.f32.mrf.mxu0
    %v2521 = vadd.f32 %v789, %v2520
    %v2522 = vpop.f32.mrf.mxu0
    %v2523 = vpop.f32.mrf.mxu0
    %v2524 = vadd.f32 %v789, %v2523
    %v2525 = vpop.f32.mrf.mxu0
    %2526 = vmatprep.mubr.bf16.mxu0 0
    %2527 = vmatmul.mubr.bf16.gmra.mxu0 %v1413
    %v2528 = vpop.f32.mrf.mxu0
    %v2529 = vadd.f32 %v789, %v2528
    %v2530 = vpop.f32.mrf.mxu0
    %v2531 = vpop.f32.mrf.mxu0
    %v2532 = vadd.f32 %v789, %v2531
    %v2533 = vpop.f32.mrf.mxu0
    %2534 = vmatprep.mubr.bf16.mxu0 0
    %2535 = vmatmul.mubr.bf16.gmra.mxu0 %v1414
    %v2536 = vpop.f32.mrf.mxu0
    %v2537 = vadd.f32 %v789, %v2536
    %v2538 = vpop.f32.mrf.mxu0
    %v2539 = vpop.f32.mrf.mxu0
    %v2540 = vadd.f32 %v789, %v2539
    %v2541 = vpop.f32.mrf.mxu0
    %2542 = vmatprep.mubr.bf16.mxu0 0
    %2543 = vmatmul.mubr.bf16.gmra.mxu0 %v1415
    %v2544 = vpop.f32.mrf.mxu0
    %v2545 = vadd.f32 %v789, %v2544
    %v2546 = vpop.f32.mrf.mxu0
    %v2547 = vpop.f32.mrf.mxu0
    %v2548 = vadd.f32 %v789, %v2547
    %v2549 = vpop.f32.mrf.mxu0
    %2550 = vmatprep.mubr.bf16.mxu0 0
    %2551 = vmatmul.mubr.bf16.gmra.mxu0 %v1416
    %v2552 = vpop.f32.mrf.mxu0
    %v2553 = vadd.f32 %v789, %v2552
    %v2554 = vpop.f32.mrf.mxu0
    %v2555 = vpop.f32.mrf.mxu0
    %v2556 = vadd.f32 %v789, %v2555
    %v2557 = vpop.f32.mrf.mxu0
    %2558 = vmatprep.mubr.bf16.mxu0 0
    %2559 = vmatmul.mubr.bf16.gmra.mxu0 %v1417
    %v2560 = vpop.f32.mrf.mxu0
    %v2561 = vadd.f32 %v789, %v2560
    %v2562 = vpop.f32.mrf.mxu0
    %v2563 = vpop.f32.mrf.mxu0
    %v2564 = vadd.f32 %v789, %v2563
    %v2565 = vpop.f32.mrf.mxu0
    %2566 = vmatprep.mubr.bf16.mxu0 0
    %2567 = vmatmul.mubr.bf16.gmra.mxu0 %v1418
    %v2568 = vpop.f32.mrf.mxu0
    %v2569 = vadd.f32 %v789, %v2568
    %v2570 = vpop.f32.mrf.mxu0
    %v2571 = vpop.f32.mrf.mxu0
    %v2572 = vadd.f32 %v789, %v2571
    %v2573 = vpop.f32.mrf.mxu0
    %2574 = vmatprep.mubr.bf16.mxu0 0
    %2575 = vmatmul.mubr.bf16.gmra.mxu0 %v1419
    %v2576 = vpop.f32.mrf.mxu0
    %v2577 = vadd.f32 %v789, %v2576
    %v2578 = vpop.f32.mrf.mxu0
    %v2579 = vpop.f32.mrf.mxu0
    %v2580 = vadd.f32 %v789, %v2579
    %v2581 = vpop.f32.mrf.mxu0
    %2582 = vmatprep.mubr.bf16.mxu0 0
    %2583 = vmatmul.mubr.bf16.gmra.mxu0 %v1420
    %v2584 = vpop.f32.mrf.mxu0
    %v2585 = vadd.f32 %v789, %v2584
    %v2586 = vpop.f32.mrf.mxu0
    %v2587 = vpop.f32.mrf.mxu0
    %v2588 = vadd.f32 %v789, %v2587
    %v2589 = vpop.f32.mrf.mxu0
    %2590 = vmatprep.mubr.bf16.mxu0 0
    %2591 = vmatmul.mubr.bf16.gmra.mxu0 %v1421
    %v2592 = vpop.f32.mrf.mxu0
    %v2593 = vadd.f32 %v789, %v2592
    %v2594 = vpop.f32.mrf.mxu0
    %v2595 = vpop.f32.mrf.mxu0
    %v2596 = vadd.f32 %v789, %v2595
    %v2597 = vpop.f32.mrf.mxu0
    %2598 = vmatprep.mubr.bf16.mxu0 0
    %2599 = vmatmul.mubr.bf16.gmra.mxu0 %v1422
    %v2600 = vpop.f32.mrf.mxu0
    %v2601 = vadd.f32 %v789, %v2600
    %v2602 = vpop.f32.mrf.mxu0
    %v2603 = vpop.f32.mrf.mxu0
    %v2604 = vadd.f32 %v789, %v2603
    %v2605 = vpop.f32.mrf.mxu0
    %2606 = vmatprep.mubr.bf16.mxu0 0
    %2607 = vmatmul.mubr.bf16.gmra.mxu0 %v1423
    %v2608 = vpop.f32.mrf.mxu0
    %v2609 = vadd.f32 %v789, %v2608
    %v2610 = vpop.f32.mrf.mxu0
    %v2611 = vpop.f32.mrf.mxu0
    %v2612 = vadd.f32 %v789, %v2611
    %v2613 = vpop.f32.mrf.mxu0
    %2614 = vmatprep.mubr.bf16.mxu0 0
    %2615 = vmatmul.mubr.bf16.gmra.mxu0 %v1424
    %v2616 = vpop.f32.mrf.mxu0
    %v2617 = vadd.f32 %v789, %v2616
    %v2618 = vpop.f32.mrf.mxu0
    %v2619 = vpop.f32.mrf.mxu0
    %v2620 = vadd.f32 %v789, %v2619
    %v2621 = vpop.f32.mrf.mxu0
    %2622 = vmatprep.mubr.bf16.mxu0 0
    %2623 = vmatmul.mubr.bf16.gmra.mxu0 %v1425
    %v2624 = vpop.f32.mrf.mxu0
    %v2625 = vadd.f32 %v789, %v2624
    %v2626 = vpop.f32.mrf.mxu0
    %v2627 = vpop.f32.mrf.mxu0
    %v2628 = vadd.f32 %v789, %v2627
    %v2629 = vpop.f32.mrf.mxu0
    %2630 = vmatprep.mubr.bf16.mxu0 0
    %2631 = vmatmul.mubr.bf16.gmra.mxu0 %v1426
    %v2632 = vpop.f32.mrf.mxu0
    %v2633 = vadd.f32 %v789, %v2632
    %v2634 = vpop.f32.mrf.mxu0
    %v2635 = vpop.f32.mrf.mxu0
    %v2636 = vadd.f32 %v789, %v2635
    %v2637 = vpop.f32.mrf.mxu0
    %2638 = vmatprep.mubr.bf16.mxu0 0
    %2639 = vmatmul.mubr.bf16.gmra.mxu0 %v1427
    %v2640 = vpop.f32.mrf.mxu0
    %v2641 = vadd.f32 %v789, %v2640
    %v2642 = vpop.f32.mrf.mxu0
    %v2643 = vpop.f32.mrf.mxu0
    %v2644 = vadd.f32 %v789, %v2643
    %v2645 = vpop.f32.mrf.mxu0
    %2646 = vmatprep.mubr.bf16.mxu0 0
    %2647 = vmatmul.mubr.bf16.gmra.mxu0 %v1428
    %v2648 = vpop.f32.mrf.mxu0
    %v2649 = vadd.f32 %v789, %v2648
    %v2650 = vpop.f32.mrf.mxu0
    %v2651 = vpop.f32.mrf.mxu0
    %v2652 = vadd.f32 %v789, %v2651
    %v2653 = vpop.f32.mrf.mxu0
    %2654 = vmatprep.mubr.bf16.mxu0 0
    %2655 = vmatmul.mubr.bf16.gmra.mxu0 %v1429
    %v2656 = vpop.f32.mrf.mxu0
    %v2657 = vadd.f32 %v789, %v2656
    %v2658 = vpop.f32.mrf.mxu0
    %v2659 = vpop.f32.mrf.mxu0
    %v2660 = vadd.f32 %v789, %v2659
    %v2661 = vpop.f32.mrf.mxu0
    %2662 = vdwg.mxu0
    %v2663 = vmax.f32 %v1641, 0.0
    %v2664 = vmax.f32 %v1644, 0.0
    %v2665 = vmax.f32 %v1649, 0.0
    %v2666 = vmax.f32 %v1652, 0.0
    %v2667 = vmax.f32 %v1657, 0.0
    %v2668 = vmax.f32 %v1660, 0.0
    %v2669 = vmax.f32 %v1665, 0.0
    %v2670 = vmax.f32 %v1668, 0.0
    %v2671 = vmax.f32 %v1673, 0.0
    %v2672 = vmax.f32 %v1676, 0.0
    %v2673 = vmax.f32 %v1681, 0.0
    %v2674 = vmax.f32 %v1684, 0.0
    %v2675 = vmax.f32 %v1689, 0.0
    %v2676 = vmax.f32 %v1692, 0.0
    %v2677 = vmax.f32 %v1697, 0.0
    %v2678 = vmax.f32 %v1700, 0.0
    %v2679 = vmax.f32 %v1705, 0.0
    %v2680 = vmax.f32 %v1708, 0.0
    %v2681 = vmax.f32 %v1713, 0.0
    %v2682 = vmax.f32 %v1716, 0.0
    %v2683 = vmax.f32 %v1721, 0.0
    %v2684 = vmax.f32 %v1724, 0.0
    %v2685 = vmax.f32 %v1729, 0.0
    %v2686 = vmax.f32 %v1732, 0.0
    %v2687 = vmax.f32 %v1737, 0.0
    %v2688 = vmax.f32 %v1740, 0.0
    %v2689 = vmax.f32 %v1745, 0.0
    %v2690 = vmax.f32 %v1748, 0.0
    %v2691 = vmax.f32 %v1753, 0.0
    %v2692 = vmax.f32 %v1756, 0.0
    %v2693 = vmax.f32 %v1761, 0.0
    %v2694 = vmax.f32 %v1764, 0.0
    %v2695 = vmax.f32 %v1769, 0.0
    %v2696 = vmax.f32 %v1772, 0.0
    %v2697 = vmax.f32 %v1777, 0.0
    %v2698 = vmax.f32 %v1780, 0.0
    %v2699 = vmax.f32 %v1785, 0.0
    %v2700 = vmax.f32 %v1788, 0.0
    %v2701 = vmax.f32 %v1793, 0.0
    %v2702 = vmax.f32 %v1796, 0.0
    %v2703 = vmax.f32 %v1801, 0.0
    %v2704 = vmax.f32 %v1804, 0.0
    %v2705 = vmax.f32 %v1809, 0.0
    %v2706 = vmax.f32 %v1812, 0.0
    %v2707 = vmax.f32 %v1817, 0.0
    %v2708 = vmax.f32 %v1820, 0.0
    %v2709 = vmax.f32 %v1825, 0.0
    %v2710 = vmax.f32 %v1828, 0.0
    %v2711 = vmax.f32 %v1833, 0.0
    %v2712 = vmax.f32 %v1836, 0.0
    %v2713 = vmax.f32 %v1841, 0.0
    %v2714 = vmax.f32 %v1844, 0.0
    %v2715 = vmax.f32 %v1849, 0.0
    %v2716 = vmax.f32 %v1852, 0.0
    %v2717 = vmax.f32 %v1857, 0.0
    %v2718 = vmax.f32 %v1860, 0.0
    %v2719 = vmax.f32 %v1865, 0.0
    %v2720 = vmax.f32 %v1868, 0.0
    %v2721 = vmax.f32 %v1873, 0.0
    %v2722 = vmax.f32 %v1876, 0.0
    %v2723 = vmax.f32 %v1881, 0.0
    %v2724 = vmax.f32 %v1884, 0.0
    %v2725 = vmax.f32 %v1889, 0.0
    %v2726 = vmax.f32 %v1892, 0.0
    %v2727 = vmax.f32 %v1897, 0.0
    %v2728 = vmax.f32 %v1900, 0.0
    %v2729 = vmax.f32 %v1905, 0.0
    %v2730 = vmax.f32 %v1908, 0.0
    %v2731 = vmax.f32 %v1913, 0.0
    %v2732 = vmax.f32 %v1916, 0.0
    %v2733 = vmax.f32 %v1921, 0.0
    %v2734 = vmax.f32 %v1924, 0.0
    %v2735 = vmax.f32 %v1929, 0.0
    %v2736 = vmax.f32 %v1932, 0.0
    %v2737 = vmax.f32 %v1937, 0.0
    %v2738 = vmax.f32 %v1940, 0.0
    %v2739 = vmax.f32 %v1945, 0.0
    %v2740 = vmax.f32 %v1948, 0.0
    %v2741 = vmax.f32 %v1953, 0.0
    %v2742 = vmax.f32 %v1956, 0.0
    %v2743 = vmax.f32 %v1961, 0.0
    %v2744 = vmax.f32 %v1964, 0.0
    %v2745 = vmax.f32 %v1969, 0.0
    %v2746 = vmax.f32 %v1972, 0.0
    %v2747 = vmax.f32 %v1977, 0.0
    %v2748 = vmax.f32 %v1980, 0.0
    %v2749 = vmax.f32 %v1985, 0.0
    %v2750 = vmax.f32 %v1988, 0.0
    %v2751 = vmax.f32 %v1993, 0.0
    %v2752 = vmax.f32 %v1996, 0.0
    %v2753 = vmax.f32 %v2001, 0.0
    %v2754 = vmax.f32 %v2004, 0.0
    %v2755 = vmax.f32 %v2009, 0.0
    %v2756 = vmax.f32 %v2012, 0.0
    %v2757 = vmax.f32 %v2017, 0.0
    %v2758 = vmax.f32 %v2020, 0.0
    %v2759 = vmax.f32 %v2025, 0.0
    %v2760 = vmax.f32 %v2028, 0.0
    %v2761 = vmax.f32 %v2033, 0.0
    %v2762 = vmax.f32 %v2036, 0.0
    %v2763 = vmax.f32 %v2041, 0.0
    %v2764 = vmax.f32 %v2044, 0.0
    %v2765 = vmax.f32 %v2049, 0.0
    %v2766 = vmax.f32 %v2052, 0.0
    %v2767 = vmax.f32 %v2057, 0.0
    %v2768 = vmax.f32 %v2060, 0.0
    %v2769 = vmax.f32 %v2065, 0.0
    %v2770 = vmax.f32 %v2068, 0.0
    %v2771 = vmax.f32 %v2073, 0.0
    %v2772 = vmax.f32 %v2076, 0.0
    %v2773 = vmax.f32 %v2081, 0.0
    %v2774 = vmax.f32 %v2084, 0.0
    %v2775 = vmax.f32 %v2089, 0.0
    %v2776 = vmax.f32 %v2092, 0.0
    %v2777 = vmax.f32 %v2097, 0.0
    %v2778 = vmax.f32 %v2100, 0.0
    %v2779 = vmax.f32 %v2105, 0.0
    %v2780 = vmax.f32 %v2108, 0.0
    %v2781 = vmax.f32 %v2113, 0.0
    %v2782 = vmax.f32 %v2116, 0.0
    %v2783 = vmax.f32 %v2121, 0.0
    %v2784 = vmax.f32 %v2124, 0.0
    %v2785 = vmax.f32 %v2129, 0.0
    %v2786 = vmax.f32 %v2132, 0.0
    %v2787 = vmax.f32 %v2137, 0.0
    %v2788 = vmax.f32 %v2140, 0.0
    %v2789 = vmax.f32 %v2145, 0.0
    %v2790 = vmax.f32 %v2148, 0.0
    %v2791 = vmax.f32 %v2153, 0.0
    %v2792 = vmax.f32 %v2156, 0.0
    %v2793 = vmax.f32 %v2161, 0.0
    %v2794 = vmax.f32 %v2164, 0.0
    %v2795 = vmax.f32 %v2169, 0.0
    %v2796 = vmax.f32 %v2172, 0.0
    %v2797 = vmax.f32 %v2177, 0.0
    %v2798 = vmax.f32 %v2180, 0.0
    %v2799 = vmax.f32 %v2185, 0.0
    %v2800 = vmax.f32 %v2188, 0.0
    %v2801 = vmax.f32 %v2193, 0.0
    %v2802 = vmax.f32 %v2196, 0.0
    %v2803 = vmax.f32 %v2201, 0.0
    %v2804 = vmax.f32 %v2204, 0.0
    %v2805 = vmax.f32 %v2209, 0.0
    %v2806 = vmax.f32 %v2212, 0.0
    %v2807 = vmax.f32 %v2217, 0.0
    %v2808 = vmax.f32 %v2220, 0.0
    %v2809 = vmax.f32 %v2225, 0.0
    %v2810 = vmax.f32 %v2228, 0.0
    %v2811 = vmax.f32 %v2233, 0.0
    %v2812 = vmax.f32 %v2236, 0.0
    %v2813 = vmax.f32 %v2241, 0.0
    %v2814 = vmax.f32 %v2244, 0.0
    %v2815 = vmax.f32 %v2249, 0.0
    %v2816 = vmax.f32 %v2252, 0.0
    %v2817 = vmax.f32 %v2257, 0.0
    %v2818 = vmax.f32 %v2260, 0.0
    %v2819 = vmax.f32 %v2265, 0.0
    %v2820 = vmax.f32 %v2268, 0.0
    %v2821 = vmax.f32 %v2273, 0.0
    %v2822 = vmax.f32 %v2276, 0.0
    %v2823 = vmax.f32 %v2281, 0.0
    %v2824 = vmax.f32 %v2284, 0.0
    %v2825 = vmax.f32 %v2289, 0.0
    %v2826 = vmax.f32 %v2292, 0.0
    %v2827 = vmax.f32 %v2297, 0.0
    %v2828 = vmax.f32 %v2300, 0.0
    %v2829 = vmax.f32 %v2305, 0.0
    %v2830 = vmax.f32 %v2308, 0.0
    %v2831 = vmax.f32 %v2313, 0.0
    %v2832 = vmax.f32 %v2316, 0.0
    %v2833 = vmax.f32 %v2321, 0.0
    %v2834 = vmax.f32 %v2324, 0.0
    %v2835 = vmax.f32 %v2329, 0.0
    %v2836 = vmax.f32 %v2332, 0.0
    %v2837 = vmax.f32 %v2337, 0.0
    %v2838 = vmax.f32 %v2340, 0.0
    %v2839 = vmax.f32 %v2345, 0.0
    %v2840 = vmax.f32 %v2348, 0.0
    %v2841 = vmax.f32 %v2353, 0.0
    %v2842 = vmax.f32 %v2356, 0.0
    %v2843 = vmax.f32 %v2361, 0.0
    %v2844 = vmax.f32 %v2364, 0.0
    %v2845 = vmax.f32 %v2369, 0.0
    %v2846 = vmax.f32 %v2372, 0.0
    %v2847 = vmax.f32 %v2377, 0.0
    %v2848 = vmax.f32 %v2380, 0.0
    %v2849 = vmax.f32 %v2385, 0.0
    %v2850 = vmax.f32 %v2388, 0.0
    %v2851 = vmax.f32 %v2393, 0.0
    %v2852 = vmax.f32 %v2396, 0.0
    %v2853 = vmax.f32 %v2401, 0.0
    %v2854 = vmax.f32 %v2404, 0.0
    %v2855 = vmax.f32 %v2409, 0.0
    %v2856 = vmax.f32 %v2412, 0.0
    %v2857 = vmax.f32 %v2417, 0.0
    %v2858 = vmax.f32 %v2420, 0.0
    %v2859 = vmax.f32 %v2425, 0.0
    %v2860 = vmax.f32 %v2428, 0.0
    %v2861 = vmax.f32 %v2433, 0.0
    %v2862 = vmax.f32 %v2436, 0.0
    %v2863 = vmax.f32 %v2441, 0.0
    %v2864 = vmax.f32 %v2444, 0.0
    %v2865 = vmax.f32 %v2449, 0.0
    %v2866 = vmax.f32 %v2452, 0.0
    %v2867 = vmax.f32 %v2457, 0.0
    %v2868 = vmax.f32 %v2460, 0.0
    %v2869 = vmax.f32 %v2465, 0.0
    %v2870 = vmax.f32 %v2468, 0.0
    %v2871 = vmax.f32 %v2473, 0.0
    %v2872 = vmax.f32 %v2476, 0.0
    %v2873 = vmax.f32 %v2481, 0.0
    %v2874 = vmax.f32 %v2484, 0.0
    %v2875 = vmax.f32 %v2489, 0.0
    %v2876 = vmax.f32 %v2492, 0.0
    %v2877 = vmax.f32 %v2497, 0.0
    %v2878 = vmax.f32 %v2500, 0.0
    %v2879 = vmax.f32 %v2505, 0.0
    %v2880 = vmax.f32 %v2508, 0.0
    %v2881 = vmax.f32 %v2513, 0.0
    %v2882 = vmax.f32 %v2516, 0.0
    %v2883 = vmax.f32 %v2521, 0.0
    %v2884 = vmax.f32 %v2524, 0.0
    %v2885 = vmax.f32 %v2529, 0.0
    %v2886 = vmax.f32 %v2532, 0.0
    %v2887 = vmax.f32 %v2537, 0.0
    %v2888 = vmax.f32 %v2540, 0.0
    %v2889 = vmax.f32 %v2545, 0.0
    %v2890 = vmax.f32 %v2548, 0.0
    %v2891 = vmax.f32 %v2553, 0.0
    %v2892 = vmax.f32 %v2556, 0.0
    %v2893 = vmax.f32 %v2561, 0.0
    %v2894 = vmax.f32 %v2564, 0.0
    %v2895 = vmax.f32 %v2569, 0.0
    %v2896 = vmax.f32 %v2572, 0.0
    %v2897 = vmax.f32 %v2577, 0.0
    %v2898 = vmax.f32 %v2580, 0.0
    %v2899 = vmax.f32 %v2585, 0.0
    %v2900 = vmax.f32 %v2588, 0.0
    %v2901 = vmax.f32 %v2593, 0.0
    %v2902 = vmax.f32 %v2596, 0.0
    %v2903 = vmax.f32 %v2601, 0.0
    %v2904 = vmax.f32 %v2604, 0.0
    %v2905 = vmax.f32 %v2609, 0.0
    %v2906 = vmax.f32 %v2612, 0.0
    %v2907 = vmax.f32 %v2617, 0.0
    %v2908 = vmax.f32 %v2620, 0.0
    %v2909 = vmax.f32 %v2625, 0.0
    %v2910 = vmax.f32 %v2628, 0.0
    %v2911 = vmax.f32 %v2633, 0.0
    %v2912 = vmax.f32 %v2636, 0.0
    %v2913 = vmax.f32 %v2641, 0.0
    %v2914 = vmax.f32 %v2644, 0.0
    %v2915 = vmax.f32 %v2649, 0.0
    %v2916 = vmax.f32 %v2652, 0.0
    %v2917 = vmax.f32 %v2657, 0.0
    %v2918 = vmax.f32 %v2660, 0.0
    %v2919 = vadd.f32 %v2663, %v2664
    %v2920 = vadd.f32 %v2919, %v2665
    %v2921 = vadd.f32 %v2920, %v2666
    %v2922 = vadd.f32 %v2921, %v2667
    %v2923 = vadd.f32 %v2922, %v2668
    %v2924 = vadd.f32 %v2923, %v2669
    %v2925 = vadd.f32 %v2924, %v2670
    %v2926 = vadd.f32 %v2925, %v2671
    %v2927 = vadd.f32 %v2926, %v2672
    %v2928 = vadd.f32 %v2927, %v2673
    %v2929 = vadd.f32 %v2928, %v2674
    %v2930 = vadd.f32 %v2929, %v2675
    %v2931 = vadd.f32 %v2930, %v2676
    %v2932 = vadd.f32 %v2931, %v2677
    %v2933 = vadd.f32 %v2932, %v2678
    %v2934 = vadd.f32 %v2933, %v2679
    %v2935 = vadd.f32 %v2934, %v2680
    %v2936 = vadd.f32 %v2935, %v2681
    %v2937 = vadd.f32 %v2936, %v2682
    %v2938 = vadd.f32 %v2937, %v2683
    %v2939 = vadd.f32 %v2938, %v2684
    %v2940 = vadd.f32 %v2939, %v2685
    %v2941 = vadd.f32 %v2940, %v2686
    %v2942 = vadd.f32 %v2941, %v2687
    %v2943 = vadd.f32 %v2942, %v2688
    %v2944 = vadd.f32 %v2943, %v2689
    %v2945 = vadd.f32 %v2944, %v2690
    %v2946 = vadd.f32 %v2945, %v2691
    %v2947 = vadd.f32 %v2946, %v2692
    %v2948 = vadd.f32 %v2947, %v2693
    %v2949 = vadd.f32 %v2948, %v2694
    %v2950 = vrot.slane %v2949, 4
    %v2951 = vadd.f32 %v2949, %v2950
    %v2952 = vrot.slane %v2951, 2
    %v2953 = vadd.f32 %v2951, %v2952
    %v2954 = vrot.slane %v2953, 1
    %v2955 = vadd.f32 %v2953, %v2954
    %v2956 = vadd.f32 %v2695, %v2696
    %v2957 = vadd.f32 %v2956, %v2697
    %v2958 = vadd.f32 %v2957, %v2698
    %v2959 = vadd.f32 %v2958, %v2699
    %v2960 = vadd.f32 %v2959, %v2700
    %v2961 = vadd.f32 %v2960, %v2701
    %v2962 = vadd.f32 %v2961, %v2702
    %v2963 = vadd.f32 %v2962, %v2703
    %v2964 = vadd.f32 %v2963, %v2704
    %v2965 = vadd.f32 %v2964, %v2705
    %v2966 = vadd.f32 %v2965, %v2706
    %v2967 = vadd.f32 %v2966, %v2707
    %v2968 = vadd.f32 %v2967, %v2708
    %v2969 = vadd.f32 %v2968, %v2709
    %v2970 = vadd.f32 %v2969, %v2710
    %v2971 = vadd.f32 %v2970, %v2711
    %v2972 = vadd.f32 %v2971, %v2712
    %v2973 = vadd.f32 %v2972, %v2713
    %v2974 = vadd.f32 %v2973, %v2714
    %v2975 = vadd.f32 %v2974, %v2715
    %v2976 = vadd.f32 %v2975, %v2716
    %v2977 = vadd.f32 %v2976, %v2717
    %v2978 = vadd.f32 %v2977, %v2718
    %v2979 = vadd.f32 %v2978, %v2719
    %v2980 = vadd.f32 %v2979, %v2720
    %v2981 = vadd.f32 %v2980, %v2721
    %v2982 = vadd.f32 %v2981, %v2722
    %v2983 = vadd.f32 %v2982, %v2723
    %v2984 = vadd.f32 %v2983, %v2724
    %v2985 = vadd.f32 %v2984, %v2725
    %v2986 = vadd.f32 %v2985, %v2726
    %v2987 = vrot.slane %v2986, 4
    %v2988 = vadd.f32 %v2986, %v2987
    %v2989 = vrot.slane %v2988, 2
    %v2990 = vadd.f32 %v2988, %v2989
    %v2991 = vrot.slane %v2990, 1
    %v2992 = vadd.f32 %v2990, %v2991
    %v2993 = vadd.f32 %v2727, %v2728
    %v2994 = vadd.f32 %v2993, %v2729
    %v2995 = vadd.f32 %v2994, %v2730
    %v2996 = vadd.f32 %v2995, %v2731
    %v2997 = vadd.f32 %v2996, %v2732
    %v2998 = vadd.f32 %v2997, %v2733
    %v2999 = vadd.f32 %v2998, %v2734
    %v3000 = vadd.f32 %v2999, %v2735
    %v3001 = vadd.f32 %v3000, %v2736
    %v3002 = vadd.f32 %v3001, %v2737
    %v3003 = vadd.f32 %v3002, %v2738
    %v3004 = vadd.f32 %v3003, %v2739
    %v3005 = vadd.f32 %v3004, %v2740
    %v3006 = vadd.f32 %v3005, %v2741
    %v3007 = vadd.f32 %v3006, %v2742
    %v3008 = vadd.f32 %v3007, %v2743
    %v3009 = vadd.f32 %v3008, %v2744
    %v3010 = vadd.f32 %v3009, %v2745
    %v3011 = vadd.f32 %v3010, %v2746
    %v3012 = vadd.f32 %v3011, %v2747
    %v3013 = vadd.f32 %v3012, %v2748
    %v3014 = vadd.f32 %v3013, %v2749
    %v3015 = vadd.f32 %v3014, %v2750
    %v3016 = vadd.f32 %v3015, %v2751
    %v3017 = vadd.f32 %v3016, %v2752
    %v3018 = vadd.f32 %v3017, %v2753
    %v3019 = vadd.f32 %v3018, %v2754
    %v3020 = vadd.f32 %v3019, %v2755
    %v3021 = vadd.f32 %v3020, %v2756
    %v3022 = vadd.f32 %v3021, %v2757
    %v3023 = vadd.f32 %v3022, %v2758
    %v3024 = vrot.slane %v3023, 4
    %v3025 = vadd.f32 %v3023, %v3024
    %v3026 = vrot.slane %v3025, 2
    %v3027 = vadd.f32 %v3025, %v3026
    %v3028 = vrot.slane %v3027, 1
    %v3029 = vadd.f32 %v3027, %v3028
    %v3030 = vadd.f32 %v2759, %v2760
    %v3031 = vadd.f32 %v3030, %v2761
    %v3032 = vadd.f32 %v3031, %v2762
    %v3033 = vadd.f32 %v3032, %v2763
    %v3034 = vadd.f32 %v3033, %v2764
    %v3035 = vadd.f32 %v3034, %v2765
    %v3036 = vadd.f32 %v3035, %v2766
    %v3037 = vadd.f32 %v3036, %v2767
    %v3038 = vadd.f32 %v3037, %v2768
    %v3039 = vadd.f32 %v3038, %v2769
    %v3040 = vadd.f32 %v3039, %v2770
    %v3041 = vadd.f32 %v3040, %v2771
    %v3042 = vadd.f32 %v3041, %v2772
    %v3043 = vadd.f32 %v3042, %v2773
    %v3044 = vadd.f32 %v3043, %v2774
    %v3045 = vadd.f32 %v3044, %v2775
    %v3046 = vadd.f32 %v3045, %v2776
    %v3047 = vadd.f32 %v3046, %v2777
    %v3048 = vadd.f32 %v3047, %v2778
    %v3049 = vadd.f32 %v3048, %v2779
    %v3050 = vadd.f32 %v3049, %v2780
    %v3051 = vadd.f32 %v3050, %v2781
    %v3052 = vadd.f32 %v3051, %v2782
    %v3053 = vadd.f32 %v3052, %v2783
    %v3054 = vadd.f32 %v3053, %v2784
    %v3055 = vadd.f32 %v3054, %v2785
    %v3056 = vadd.f32 %v3055, %v2786
    %v3057 = vadd.f32 %v3056, %v2787
    %v3058 = vadd.f32 %v3057, %v2788
    %v3059 = vadd.f32 %v3058, %v2789
    %v3060 = vadd.f32 %v3059, %v2790
    %v3061 = vrot.slane %v3060, 4
    %v3062 = vadd.f32 %v3060, %v3061
    %v3063 = vrot.slane %v3062, 2
    %v3064 = vadd.f32 %v3062, %v3063
    %v3065 = vrot.slane %v3064, 1
    %v3066 = vadd.f32 %v3064, %v3065
    %v3067 = vadd.f32 %v2791, %v2792
    %v3068 = vadd.f32 %v3067, %v2793
    %v3069 = vadd.f32 %v3068, %v2794
    %v3070 = vadd.f32 %v3069, %v2795
    %v3071 = vadd.f32 %v3070, %v2796
    %v3072 = vadd.f32 %v3071, %v2797
    %v3073 = vadd.f32 %v3072, %v2798
    %v3074 = vadd.f32 %v3073, %v2799
    %v3075 = vadd.f32 %v3074, %v2800
    %v3076 = vadd.f32 %v3075, %v2801
    %v3077 = vadd.f32 %v3076, %v2802
    %v3078 = vadd.f32 %v3077, %v2803
    %v3079 = vadd.f32 %v3078, %v2804
    %v3080 = vadd.f32 %v3079, %v2805
    %v3081 = vadd.f32 %v3080, %v2806
    %v3082 = vadd.f32 %v3081, %v2807
    %v3083 = vadd.f32 %v3082, %v2808
    %v3084 = vadd.f32 %v3083, %v2809
    %v3085 = vadd.f32 %v3084, %v2810
    %v3086 = vadd.f32 %v3085, %v2811
    %v3087 = vadd.f32 %v3086, %v2812
    %v3088 = vadd.f32 %v3087, %v2813
    %v3089 = vadd.f32 %v3088, %v2814
    %v3090 = vadd.f32 %v3089, %v2815
    %v3091 = vadd.f32 %v3090, %v2816
    %v3092 = vadd.f32 %v3091, %v2817
    %v3093 = vadd.f32 %v3092, %v2818
    %v3094 = vadd.f32 %v3093, %v2819
    %v3095 = vadd.f32 %v3094, %v2820
    %v3096 = vadd.f32 %v3095, %v2821
    %v3097 = vadd.f32 %v3096, %v2822
    %v3098 = vrot.slane %v3097, 4
    %v3099 = vadd.f32 %v3097, %v3098
    %v3100 = vrot.slane %v3099, 2
    %v3101 = vadd.f32 %v3099, %v3100
    %v3102 = vrot.slane %v3101, 1
    %v3103 = vadd.f32 %v3101, %v3102
    %v3104 = vadd.f32 %v2823, %v2824
    %v3105 = vadd.f32 %v3104, %v2825
    %v3106 = vadd.f32 %v3105, %v2826
    %v3107 = vadd.f32 %v3106, %v2827
    %v3108 = vadd.f32 %v3107, %v2828
    %v3109 = vadd.f32 %v3108, %v2829
    %v3110 = vadd.f32 %v3109, %v2830
    %v3111 = vadd.f32 %v3110, %v2831
    %v3112 = vadd.f32 %v3111, %v2832
    %v3113 = vadd.f32 %v3112, %v2833
    %v3114 = vadd.f32 %v3113, %v2834
    %v3115 = vadd.f32 %v3114, %v2835
    %v3116 = vadd.f32 %v3115, %v2836
    %v3117 = vadd.f32 %v3116, %v2837
    %v3118 = vadd.f32 %v3117, %v2838
    %v3119 = vadd.f32 %v3118, %v2839
    %v3120 = vadd.f32 %v3119, %v2840
    %v3121 = vadd.f32 %v3120, %v2841
    %v3122 = vadd.f32 %v3121, %v2842
    %v3123 = vadd.f32 %v3122, %v2843
    %v3124 = vadd.f32 %v3123, %v2844
    %v3125 = vadd.f32 %v3124, %v2845
    %v3126 = vadd.f32 %v3125, %v2846
    %v3127 = vadd.f32 %v3126, %v2847
    %v3128 = vadd.f32 %v3127, %v2848
    %v3129 = vadd.f32 %v3128, %v2849
    %v3130 = vadd.f32 %v3129, %v2850
    %v3131 = vadd.f32 %v3130, %v2851
    %v3132 = vadd.f32 %v3131, %v2852
    %v3133 = vadd.f32 %v3132, %v2853
    %v3134 = vadd.f32 %v3133, %v2854
    %v3135 = vrot.slane %v3134, 4
    %v3136 = vadd.f32 %v3134, %v3135
    %v3137 = vrot.slane %v3136, 2
    %v3138 = vadd.f32 %v3136, %v3137
    %v3139 = vrot.slane %v3138, 1
    %v3140 = vadd.f32 %v3138, %v3139
    %v3141 = vadd.f32 %v2855, %v2856
    %v3142 = vadd.f32 %v3141, %v2857
    %v3143 = vadd.f32 %v3142, %v2858
    %v3144 = vadd.f32 %v3143, %v2859
    %v3145 = vadd.f32 %v3144, %v2860
    %v3146 = vadd.f32 %v3145, %v2861
    %v3147 = vadd.f32 %v3146, %v2862
    %v3148 = vadd.f32 %v3147, %v2863
    %v3149 = vadd.f32 %v3148, %v2864
    %v3150 = vadd.f32 %v3149, %v2865
    %v3151 = vadd.f32 %v3150, %v2866
    %v3152 = vadd.f32 %v3151, %v2867
    %v3153 = vadd.f32 %v3152, %v2868
    %v3154 = vadd.f32 %v3153, %v2869
    %v3155 = vadd.f32 %v3154, %v2870
    %v3156 = vadd.f32 %v3155, %v2871
    %v3157 = vadd.f32 %v3156, %v2872
    %v3158 = vadd.f32 %v3157, %v2873
    %v3159 = vadd.f32 %v3158, %v2874
    %v3160 = vadd.f32 %v3159, %v2875
    %v3161 = vadd.f32 %v3160, %v2876
    %v3162 = vadd.f32 %v3161, %v2877
    %v3163 = vadd.f32 %v3162, %v2878
    %v3164 = vadd.f32 %v3163, %v2879
    %v3165 = vadd.f32 %v3164, %v2880
    %v3166 = vadd.f32 %v3165, %v2881
    %v3167 = vadd.f32 %v3166, %v2882
    %v3168 = vadd.f32 %v3167, %v2883
    %v3169 = vadd.f32 %v3168, %v2884
    %v3170 = vadd.f32 %v3169, %v2885
    %v3171 = vadd.f32 %v3170, %v2886
    %v3172 = vrot.slane %v3171, 4
    %v3173 = vadd.f32 %v3171, %v3172
    %v3174 = vrot.slane %v3173, 2
    %v3175 = vadd.f32 %v3173, %v3174
    %v3176 = vrot.slane %v3175, 1
    %v3177 = vadd.f32 %v3175, %v3176
    %v3178 = vadd.f32 %v2887, %v2888
    %v3179 = vadd.f32 %v3178, %v2889
    %v3180 = vadd.f32 %v3179, %v2890
    %v3181 = vadd.f32 %v3180, %v2891
    %v3182 = vadd.f32 %v3181, %v2892
    %v3183 = vadd.f32 %v3182, %v2893
    %v3184 = vadd.f32 %v3183, %v2894
    %v3185 = vadd.f32 %v3184, %v2895
    %v3186 = vadd.f32 %v3185, %v2896
    %v3187 = vadd.f32 %v3186, %v2897
    %v3188 = vadd.f32 %v3187, %v2898
    %v3189 = vadd.f32 %v3188, %v2899
    %v3190 = vadd.f32 %v3189, %v2900
    %v3191 = vadd.f32 %v3190, %v2901
    %v3192 = vadd.f32 %v3191, %v2902
    %v3193 = vadd.f32 %v3192, %v2903
    %v3194 = vadd.f32 %v3193, %v2904
    %v3195 = vadd.f32 %v3194, %v2905
    %v3196 = vadd.f32 %v3195, %v2906
    %v3197 = vadd.f32 %v3196, %v2907
    %v3198 = vadd.f32 %v3197, %v2908
    %v3199 = vadd.f32 %v3198, %v2909
    %v3200 = vadd.f32 %v3199, %v2910
    %v3201 = vadd.f32 %v3200, %v2911
    %v3202 = vadd.f32 %v3201, %v2912
    %v3203 = vadd.f32 %v3202, %v2913
    %v3204 = vadd.f32 %v3203, %v2914
    %v3205 = vadd.f32 %v3204, %v2915
    %v3206 = vadd.f32 %v3205, %v2916
    %v3207 = vadd.f32 %v3206, %v2917
    %v3208 = vadd.f32 %v3207, %v2918
    %v3209 = vrot.slane %v3208, 4
    %v3210 = vadd.f32 %v3208, %v3209
    %v3211 = vrot.slane %v3210, 2
    %v3212 = vadd.f32 %v3210, %v3211
    %v3213 = vrot.slane %v3212, 1
    %v3214 = vadd.f32 %v3212, %v3213
    %v3215 = vrcp.pop 256.0
    %v3216 = vmul.f32 %v2955, %v3215
    %v3217 = vmul.f32 %v2992, %v3215
    %v3218 = vmul.f32 %v3029, %v3215
    %v3219 = vmul.f32 %v3066, %v3215
    %v3220 = vmul.f32 %v3103, %v3215
    %v3221 = vmul.f32 %v3140, %v3215
    %v3222 = vmul.f32 %v3177, %v3215
    %v3223 = vmul.f32 %v3214, %v3215
    %v3224 = vpack.c.bf16 %v3216, %v3216
    %v3225 = vpack.c.bf16 %v3217, %v3217
    %v3226 = vpack.c.bf16 %v3218, %v3218
    %v3227 = vpack.c.bf16 %v3219, %v3219
    %v3228 = vpack.c.bf16 %v3220, %v3220
    %v3229 = vpack.c.bf16 %v3221, %v3221
    %v3230 = vpack.c.bf16 %v3222, %v3222
    %v3231 = vpack.c.bf16 %v3223, %v3223
    %v3232 = vlaneseq
    %v3233 = vshrl.u32 %v3232, 7
    %v3234 = vsub.s32 0, %v3233
    %v3235 = vrot.slane %v693, %v3234
    %v3244 = vunpack.c.l.b16 %v3224
    %v3245 = vunpack.c.l.b16 %v3225
    %v3246 = vunpack.c.l.b16 %v3226
    %v3247 = vunpack.c.l.b16 %v3227
    %v3248 = vunpack.c.l.b16 %v3228
    %v3249 = vunpack.c.l.b16 %v3229
    %v3250 = vunpack.c.l.b16 %v3230
    %v3251 = vunpack.c.l.b16 %v3231
    %vm3252 = vcmask 1041409
    %v3253 = vsel %vm3252, %v3245, %v3244
    %vm3254 = vcmask 1042434
    %v3255 = vsel %vm3254, %v3246, %v3253
    %vm3256 = vcmask 1043459
    %v3257 = vsel %vm3256, %v3247, %v3255
    %vm3258 = vcmask 1044484
    %v3259 = vsel %vm3258, %v3248, %v3257
    %vm3260 = vcmask 1045509
    %v3261 = vsel %vm3260, %v3249, %v3259
    %vm3262 = vcmask 1046534
    %v3263 = vsel %vm3262, %v3250, %v3261
    %vm3264 = vcmask 1047559
    %v3265 = vsel %vm3264, %v3251, %v3263
    %v3266 = vpack.c.b16 %v3265, %v3265
    %v3284 = vunpack.c.l.b16 %v309
    %v3285 = vunpack.c.l.b16 %v310
    %v3286 = vunpack.c.l.b16 %v311
    %v3287 = vunpack.c.l.b16 %v312
    %v3288 = vunpack.c.l.b16 %v313
    %v3289 = vunpack.c.l.b16 %v314
    %v3290 = vunpack.c.l.b16 %v315
    %v3291 = vunpack.c.l.b16 %v316
    %v3292 = vunpack.c.l.b16 %v317
    %v3293 = vunpack.c.l.b16 %v318
    %v3294 = vunpack.c.l.b16 %v319
    %v3295 = vunpack.c.l.b16 %v320
    %v3296 = vunpack.c.l.b16 %v321
    %v3297 = vunpack.c.l.b16 %v322
    %v3298 = vunpack.c.l.b16 %v323
    %v3299 = vunpack.c.l.b16 %v324
    %v3300 = vpack.c.b16 %v3285, %v3284
    %v3301 = vpack.c.b16 %v3287, %v3286
    %v3302 = vpack.c.b16 %v3289, %v3288
    %v3303 = vpack.c.b16 %v3291, %v3290
    %v3304 = vpack.c.b16 %v3293, %v3292
    %v3305 = vpack.c.b16 %v3295, %v3294
    %v3306 = vpack.c.b16 %v3297, %v3296
    %v3307 = vpack.c.b16 %v3299, %v3298
    %3316 = vmatprep.subr.bf16.mxu0 0
    %3317 = vmatpush1.bf16.msra.mxu0 %v3307
    %3318 = vmatprep.subr.bf16.mxu0 0
    %3319 = vmatpush1.bf16.msra.mxu0 %v3306
    %3320 = vmatprep.subr.bf16.mxu0 0
    %3321 = vmatpush1.bf16.msra.mxu0 %v3305
    %3322 = vmatprep.subr.bf16.mxu0 0
    %3323 = vmatpush1.bf16.msra.mxu0 %v3304
    %3324 = vmatprep.subr.bf16.mxu0 0
    %3325 = vmatpush1.bf16.msra.mxu0 %v3303
    %3326 = vmatprep.subr.bf16.mxu0 0
    %3327 = vmatpush1.bf16.msra.mxu0 %v3302
    %3328 = vmatprep.subr.bf16.mxu0 0
    %3329 = vmatpush1.bf16.msra.mxu0 %v3301
    %3330 = vmatprep.subr.bf16.mxu0 0
    %3331 = vmatpush1.bf16.msra.mxu0 %v3300
    %3332 = vmatprep.subr.bf16.mxu0 0
    %3333 = vmatpush2.bf16.msra.mxu0 0
    %3334 = vmatprep.subr.bf16.mxu0 0
    %3335 = vmatpush2.bf16.msra.mxu0 0
    %3336 = vmatprep.subr.bf16.mxu0 0
    %3337 = vmatpush2.bf16.msra.mxu0 0
    %3338 = vmatprep.subr.bf16.mxu0 0
    %3339 = vmatpush2.bf16.msra.mxu0 0
    %3340 = vmatprep.subr.bf16.mxu0 0
    %3341 = vmatpush2.bf16.msra.mxu0 0
    %3342 = vmatprep.subr.bf16.mxu0 0
    %3343 = vmatpush2.bf16.msra.mxu0 0
    %3344 = vmatprep.subr.bf16.mxu0 0
    %3345 = vmatpush2.bf16.msra.mxu0 0
    %3346 = vmatprep.subr.bf16.mxu0 0
    %3347 = vmatpush2.bf16.msra.mxu0 0
    %3348 = vmatprep.mubr.bf16.mxu0 0
    %3349 = vmatmul.mubr.bf16.gmra.mxu0 %v3266
    %v3350 = vpop.f32.mrf.mxu0
    %v3351 = vadd.f32 %v3235, %v3350
    %v3352 = vpop.f32.mrf.mxu0
    %v3353 = vpop.f32.mrf.mxu0
    %v3354 = vpop.f32.mrf.mxu0
    %3355 = vdwg.mxu0
    %v3357 = vrot.slane %v3351, 1
    %v3358 = vrot.slane %v3351, 2
    %v3359 = vrot.slane %v3351, 3
    %v3360 = vrot.slane %v3351, 4
    %v3361 = vrot.slane %v3351, 5
    %v3362 = vrot.slane %v3351, 6
    %v3363 = vrot.slane %v3351, 7
    %v3372 = vadd.f32 %v3216, %v3351
    %v3373 = vadd.f32 %v3217, %v3357
    %v3374 = vadd.f32 %v3218, %v3358
    %v3375 = vadd.f32 %v3219, %v3359
    %v3376 = vadd.f32 %v3220, %v3360
    %v3377 = vadd.f32 %v3221, %v3361
    %v3378 = vadd.f32 %v3222, %v3362
    %v3379 = vadd.f32 %v3223, %v3363
    %v3388 = vrot.slane %v3373, 7
    %v3389 = vsel %vm3252, %v3388, %v3372
    %v3390 = vrot.slane %v3374, 6
    %v3391 = vsel %vm3254, %v3390, %v3389
    %v3392 = vrot.slane %v3375, 5
    %v3393 = vsel %vm3256, %v3392, %v3391
    %v3394 = vrot.slane %v3376, 4
    %v3395 = vsel %vm3258, %v3394, %v3393
    %v3396 = vrot.slane %v3377, 3
    %v3397 = vsel %vm3260, %v3396, %v3395
    %v3398 = vrot.slane %v3378, 2
    %v3399 = vsel %vm3262, %v3398, %v3397
    %v3400 = vrot.slane %v3379, 1
    %v3401 = vsel %vm3264, %v3400, %v3399
    %3403 = vadd.xlane.f32.xlu0 %v3401
    %v3404 = vpop.xlane.xlu0 %3403
    %v3405 = vrcp.pop 128.0
    %v3406 = vmul.f32 %v3404, %v3405
    %v3408 = vrot.slane %v3406, 1
    %v3409 = vrot.slane %v3406, 2
    %v3410 = vrot.slane %v3406, 3
    %v3411 = vrot.slane %v3406, 4
    %v3412 = vrot.slane %v3406, 5
    %v3413 = vrot.slane %v3406, 6
    %v3414 = vrot.slane %v3406, 7
    %v3423 = vsub.f32 %v3372, %v3406
    %v3424 = vsub.f32 %v3373, %v3408
    %v3425 = vsub.f32 %v3374, %v3409
    %v3426 = vsub.f32 %v3375, %v3410
    %v3427 = vsub.f32 %v3376, %v3411
    %v3428 = vsub.f32 %v3377, %v3412
    %v3429 = vsub.f32 %v3378, %v3413
    %v3430 = vsub.f32 %v3379, %v3414
    %v3431 = vmul.f32 %v3423, %v3423
    %v3432 = vmul.f32 %v3424, %v3424
    %v3433 = vmul.f32 %v3425, %v3425
    %v3434 = vmul.f32 %v3426, %v3426
    %v3435 = vmul.f32 %v3427, %v3427
    %v3436 = vmul.f32 %v3428, %v3428
    %v3437 = vmul.f32 %v3429, %v3429
    %v3438 = vmul.f32 %v3430, %v3430
    %v3447 = vrot.slane %v3432, 7
    %v3448 = vsel %vm3252, %v3447, %v3431
    %v3449 = vrot.slane %v3433, 6
    %v3450 = vsel %vm3254, %v3449, %v3448
    %v3451 = vrot.slane %v3434, 5
    %v3452 = vsel %vm3256, %v3451, %v3450
    %v3453 = vrot.slane %v3435, 4
    %v3454 = vsel %vm3258, %v3453, %v3452
    %v3455 = vrot.slane %v3436, 3
    %v3456 = vsel %vm3260, %v3455, %v3454
    %v3457 = vrot.slane %v3437, 2
    %v3458 = vsel %vm3262, %v3457, %v3456
    %v3459 = vrot.slane %v3438, 1
    %v3460 = vsel %vm3264, %v3459, %v3458
    %3462 = vadd.xlane.f32.xlu0 %v3460
    %v3463 = vpop.xlane.xlu0 %3462
    %v3464 = vmul.f32 %v3463, %v3405
    %v3465 = vadd.f32 %v3464, 1e-05
    %v3466 = vrsqrt.pop %v3465
    %v3468 = vrot.slane %v3466, 1
    %v3469 = vrot.slane %v3466, 2
    %v3470 = vrot.slane %v3466, 3
    %v3471 = vrot.slane %v3466, 4
    %v3472 = vrot.slane %v3466, 5
    %v3473 = vrot.slane %v3466, 6
    %v3474 = vrot.slane %v3466, 7
    %v3483 = vmul.f32 %v3423, %v3466
    %v3484 = vmul.f32 %v3424, %v3468
    %v3485 = vmul.f32 %v3425, %v3469
    %v3486 = vmul.f32 %v3426, %v3470
    %v3487 = vmul.f32 %v3427, %v3471
    %v3488 = vmul.f32 %v3428, %v3472
    %v3489 = vmul.f32 %v3429, %v3473
    %v3490 = vmul.f32 %v3430, %v3474
    %v3491 = vlaneseq
    %v3492 = vshrl.u32 %v3491, 7
    %v3493 = vsub.s32 2, %v3492
    %v3494 = vrot.slane %v693, %v3493
    %v3495 = vmul.f32 %v3483, %v3494
    %v3496 = vmul.f32 %v3484, %v3494
    %v3497 = vmul.f32 %v3485, %v3494
    %v3498 = vmul.f32 %v3486, %v3494
    %v3499 = vmul.f32 %v3487, %v3494
    %v3500 = vmul.f32 %v3488, %v3494
    %v3501 = vmul.f32 %v3489, %v3494
    %v3502 = vmul.f32 %v3490, %v3494
    %v3503 = vlaneseq
    %v3504 = vshrl.u32 %v3503, 7
    %v3505 = vsub.s32 3, %v3504
    %v3506 = vrot.slane %v693, %v3505
    %v3507 = vadd.f32 %v3495, %v3506
    %v3508 = vadd.f32 %v3496, %v3506
    %v3509 = vadd.f32 %v3497, %v3506
    %v3510 = vadd.f32 %v3498, %v3506
    %v3511 = vadd.f32 %v3499, %v3506
    %v3512 = vadd.f32 %v3500, %v3506
    %v3513 = vadd.f32 %v3501, %v3506
    %v3514 = vadd.f32 %v3502, %v3506
    %v3515 = vpack.c.bf16 %v3507, %v3507
    %v3516 = vpack.c.bf16 %v3508, %v3508
    %v3517 = vpack.c.bf16 %v3509, %v3509
    %v3518 = vpack.c.bf16 %v3510, %v3510
    %v3519 = vpack.c.bf16 %v3511, %v3511
    %v3520 = vpack.c.bf16 %v3512, %v3512
    %v3521 = vpack.c.bf16 %v3513, %v3513
    %v3522 = vpack.c.bf16 %v3514, %v3514
    %v3523 = vlaneseq
    %v3524 = vshrl.u32 %v3523, 7
    %v3525 = vsub.s32 6, %v3524
    %v3526 = vrot.slane %v693, %v3525
    %v3527 = vlaneseq
    %v3528 = vshrl.u32 %v3527, 7
    %v3529 = vsub.s32 6, %v3528
    %v3530 = vrot.slane %v694, %v3529
    %v3539 = vunpack.c.l.b16 %v3515
    %v3540 = vunpack.c.l.b16 %v3516
    %v3541 = vunpack.c.l.b16 %v3517
    %v3542 = vunpack.c.l.b16 %v3518
    %v3543 = vunpack.c.l.b16 %v3519
    %v3544 = vunpack.c.l.b16 %v3520
    %v3545 = vunpack.c.l.b16 %v3521
    %v3546 = vunpack.c.l.b16 %v3522
    %v3547 = vrot.slane %v3540, 7
    %v3548 = vsel %vm3252, %v3547, %v3539
    %v3549 = vrot.slane %v3541, 6
    %v3550 = vsel %vm3254, %v3549, %v3548
    %v3551 = vrot.slane %v3542, 5
    %v3552 = vsel %vm3256, %v3551, %v3550
    %v3553 = vrot.slane %v3543, 4
    %v3554 = vsel %vm3258, %v3553, %v3552
    %v3555 = vrot.slane %v3544, 3
    %v3556 = vsel %vm3260, %v3555, %v3554
    %v3557 = vrot.slane %v3545, 2
    %v3558 = vsel %vm3262, %v3557, %v3556
    %v3559 = vrot.slane %v3546, 1
    %v3560 = vsel %vm3264, %v3559, %v3558
    %v3561 = vpack.c.b16 %v3560, %v3560
    %v3579 = vunpack.c.l.b16 %v405
    %v3580 = vunpack.c.h.b16 %v405
    %v3581 = vunpack.c.l.b16 %v406
    %v3582 = vunpack.c.h.b16 %v406
    %v3583 = vunpack.c.l.b16 %v407
    %v3584 = vunpack.c.h.b16 %v407
    %v3585 = vunpack.c.l.b16 %v408
    %v3586 = vunpack.c.h.b16 %v408
    %v3587 = vunpack.c.l.b16 %v409
    %v3588 = vunpack.c.h.b16 %v409
    %v3589 = vunpack.c.l.b16 %v410
    %v3590 = vunpack.c.h.b16 %v410
    %v3591 = vunpack.c.l.b16 %v411
    %v3592 = vunpack.c.h.b16 %v411
    %v3593 = vunpack.c.l.b16 %v412
    %v3594 = vunpack.c.h.b16 %v412
    %v3595 = vunpack.c.l.b16 %v413
    %v3596 = vunpack.c.h.b16 %v413
    %v3597 = vunpack.c.l.b16 %v414
    %v3598 = vunpack.c.h.b16 %v414
    %v3599 = vunpack.c.l.b16 %v415
    %v3600 = vunpack.c.h.b16 %v415
    %v3601 = vunpack.c.l.b16 %v416
    %v3602 = vunpack.c.h.b16 %v416
    %v3603 = vunpack.c.l.b16 %v417
    %v3604 = vunpack.c.h.b16 %v417
    %v3605 = vunpack.c.l.b16 %v418
    %v3606 = vunpack.c.h.b16 %v418
    %v3607 = vunpack.c.l.b16 %v419
    %v3608 = vunpack.c.h.b16 %v419
    %v3609 = vunpack.c.l.b16 %v420
    %v3610 = vunpack.c.h.b16 %v420
    %v3611 = vpack.c.b16 %v3581, %v3579
    %v3612 = vpack.c.b16 %v3582, %v3580
    %v3613 = vpack.c.b16 %v3585, %v3583
    %v3614 = vpack.c.b16 %v3586, %v3584
    %v3615 = vpack.c.b16 %v3589, %v3587
    %v3616 = vpack.c.b16 %v3590, %v3588
    %v3617 = vpack.c.b16 %v3593, %v3591
    %v3618 = vpack.c.b16 %v3594, %v3592
    %v3619 = vpack.c.b16 %v3597, %v3595
    %v3620 = vpack.c.b16 %v3598, %v3596
    %v3621 = vpack.c.b16 %v3601, %v3599
    %v3622 = vpack.c.b16 %v3602, %v3600
    %v3623 = vpack.c.b16 %v3605, %v3603
    %v3624 = vpack.c.b16 %v3606, %v3604
    %v3625 = vpack.c.b16 %v3609, %v3607
    %v3626 = vpack.c.b16 %v3610, %v3608
    %3643 = vmatprep.subr.bf16.mxu0 %v3626
    %3644 = vmatpush1.bf16.msra.mxu0 %v3625
    %3645 = vmatprep.subr.bf16.mxu0 %v3624
    %3646 = vmatpush1.bf16.msra.mxu0 %v3623
    %3647 = vmatprep.subr.bf16.mxu0 %v3622
    %3648 = vmatpush1.bf16.msra.mxu0 %v3621
    %3649 = vmatprep.subr.bf16.mxu0 %v3620
    %3650 = vmatpush1.bf16.msra.mxu0 %v3619
    %3651 = vmatprep.subr.bf16.mxu0 %v3618
    %3652 = vmatpush1.bf16.msra.mxu0 %v3617
    %3653 = vmatprep.subr.bf16.mxu0 %v3616
    %3654 = vmatpush1.bf16.msra.mxu0 %v3615
    %3655 = vmatprep.subr.bf16.mxu0 %v3614
    %3656 = vmatpush1.bf16.msra.mxu0 %v3613
    %3657 = vmatprep.subr.bf16.mxu0 %v3612
    %3658 = vmatpush1.bf16.msra.mxu0 %v3611
    %3659 = vmatprep.subr.bf16.mxu0 0
    %3660 = vmatpush2.bf16.msra.mxu0 0
    %3661 = vmatprep.subr.bf16.mxu0 0
    %3662 = vmatpush2.bf16.msra.mxu0 0
    %3663 = vmatprep.subr.bf16.mxu0 0
    %3664 = vmatpush2.bf16.msra.mxu0 0
    %3665 = vmatprep.subr.bf16.mxu0 0
    %3666 = vmatpush2.bf16.msra.mxu0 0
    %3667 = vmatprep.subr.bf16.mxu0 0
    %3668 = vmatpush2.bf16.msra.mxu0 0
    %3669 = vmatprep.subr.bf16.mxu0 0
    %3670 = vmatpush2.bf16.msra.mxu0 0
    %3671 = vmatprep.subr.bf16.mxu0 0
    %3672 = vmatpush2.bf16.msra.mxu0 0
    %3673 = vmatprep.subr.bf16.mxu0 0
    %3674 = vmatpush2.bf16.msra.mxu0 0
    %3675 = vmatprep.mubr.bf16.mxu0 0
    %3676 = vmatmul.mubr.bf16.gmra.mxu0 %v3561
    %v3677 = vpop.f32.mrf.mxu0
    %v3678 = vadd.f32 %v3526, %v3677
    %v3679 = vpop.f32.mrf.mxu0
    %v3680 = vadd.f32 %v3530, %v3679
    %v3681 = vpop.f32.mrf.mxu0
    %v3682 = vpop.f32.mrf.mxu0
    %3683 = vdwg.mxu0
    %v3684 = vmax.f32 %v3678, 0.0
    %v3685 = vmax.f32 %v3680, 0.0
    %v3686 = vpack.c.bf16 %v3684, %v3684
    %v3687 = vpack.c.bf16 %v3685, %v3685
    %v3688 = vlaneseq
    %v3689 = vshrl.u32 %v3688, 7
    %v3690 = vsub.s32 1, %v3689
    %v3691 = vrot.slane %v693, %v3690
    %v3724 = vunpack.c.l.b16 %v501
    %v3725 = vunpack.c.l.b16 %v502
    %v3726 = vunpack.c.l.b16 %v503
    %v3727 = vunpack.c.l.b16 %v504
    %v3728 = vunpack.c.l.b16 %v505
    %v3729 = vunpack.c.l.b16 %v506
    %v3730 = vunpack.c.l.b16 %v507
    %v3731 = vunpack.c.l.b16 %v508
    %v3732 = vunpack.c.l.b16 %v509
    %v3733 = vunpack.c.l.b16 %v510
    %v3734 = vunpack.c.l.b16 %v511
    %v3735 = vunpack.c.l.b16 %v512
    %v3736 = vunpack.c.l.b16 %v513
    %v3737 = vunpack.c.l.b16 %v514
    %v3738 = vunpack.c.l.b16 %v515
    %v3739 = vunpack.c.l.b16 %v516
    %v3740 = vunpack.c.l.b16 %v517
    %v3741 = vunpack.c.l.b16 %v518
    %v3742 = vunpack.c.l.b16 %v519
    %v3743 = vunpack.c.l.b16 %v520
    %v3744 = vunpack.c.l.b16 %v521
    %v3745 = vunpack.c.l.b16 %v522
    %v3746 = vunpack.c.l.b16 %v523
    %v3747 = vunpack.c.l.b16 %v524
    %v3748 = vunpack.c.l.b16 %v525
    %v3749 = vunpack.c.l.b16 %v526
    %v3750 = vunpack.c.l.b16 %v527
    %v3751 = vunpack.c.l.b16 %v528
    %v3752 = vunpack.c.l.b16 %v529
    %v3753 = vunpack.c.l.b16 %v530
    %v3754 = vunpack.c.l.b16 %v531
    %v3755 = vunpack.c.l.b16 %v532
    %v3756 = vpack.c.b16 %v3725, %v3724
    %v3757 = vpack.c.b16 %v3727, %v3726
    %v3758 = vpack.c.b16 %v3729, %v3728
    %v3759 = vpack.c.b16 %v3731, %v3730
    %v3760 = vpack.c.b16 %v3733, %v3732
    %v3761 = vpack.c.b16 %v3735, %v3734
    %v3762 = vpack.c.b16 %v3737, %v3736
    %v3763 = vpack.c.b16 %v3739, %v3738
    %v3764 = vpack.c.b16 %v3741, %v3740
    %v3765 = vpack.c.b16 %v3743, %v3742
    %v3766 = vpack.c.b16 %v3745, %v3744
    %v3767 = vpack.c.b16 %v3747, %v3746
    %v3768 = vpack.c.b16 %v3749, %v3748
    %v3769 = vpack.c.b16 %v3751, %v3750
    %v3770 = vpack.c.b16 %v3753, %v3752
    %v3771 = vpack.c.b16 %v3755, %v3754
    %3788 = vmatprep.subr.bf16.mxu0 0
    %3789 = vmatpush1.bf16.msra.mxu0 %v3763
    %3790 = vmatprep.subr.bf16.mxu0 0
    %3791 = vmatpush1.bf16.msra.mxu0 %v3762
    %3792 = vmatprep.subr.bf16.mxu0 0
    %3793 = vmatpush1.bf16.msra.mxu0 %v3761
    %3794 = vmatprep.subr.bf16.mxu0 0
    %3795 = vmatpush1.bf16.msra.mxu0 %v3760
    %3796 = vmatprep.subr.bf16.mxu0 0
    %3797 = vmatpush1.bf16.msra.mxu0 %v3759
    %3798 = vmatprep.subr.bf16.mxu0 0
    %3799 = vmatpush1.bf16.msra.mxu0 %v3758
    %3800 = vmatprep.subr.bf16.mxu0 0
    %3801 = vmatpush1.bf16.msra.mxu0 %v3757
    %3802 = vmatprep.subr.bf16.mxu0 0
    %3803 = vmatpush1.bf16.msra.mxu0 %v3756
    %3804 = vmatprep.subr.bf16.mxu0 0
    %3805 = vmatpush2.bf16.msra.mxu0 %v3771
    %3806 = vmatprep.subr.bf16.mxu0 0
    %3807 = vmatpush2.bf16.msra.mxu0 %v3770
    %3808 = vmatprep.subr.bf16.mxu0 0
    %3809 = vmatpush2.bf16.msra.mxu0 %v3769
    %3810 = vmatprep.subr.bf16.mxu0 0
    %3811 = vmatpush2.bf16.msra.mxu0 %v3768
    %3812 = vmatprep.subr.bf16.mxu0 0
    %3813 = vmatpush2.bf16.msra.mxu0 %v3767
    %3814 = vmatprep.subr.bf16.mxu0 0
    %3815 = vmatpush2.bf16.msra.mxu0 %v3766
    %3816 = vmatprep.subr.bf16.mxu0 0
    %3817 = vmatpush2.bf16.msra.mxu0 %v3765
    %3818 = vmatprep.subr.bf16.mxu0 0
    %3819 = vmatpush2.bf16.msra.mxu0 %v3764
    %3820 = vmatprep.mubr.bf16.mxu0 %v3687
    %3821 = vmatmul.mubr.bf16.gmra.mxu0 %v3686
    %v3822 = vpop.f32.mrf.mxu0
    %v3823 = vadd.f32 %v3691, %v3822
    %v3824 = vpop.f32.mrf.mxu0
    %v3825 = vpop.f32.mrf.mxu0
    %v3826 = vpop.f32.mrf.mxu0
    %3827 = vdwg.mxu0
    %v3829 = vrot.slane %v3823, 1
    %v3830 = vrot.slane %v3823, 2
    %v3831 = vrot.slane %v3823, 3
    %v3832 = vrot.slane %v3823, 4
    %v3833 = vrot.slane %v3823, 5
    %v3834 = vrot.slane %v3823, 6
    %v3835 = vrot.slane %v3823, 7
    %v3844 = vadd.f32 %v3507, %v3823
    %v3845 = vadd.f32 %v3508, %v3829
    %v3846 = vadd.f32 %v3509, %v3830
    %v3847 = vadd.f32 %v3510, %v3831
    %v3848 = vadd.f32 %v3511, %v3832
    %v3849 = vadd.f32 %v3512, %v3833
    %v3850 = vadd.f32 %v3513, %v3834
    %v3851 = vadd.f32 %v3514, %v3835
    %v3860 = vrot.slane %v3845, 7
    %v3861 = vsel %vm3252, %v3860, %v3844
    %v3862 = vrot.slane %v3846, 6
    %v3863 = vsel %vm3254, %v3862, %v3861
    %v3864 = vrot.slane %v3847, 5
    %v3865 = vsel %vm3256, %v3864, %v3863
    %v3866 = vrot.slane %v3848, 4
    %v3867 = vsel %vm3258, %v3866, %v3865
    %v3868 = vrot.slane %v3849, 3
    %v3869 = vsel %vm3260, %v3868, %v3867
    %v3870 = vrot.slane %v3850, 2
    %v3871 = vsel %vm3262, %v3870, %v3869
    %v3872 = vrot.slane %v3851, 1
    %v3873 = vsel %vm3264, %v3872, %v3871
    %3875 = vadd.xlane.f32.xlu0 %v3873
    %v3876 = vpop.xlane.xlu0 %3875
    %v3877 = vmul.f32 %v3876, %v3405
    %v3879 = vrot.slane %v3877, 1
    %v3880 = vrot.slane %v3877, 2
    %v3881 = vrot.slane %v3877, 3
    %v3882 = vrot.slane %v3877, 4
    %v3883 = vrot.slane %v3877, 5
    %v3884 = vrot.slane %v3877, 6
    %v3885 = vrot.slane %v3877, 7
    %v3894 = vsub.f32 %v3844, %v3877
    %v3895 = vsub.f32 %v3845, %v3879
    %v3896 = vsub.f32 %v3846, %v3880
    %v3897 = vsub.f32 %v3847, %v3881
    %v3898 = vsub.f32 %v3848, %v3882
    %v3899 = vsub.f32 %v3849, %v3883
    %v3900 = vsub.f32 %v3850, %v3884
    %v3901 = vsub.f32 %v3851, %v3885
    %v3902 = vmul.f32 %v3894, %v3894
    %v3903 = vmul.f32 %v3895, %v3895
    %v3904 = vmul.f32 %v3896, %v3896
    %v3905 = vmul.f32 %v3897, %v3897
    %v3906 = vmul.f32 %v3898, %v3898
    %v3907 = vmul.f32 %v3899, %v3899
    %v3908 = vmul.f32 %v3900, %v3900
    %v3909 = vmul.f32 %v3901, %v3901
    %v3918 = vrot.slane %v3903, 7
    %v3919 = vsel %vm3252, %v3918, %v3902
    %v3920 = vrot.slane %v3904, 6
    %v3921 = vsel %vm3254, %v3920, %v3919
    %v3922 = vrot.slane %v3905, 5
    %v3923 = vsel %vm3256, %v3922, %v3921
    %v3924 = vrot.slane %v3906, 4
    %v3925 = vsel %vm3258, %v3924, %v3923
    %v3926 = vrot.slane %v3907, 3
    %v3927 = vsel %vm3260, %v3926, %v3925
    %v3928 = vrot.slane %v3908, 2
    %v3929 = vsel %vm3262, %v3928, %v3927
    %v3930 = vrot.slane %v3909, 1
    %v3931 = vsel %vm3264, %v3930, %v3929
    %3933 = vadd.xlane.f32.xlu0 %v3931
    %v3934 = vpop.xlane.xlu0 %3933
    %v3935 = vmul.f32 %v3934, %v3405
    %v3936 = vadd.f32 %v3935, 1e-05
    %v3937 = vrsqrt.pop %v3936
    %v3939 = vrot.slane %v3937, 1
    %v3940 = vrot.slane %v3937, 2
    %v3941 = vrot.slane %v3937, 3
    %v3942 = vrot.slane %v3937, 4
    %v3943 = vrot.slane %v3937, 5
    %v3944 = vrot.slane %v3937, 6
    %v3945 = vrot.slane %v3937, 7
    %v3954 = vmul.f32 %v3894, %v3937
    %v3955 = vmul.f32 %v3895, %v3939
    %v3956 = vmul.f32 %v3896, %v3940
    %v3957 = vmul.f32 %v3897, %v3941
    %v3958 = vmul.f32 %v3898, %v3942
    %v3959 = vmul.f32 %v3899, %v3943
    %v3960 = vmul.f32 %v3900, %v3944
    %v3961 = vmul.f32 %v3901, %v3945
    %v3962 = vlaneseq
    %v3963 = vshrl.u32 %v3962, 7
    %v3964 = vsub.s32 4, %v3963
    %v3965 = vrot.slane %v693, %v3964
    %v3966 = vmul.f32 %v3954, %v3965
    %v3967 = vmul.f32 %v3955, %v3965
    %v3968 = vmul.f32 %v3956, %v3965
    %v3969 = vmul.f32 %v3957, %v3965
    %v3970 = vmul.f32 %v3958, %v3965
    %v3971 = vmul.f32 %v3959, %v3965
    %v3972 = vmul.f32 %v3960, %v3965
    %v3973 = vmul.f32 %v3961, %v3965
    %v3974 = vlaneseq
    %v3975 = vshrl.u32 %v3974, 7
    %v3976 = vsub.s32 5, %v3975
    %v3977 = vrot.slane %v693, %v3976
    %v3978 = vadd.f32 %v3966, %v3977
    %v3979 = vadd.f32 %v3967, %v3977
    %v3980 = vadd.f32 %v3968, %v3977
    %v3981 = vadd.f32 %v3969, %v3977
    %v3982 = vadd.f32 %v3970, %v3977
    %v3983 = vadd.f32 %v3971, %v3977
    %v3984 = vadd.f32 %v3972, %v3977
    %v3985 = vadd.f32 %v3973, %v3977
    %v3986 = vpack.c.bf16 %v3978, %v3978
    %v3987 = vpack.c.bf16 %v3979, %v3979
    %v3988 = vpack.c.bf16 %v3980, %v3980
    %v3989 = vpack.c.bf16 %v3981, %v3981
    %v3990 = vpack.c.bf16 %v3982, %v3982
    %v3991 = vpack.c.bf16 %v3983, %v3983
    %v3992 = vpack.c.bf16 %v3984, %v3984
    %v3993 = vpack.c.bf16 %v3985, %v3985
    %v3994 = vlaneseq
    %v3995 = vshrl.u32 %v3994, 7
    %v3996 = vsub.s32 0, %v3995
    %v3997 = vrot.slane %v695, %v3996
    %v4006 = vunpack.c.l.b16 %v3986
    %v4007 = vunpack.c.l.b16 %v3987
    %v4008 = vunpack.c.l.b16 %v3988
    %v4009 = vunpack.c.l.b16 %v3989
    %v4010 = vunpack.c.l.b16 %v3990
    %v4011 = vunpack.c.l.b16 %v3991
    %v4012 = vunpack.c.l.b16 %v3992
    %v4013 = vunpack.c.l.b16 %v3993
    %v4014 = vrot.slane %v4007, 7
    %v4015 = vsel %vm3252, %v4014, %v4006
    %v4016 = vrot.slane %v4008, 6
    %v4017 = vsel %vm3254, %v4016, %v4015
    %v4018 = vrot.slane %v4009, 5
    %v4019 = vsel %vm3256, %v4018, %v4017
    %v4020 = vrot.slane %v4010, 4
    %v4021 = vsel %vm3258, %v4020, %v4019
    %v4022 = vrot.slane %v4011, 3
    %v4023 = vsel %vm3260, %v4022, %v4021
    %v4024 = vrot.slane %v4012, 2
    %v4025 = vsel %vm3262, %v4024, %v4023
    %v4026 = vrot.slane %v4013, 1
    %v4027 = vsel %vm3264, %v4026, %v4025
    %v4028 = vpack.c.b16 %v4027, %v4027
    %v4046 = vunpack.c.l.b16 %v325
    %v4047 = vunpack.c.l.b16 %v326
    %v4048 = vunpack.c.l.b16 %v327
    %v4049 = vunpack.c.l.b16 %v328
    %v4050 = vunpack.c.l.b16 %v329
    %v4051 = vunpack.c.l.b16 %v330
    %v4052 = vunpack.c.l.b16 %v331
    %v4053 = vunpack.c.l.b16 %v332
    %v4054 = vunpack.c.l.b16 %v333
    %v4055 = vunpack.c.l.b16 %v334
    %v4056 = vunpack.c.l.b16 %v335
    %v4057 = vunpack.c.l.b16 %v336
    %v4058 = vunpack.c.l.b16 %v337
    %v4059 = vunpack.c.l.b16 %v338
    %v4060 = vunpack.c.l.b16 %v339
    %v4061 = vunpack.c.l.b16 %v340
    %v4062 = vpack.c.b16 %v4047, %v4046
    %v4063 = vpack.c.b16 %v4049, %v4048
    %v4064 = vpack.c.b16 %v4051, %v4050
    %v4065 = vpack.c.b16 %v4053, %v4052
    %v4066 = vpack.c.b16 %v4055, %v4054
    %v4067 = vpack.c.b16 %v4057, %v4056
    %v4068 = vpack.c.b16 %v4059, %v4058
    %v4069 = vpack.c.b16 %v4061, %v4060
    %4078 = vmatprep.subr.bf16.mxu0 0
    %4079 = vmatpush1.bf16.msra.mxu0 %v4069
    %4080 = vmatprep.subr.bf16.mxu0 0
    %4081 = vmatpush1.bf16.msra.mxu0 %v4068
    %4082 = vmatprep.subr.bf16.mxu0 0
    %4083 = vmatpush1.bf16.msra.mxu0 %v4067
    %4084 = vmatprep.subr.bf16.mxu0 0
    %4085 = vmatpush1.bf16.msra.mxu0 %v4066
    %4086 = vmatprep.subr.bf16.mxu0 0
    %4087 = vmatpush1.bf16.msra.mxu0 %v4065
    %4088 = vmatprep.subr.bf16.mxu0 0
    %4089 = vmatpush1.bf16.msra.mxu0 %v4064
    %4090 = vmatprep.subr.bf16.mxu0 0
    %4091 = vmatpush1.bf16.msra.mxu0 %v4063
    %4092 = vmatprep.subr.bf16.mxu0 0
    %4093 = vmatpush1.bf16.msra.mxu0 %v4062
    %4094 = vmatprep.subr.bf16.mxu0 0
    %4095 = vmatpush2.bf16.msra.mxu0 0
    %4096 = vmatprep.subr.bf16.mxu0 0
    %4097 = vmatpush2.bf16.msra.mxu0 0
    %4098 = vmatprep.subr.bf16.mxu0 0
    %4099 = vmatpush2.bf16.msra.mxu0 0
    %4100 = vmatprep.subr.bf16.mxu0 0
    %4101 = vmatpush2.bf16.msra.mxu0 0
    %4102 = vmatprep.subr.bf16.mxu0 0
    %4103 = vmatpush2.bf16.msra.mxu0 0
    %4104 = vmatprep.subr.bf16.mxu0 0
    %4105 = vmatpush2.bf16.msra.mxu0 0
    %4106 = vmatprep.subr.bf16.mxu0 0
    %4107 = vmatpush2.bf16.msra.mxu0 0
    %4108 = vmatprep.subr.bf16.mxu0 0
    %4109 = vmatpush2.bf16.msra.mxu0 0
    %4110 = vmatprep.mubr.bf16.mxu0 0
    %4111 = vmatmul.mubr.bf16.gmra.mxu0 %v4028
    %v4112 = vpop.f32.mrf.mxu0
    %v4113 = vadd.f32 %v3997, %v4112
    %v4114 = vpop.f32.mrf.mxu0
    %v4115 = vpop.f32.mrf.mxu0
    %v4116 = vpop.f32.mrf.mxu0
    %4117 = vdwg.mxu0
    %v4119 = vrot.slane %v4113, 1
    %v4120 = vrot.slane %v4113, 2
    %v4121 = vrot.slane %v4113, 3
    %v4122 = vrot.slane %v4113, 4
    %v4123 = vrot.slane %v4113, 5
    %v4124 = vrot.slane %v4113, 6
    %v4125 = vrot.slane %v4113, 7
    %v4134 = vadd.f32 %v3978, %v4113
    %v4135 = vadd.f32 %v3979, %v4119
    %v4136 = vadd.f32 %v3980, %v4120
    %v4137 = vadd.f32 %v3981, %v4121
    %v4138 = vadd.f32 %v3982, %v4122
    %v4139 = vadd.f32 %v3983, %v4123
    %v4140 = vadd.f32 %v3984, %v4124
    %v4141 = vadd.f32 %v3985, %v4125
    %v4150 = vrot.slane %v4135, 7
    %v4151 = vsel %vm3252, %v4150, %v4134
    %v4152 = vrot.slane %v4136, 6
    %v4153 = vsel %vm3254, %v4152, %v4151
    %v4154 = vrot.slane %v4137, 5
    %v4155 = vsel %vm3256, %v4154, %v4153
    %v4156 = vrot.slane %v4138, 4
    %v4157 = vsel %vm3258, %v4156, %v4155
    %v4158 = vrot.slane %v4139, 3
    %v4159 = vsel %vm3260, %v4158, %v4157
    %v4160 = vrot.slane %v4140, 2
    %v4161 = vsel %vm3262, %v4160, %v4159
    %v4162 = vrot.slane %v4141, 1
    %v4163 = vsel %vm3264, %v4162, %v4161
    %4165 = vadd.xlane.f32.xlu0 %v4163
    %v4166 = vpop.xlane.xlu0 %4165
    %v4167 = vmul.f32 %v4166, %v3405
    %v4169 = vrot.slane %v4167, 1
    %v4170 = vrot.slane %v4167, 2
    %v4171 = vrot.slane %v4167, 3
    %v4172 = vrot.slane %v4167, 4
    %v4173 = vrot.slane %v4167, 5
    %v4174 = vrot.slane %v4167, 6
    %v4175 = vrot.slane %v4167, 7
    %v4184 = vsub.f32 %v4134, %v4167
    %v4185 = vsub.f32 %v4135, %v4169
    %v4186 = vsub.f32 %v4136, %v4170
    %v4187 = vsub.f32 %v4137, %v4171
    %v4188 = vsub.f32 %v4138, %v4172
    %v4189 = vsub.f32 %v4139, %v4173
    %v4190 = vsub.f32 %v4140, %v4174
    %v4191 = vsub.f32 %v4141, %v4175
    %v4192 = vmul.f32 %v4184, %v4184
    %v4193 = vmul.f32 %v4185, %v4185
    %v4194 = vmul.f32 %v4186, %v4186
    %v4195 = vmul.f32 %v4187, %v4187
    %v4196 = vmul.f32 %v4188, %v4188
    %v4197 = vmul.f32 %v4189, %v4189
    %v4198 = vmul.f32 %v4190, %v4190
    %v4199 = vmul.f32 %v4191, %v4191
    %v4208 = vrot.slane %v4193, 7
    %v4209 = vsel %vm3252, %v4208, %v4192
    %v4210 = vrot.slane %v4194, 6
    %v4211 = vsel %vm3254, %v4210, %v4209
    %v4212 = vrot.slane %v4195, 5
    %v4213 = vsel %vm3256, %v4212, %v4211
    %v4214 = vrot.slane %v4196, 4
    %v4215 = vsel %vm3258, %v4214, %v4213
    %v4216 = vrot.slane %v4197, 3
    %v4217 = vsel %vm3260, %v4216, %v4215
    %v4218 = vrot.slane %v4198, 2
    %v4219 = vsel %vm3262, %v4218, %v4217
    %v4220 = vrot.slane %v4199, 1
    %v4221 = vsel %vm3264, %v4220, %v4219
    %4223 = vadd.xlane.f32.xlu0 %v4221
    %v4224 = vpop.xlane.xlu0 %4223
    %v4225 = vmul.f32 %v4224, %v3405
    %v4226 = vadd.f32 %v4225, 1e-05
    %v4227 = vrsqrt.pop %v4226
    %v4229 = vrot.slane %v4227, 1
    %v4230 = vrot.slane %v4227, 2
    %v4231 = vrot.slane %v4227, 3
    %v4232 = vrot.slane %v4227, 4
    %v4233 = vrot.slane %v4227, 5
    %v4234 = vrot.slane %v4227, 6
    %v4235 = vrot.slane %v4227, 7
    %v4244 = vmul.f32 %v4184, %v4227
    %v4245 = vmul.f32 %v4185, %v4229
    %v4246 = vmul.f32 %v4186, %v4230
    %v4247 = vmul.f32 %v4187, %v4231
    %v4248 = vmul.f32 %v4188, %v4232
    %v4249 = vmul.f32 %v4189, %v4233
    %v4250 = vmul.f32 %v4190, %v4234
    %v4251 = vmul.f32 %v4191, %v4235
    %v4252 = vlaneseq
    %v4253 = vshrl.u32 %v4252, 7
    %v4254 = vsub.s32 2, %v4253
    %v4255 = vrot.slane %v695, %v4254
    %v4256 = vmul.f32 %v4244, %v4255
    %v4257 = vmul.f32 %v4245, %v4255
    %v4258 = vmul.f32 %v4246, %v4255
    %v4259 = vmul.f32 %v4247, %v4255
    %v4260 = vmul.f32 %v4248, %v4255
    %v4261 = vmul.f32 %v4249, %v4255
    %v4262 = vmul.f32 %v4250, %v4255
    %v4263 = vmul.f32 %v4251, %v4255
    %v4264 = vlaneseq
    %v4265 = vshrl.u32 %v4264, 7
    %v4266 = vsub.s32 3, %v4265
    %v4267 = vrot.slane %v695, %v4266
    %v4268 = vadd.f32 %v4256, %v4267
    %v4269 = vadd.f32 %v4257, %v4267
    %v4270 = vadd.f32 %v4258, %v4267
    %v4271 = vadd.f32 %v4259, %v4267
    %v4272 = vadd.f32 %v4260, %v4267
    %v4273 = vadd.f32 %v4261, %v4267
    %v4274 = vadd.f32 %v4262, %v4267
    %v4275 = vadd.f32 %v4263, %v4267
    %v4276 = vpack.c.bf16 %v4268, %v4268
    %v4277 = vpack.c.bf16 %v4269, %v4269
    %v4278 = vpack.c.bf16 %v4270, %v4270
    %v4279 = vpack.c.bf16 %v4271, %v4271
    %v4280 = vpack.c.bf16 %v4272, %v4272
    %v4281 = vpack.c.bf16 %v4273, %v4273
    %v4282 = vpack.c.bf16 %v4274, %v4274
    %v4283 = vpack.c.bf16 %v4275, %v4275
    %v4284 = vlaneseq
    %v4285 = vshrl.u32 %v4284, 7
    %v4286 = vsub.s32 6, %v4285
    %v4287 = vrot.slane %v695, %v4286
    %v4288 = vlaneseq
    %v4289 = vshrl.u32 %v4288, 7
    %v4290 = vsub.s32 6, %v4289
    %v4291 = vrot.slane %v696, %v4290
    %v4300 = vunpack.c.l.b16 %v4276
    %v4301 = vunpack.c.l.b16 %v4277
    %v4302 = vunpack.c.l.b16 %v4278
    %v4303 = vunpack.c.l.b16 %v4279
    %v4304 = vunpack.c.l.b16 %v4280
    %v4305 = vunpack.c.l.b16 %v4281
    %v4306 = vunpack.c.l.b16 %v4282
    %v4307 = vunpack.c.l.b16 %v4283
    %v4308 = vrot.slane %v4301, 7
    %v4309 = vsel %vm3252, %v4308, %v4300
    %v4310 = vrot.slane %v4302, 6
    %v4311 = vsel %vm3254, %v4310, %v4309
    %v4312 = vrot.slane %v4303, 5
    %v4313 = vsel %vm3256, %v4312, %v4311
    %v4314 = vrot.slane %v4304, 4
    %v4315 = vsel %vm3258, %v4314, %v4313
    %v4316 = vrot.slane %v4305, 3
    %v4317 = vsel %vm3260, %v4316, %v4315
    %v4318 = vrot.slane %v4306, 2
    %v4319 = vsel %vm3262, %v4318, %v4317
    %v4320 = vrot.slane %v4307, 1
    %v4321 = vsel %vm3264, %v4320, %v4319
    %v4322 = vpack.c.b16 %v4321, %v4321
    %v4340 = vunpack.c.l.b16 %v421
    %v4341 = vunpack.c.h.b16 %v421
    %v4342 = vunpack.c.l.b16 %v422
    %v4343 = vunpack.c.h.b16 %v422
    %v4344 = vunpack.c.l.b16 %v423
    %v4345 = vunpack.c.h.b16 %v423
    %v4346 = vunpack.c.l.b16 %v424
    %v4347 = vunpack.c.h.b16 %v424
    %v4348 = vunpack.c.l.b16 %v425
    %v4349 = vunpack.c.h.b16 %v425
    %v4350 = vunpack.c.l.b16 %v426
    %v4351 = vunpack.c.h.b16 %v426
    %v4352 = vunpack.c.l.b16 %v427
    %v4353 = vunpack.c.h.b16 %v427
    %v4354 = vunpack.c.l.b16 %v428
    %v4355 = vunpack.c.h.b16 %v428
    %v4356 = vunpack.c.l.b16 %v429
    %v4357 = vunpack.c.h.b16 %v429
    %v4358 = vunpack.c.l.b16 %v430
    %v4359 = vunpack.c.h.b16 %v430
    %v4360 = vunpack.c.l.b16 %v431
    %v4361 = vunpack.c.h.b16 %v431
    %v4362 = vunpack.c.l.b16 %v432
    %v4363 = vunpack.c.h.b16 %v432
    %v4364 = vunpack.c.l.b16 %v433
    %v4365 = vunpack.c.h.b16 %v433
    %v4366 = vunpack.c.l.b16 %v434
    %v4367 = vunpack.c.h.b16 %v434
    %v4368 = vunpack.c.l.b16 %v435
    %v4369 = vunpack.c.h.b16 %v435
    %v4370 = vunpack.c.l.b16 %v436
    %v4371 = vunpack.c.h.b16 %v436
    %v4372 = vpack.c.b16 %v4342, %v4340
    %v4373 = vpack.c.b16 %v4343, %v4341
    %v4374 = vpack.c.b16 %v4346, %v4344
    %v4375 = vpack.c.b16 %v4347, %v4345
    %v4376 = vpack.c.b16 %v4350, %v4348
    %v4377 = vpack.c.b16 %v4351, %v4349
    %v4378 = vpack.c.b16 %v4354, %v4352
    %v4379 = vpack.c.b16 %v4355, %v4353
    %v4380 = vpack.c.b16 %v4358, %v4356
    %v4381 = vpack.c.b16 %v4359, %v4357
    %v4382 = vpack.c.b16 %v4362, %v4360
    %v4383 = vpack.c.b16 %v4363, %v4361
    %v4384 = vpack.c.b16 %v4366, %v4364
    %v4385 = vpack.c.b16 %v4367, %v4365
    %v4386 = vpack.c.b16 %v4370, %v4368
    %v4387 = vpack.c.b16 %v4371, %v4369
    %4404 = vmatprep.subr.bf16.mxu0 %v4387
    %4405 = vmatpush1.bf16.msra.mxu0 %v4386
    %4406 = vmatprep.subr.bf16.mxu0 %v4385
    %4407 = vmatpush1.bf16.msra.mxu0 %v4384
    %4408 = vmatprep.subr.bf16.mxu0 %v4383
    %4409 = vmatpush1.bf16.msra.mxu0 %v4382
    %4410 = vmatprep.subr.bf16.mxu0 %v4381
    %4411 = vmatpush1.bf16.msra.mxu0 %v4380
    %4412 = vmatprep.subr.bf16.mxu0 %v4379
    %4413 = vmatpush1.bf16.msra.mxu0 %v4378
    %4414 = vmatprep.subr.bf16.mxu0 %v4377
    %4415 = vmatpush1.bf16.msra.mxu0 %v4376
    %4416 = vmatprep.subr.bf16.mxu0 %v4375
    %4417 = vmatpush1.bf16.msra.mxu0 %v4374
    %4418 = vmatprep.subr.bf16.mxu0 %v4373
    %4419 = vmatpush1.bf16.msra.mxu0 %v4372
    %4420 = vmatprep.subr.bf16.mxu0 0
    %4421 = vmatpush2.bf16.msra.mxu0 0
    %4422 = vmatprep.subr.bf16.mxu0 0
    %4423 = vmatpush2.bf16.msra.mxu0 0
    %4424 = vmatprep.subr.bf16.mxu0 0
    %4425 = vmatpush2.bf16.msra.mxu0 0
    %4426 = vmatprep.subr.bf16.mxu0 0
    %4427 = vmatpush2.bf16.msra.mxu0 0
    %4428 = vmatprep.subr.bf16.mxu0 0
    %4429 = vmatpush2.bf16.msra.mxu0 0
    %4430 = vmatprep.subr.bf16.mxu0 0
    %4431 = vmatpush2.bf16.msra.mxu0 0
    %4432 = vmatprep.subr.bf16.mxu0 0
    %4433 = vmatpush2.bf16.msra.mxu0 0
    %4434 = vmatprep.subr.bf16.mxu0 0
    %4435 = vmatpush2.bf16.msra.mxu0 0
    %4436 = vmatprep.mubr.bf16.mxu0 0
    %4437 = vmatmul.mubr.bf16.gmra.mxu0 %v4322
    %v4438 = vpop.f32.mrf.mxu0
    %v4439 = vadd.f32 %v4287, %v4438
    %v4440 = vpop.f32.mrf.mxu0
    %v4441 = vadd.f32 %v4291, %v4440
    %v4442 = vpop.f32.mrf.mxu0
    %v4443 = vpop.f32.mrf.mxu0
    %4444 = vdwg.mxu0
    %v4445 = vmax.f32 %v4439, 0.0
    %v4446 = vmax.f32 %v4441, 0.0
    %v4447 = vpack.c.bf16 %v4445, %v4445
    %v4448 = vpack.c.bf16 %v4446, %v4446
    %v4449 = vlaneseq
    %v4450 = vshrl.u32 %v4449, 7
    %v4451 = vsub.s32 1, %v4450
    %v4452 = vrot.slane %v695, %v4451
    %v4485 = vunpack.c.l.b16 %v533
    %v4486 = vunpack.c.l.b16 %v534
    %v4487 = vunpack.c.l.b16 %v535
    %v4488 = vunpack.c.l.b16 %v536
    %v4489 = vunpack.c.l.b16 %v537
    %v4490 = vunpack.c.l.b16 %v538
    %v4491 = vunpack.c.l.b16 %v539
    %v4492 = vunpack.c.l.b16 %v540
    %v4493 = vunpack.c.l.b16 %v541
    %v4494 = vunpack.c.l.b16 %v542
    %v4495 = vunpack.c.l.b16 %v543
    %v4496 = vunpack.c.l.b16 %v544
    %v4497 = vunpack.c.l.b16 %v545
    %v4498 = vunpack.c.l.b16 %v546
    %v4499 = vunpack.c.l.b16 %v547
    %v4500 = vunpack.c.l.b16 %v548
    %v4501 = vunpack.c.l.b16 %v549
    %v4502 = vunpack.c.l.b16 %v550
    %v4503 = vunpack.c.l.b16 %v551
    %v4504 = vunpack.c.l.b16 %v552
    %v4505 = vunpack.c.l.b16 %v553
    %v4506 = vunpack.c.l.b16 %v554
    %v4507 = vunpack.c.l.b16 %v555
    %v4508 = vunpack.c.l.b16 %v556
    %v4509 = vunpack.c.l.b16 %v557
    %v4510 = vunpack.c.l.b16 %v558
    %v4511 = vunpack.c.l.b16 %v559
    %v4512 = vunpack.c.l.b16 %v560
    %v4513 = vunpack.c.l.b16 %v561
    %v4514 = vunpack.c.l.b16 %v562
    %v4515 = vunpack.c.l.b16 %v563
    %v4516 = vunpack.c.l.b16 %v564
    %v4517 = vpack.c.b16 %v4486, %v4485
    %v4518 = vpack.c.b16 %v4488, %v4487
    %v4519 = vpack.c.b16 %v4490, %v4489
    %v4520 = vpack.c.b16 %v4492, %v4491
    %v4521 = vpack.c.b16 %v4494, %v4493
    %v4522 = vpack.c.b16 %v4496, %v4495
    %v4523 = vpack.c.b16 %v4498, %v4497
    %v4524 = vpack.c.b16 %v4500, %v4499
    %v4525 = vpack.c.b16 %v4502, %v4501
    %v4526 = vpack.c.b16 %v4504, %v4503
    %v4527 = vpack.c.b16 %v4506, %v4505
    %v4528 = vpack.c.b16 %v4508, %v4507
    %v4529 = vpack.c.b16 %v4510, %v4509
    %v4530 = vpack.c.b16 %v4512, %v4511
    %v4531 = vpack.c.b16 %v4514, %v4513
    %v4532 = vpack.c.b16 %v4516, %v4515
    %4549 = vmatprep.subr.bf16.mxu0 0
    %4550 = vmatpush1.bf16.msra.mxu0 %v4524
    %4551 = vmatprep.subr.bf16.mxu0 0
    %4552 = vmatpush1.bf16.msra.mxu0 %v4523
    %4553 = vmatprep.subr.bf16.mxu0 0
    %4554 = vmatpush1.bf16.msra.mxu0 %v4522
    %4555 = vmatprep.subr.bf16.mxu0 0
    %4556 = vmatpush1.bf16.msra.mxu0 %v4521
    %4557 = vmatprep.subr.bf16.mxu0 0
    %4558 = vmatpush1.bf16.msra.mxu0 %v4520
    %4559 = vmatprep.subr.bf16.mxu0 0
    %4560 = vmatpush1.bf16.msra.mxu0 %v4519
    %4561 = vmatprep.subr.bf16.mxu0 0
    %4562 = vmatpush1.bf16.msra.mxu0 %v4518
    %4563 = vmatprep.subr.bf16.mxu0 0
    %4564 = vmatpush1.bf16.msra.mxu0 %v4517
    %4565 = vmatprep.subr.bf16.mxu0 0
    %4566 = vmatpush2.bf16.msra.mxu0 %v4532
    %4567 = vmatprep.subr.bf16.mxu0 0
    %4568 = vmatpush2.bf16.msra.mxu0 %v4531
    %4569 = vmatprep.subr.bf16.mxu0 0
    %4570 = vmatpush2.bf16.msra.mxu0 %v4530
    %4571 = vmatprep.subr.bf16.mxu0 0
    %4572 = vmatpush2.bf16.msra.mxu0 %v4529
    %4573 = vmatprep.subr.bf16.mxu0 0
    %4574 = vmatpush2.bf16.msra.mxu0 %v4528
    %4575 = vmatprep.subr.bf16.mxu0 0
    %4576 = vmatpush2.bf16.msra.mxu0 %v4527
    %4577 = vmatprep.subr.bf16.mxu0 0
    %4578 = vmatpush2.bf16.msra.mxu0 %v4526
    %4579 = vmatprep.subr.bf16.mxu0 0
    %4580 = vmatpush2.bf16.msra.mxu0 %v4525
    %4581 = vmatprep.mubr.bf16.mxu0 %v4448
    %4582 = vmatmul.mubr.bf16.gmra.mxu0 %v4447
    %v4583 = vpop.f32.mrf.mxu0
    %v4584 = vadd.f32 %v4452, %v4583
    %v4585 = vpop.f32.mrf.mxu0
    %v4586 = vpop.f32.mrf.mxu0
    %v4587 = vpop.f32.mrf.mxu0
    %4588 = vdwg.mxu0
    %v4590 = vrot.slane %v4584, 1
    %v4591 = vrot.slane %v4584, 2
    %v4592 = vrot.slane %v4584, 3
    %v4593 = vrot.slane %v4584, 4
    %v4594 = vrot.slane %v4584, 5
    %v4595 = vrot.slane %v4584, 6
    %v4596 = vrot.slane %v4584, 7
    %v4605 = vadd.f32 %v4268, %v4584
    %v4606 = vadd.f32 %v4269, %v4590
    %v4607 = vadd.f32 %v4270, %v4591
    %v4608 = vadd.f32 %v4271, %v4592
    %v4609 = vadd.f32 %v4272, %v4593
    %v4610 = vadd.f32 %v4273, %v4594
    %v4611 = vadd.f32 %v4274, %v4595
    %v4612 = vadd.f32 %v4275, %v4596
    %v4621 = vrot.slane %v4606, 7
    %v4622 = vsel %vm3252, %v4621, %v4605
    %v4623 = vrot.slane %v4607, 6
    %v4624 = vsel %vm3254, %v4623, %v4622
    %v4625 = vrot.slane %v4608, 5
    %v4626 = vsel %vm3256, %v4625, %v4624
    %v4627 = vrot.slane %v4609, 4
    %v4628 = vsel %vm3258, %v4627, %v4626
    %v4629 = vrot.slane %v4610, 3
    %v4630 = vsel %vm3260, %v4629, %v4628
    %v4631 = vrot.slane %v4611, 2
    %v4632 = vsel %vm3262, %v4631, %v4630
    %v4633 = vrot.slane %v4612, 1
    %v4634 = vsel %vm3264, %v4633, %v4632
    %4636 = vadd.xlane.f32.xlu0 %v4634
    %v4637 = vpop.xlane.xlu0 %4636
    %v4638 = vmul.f32 %v4637, %v3405
    %v4640 = vrot.slane %v4638, 1
    %v4641 = vrot.slane %v4638, 2
    %v4642 = vrot.slane %v4638, 3
    %v4643 = vrot.slane %v4638, 4
    %v4644 = vrot.slane %v4638, 5
    %v4645 = vrot.slane %v4638, 6
    %v4646 = vrot.slane %v4638, 7
    %v4655 = vsub.f32 %v4605, %v4638
    %v4656 = vsub.f32 %v4606, %v4640
    %v4657 = vsub.f32 %v4607, %v4641
    %v4658 = vsub.f32 %v4608, %v4642
    %v4659 = vsub.f32 %v4609, %v4643
    %v4660 = vsub.f32 %v4610, %v4644
    %v4661 = vsub.f32 %v4611, %v4645
    %v4662 = vsub.f32 %v4612, %v4646
    %v4663 = vmul.f32 %v4655, %v4655
    %v4664 = vmul.f32 %v4656, %v4656
    %v4665 = vmul.f32 %v4657, %v4657
    %v4666 = vmul.f32 %v4658, %v4658
    %v4667 = vmul.f32 %v4659, %v4659
    %v4668 = vmul.f32 %v4660, %v4660
    %v4669 = vmul.f32 %v4661, %v4661
    %v4670 = vmul.f32 %v4662, %v4662
    %v4679 = vrot.slane %v4664, 7
    %v4680 = vsel %vm3252, %v4679, %v4663
    %v4681 = vrot.slane %v4665, 6
    %v4682 = vsel %vm3254, %v4681, %v4680
    %v4683 = vrot.slane %v4666, 5
    %v4684 = vsel %vm3256, %v4683, %v4682
    %v4685 = vrot.slane %v4667, 4
    %v4686 = vsel %vm3258, %v4685, %v4684
    %v4687 = vrot.slane %v4668, 3
    %v4688 = vsel %vm3260, %v4687, %v4686
    %v4689 = vrot.slane %v4669, 2
    %v4690 = vsel %vm3262, %v4689, %v4688
    %v4691 = vrot.slane %v4670, 1
    %v4692 = vsel %vm3264, %v4691, %v4690
    %4694 = vadd.xlane.f32.xlu0 %v4692
    %v4695 = vpop.xlane.xlu0 %4694
    %v4696 = vmul.f32 %v4695, %v3405
    %v4697 = vadd.f32 %v4696, 1e-05
    %v4698 = vrsqrt.pop %v4697
    %v4700 = vrot.slane %v4698, 1
    %v4701 = vrot.slane %v4698, 2
    %v4702 = vrot.slane %v4698, 3
    %v4703 = vrot.slane %v4698, 4
    %v4704 = vrot.slane %v4698, 5
    %v4705 = vrot.slane %v4698, 6
    %v4706 = vrot.slane %v4698, 7
    %v4715 = vmul.f32 %v4655, %v4698
    %v4716 = vmul.f32 %v4656, %v4700
    %v4717 = vmul.f32 %v4657, %v4701
    %v4718 = vmul.f32 %v4658, %v4702
    %v4719 = vmul.f32 %v4659, %v4703
    %v4720 = vmul.f32 %v4660, %v4704
    %v4721 = vmul.f32 %v4661, %v4705
    %v4722 = vmul.f32 %v4662, %v4706
    %v4723 = vlaneseq
    %v4724 = vshrl.u32 %v4723, 7
    %v4725 = vsub.s32 4, %v4724
    %v4726 = vrot.slane %v695, %v4725
    %v4727 = vmul.f32 %v4715, %v4726
    %v4728 = vmul.f32 %v4716, %v4726
    %v4729 = vmul.f32 %v4717, %v4726
    %v4730 = vmul.f32 %v4718, %v4726
    %v4731 = vmul.f32 %v4719, %v4726
    %v4732 = vmul.f32 %v4720, %v4726
    %v4733 = vmul.f32 %v4721, %v4726
    %v4734 = vmul.f32 %v4722, %v4726
    %v4735 = vlaneseq
    %v4736 = vshrl.u32 %v4735, 7
    %v4737 = vsub.s32 5, %v4736
    %v4738 = vrot.slane %v695, %v4737
    %v4739 = vadd.f32 %v4727, %v4738
    %v4740 = vadd.f32 %v4728, %v4738
    %v4741 = vadd.f32 %v4729, %v4738
    %v4742 = vadd.f32 %v4730, %v4738
    %v4743 = vadd.f32 %v4731, %v4738
    %v4744 = vadd.f32 %v4732, %v4738
    %v4745 = vadd.f32 %v4733, %v4738
    %v4746 = vadd.f32 %v4734, %v4738
    %v4747 = vpack.c.bf16 %v4739, %v4739
    %v4748 = vpack.c.bf16 %v4740, %v4740
    %v4749 = vpack.c.bf16 %v4741, %v4741
    %v4750 = vpack.c.bf16 %v4742, %v4742
    %v4751 = vpack.c.bf16 %v4743, %v4743
    %v4752 = vpack.c.bf16 %v4744, %v4744
    %v4753 = vpack.c.bf16 %v4745, %v4745
    %v4754 = vpack.c.bf16 %v4746, %v4746
    %v4755 = vlaneseq
    %v4756 = vshrl.u32 %v4755, 7
    %v4757 = vsub.s32 0, %v4756
    %v4758 = vrot.slane %v697, %v4757
    %v4767 = vunpack.c.l.b16 %v4747
    %v4768 = vunpack.c.l.b16 %v4748
    %v4769 = vunpack.c.l.b16 %v4749
    %v4770 = vunpack.c.l.b16 %v4750
    %v4771 = vunpack.c.l.b16 %v4751
    %v4772 = vunpack.c.l.b16 %v4752
    %v4773 = vunpack.c.l.b16 %v4753
    %v4774 = vunpack.c.l.b16 %v4754
    %v4775 = vrot.slane %v4768, 7
    %v4776 = vsel %vm3252, %v4775, %v4767
    %v4777 = vrot.slane %v4769, 6
    %v4778 = vsel %vm3254, %v4777, %v4776
    %v4779 = vrot.slane %v4770, 5
    %v4780 = vsel %vm3256, %v4779, %v4778
    %v4781 = vrot.slane %v4771, 4
    %v4782 = vsel %vm3258, %v4781, %v4780
    %v4783 = vrot.slane %v4772, 3
    %v4784 = vsel %vm3260, %v4783, %v4782
    %v4785 = vrot.slane %v4773, 2
    %v4786 = vsel %vm3262, %v4785, %v4784
    %v4787 = vrot.slane %v4774, 1
    %v4788 = vsel %vm3264, %v4787, %v4786
    %v4789 = vpack.c.b16 %v4788, %v4788
    %v4807 = vunpack.c.l.b16 %v341
    %v4808 = vunpack.c.l.b16 %v342
    %v4809 = vunpack.c.l.b16 %v343
    %v4810 = vunpack.c.l.b16 %v344
    %v4811 = vunpack.c.l.b16 %v345
    %v4812 = vunpack.c.l.b16 %v346
    %v4813 = vunpack.c.l.b16 %v347
    %v4814 = vunpack.c.l.b16 %v348
    %v4815 = vunpack.c.l.b16 %v349
    %v4816 = vunpack.c.l.b16 %v350
    %v4817 = vunpack.c.l.b16 %v351
    %v4818 = vunpack.c.l.b16 %v352
    %v4819 = vunpack.c.l.b16 %v353
    %v4820 = vunpack.c.l.b16 %v354
    %v4821 = vunpack.c.l.b16 %v355
    %v4822 = vunpack.c.l.b16 %v356
    %v4823 = vpack.c.b16 %v4808, %v4807
    %v4824 = vpack.c.b16 %v4810, %v4809
    %v4825 = vpack.c.b16 %v4812, %v4811
    %v4826 = vpack.c.b16 %v4814, %v4813
    %v4827 = vpack.c.b16 %v4816, %v4815
    %v4828 = vpack.c.b16 %v4818, %v4817
    %v4829 = vpack.c.b16 %v4820, %v4819
    %v4830 = vpack.c.b16 %v4822, %v4821
    %4839 = vmatprep.subr.bf16.mxu0 0
    %4840 = vmatpush1.bf16.msra.mxu0 %v4830
    %4841 = vmatprep.subr.bf16.mxu0 0
    %4842 = vmatpush1.bf16.msra.mxu0 %v4829
    %4843 = vmatprep.subr.bf16.mxu0 0
    %4844 = vmatpush1.bf16.msra.mxu0 %v4828
    %4845 = vmatprep.subr.bf16.mxu0 0
    %4846 = vmatpush1.bf16.msra.mxu0 %v4827
    %4847 = vmatprep.subr.bf16.mxu0 0
    %4848 = vmatpush1.bf16.msra.mxu0 %v4826
    %4849 = vmatprep.subr.bf16.mxu0 0
    %4850 = vmatpush1.bf16.msra.mxu0 %v4825
    %4851 = vmatprep.subr.bf16.mxu0 0
    %4852 = vmatpush1.bf16.msra.mxu0 %v4824
    %4853 = vmatprep.subr.bf16.mxu0 0
    %4854 = vmatpush1.bf16.msra.mxu0 %v4823
    %4855 = vmatprep.subr.bf16.mxu0 0
    %4856 = vmatpush2.bf16.msra.mxu0 0
    %4857 = vmatprep.subr.bf16.mxu0 0
    %4858 = vmatpush2.bf16.msra.mxu0 0
    %4859 = vmatprep.subr.bf16.mxu0 0
    %4860 = vmatpush2.bf16.msra.mxu0 0
    %4861 = vmatprep.subr.bf16.mxu0 0
    %4862 = vmatpush2.bf16.msra.mxu0 0
    %4863 = vmatprep.subr.bf16.mxu0 0
    %4864 = vmatpush2.bf16.msra.mxu0 0
    %4865 = vmatprep.subr.bf16.mxu0 0
    %4866 = vmatpush2.bf16.msra.mxu0 0
    %4867 = vmatprep.subr.bf16.mxu0 0
    %4868 = vmatpush2.bf16.msra.mxu0 0
    %4869 = vmatprep.subr.bf16.mxu0 0
    %4870 = vmatpush2.bf16.msra.mxu0 0
    %4871 = vmatprep.mubr.bf16.mxu0 0
    %4872 = vmatmul.mubr.bf16.gmra.mxu0 %v4789
    %v4873 = vpop.f32.mrf.mxu0
    %v4874 = vadd.f32 %v4758, %v4873
    %v4875 = vpop.f32.mrf.mxu0
    %v4876 = vpop.f32.mrf.mxu0
    %v4877 = vpop.f32.mrf.mxu0
    %4878 = vdwg.mxu0
    %v4880 = vrot.slane %v4874, 1
    %v4881 = vrot.slane %v4874, 2
    %v4882 = vrot.slane %v4874, 3
    %v4883 = vrot.slane %v4874, 4
    %v4884 = vrot.slane %v4874, 5
    %v4885 = vrot.slane %v4874, 6
    %v4886 = vrot.slane %v4874, 7
    %v4895 = vadd.f32 %v4739, %v4874
    %v4896 = vadd.f32 %v4740, %v4880
    %v4897 = vadd.f32 %v4741, %v4881
    %v4898 = vadd.f32 %v4742, %v4882
    %v4899 = vadd.f32 %v4743, %v4883
    %v4900 = vadd.f32 %v4744, %v4884
    %v4901 = vadd.f32 %v4745, %v4885
    %v4902 = vadd.f32 %v4746, %v4886
    %v4911 = vrot.slane %v4896, 7
    %v4912 = vsel %vm3252, %v4911, %v4895
    %v4913 = vrot.slane %v4897, 6
    %v4914 = vsel %vm3254, %v4913, %v4912
    %v4915 = vrot.slane %v4898, 5
    %v4916 = vsel %vm3256, %v4915, %v4914
    %v4917 = vrot.slane %v4899, 4
    %v4918 = vsel %vm3258, %v4917, %v4916
    %v4919 = vrot.slane %v4900, 3
    %v4920 = vsel %vm3260, %v4919, %v4918
    %v4921 = vrot.slane %v4901, 2
    %v4922 = vsel %vm3262, %v4921, %v4920
    %v4923 = vrot.slane %v4902, 1
    %v4924 = vsel %vm3264, %v4923, %v4922
    %4926 = vadd.xlane.f32.xlu0 %v4924
    %v4927 = vpop.xlane.xlu0 %4926
    %v4928 = vmul.f32 %v4927, %v3405
    %v4930 = vrot.slane %v4928, 1
    %v4931 = vrot.slane %v4928, 2
    %v4932 = vrot.slane %v4928, 3
    %v4933 = vrot.slane %v4928, 4
    %v4934 = vrot.slane %v4928, 5
    %v4935 = vrot.slane %v4928, 6
    %v4936 = vrot.slane %v4928, 7
    %v4945 = vsub.f32 %v4895, %v4928
    %v4946 = vsub.f32 %v4896, %v4930
    %v4947 = vsub.f32 %v4897, %v4931
    %v4948 = vsub.f32 %v4898, %v4932
    %v4949 = vsub.f32 %v4899, %v4933
    %v4950 = vsub.f32 %v4900, %v4934
    %v4951 = vsub.f32 %v4901, %v4935
    %v4952 = vsub.f32 %v4902, %v4936
    %v4953 = vmul.f32 %v4945, %v4945
    %v4954 = vmul.f32 %v4946, %v4946
    %v4955 = vmul.f32 %v4947, %v4947
    %v4956 = vmul.f32 %v4948, %v4948
    %v4957 = vmul.f32 %v4949, %v4949
    %v4958 = vmul.f32 %v4950, %v4950
    %v4959 = vmul.f32 %v4951, %v4951
    %v4960 = vmul.f32 %v4952, %v4952
    %v4969 = vrot.slane %v4954, 7
    %v4970 = vsel %vm3252, %v4969, %v4953
    %v4971 = vrot.slane %v4955, 6
    %v4972 = vsel %vm3254, %v4971, %v4970
    %v4973 = vrot.slane %v4956, 5
    %v4974 = vsel %vm3256, %v4973, %v4972
    %v4975 = vrot.slane %v4957, 4
    %v4976 = vsel %vm3258, %v4975, %v4974
    %v4977 = vrot.slane %v4958, 3
    %v4978 = vsel %vm3260, %v4977, %v4976
    %v4979 = vrot.slane %v4959, 2
    %v4980 = vsel %vm3262, %v4979, %v4978
    %v4981 = vrot.slane %v4960, 1
    %v4982 = vsel %vm3264, %v4981, %v4980
    %4984 = vadd.xlane.f32.xlu0 %v4982
    %v4985 = vpop.xlane.xlu0 %4984
    %v4986 = vmul.f32 %v4985, %v3405
    %v4987 = vadd.f32 %v4986, 1e-05
    %v4988 = vrsqrt.pop %v4987
    %v4990 = vrot.slane %v4988, 1
    %v4991 = vrot.slane %v4988, 2
    %v4992 = vrot.slane %v4988, 3
    %v4993 = vrot.slane %v4988, 4
    %v4994 = vrot.slane %v4988, 5
    %v4995 = vrot.slane %v4988, 6
    %v4996 = vrot.slane %v4988, 7
    %v5005 = vmul.f32 %v4945, %v4988
    %v5006 = vmul.f32 %v4946, %v4990
    %v5007 = vmul.f32 %v4947, %v4991
    %v5008 = vmul.f32 %v4948, %v4992
    %v5009 = vmul.f32 %v4949, %v4993
    %v5010 = vmul.f32 %v4950, %v4994
    %v5011 = vmul.f32 %v4951, %v4995
    %v5012 = vmul.f32 %v4952, %v4996
    %v5013 = vlaneseq
    %v5014 = vshrl.u32 %v5013, 7
    %v5015 = vsub.s32 2, %v5014
    %v5016 = vrot.slane %v697, %v5015
    %v5017 = vmul.f32 %v5005, %v5016
    %v5018 = vmul.f32 %v5006, %v5016
    %v5019 = vmul.f32 %v5007, %v5016
    %v5020 = vmul.f32 %v5008, %v5016
    %v5021 = vmul.f32 %v5009, %v5016
    %v5022 = vmul.f32 %v5010, %v5016
    %v5023 = vmul.f32 %v5011, %v5016
    %v5024 = vmul.f32 %v5012, %v5016
    %v5025 = vlaneseq
    %v5026 = vshrl.u32 %v5025, 7
    %v5027 = vsub.s32 3, %v5026
    %v5028 = vrot.slane %v697, %v5027
    %v5029 = vadd.f32 %v5017, %v5028
    %v5030 = vadd.f32 %v5018, %v5028
    %v5031 = vadd.f32 %v5019, %v5028
    %v5032 = vadd.f32 %v5020, %v5028
    %v5033 = vadd.f32 %v5021, %v5028
    %v5034 = vadd.f32 %v5022, %v5028
    %v5035 = vadd.f32 %v5023, %v5028
    %v5036 = vadd.f32 %v5024, %v5028
    %v5037 = vpack.c.bf16 %v5029, %v5029
    %v5038 = vpack.c.bf16 %v5030, %v5030
    %v5039 = vpack.c.bf16 %v5031, %v5031
    %v5040 = vpack.c.bf16 %v5032, %v5032
    %v5041 = vpack.c.bf16 %v5033, %v5033
    %v5042 = vpack.c.bf16 %v5034, %v5034
    %v5043 = vpack.c.bf16 %v5035, %v5035
    %v5044 = vpack.c.bf16 %v5036, %v5036
    %v5045 = vlaneseq
    %v5046 = vshrl.u32 %v5045, 7
    %v5047 = vsub.s32 6, %v5046
    %v5048 = vrot.slane %v697, %v5047
    %v5049 = vlaneseq
    %v5050 = vshrl.u32 %v5049, 7
    %v5051 = vsub.s32 6, %v5050
    %v5052 = vrot.slane %v698, %v5051
    %v5061 = vunpack.c.l.b16 %v5037
    %v5062 = vunpack.c.l.b16 %v5038
    %v5063 = vunpack.c.l.b16 %v5039
    %v5064 = vunpack.c.l.b16 %v5040
    %v5065 = vunpack.c.l.b16 %v5041
    %v5066 = vunpack.c.l.b16 %v5042
    %v5067 = vunpack.c.l.b16 %v5043
    %v5068 = vunpack.c.l.b16 %v5044
    %v5069 = vrot.slane %v5062, 7
    %v5070 = vsel %vm3252, %v5069, %v5061
    %v5071 = vrot.slane %v5063, 6
    %v5072 = vsel %vm3254, %v5071, %v5070
    %v5073 = vrot.slane %v5064, 5
    %v5074 = vsel %vm3256, %v5073, %v5072
    %v5075 = vrot.slane %v5065, 4
    %v5076 = vsel %vm3258, %v5075, %v5074
    %v5077 = vrot.slane %v5066, 3
    %v5078 = vsel %vm3260, %v5077, %v5076
    %v5079 = vrot.slane %v5067, 2
    %v5080 = vsel %vm3262, %v5079, %v5078
    %v5081 = vrot.slane %v5068, 1
    %v5082 = vsel %vm3264, %v5081, %v5080
    %v5083 = vpack.c.b16 %v5082, %v5082
    %v5101 = vunpack.c.l.b16 %v437
    %v5102 = vunpack.c.h.b16 %v437
    %v5103 = vunpack.c.l.b16 %v438
    %v5104 = vunpack.c.h.b16 %v438
    %v5105 = vunpack.c.l.b16 %v439
    %v5106 = vunpack.c.h.b16 %v439
    %v5107 = vunpack.c.l.b16 %v440
    %v5108 = vunpack.c.h.b16 %v440
    %v5109 = vunpack.c.l.b16 %v441
    %v5110 = vunpack.c.h.b16 %v441
    %v5111 = vunpack.c.l.b16 %v442
    %v5112 = vunpack.c.h.b16 %v442
    %v5113 = vunpack.c.l.b16 %v443
    %v5114 = vunpack.c.h.b16 %v443
    %v5115 = vunpack.c.l.b16 %v444
    %v5116 = vunpack.c.h.b16 %v444
    %v5117 = vunpack.c.l.b16 %v445
    %v5118 = vunpack.c.h.b16 %v445
    %v5119 = vunpack.c.l.b16 %v446
    %v5120 = vunpack.c.h.b16 %v446
    %v5121 = vunpack.c.l.b16 %v447
    %v5122 = vunpack.c.h.b16 %v447
    %v5123 = vunpack.c.l.b16 %v448
    %v5124 = vunpack.c.h.b16 %v448
    %v5125 = vunpack.c.l.b16 %v449
    %v5126 = vunpack.c.h.b16 %v449
    %v5127 = vunpack.c.l.b16 %v450
    %v5128 = vunpack.c.h.b16 %v450
    %v5129 = vunpack.c.l.b16 %v451
    %v5130 = vunpack.c.h.b16 %v451
    %v5131 = vunpack.c.l.b16 %v452
    %v5132 = vunpack.c.h.b16 %v452
    %v5133 = vpack.c.b16 %v5103, %v5101
    %v5134 = vpack.c.b16 %v5104, %v5102
    %v5135 = vpack.c.b16 %v5107, %v5105
    %v5136 = vpack.c.b16 %v5108, %v5106
    %v5137 = vpack.c.b16 %v5111, %v5109
    %v5138 = vpack.c.b16 %v5112, %v5110
    %v5139 = vpack.c.b16 %v5115, %v5113
    %v5140 = vpack.c.b16 %v5116, %v5114
    %v5141 = vpack.c.b16 %v5119, %v5117
    %v5142 = vpack.c.b16 %v5120, %v5118
    %v5143 = vpack.c.b16 %v5123, %v5121
    %v5144 = vpack.c.b16 %v5124, %v5122
    %v5145 = vpack.c.b16 %v5127, %v5125
    %v5146 = vpack.c.b16 %v5128, %v5126
    %v5147 = vpack.c.b16 %v5131, %v5129
    %v5148 = vpack.c.b16 %v5132, %v5130
    %5165 = vmatprep.subr.bf16.mxu0 %v5148
    %5166 = vmatpush1.bf16.msra.mxu0 %v5147
    %5167 = vmatprep.subr.bf16.mxu0 %v5146
    %5168 = vmatpush1.bf16.msra.mxu0 %v5145
    %5169 = vmatprep.subr.bf16.mxu0 %v5144
    %5170 = vmatpush1.bf16.msra.mxu0 %v5143
    %5171 = vmatprep.subr.bf16.mxu0 %v5142
    %5172 = vmatpush1.bf16.msra.mxu0 %v5141
    %5173 = vmatprep.subr.bf16.mxu0 %v5140
    %5174 = vmatpush1.bf16.msra.mxu0 %v5139
    %5175 = vmatprep.subr.bf16.mxu0 %v5138
    %5176 = vmatpush1.bf16.msra.mxu0 %v5137
    %5177 = vmatprep.subr.bf16.mxu0 %v5136
    %5178 = vmatpush1.bf16.msra.mxu0 %v5135
    %5179 = vmatprep.subr.bf16.mxu0 %v5134
    %5180 = vmatpush1.bf16.msra.mxu0 %v5133
    %5181 = vmatprep.subr.bf16.mxu0 0
    %5182 = vmatpush2.bf16.msra.mxu0 0
    %5183 = vmatprep.subr.bf16.mxu0 0
    %5184 = vmatpush2.bf16.msra.mxu0 0
    %5185 = vmatprep.subr.bf16.mxu0 0
    %5186 = vmatpush2.bf16.msra.mxu0 0
    %5187 = vmatprep.subr.bf16.mxu0 0
    %5188 = vmatpush2.bf16.msra.mxu0 0
    %5189 = vmatprep.subr.bf16.mxu0 0
    %5190 = vmatpush2.bf16.msra.mxu0 0
    %5191 = vmatprep.subr.bf16.mxu0 0
    %5192 = vmatpush2.bf16.msra.mxu0 0
    %5193 = vmatprep.subr.bf16.mxu0 0
    %5194 = vmatpush2.bf16.msra.mxu0 0
    %5195 = vmatprep.subr.bf16.mxu0 0
    %5196 = vmatpush2.bf16.msra.mxu0 0
    %5197 = vmatprep.mubr.bf16.mxu0 0
    %5198 = vmatmul.mubr.bf16.gmra.mxu0 %v5083
    %v5199 = vpop.f32.mrf.mxu0
    %v5200 = vadd.f32 %v5048, %v5199
    %v5201 = vpop.f32.mrf.mxu0
    %v5202 = vadd.f32 %v5052, %v5201
    %v5203 = vpop.f32.mrf.mxu0
    %v5204 = vpop.f32.mrf.mxu0
    %5205 = vdwg.mxu0
    %v5206 = vmax.f32 %v5200, 0.0
    %v5207 = vmax.f32 %v5202, 0.0
    %v5208 = vpack.c.bf16 %v5206, %v5206
    %v5209 = vpack.c.bf16 %v5207, %v5207
    %v5210 = vlaneseq
    %v5211 = vshrl.u32 %v5210, 7
    %v5212 = vsub.s32 1, %v5211
    %v5213 = vrot.slane %v697, %v5212
    %v5246 = vunpack.c.l.b16 %v565
    %v5247 = vunpack.c.l.b16 %v566
    %v5248 = vunpack.c.l.b16 %v567
    %v5249 = vunpack.c.l.b16 %v568
    %v5250 = vunpack.c.l.b16 %v569
    %v5251 = vunpack.c.l.b16 %v570
    %v5252 = vunpack.c.l.b16 %v571
    %v5253 = vunpack.c.l.b16 %v572
    %v5254 = vunpack.c.l.b16 %v573
    %v5255 = vunpack.c.l.b16 %v574
    %v5256 = vunpack.c.l.b16 %v575
    %v5257 = vunpack.c.l.b16 %v576
    %v5258 = vunpack.c.l.b16 %v577
    %v5259 = vunpack.c.l.b16 %v578
    %v5260 = vunpack.c.l.b16 %v579
    %v5261 = vunpack.c.l.b16 %v580
    %v5262 = vunpack.c.l.b16 %v581
    %v5263 = vunpack.c.l.b16 %v582
    %v5264 = vunpack.c.l.b16 %v583
    %v5265 = vunpack.c.l.b16 %v584
    %v5266 = vunpack.c.l.b16 %v585
    %v5267 = vunpack.c.l.b16 %v586
    %v5268 = vunpack.c.l.b16 %v587
    %v5269 = vunpack.c.l.b16 %v588
    %v5270 = vunpack.c.l.b16 %v589
    %v5271 = vunpack.c.l.b16 %v590
    %v5272 = vunpack.c.l.b16 %v591
    %v5273 = vunpack.c.l.b16 %v592
    %v5274 = vunpack.c.l.b16 %v593
    %v5275 = vunpack.c.l.b16 %v594
    %v5276 = vunpack.c.l.b16 %v595
    %v5277 = vunpack.c.l.b16 %v596
    %v5278 = vpack.c.b16 %v5247, %v5246
    %v5279 = vpack.c.b16 %v5249, %v5248
    %v5280 = vpack.c.b16 %v5251, %v5250
    %v5281 = vpack.c.b16 %v5253, %v5252
    %v5282 = vpack.c.b16 %v5255, %v5254
    %v5283 = vpack.c.b16 %v5257, %v5256
    %v5284 = vpack.c.b16 %v5259, %v5258
    %v5285 = vpack.c.b16 %v5261, %v5260
    %v5286 = vpack.c.b16 %v5263, %v5262
    %v5287 = vpack.c.b16 %v5265, %v5264
    %v5288 = vpack.c.b16 %v5267, %v5266
    %v5289 = vpack.c.b16 %v5269, %v5268
    %v5290 = vpack.c.b16 %v5271, %v5270
    %v5291 = vpack.c.b16 %v5273, %v5272
    %v5292 = vpack.c.b16 %v5275, %v5274
    %v5293 = vpack.c.b16 %v5277, %v5276
    %5310 = vmatprep.subr.bf16.mxu0 0
    %5311 = vmatpush1.bf16.msra.mxu0 %v5285
    %5312 = vmatprep.subr.bf16.mxu0 0
    %5313 = vmatpush1.bf16.msra.mxu0 %v5284
    %5314 = vmatprep.subr.bf16.mxu0 0
    %5315 = vmatpush1.bf16.msra.mxu0 %v5283
    %5316 = vmatprep.subr.bf16.mxu0 0
    %5317 = vmatpush1.bf16.msra.mxu0 %v5282
    %5318 = vmatprep.subr.bf16.mxu0 0
    %5319 = vmatpush1.bf16.msra.mxu0 %v5281
    %5320 = vmatprep.subr.bf16.mxu0 0
    %5321 = vmatpush1.bf16.msra.mxu0 %v5280
    %5322 = vmatprep.subr.bf16.mxu0 0
    %5323 = vmatpush1.bf16.msra.mxu0 %v5279
    %5324 = vmatprep.subr.bf16.mxu0 0
    %5325 = vmatpush1.bf16.msra.mxu0 %v5278
    %5326 = vmatprep.subr.bf16.mxu0 0
    %5327 = vmatpush2.bf16.msra.mxu0 %v5293
    %5328 = vmatprep.subr.bf16.mxu0 0
    %5329 = vmatpush2.bf16.msra.mxu0 %v5292
    %5330 = vmatprep.subr.bf16.mxu0 0
    %5331 = vmatpush2.bf16.msra.mxu0 %v5291
    %5332 = vmatprep.subr.bf16.mxu0 0
    %5333 = vmatpush2.bf16.msra.mxu0 %v5290
    %5334 = vmatprep.subr.bf16.mxu0 0
    %5335 = vmatpush2.bf16.msra.mxu0 %v5289
    %5336 = vmatprep.subr.bf16.mxu0 0
    %5337 = vmatpush2.bf16.msra.mxu0 %v5288
    %5338 = vmatprep.subr.bf16.mxu0 0
    %5339 = vmatpush2.bf16.msra.mxu0 %v5287
    %5340 = vmatprep.subr.bf16.mxu0 0
    %5341 = vmatpush2.bf16.msra.mxu0 %v5286
    %5342 = vmatprep.mubr.bf16.mxu0 %v5209
    %5343 = vmatmul.mubr.bf16.gmra.mxu0 %v5208
    %v5344 = vpop.f32.mrf.mxu0
    %v5345 = vadd.f32 %v5213, %v5344
    %v5346 = vpop.f32.mrf.mxu0
    %v5347 = vpop.f32.mrf.mxu0
    %v5348 = vpop.f32.mrf.mxu0
    %5349 = vdwg.mxu0
    %v5351 = vrot.slane %v5345, 1
    %v5352 = vrot.slane %v5345, 2
    %v5353 = vrot.slane %v5345, 3
    %v5354 = vrot.slane %v5345, 4
    %v5355 = vrot.slane %v5345, 5
    %v5356 = vrot.slane %v5345, 6
    %v5357 = vrot.slane %v5345, 7
    %v5366 = vadd.f32 %v5029, %v5345
    %v5367 = vadd.f32 %v5030, %v5351
    %v5368 = vadd.f32 %v5031, %v5352
    %v5369 = vadd.f32 %v5032, %v5353
    %v5370 = vadd.f32 %v5033, %v5354
    %v5371 = vadd.f32 %v5034, %v5355
    %v5372 = vadd.f32 %v5035, %v5356
    %v5373 = vadd.f32 %v5036, %v5357
    %v5382 = vrot.slane %v5367, 7
    %v5383 = vsel %vm3252, %v5382, %v5366
    %v5384 = vrot.slane %v5368, 6
    %v5385 = vsel %vm3254, %v5384, %v5383
    %v5386 = vrot.slane %v5369, 5
    %v5387 = vsel %vm3256, %v5386, %v5385
    %v5388 = vrot.slane %v5370, 4
    %v5389 = vsel %vm3258, %v5388, %v5387
    %v5390 = vrot.slane %v5371, 3
    %v5391 = vsel %vm3260, %v5390, %v5389
    %v5392 = vrot.slane %v5372, 2
    %v5393 = vsel %vm3262, %v5392, %v5391
    %v5394 = vrot.slane %v5373, 1
    %v5395 = vsel %vm3264, %v5394, %v5393
    %5397 = vadd.xlane.f32.xlu0 %v5395
    %v5398 = vpop.xlane.xlu0 %5397
    %v5399 = vmul.f32 %v5398, %v3405
    %v5401 = vrot.slane %v5399, 1
    %v5402 = vrot.slane %v5399, 2
    %v5403 = vrot.slane %v5399, 3
    %v5404 = vrot.slane %v5399, 4
    %v5405 = vrot.slane %v5399, 5
    %v5406 = vrot.slane %v5399, 6
    %v5407 = vrot.slane %v5399, 7
    %v5416 = vsub.f32 %v5366, %v5399
    %v5417 = vsub.f32 %v5367, %v5401
    %v5418 = vsub.f32 %v5368, %v5402
    %v5419 = vsub.f32 %v5369, %v5403
    %v5420 = vsub.f32 %v5370, %v5404
    %v5421 = vsub.f32 %v5371, %v5405
    %v5422 = vsub.f32 %v5372, %v5406
    %v5423 = vsub.f32 %v5373, %v5407
    %v5424 = vmul.f32 %v5416, %v5416
    %v5425 = vmul.f32 %v5417, %v5417
    %v5426 = vmul.f32 %v5418, %v5418
    %v5427 = vmul.f32 %v5419, %v5419
    %v5428 = vmul.f32 %v5420, %v5420
    %v5429 = vmul.f32 %v5421, %v5421
    %v5430 = vmul.f32 %v5422, %v5422
    %v5431 = vmul.f32 %v5423, %v5423
    %v5440 = vrot.slane %v5425, 7
    %v5441 = vsel %vm3252, %v5440, %v5424
    %v5442 = vrot.slane %v5426, 6
    %v5443 = vsel %vm3254, %v5442, %v5441
    %v5444 = vrot.slane %v5427, 5
    %v5445 = vsel %vm3256, %v5444, %v5443
    %v5446 = vrot.slane %v5428, 4
    %v5447 = vsel %vm3258, %v5446, %v5445
    %v5448 = vrot.slane %v5429, 3
    %v5449 = vsel %vm3260, %v5448, %v5447
    %v5450 = vrot.slane %v5430, 2
    %v5451 = vsel %vm3262, %v5450, %v5449
    %v5452 = vrot.slane %v5431, 1
    %v5453 = vsel %vm3264, %v5452, %v5451
    %5455 = vadd.xlane.f32.xlu0 %v5453
    %v5456 = vpop.xlane.xlu0 %5455
    %v5457 = vmul.f32 %v5456, %v3405
    %v5458 = vadd.f32 %v5457, 1e-05
    %v5459 = vrsqrt.pop %v5458
    %v5461 = vrot.slane %v5459, 1
    %v5462 = vrot.slane %v5459, 2
    %v5463 = vrot.slane %v5459, 3
    %v5464 = vrot.slane %v5459, 4
    %v5465 = vrot.slane %v5459, 5
    %v5466 = vrot.slane %v5459, 6
    %v5467 = vrot.slane %v5459, 7
    %v5476 = vmul.f32 %v5416, %v5459
    %v5477 = vmul.f32 %v5417, %v5461
    %v5478 = vmul.f32 %v5418, %v5462
    %v5479 = vmul.f32 %v5419, %v5463
    %v5480 = vmul.f32 %v5420, %v5464
    %v5481 = vmul.f32 %v5421, %v5465
    %v5482 = vmul.f32 %v5422, %v5466
    %v5483 = vmul.f32 %v5423, %v5467
    %v5484 = vlaneseq
    %v5485 = vshrl.u32 %v5484, 7
    %v5486 = vsub.s32 4, %v5485
    %v5487 = vrot.slane %v697, %v5486
    %v5488 = vmul.f32 %v5476, %v5487
    %v5489 = vmul.f32 %v5477, %v5487
    %v5490 = vmul.f32 %v5478, %v5487
    %v5491 = vmul.f32 %v5479, %v5487
    %v5492 = vmul.f32 %v5480, %v5487
    %v5493 = vmul.f32 %v5481, %v5487
    %v5494 = vmul.f32 %v5482, %v5487
    %v5495 = vmul.f32 %v5483, %v5487
    %v5496 = vlaneseq
    %v5497 = vshrl.u32 %v5496, 7
    %v5498 = vsub.s32 5, %v5497
    %v5499 = vrot.slane %v697, %v5498
    %v5500 = vadd.f32 %v5488, %v5499
    %v5501 = vadd.f32 %v5489, %v5499
    %v5502 = vadd.f32 %v5490, %v5499
    %v5503 = vadd.f32 %v5491, %v5499
    %v5504 = vadd.f32 %v5492, %v5499
    %v5505 = vadd.f32 %v5493, %v5499
    %v5506 = vadd.f32 %v5494, %v5499
    %v5507 = vadd.f32 %v5495, %v5499
    %v5508 = vpack.c.bf16 %v5500, %v5500
    %v5509 = vpack.c.bf16 %v5501, %v5501
    %v5510 = vpack.c.bf16 %v5502, %v5502
    %v5511 = vpack.c.bf16 %v5503, %v5503
    %v5512 = vpack.c.bf16 %v5504, %v5504
    %v5513 = vpack.c.bf16 %v5505, %v5505
    %v5514 = vpack.c.bf16 %v5506, %v5506
    %v5515 = vpack.c.bf16 %v5507, %v5507
    %v5516 = vlaneseq
    %v5517 = vshrl.u32 %v5516, 7
    %v5518 = vsub.s32 0, %v5517
    %v5519 = vrot.slane %v699, %v5518
    %v5528 = vunpack.c.l.b16 %v5508
    %v5529 = vunpack.c.l.b16 %v5509
    %v5530 = vunpack.c.l.b16 %v5510
    %v5531 = vunpack.c.l.b16 %v5511
    %v5532 = vunpack.c.l.b16 %v5512
    %v5533 = vunpack.c.l.b16 %v5513
    %v5534 = vunpack.c.l.b16 %v5514
    %v5535 = vunpack.c.l.b16 %v5515
    %v5536 = vrot.slane %v5529, 7
    %v5537 = vsel %vm3252, %v5536, %v5528
    %v5538 = vrot.slane %v5530, 6
    %v5539 = vsel %vm3254, %v5538, %v5537
    %v5540 = vrot.slane %v5531, 5
    %v5541 = vsel %vm3256, %v5540, %v5539
    %v5542 = vrot.slane %v5532, 4
    %v5543 = vsel %vm3258, %v5542, %v5541
    %v5544 = vrot.slane %v5533, 3
    %v5545 = vsel %vm3260, %v5544, %v5543
    %v5546 = vrot.slane %v5534, 2
    %v5547 = vsel %vm3262, %v5546, %v5545
    %v5548 = vrot.slane %v5535, 1
    %v5549 = vsel %vm3264, %v5548, %v5547
    %v5550 = vpack.c.b16 %v5549, %v5549
    %v5568 = vunpack.c.l.b16 %v357
    %v5569 = vunpack.c.l.b16 %v358
    %v5570 = vunpack.c.l.b16 %v359
    %v5571 = vunpack.c.l.b16 %v360
    %v5572 = vunpack.c.l.b16 %v361
    %v5573 = vunpack.c.l.b16 %v362
    %v5574 = vunpack.c.l.b16 %v363
    %v5575 = vunpack.c.l.b16 %v364
    %v5576 = vunpack.c.l.b16 %v365
    %v5577 = vunpack.c.l.b16 %v366
    %v5578 = vunpack.c.l.b16 %v367
    %v5579 = vunpack.c.l.b16 %v368
    %v5580 = vunpack.c.l.b16 %v369
    %v5581 = vunpack.c.l.b16 %v370
    %v5582 = vunpack.c.l.b16 %v371
    %v5583 = vunpack.c.l.b16 %v372
    %v5584 = vpack.c.b16 %v5569, %v5568
    %v5585 = vpack.c.b16 %v5571, %v5570
    %v5586 = vpack.c.b16 %v5573, %v5572
    %v5587 = vpack.c.b16 %v5575, %v5574
    %v5588 = vpack.c.b16 %v5577, %v5576
    %v5589 = vpack.c.b16 %v5579, %v5578
    %v5590 = vpack.c.b16 %v5581, %v5580
    %v5591 = vpack.c.b16 %v5583, %v5582
    %5600 = vmatprep.subr.bf16.mxu0 0
    %5601 = vmatpush1.bf16.msra.mxu0 %v5591
    %5602 = vmatprep.subr.bf16.mxu0 0
    %5603 = vmatpush1.bf16.msra.mxu0 %v5590
    %5604 = vmatprep.subr.bf16.mxu0 0
    %5605 = vmatpush1.bf16.msra.mxu0 %v5589
    %5606 = vmatprep.subr.bf16.mxu0 0
    %5607 = vmatpush1.bf16.msra.mxu0 %v5588
    %5608 = vmatprep.subr.bf16.mxu0 0
    %5609 = vmatpush1.bf16.msra.mxu0 %v5587
    %5610 = vmatprep.subr.bf16.mxu0 0
    %5611 = vmatpush1.bf16.msra.mxu0 %v5586
    %5612 = vmatprep.subr.bf16.mxu0 0
    %5613 = vmatpush1.bf16.msra.mxu0 %v5585
    %5614 = vmatprep.subr.bf16.mxu0 0
    %5615 = vmatpush1.bf16.msra.mxu0 %v5584
    %5616 = vmatprep.subr.bf16.mxu0 0
    %5617 = vmatpush2.bf16.msra.mxu0 0
    %5618 = vmatprep.subr.bf16.mxu0 0
    %5619 = vmatpush2.bf16.msra.mxu0 0
    %5620 = vmatprep.subr.bf16.mxu0 0
    %5621 = vmatpush2.bf16.msra.mxu0 0
    %5622 = vmatprep.subr.bf16.mxu0 0
    %5623 = vmatpush2.bf16.msra.mxu0 0
    %5624 = vmatprep.subr.bf16.mxu0 0
    %5625 = vmatpush2.bf16.msra.mxu0 0
    %5626 = vmatprep.subr.bf16.mxu0 0
    %5627 = vmatpush2.bf16.msra.mxu0 0
    %5628 = vmatprep.subr.bf16.mxu0 0
    %5629 = vmatpush2.bf16.msra.mxu0 0
    %5630 = vmatprep.subr.bf16.mxu0 0
    %5631 = vmatpush2.bf16.msra.mxu0 0
    %5632 = vmatprep.mubr.bf16.mxu0 0
    %5633 = vmatmul.mubr.bf16.gmra.mxu0 %v5550
    %v5634 = vpop.f32.mrf.mxu0
    %v5635 = vadd.f32 %v5519, %v5634
    %v5636 = vpop.f32.mrf.mxu0
    %v5637 = vpop.f32.mrf.mxu0
    %v5638 = vpop.f32.mrf.mxu0
    %5639 = vdwg.mxu0
    %v5641 = vrot.slane %v5635, 1
    %v5642 = vrot.slane %v5635, 2
    %v5643 = vrot.slane %v5635, 3
    %v5644 = vrot.slane %v5635, 4
    %v5645 = vrot.slane %v5635, 5
    %v5646 = vrot.slane %v5635, 6
    %v5647 = vrot.slane %v5635, 7
    %v5656 = vadd.f32 %v5500, %v5635
    %v5657 = vadd.f32 %v5501, %v5641
    %v5658 = vadd.f32 %v5502, %v5642
    %v5659 = vadd.f32 %v5503, %v5643
    %v5660 = vadd.f32 %v5504, %v5644
    %v5661 = vadd.f32 %v5505, %v5645
    %v5662 = vadd.f32 %v5506, %v5646
    %v5663 = vadd.f32 %v5507, %v5647
    %v5672 = vrot.slane %v5657, 7
    %v5673 = vsel %vm3252, %v5672, %v5656
    %v5674 = vrot.slane %v5658, 6
    %v5675 = vsel %vm3254, %v5674, %v5673
    %v5676 = vrot.slane %v5659, 5
    %v5677 = vsel %vm3256, %v5676, %v5675
    %v5678 = vrot.slane %v5660, 4
    %v5679 = vsel %vm3258, %v5678, %v5677
    %v5680 = vrot.slane %v5661, 3
    %v5681 = vsel %vm3260, %v5680, %v5679
    %v5682 = vrot.slane %v5662, 2
    %v5683 = vsel %vm3262, %v5682, %v5681
    %v5684 = vrot.slane %v5663, 1
    %v5685 = vsel %vm3264, %v5684, %v5683
    %5687 = vadd.xlane.f32.xlu0 %v5685
    %v5688 = vpop.xlane.xlu0 %5687
    %v5689 = vmul.f32 %v5688, %v3405
    %v5691 = vrot.slane %v5689, 1
    %v5692 = vrot.slane %v5689, 2
    %v5693 = vrot.slane %v5689, 3
    %v5694 = vrot.slane %v5689, 4
    %v5695 = vrot.slane %v5689, 5
    %v5696 = vrot.slane %v5689, 6
    %v5697 = vrot.slane %v5689, 7
    %v5706 = vsub.f32 %v5656, %v5689
    %v5707 = vsub.f32 %v5657, %v5691
    %v5708 = vsub.f32 %v5658, %v5692
    %v5709 = vsub.f32 %v5659, %v5693
    %v5710 = vsub.f32 %v5660, %v5694
    %v5711 = vsub.f32 %v5661, %v5695
    %v5712 = vsub.f32 %v5662, %v5696
    %v5713 = vsub.f32 %v5663, %v5697
    %v5714 = vmul.f32 %v5706, %v5706
    %v5715 = vmul.f32 %v5707, %v5707
    %v5716 = vmul.f32 %v5708, %v5708
    %v5717 = vmul.f32 %v5709, %v5709
    %v5718 = vmul.f32 %v5710, %v5710
    %v5719 = vmul.f32 %v5711, %v5711
    %v5720 = vmul.f32 %v5712, %v5712
    %v5721 = vmul.f32 %v5713, %v5713
    %v5730 = vrot.slane %v5715, 7
    %v5731 = vsel %vm3252, %v5730, %v5714
    %v5732 = vrot.slane %v5716, 6
    %v5733 = vsel %vm3254, %v5732, %v5731
    %v5734 = vrot.slane %v5717, 5
    %v5735 = vsel %vm3256, %v5734, %v5733
    %v5736 = vrot.slane %v5718, 4
    %v5737 = vsel %vm3258, %v5736, %v5735
    %v5738 = vrot.slane %v5719, 3
    %v5739 = vsel %vm3260, %v5738, %v5737
    %v5740 = vrot.slane %v5720, 2
    %v5741 = vsel %vm3262, %v5740, %v5739
    %v5742 = vrot.slane %v5721, 1
    %v5743 = vsel %vm3264, %v5742, %v5741
    %5745 = vadd.xlane.f32.xlu0 %v5743
    %v5746 = vpop.xlane.xlu0 %5745
    %v5747 = vmul.f32 %v5746, %v3405
    %v5748 = vadd.f32 %v5747, 1e-05
    %v5749 = vrsqrt.pop %v5748
    %v5751 = vrot.slane %v5749, 1
    %v5752 = vrot.slane %v5749, 2
    %v5753 = vrot.slane %v5749, 3
    %v5754 = vrot.slane %v5749, 4
    %v5755 = vrot.slane %v5749, 5
    %v5756 = vrot.slane %v5749, 6
    %v5757 = vrot.slane %v5749, 7
    %v5766 = vmul.f32 %v5706, %v5749
    %v5767 = vmul.f32 %v5707, %v5751
    %v5768 = vmul.f32 %v5708, %v5752
    %v5769 = vmul.f32 %v5709, %v5753
    %v5770 = vmul.f32 %v5710, %v5754
    %v5771 = vmul.f32 %v5711, %v5755
    %v5772 = vmul.f32 %v5712, %v5756
    %v5773 = vmul.f32 %v5713, %v5757
    %v5774 = vlaneseq
    %v5775 = vshrl.u32 %v5774, 7
    %v5776 = vsub.s32 2, %v5775
    %v5777 = vrot.slane %v699, %v5776
    %v5778 = vmul.f32 %v5766, %v5777
    %v5779 = vmul.f32 %v5767, %v5777
    %v5780 = vmul.f32 %v5768, %v5777
    %v5781 = vmul.f32 %v5769, %v5777
    %v5782 = vmul.f32 %v5770, %v5777
    %v5783 = vmul.f32 %v5771, %v5777
    %v5784 = vmul.f32 %v5772, %v5777
    %v5785 = vmul.f32 %v5773, %v5777
    %v5786 = vlaneseq
    %v5787 = vshrl.u32 %v5786, 7
    %v5788 = vsub.s32 3, %v5787
    %v5789 = vrot.slane %v699, %v5788
    %v5790 = vadd.f32 %v5778, %v5789
    %v5791 = vadd.f32 %v5779, %v5789
    %v5792 = vadd.f32 %v5780, %v5789
    %v5793 = vadd.f32 %v5781, %v5789
    %v5794 = vadd.f32 %v5782, %v5789
    %v5795 = vadd.f32 %v5783, %v5789
    %v5796 = vadd.f32 %v5784, %v5789
    %v5797 = vadd.f32 %v5785, %v5789
    %v5798 = vpack.c.bf16 %v5790, %v5790
    %v5799 = vpack.c.bf16 %v5791, %v5791
    %v5800 = vpack.c.bf16 %v5792, %v5792
    %v5801 = vpack.c.bf16 %v5793, %v5793
    %v5802 = vpack.c.bf16 %v5794, %v5794
    %v5803 = vpack.c.bf16 %v5795, %v5795
    %v5804 = vpack.c.bf16 %v5796, %v5796
    %v5805 = vpack.c.bf16 %v5797, %v5797
    %v5806 = vlaneseq
    %v5807 = vshrl.u32 %v5806, 7
    %v5808 = vsub.s32 6, %v5807
    %v5809 = vrot.slane %v699, %v5808
    %v5810 = vlaneseq
    %v5811 = vshrl.u32 %v5810, 7
    %v5812 = vsub.s32 6, %v5811
    %v5813 = vrot.slane %v700, %v5812
    %v5822 = vunpack.c.l.b16 %v5798
    %v5823 = vunpack.c.l.b16 %v5799
    %v5824 = vunpack.c.l.b16 %v5800
    %v5825 = vunpack.c.l.b16 %v5801
    %v5826 = vunpack.c.l.b16 %v5802
    %v5827 = vunpack.c.l.b16 %v5803
    %v5828 = vunpack.c.l.b16 %v5804
    %v5829 = vunpack.c.l.b16 %v5805
    %v5830 = vrot.slane %v5823, 7
    %v5831 = vsel %vm3252, %v5830, %v5822
    %v5832 = vrot.slane %v5824, 6
    %v5833 = vsel %vm3254, %v5832, %v5831
    %v5834 = vrot.slane %v5825, 5
    %v5835 = vsel %vm3256, %v5834, %v5833
    %v5836 = vrot.slane %v5826, 4
    %v5837 = vsel %vm3258, %v5836, %v5835
    %v5838 = vrot.slane %v5827, 3
    %v5839 = vsel %vm3260, %v5838, %v5837
    %v5840 = vrot.slane %v5828, 2
    %v5841 = vsel %vm3262, %v5840, %v5839
    %v5842 = vrot.slane %v5829, 1
    %v5843 = vsel %vm3264, %v5842, %v5841
    %v5844 = vpack.c.b16 %v5843, %v5843
    %v5862 = vunpack.c.l.b16 %v453
    %v5863 = vunpack.c.h.b16 %v453
    %v5864 = vunpack.c.l.b16 %v454
    %v5865 = vunpack.c.h.b16 %v454
    %v5866 = vunpack.c.l.b16 %v455
    %v5867 = vunpack.c.h.b16 %v455
    %v5868 = vunpack.c.l.b16 %v456
    %v5869 = vunpack.c.h.b16 %v456
    %v5870 = vunpack.c.l.b16 %v457
    %v5871 = vunpack.c.h.b16 %v457
    %v5872 = vunpack.c.l.b16 %v458
    %v5873 = vunpack.c.h.b16 %v458
    %v5874 = vunpack.c.l.b16 %v459
    %v5875 = vunpack.c.h.b16 %v459
    %v5876 = vunpack.c.l.b16 %v460
    %v5877 = vunpack.c.h.b16 %v460
    %v5878 = vunpack.c.l.b16 %v461
    %v5879 = vunpack.c.h.b16 %v461
    %v5880 = vunpack.c.l.b16 %v462
    %v5881 = vunpack.c.h.b16 %v462
    %v5882 = vunpack.c.l.b16 %v463
    %v5883 = vunpack.c.h.b16 %v463
    %v5884 = vunpack.c.l.b16 %v464
    %v5885 = vunpack.c.h.b16 %v464
    %v5886 = vunpack.c.l.b16 %v465
    %v5887 = vunpack.c.h.b16 %v465
    %v5888 = vunpack.c.l.b16 %v466
    %v5889 = vunpack.c.h.b16 %v466
    %v5890 = vunpack.c.l.b16 %v467
    %v5891 = vunpack.c.h.b16 %v467
    %v5892 = vunpack.c.l.b16 %v468
    %v5893 = vunpack.c.h.b16 %v468
    %v5894 = vpack.c.b16 %v5864, %v5862
    %v5895 = vpack.c.b16 %v5865, %v5863
    %v5896 = vpack.c.b16 %v5868, %v5866
    %v5897 = vpack.c.b16 %v5869, %v5867
    %v5898 = vpack.c.b16 %v5872, %v5870
    %v5899 = vpack.c.b16 %v5873, %v5871
    %v5900 = vpack.c.b16 %v5876, %v5874
    %v5901 = vpack.c.b16 %v5877, %v5875
    %v5902 = vpack.c.b16 %v5880, %v5878
    %v5903 = vpack.c.b16 %v5881, %v5879
    %v5904 = vpack.c.b16 %v5884, %v5882
    %v5905 = vpack.c.b16 %v5885, %v5883
    %v5906 = vpack.c.b16 %v5888, %v5886
    %v5907 = vpack.c.b16 %v5889, %v5887
    %v5908 = vpack.c.b16 %v5892, %v5890
    %v5909 = vpack.c.b16 %v5893, %v5891
    %5926 = vmatprep.subr.bf16.mxu0 %v5909
    %5927 = vmatpush1.bf16.msra.mxu0 %v5908
    %5928 = vmatprep.subr.bf16.mxu0 %v5907
    %5929 = vmatpush1.bf16.msra.mxu0 %v5906
    %5930 = vmatprep.subr.bf16.mxu0 %v5905
    %5931 = vmatpush1.bf16.msra.mxu0 %v5904
    %5932 = vmatprep.subr.bf16.mxu0 %v5903
    %5933 = vmatpush1.bf16.msra.mxu0 %v5902
    %5934 = vmatprep.subr.bf16.mxu0 %v5901
    %5935 = vmatpush1.bf16.msra.mxu0 %v5900
    %5936 = vmatprep.subr.bf16.mxu0 %v5899
    %5937 = vmatpush1.bf16.msra.mxu0 %v5898
    %5938 = vmatprep.subr.bf16.mxu0 %v5897
    %5939 = vmatpush1.bf16.msra.mxu0 %v5896
    %5940 = vmatprep.subr.bf16.mxu0 %v5895
    %5941 = vmatpush1.bf16.msra.mxu0 %v5894
    %5942 = vmatprep.subr.bf16.mxu0 0
    %5943 = vmatpush2.bf16.msra.mxu0 0
    %5944 = vmatprep.subr.bf16.mxu0 0
    %5945 = vmatpush2.bf16.msra.mxu0 0
    %5946 = vmatprep.subr.bf16.mxu0 0
    %5947 = vmatpush2.bf16.msra.mxu0 0
    %5948 = vmatprep.subr.bf16.mxu0 0
    %5949 = vmatpush2.bf16.msra.mxu0 0
    %5950 = vmatprep.subr.bf16.mxu0 0
    %5951 = vmatpush2.bf16.msra.mxu0 0
    %5952 = vmatprep.subr.bf16.mxu0 0
    %5953 = vmatpush2.bf16.msra.mxu0 0
    %5954 = vmatprep.subr.bf16.mxu0 0
    %5955 = vmatpush2.bf16.msra.mxu0 0
    %5956 = vmatprep.subr.bf16.mxu0 0
    %5957 = vmatpush2.bf16.msra.mxu0 0
    %5958 = vmatprep.mubr.bf16.mxu0 0
    %5959 = vmatmul.mubr.bf16.gmra.mxu0 %v5844
    %v5960 = vpop.f32.mrf.mxu0
    %v5961 = vadd.f32 %v5809, %v5960
    %v5962 = vpop.f32.mrf.mxu0
    %v5963 = vadd.f32 %v5813, %v5962
    %v5964 = vpop.f32.mrf.mxu0
    %v5965 = vpop.f32.mrf.mxu0
    %5966 = vdwg.mxu0
    %v5967 = vmax.f32 %v5961, 0.0
    %v5968 = vmax.f32 %v5963, 0.0
    %v5969 = vpack.c.bf16 %v5967, %v5967
    %v5970 = vpack.c.bf16 %v5968, %v5968
    %v5971 = vlaneseq
    %v5972 = vshrl.u32 %v5971, 7
    %v5973 = vsub.s32 1, %v5972
    %v5974 = vrot.slane %v699, %v5973
    %v6007 = vunpack.c.l.b16 %v597
    %v6008 = vunpack.c.l.b16 %v598
    %v6009 = vunpack.c.l.b16 %v599
    %v6010 = vunpack.c.l.b16 %v600
    %v6011 = vunpack.c.l.b16 %v601
    %v6012 = vunpack.c.l.b16 %v602
    %v6013 = vunpack.c.l.b16 %v603
    %v6014 = vunpack.c.l.b16 %v604
    %v6015 = vunpack.c.l.b16 %v605
    %v6016 = vunpack.c.l.b16 %v606
    %v6017 = vunpack.c.l.b16 %v607
    %v6018 = vunpack.c.l.b16 %v608
    %v6019 = vunpack.c.l.b16 %v609
    %v6020 = vunpack.c.l.b16 %v610
    %v6021 = vunpack.c.l.b16 %v611
    %v6022 = vunpack.c.l.b16 %v612
    %v6023 = vunpack.c.l.b16 %v613
    %v6024 = vunpack.c.l.b16 %v614
    %v6025 = vunpack.c.l.b16 %v615
    %v6026 = vunpack.c.l.b16 %v616
    %v6027 = vunpack.c.l.b16 %v617
    %v6028 = vunpack.c.l.b16 %v618
    %v6029 = vunpack.c.l.b16 %v619
    %v6030 = vunpack.c.l.b16 %v620
    %v6031 = vunpack.c.l.b16 %v621
    %v6032 = vunpack.c.l.b16 %v622
    %v6033 = vunpack.c.l.b16 %v623
    %v6034 = vunpack.c.l.b16 %v624
    %v6035 = vunpack.c.l.b16 %v625
    %v6036 = vunpack.c.l.b16 %v626
    %v6037 = vunpack.c.l.b16 %v627
    %v6038 = vunpack.c.l.b16 %v628
    %v6039 = vpack.c.b16 %v6008, %v6007
    %v6040 = vpack.c.b16 %v6010, %v6009
    %v6041 = vpack.c.b16 %v6012, %v6011
    %v6042 = vpack.c.b16 %v6014, %v6013
    %v6043 = vpack.c.b16 %v6016, %v6015
    %v6044 = vpack.c.b16 %v6018, %v6017
    %v6045 = vpack.c.b16 %v6020, %v6019
    %v6046 = vpack.c.b16 %v6022, %v6021
    %v6047 = vpack.c.b16 %v6024, %v6023
    %v6048 = vpack.c.b16 %v6026, %v6025
    %v6049 = vpack.c.b16 %v6028, %v6027
    %v6050 = vpack.c.b16 %v6030, %v6029
    %v6051 = vpack.c.b16 %v6032, %v6031
    %v6052 = vpack.c.b16 %v6034, %v6033
    %v6053 = vpack.c.b16 %v6036, %v6035
    %v6054 = vpack.c.b16 %v6038, %v6037
    %6071 = vmatprep.subr.bf16.mxu0 0
    %6072 = vmatpush1.bf16.msra.mxu0 %v6046
    %6073 = vmatprep.subr.bf16.mxu0 0
    %6074 = vmatpush1.bf16.msra.mxu0 %v6045
    %6075 = vmatprep.subr.bf16.mxu0 0
    %6076 = vmatpush1.bf16.msra.mxu0 %v6044
    %6077 = vmatprep.subr.bf16.mxu0 0
    %6078 = vmatpush1.bf16.msra.mxu0 %v6043
    %6079 = vmatprep.subr.bf16.mxu0 0
    %6080 = vmatpush1.bf16.msra.mxu0 %v6042
    %6081 = vmatprep.subr.bf16.mxu0 0
    %6082 = vmatpush1.bf16.msra.mxu0 %v6041
    %6083 = vmatprep.subr.bf16.mxu0 0
    %6084 = vmatpush1.bf16.msra.mxu0 %v6040
    %6085 = vmatprep.subr.bf16.mxu0 0
    %6086 = vmatpush1.bf16.msra.mxu0 %v6039
    %6087 = vmatprep.subr.bf16.mxu0 0
    %6088 = vmatpush2.bf16.msra.mxu0 %v6054
    %6089 = vmatprep.subr.bf16.mxu0 0
    %6090 = vmatpush2.bf16.msra.mxu0 %v6053
    %6091 = vmatprep.subr.bf16.mxu0 0
    %6092 = vmatpush2.bf16.msra.mxu0 %v6052
    %6093 = vmatprep.subr.bf16.mxu0 0
    %6094 = vmatpush2.bf16.msra.mxu0 %v6051
    %6095 = vmatprep.subr.bf16.mxu0 0
    %6096 = vmatpush2.bf16.msra.mxu0 %v6050
    %6097 = vmatprep.subr.bf16.mxu0 0
    %6098 = vmatpush2.bf16.msra.mxu0 %v6049
    %6099 = vmatprep.subr.bf16.mxu0 0
    %6100 = vmatpush2.bf16.msra.mxu0 %v6048
    %6101 = vmatprep.subr.bf16.mxu0 0
    %6102 = vmatpush2.bf16.msra.mxu0 %v6047
    %6103 = vmatprep.mubr.bf16.mxu0 %v5970
    %6104 = vmatmul.mubr.bf16.gmra.mxu0 %v5969
    %v6105 = vpop.f32.mrf.mxu0
    %v6106 = vadd.f32 %v5974, %v6105
    %v6107 = vpop.f32.mrf.mxu0
    %v6108 = vpop.f32.mrf.mxu0
    %v6109 = vpop.f32.mrf.mxu0
    %6110 = vdwg.mxu0
    %v6112 = vrot.slane %v6106, 1
    %v6113 = vrot.slane %v6106, 2
    %v6114 = vrot.slane %v6106, 3
    %v6115 = vrot.slane %v6106, 4
    %v6116 = vrot.slane %v6106, 5
    %v6117 = vrot.slane %v6106, 6
    %v6118 = vrot.slane %v6106, 7
    %v6127 = vadd.f32 %v5790, %v6106
    %v6128 = vadd.f32 %v5791, %v6112
    %v6129 = vadd.f32 %v5792, %v6113
    %v6130 = vadd.f32 %v5793, %v6114
    %v6131 = vadd.f32 %v5794, %v6115
    %v6132 = vadd.f32 %v5795, %v6116
    %v6133 = vadd.f32 %v5796, %v6117
    %v6134 = vadd.f32 %v5797, %v6118
    %v6143 = vrot.slane %v6128, 7
    %v6144 = vsel %vm3252, %v6143, %v6127
    %v6145 = vrot.slane %v6129, 6
    %v6146 = vsel %vm3254, %v6145, %v6144
    %v6147 = vrot.slane %v6130, 5
    %v6148 = vsel %vm3256, %v6147, %v6146
    %v6149 = vrot.slane %v6131, 4
    %v6150 = vsel %vm3258, %v6149, %v6148
    %v6151 = vrot.slane %v6132, 3
    %v6152 = vsel %vm3260, %v6151, %v6150
    %v6153 = vrot.slane %v6133, 2
    %v6154 = vsel %vm3262, %v6153, %v6152
    %v6155 = vrot.slane %v6134, 1
    %v6156 = vsel %vm3264, %v6155, %v6154
    %6158 = vadd.xlane.f32.xlu0 %v6156
    %v6159 = vpop.xlane.xlu0 %6158
    %v6160 = vmul.f32 %v6159, %v3405
    %v6162 = vrot.slane %v6160, 1
    %v6163 = vrot.slane %v6160, 2
    %v6164 = vrot.slane %v6160, 3
    %v6165 = vrot.slane %v6160, 4
    %v6166 = vrot.slane %v6160, 5
    %v6167 = vrot.slane %v6160, 6
    %v6168 = vrot.slane %v6160, 7
    %v6177 = vsub.f32 %v6127, %v6160
    %v6178 = vsub.f32 %v6128, %v6162
    %v6179 = vsub.f32 %v6129, %v6163
    %v6180 = vsub.f32 %v6130, %v6164
    %v6181 = vsub.f32 %v6131, %v6165
    %v6182 = vsub.f32 %v6132, %v6166
    %v6183 = vsub.f32 %v6133, %v6167
    %v6184 = vsub.f32 %v6134, %v6168
    %v6185 = vmul.f32 %v6177, %v6177
    %v6186 = vmul.f32 %v6178, %v6178
    %v6187 = vmul.f32 %v6179, %v6179
    %v6188 = vmul.f32 %v6180, %v6180
    %v6189 = vmul.f32 %v6181, %v6181
    %v6190 = vmul.f32 %v6182, %v6182
    %v6191 = vmul.f32 %v6183, %v6183
    %v6192 = vmul.f32 %v6184, %v6184
    %v6201 = vrot.slane %v6186, 7
    %v6202 = vsel %vm3252, %v6201, %v6185
    %v6203 = vrot.slane %v6187, 6
    %v6204 = vsel %vm3254, %v6203, %v6202
    %v6205 = vrot.slane %v6188, 5
    %v6206 = vsel %vm3256, %v6205, %v6204
    %v6207 = vrot.slane %v6189, 4
    %v6208 = vsel %vm3258, %v6207, %v6206
    %v6209 = vrot.slane %v6190, 3
    %v6210 = vsel %vm3260, %v6209, %v6208
    %v6211 = vrot.slane %v6191, 2
    %v6212 = vsel %vm3262, %v6211, %v6210
    %v6213 = vrot.slane %v6192, 1
    %v6214 = vsel %vm3264, %v6213, %v6212
    %6216 = vadd.xlane.f32.xlu0 %v6214
    %v6217 = vpop.xlane.xlu0 %6216
    %v6218 = vmul.f32 %v6217, %v3405
    %v6219 = vadd.f32 %v6218, 1e-05
    %v6220 = vrsqrt.pop %v6219
    %v6222 = vrot.slane %v6220, 1
    %v6223 = vrot.slane %v6220, 2
    %v6224 = vrot.slane %v6220, 3
    %v6225 = vrot.slane %v6220, 4
    %v6226 = vrot.slane %v6220, 5
    %v6227 = vrot.slane %v6220, 6
    %v6228 = vrot.slane %v6220, 7
    %v6237 = vmul.f32 %v6177, %v6220
    %v6238 = vmul.f32 %v6178, %v6222
    %v6239 = vmul.f32 %v6179, %v6223
    %v6240 = vmul.f32 %v6180, %v6224
    %v6241 = vmul.f32 %v6181, %v6225
    %v6242 = vmul.f32 %v6182, %v6226
    %v6243 = vmul.f32 %v6183, %v6227
    %v6244 = vmul.f32 %v6184, %v6228
    %v6245 = vlaneseq
    %v6246 = vshrl.u32 %v6245, 7
    %v6247 = vsub.s32 4, %v6246
    %v6248 = vrot.slane %v699, %v6247
    %v6249 = vmul.f32 %v6237, %v6248
    %v6250 = vmul.f32 %v6238, %v6248
    %v6251 = vmul.f32 %v6239, %v6248
    %v6252 = vmul.f32 %v6240, %v6248
    %v6253 = vmul.f32 %v6241, %v6248
    %v6254 = vmul.f32 %v6242, %v6248
    %v6255 = vmul.f32 %v6243, %v6248
    %v6256 = vmul.f32 %v6244, %v6248
    %v6257 = vlaneseq
    %v6258 = vshrl.u32 %v6257, 7
    %v6259 = vsub.s32 5, %v6258
    %v6260 = vrot.slane %v699, %v6259
    %v6261 = vadd.f32 %v6249, %v6260
    %v6262 = vadd.f32 %v6250, %v6260
    %v6263 = vadd.f32 %v6251, %v6260
    %v6264 = vadd.f32 %v6252, %v6260
    %v6265 = vadd.f32 %v6253, %v6260
    %v6266 = vadd.f32 %v6254, %v6260
    %v6267 = vadd.f32 %v6255, %v6260
    %v6268 = vadd.f32 %v6256, %v6260
    %v6269 = vpack.c.bf16 %v6261, %v6261
    %v6270 = vpack.c.bf16 %v6262, %v6262
    %v6271 = vpack.c.bf16 %v6263, %v6263
    %v6272 = vpack.c.bf16 %v6264, %v6264
    %v6273 = vpack.c.bf16 %v6265, %v6265
    %v6274 = vpack.c.bf16 %v6266, %v6266
    %v6275 = vpack.c.bf16 %v6267, %v6267
    %v6276 = vpack.c.bf16 %v6268, %v6268
    %v6277 = vlaneseq
    %v6278 = vshrl.u32 %v6277, 7
    %v6279 = vsub.s32 0, %v6278
    %v6280 = vrot.slane %v701, %v6279
    %v6289 = vunpack.c.l.b16 %v6269
    %v6290 = vunpack.c.l.b16 %v6270
    %v6291 = vunpack.c.l.b16 %v6271
    %v6292 = vunpack.c.l.b16 %v6272
    %v6293 = vunpack.c.l.b16 %v6273
    %v6294 = vunpack.c.l.b16 %v6274
    %v6295 = vunpack.c.l.b16 %v6275
    %v6296 = vunpack.c.l.b16 %v6276
    %v6297 = vrot.slane %v6290, 7
    %v6298 = vsel %vm3252, %v6297, %v6289
    %v6299 = vrot.slane %v6291, 6
    %v6300 = vsel %vm3254, %v6299, %v6298
    %v6301 = vrot.slane %v6292, 5
    %v6302 = vsel %vm3256, %v6301, %v6300
    %v6303 = vrot.slane %v6293, 4
    %v6304 = vsel %vm3258, %v6303, %v6302
    %v6305 = vrot.slane %v6294, 3
    %v6306 = vsel %vm3260, %v6305, %v6304
    %v6307 = vrot.slane %v6295, 2
    %v6308 = vsel %vm3262, %v6307, %v6306
    %v6309 = vrot.slane %v6296, 1
    %v6310 = vsel %vm3264, %v6309, %v6308
    %v6311 = vpack.c.b16 %v6310, %v6310
    %v6329 = vunpack.c.l.b16 %v373
    %v6330 = vunpack.c.l.b16 %v374
    %v6331 = vunpack.c.l.b16 %v375
    %v6332 = vunpack.c.l.b16 %v376
    %v6333 = vunpack.c.l.b16 %v377
    %v6334 = vunpack.c.l.b16 %v378
    %v6335 = vunpack.c.l.b16 %v379
    %v6336 = vunpack.c.l.b16 %v380
    %v6337 = vunpack.c.l.b16 %v381
    %v6338 = vunpack.c.l.b16 %v382
    %v6339 = vunpack.c.l.b16 %v383
    %v6340 = vunpack.c.l.b16 %v384
    %v6341 = vunpack.c.l.b16 %v385
    %v6342 = vunpack.c.l.b16 %v386
    %v6343 = vunpack.c.l.b16 %v387
    %v6344 = vunpack.c.l.b16 %v388
    %v6345 = vpack.c.b16 %v6330, %v6329
    %v6346 = vpack.c.b16 %v6332, %v6331
    %v6347 = vpack.c.b16 %v6334, %v6333
    %v6348 = vpack.c.b16 %v6336, %v6335
    %v6349 = vpack.c.b16 %v6338, %v6337
    %v6350 = vpack.c.b16 %v6340, %v6339
    %v6351 = vpack.c.b16 %v6342, %v6341
    %v6352 = vpack.c.b16 %v6344, %v6343
    %6361 = vmatprep.subr.bf16.mxu0 0
    %6362 = vmatpush1.bf16.msra.mxu0 %v6352
    %6363 = vmatprep.subr.bf16.mxu0 0
    %6364 = vmatpush1.bf16.msra.mxu0 %v6351
    %6365 = vmatprep.subr.bf16.mxu0 0
    %6366 = vmatpush1.bf16.msra.mxu0 %v6350
    %6367 = vmatprep.subr.bf16.mxu0 0
    %6368 = vmatpush1.bf16.msra.mxu0 %v6349
    %6369 = vmatprep.subr.bf16.mxu0 0
    %6370 = vmatpush1.bf16.msra.mxu0 %v6348
    %6371 = vmatprep.subr.bf16.mxu0 0
    %6372 = vmatpush1.bf16.msra.mxu0 %v6347
    %6373 = vmatprep.subr.bf16.mxu0 0
    %6374 = vmatpush1.bf16.msra.mxu0 %v6346
    %6375 = vmatprep.subr.bf16.mxu0 0
    %6376 = vmatpush1.bf16.msra.mxu0 %v6345
    %6377 = vmatprep.subr.bf16.mxu0 0
    %6378 = vmatpush2.bf16.msra.mxu0 0
    %6379 = vmatprep.subr.bf16.mxu0 0
    %6380 = vmatpush2.bf16.msra.mxu0 0
    %6381 = vmatprep.subr.bf16.mxu0 0
    %6382 = vmatpush2.bf16.msra.mxu0 0
    %6383 = vmatprep.subr.bf16.mxu0 0
    %6384 = vmatpush2.bf16.msra.mxu0 0
    %6385 = vmatprep.subr.bf16.mxu0 0
    %6386 = vmatpush2.bf16.msra.mxu0 0
    %6387 = vmatprep.subr.bf16.mxu0 0
    %6388 = vmatpush2.bf16.msra.mxu0 0
    %6389 = vmatprep.subr.bf16.mxu0 0
    %6390 = vmatpush2.bf16.msra.mxu0 0
    %6391 = vmatprep.subr.bf16.mxu0 0
    %6392 = vmatpush2.bf16.msra.mxu0 0
    %6393 = vmatprep.mubr.bf16.mxu0 0
    %6394 = vmatmul.mubr.bf16.gmra.mxu0 %v6311
    %v6395 = vpop.f32.mrf.mxu0
    %v6396 = vadd.f32 %v6280, %v6395
    %v6397 = vpop.f32.mrf.mxu0
    %v6398 = vpop.f32.mrf.mxu0
    %v6399 = vpop.f32.mrf.mxu0
    %6400 = vdwg.mxu0
    %v6402 = vrot.slane %v6396, 1
    %v6403 = vrot.slane %v6396, 2
    %v6404 = vrot.slane %v6396, 3
    %v6405 = vrot.slane %v6396, 4
    %v6406 = vrot.slane %v6396, 5
    %v6407 = vrot.slane %v6396, 6
    %v6408 = vrot.slane %v6396, 7
    %v6417 = vadd.f32 %v6261, %v6396
    %v6418 = vadd.f32 %v6262, %v6402
    %v6419 = vadd.f32 %v6263, %v6403
    %v6420 = vadd.f32 %v6264, %v6404
    %v6421 = vadd.f32 %v6265, %v6405
    %v6422 = vadd.f32 %v6266, %v6406
    %v6423 = vadd.f32 %v6267, %v6407
    %v6424 = vadd.f32 %v6268, %v6408
    %v6433 = vrot.slane %v6418, 7
    %v6434 = vsel %vm3252, %v6433, %v6417
    %v6435 = vrot.slane %v6419, 6
    %v6436 = vsel %vm3254, %v6435, %v6434
    %v6437 = vrot.slane %v6420, 5
    %v6438 = vsel %vm3256, %v6437, %v6436
    %v6439 = vrot.slane %v6421, 4
    %v6440 = vsel %vm3258, %v6439, %v6438
    %v6441 = vrot.slane %v6422, 3
    %v6442 = vsel %vm3260, %v6441, %v6440
    %v6443 = vrot.slane %v6423, 2
    %v6444 = vsel %vm3262, %v6443, %v6442
    %v6445 = vrot.slane %v6424, 1
    %v6446 = vsel %vm3264, %v6445, %v6444
    %6448 = vadd.xlane.f32.xlu0 %v6446
    %v6449 = vpop.xlane.xlu0 %6448
    %v6450 = vmul.f32 %v6449, %v3405
    %v6452 = vrot.slane %v6450, 1
    %v6453 = vrot.slane %v6450, 2
    %v6454 = vrot.slane %v6450, 3
    %v6455 = vrot.slane %v6450, 4
    %v6456 = vrot.slane %v6450, 5
    %v6457 = vrot.slane %v6450, 6
    %v6458 = vrot.slane %v6450, 7
    %v6467 = vsub.f32 %v6417, %v6450
    %v6468 = vsub.f32 %v6418, %v6452
    %v6469 = vsub.f32 %v6419, %v6453
    %v6470 = vsub.f32 %v6420, %v6454
    %v6471 = vsub.f32 %v6421, %v6455
    %v6472 = vsub.f32 %v6422, %v6456
    %v6473 = vsub.f32 %v6423, %v6457
    %v6474 = vsub.f32 %v6424, %v6458
    %v6475 = vmul.f32 %v6467, %v6467
    %v6476 = vmul.f32 %v6468, %v6468
    %v6477 = vmul.f32 %v6469, %v6469
    %v6478 = vmul.f32 %v6470, %v6470
    %v6479 = vmul.f32 %v6471, %v6471
    %v6480 = vmul.f32 %v6472, %v6472
    %v6481 = vmul.f32 %v6473, %v6473
    %v6482 = vmul.f32 %v6474, %v6474
    %v6491 = vrot.slane %v6476, 7
    %v6492 = vsel %vm3252, %v6491, %v6475
    %v6493 = vrot.slane %v6477, 6
    %v6494 = vsel %vm3254, %v6493, %v6492
    %v6495 = vrot.slane %v6478, 5
    %v6496 = vsel %vm3256, %v6495, %v6494
    %v6497 = vrot.slane %v6479, 4
    %v6498 = vsel %vm3258, %v6497, %v6496
    %v6499 = vrot.slane %v6480, 3
    %v6500 = vsel %vm3260, %v6499, %v6498
    %v6501 = vrot.slane %v6481, 2
    %v6502 = vsel %vm3262, %v6501, %v6500
    %v6503 = vrot.slane %v6482, 1
    %v6504 = vsel %vm3264, %v6503, %v6502
    %6506 = vadd.xlane.f32.xlu0 %v6504
    %v6507 = vpop.xlane.xlu0 %6506
    %v6508 = vmul.f32 %v6507, %v3405
    %v6509 = vadd.f32 %v6508, 1e-05
    %v6510 = vrsqrt.pop %v6509
    %v6512 = vrot.slane %v6510, 1
    %v6513 = vrot.slane %v6510, 2
    %v6514 = vrot.slane %v6510, 3
    %v6515 = vrot.slane %v6510, 4
    %v6516 = vrot.slane %v6510, 5
    %v6517 = vrot.slane %v6510, 6
    %v6518 = vrot.slane %v6510, 7
    %v6527 = vmul.f32 %v6467, %v6510
    %v6528 = vmul.f32 %v6468, %v6512
    %v6529 = vmul.f32 %v6469, %v6513
    %v6530 = vmul.f32 %v6470, %v6514
    %v6531 = vmul.f32 %v6471, %v6515
    %v6532 = vmul.f32 %v6472, %v6516
    %v6533 = vmul.f32 %v6473, %v6517
    %v6534 = vmul.f32 %v6474, %v6518
    %v6535 = vlaneseq
    %v6536 = vshrl.u32 %v6535, 7
    %v6537 = vsub.s32 2, %v6536
    %v6538 = vrot.slane %v701, %v6537
    %v6539 = vmul.f32 %v6527, %v6538
    %v6540 = vmul.f32 %v6528, %v6538
    %v6541 = vmul.f32 %v6529, %v6538
    %v6542 = vmul.f32 %v6530, %v6538
    %v6543 = vmul.f32 %v6531, %v6538
    %v6544 = vmul.f32 %v6532, %v6538
    %v6545 = vmul.f32 %v6533, %v6538
    %v6546 = vmul.f32 %v6534, %v6538
    %v6547 = vlaneseq
    %v6548 = vshrl.u32 %v6547, 7
    %v6549 = vsub.s32 3, %v6548
    %v6550 = vrot.slane %v701, %v6549
    %v6551 = vadd.f32 %v6539, %v6550
    %v6552 = vadd.f32 %v6540, %v6550
    %v6553 = vadd.f32 %v6541, %v6550
    %v6554 = vadd.f32 %v6542, %v6550
    %v6555 = vadd.f32 %v6543, %v6550
    %v6556 = vadd.f32 %v6544, %v6550
    %v6557 = vadd.f32 %v6545, %v6550
    %v6558 = vadd.f32 %v6546, %v6550
    %v6559 = vpack.c.bf16 %v6551, %v6551
    %v6560 = vpack.c.bf16 %v6552, %v6552
    %v6561 = vpack.c.bf16 %v6553, %v6553
    %v6562 = vpack.c.bf16 %v6554, %v6554
    %v6563 = vpack.c.bf16 %v6555, %v6555
    %v6564 = vpack.c.bf16 %v6556, %v6556
    %v6565 = vpack.c.bf16 %v6557, %v6557
    %v6566 = vpack.c.bf16 %v6558, %v6558
    %v6567 = vlaneseq
    %v6568 = vshrl.u32 %v6567, 7
    %v6569 = vsub.s32 6, %v6568
    %v6570 = vrot.slane %v701, %v6569
    %v6571 = vlaneseq
    %v6572 = vshrl.u32 %v6571, 7
    %v6573 = vsub.s32 6, %v6572
    %v6574 = vrot.slane %v702, %v6573
    %v6583 = vunpack.c.l.b16 %v6559
    %v6584 = vunpack.c.l.b16 %v6560
    %v6585 = vunpack.c.l.b16 %v6561
    %v6586 = vunpack.c.l.b16 %v6562
    %v6587 = vunpack.c.l.b16 %v6563
    %v6588 = vunpack.c.l.b16 %v6564
    %v6589 = vunpack.c.l.b16 %v6565
    %v6590 = vunpack.c.l.b16 %v6566
    %v6591 = vrot.slane %v6584, 7
    %v6592 = vsel %vm3252, %v6591, %v6583
    %v6593 = vrot.slane %v6585, 6
    %v6594 = vsel %vm3254, %v6593, %v6592
    %v6595 = vrot.slane %v6586, 5
    %v6596 = vsel %vm3256, %v6595, %v6594
    %v6597 = vrot.slane %v6587, 4
    %v6598 = vsel %vm3258, %v6597, %v6596
    %v6599 = vrot.slane %v6588, 3
    %v6600 = vsel %vm3260, %v6599, %v6598
    %v6601 = vrot.slane %v6589, 2
    %v6602 = vsel %vm3262, %v6601, %v6600
    %v6603 = vrot.slane %v6590, 1
    %v6604 = vsel %vm3264, %v6603, %v6602
    %v6605 = vpack.c.b16 %v6604, %v6604
    %v6623 = vunpack.c.l.b16 %v469
    %v6624 = vunpack.c.h.b16 %v469
    %v6625 = vunpack.c.l.b16 %v470
    %v6626 = vunpack.c.h.b16 %v470
    %v6627 = vunpack.c.l.b16 %v471
    %v6628 = vunpack.c.h.b16 %v471
    %v6629 = vunpack.c.l.b16 %v472
    %v6630 = vunpack.c.h.b16 %v472
    %v6631 = vunpack.c.l.b16 %v473
    %v6632 = vunpack.c.h.b16 %v473
    %v6633 = vunpack.c.l.b16 %v474
    %v6634 = vunpack.c.h.b16 %v474
    %v6635 = vunpack.c.l.b16 %v475
    %v6636 = vunpack.c.h.b16 %v475
    %v6637 = vunpack.c.l.b16 %v476
    %v6638 = vunpack.c.h.b16 %v476
    %v6639 = vunpack.c.l.b16 %v477
    %v6640 = vunpack.c.h.b16 %v477
    %v6641 = vunpack.c.l.b16 %v478
    %v6642 = vunpack.c.h.b16 %v478
    %v6643 = vunpack.c.l.b16 %v479
    %v6644 = vunpack.c.h.b16 %v479
    %v6645 = vunpack.c.l.b16 %v480
    %v6646 = vunpack.c.h.b16 %v480
    %v6647 = vunpack.c.l.b16 %v481
    %v6648 = vunpack.c.h.b16 %v481
    %v6649 = vunpack.c.l.b16 %v482
    %v6650 = vunpack.c.h.b16 %v482
    %v6651 = vunpack.c.l.b16 %v483
    %v6652 = vunpack.c.h.b16 %v483
    %v6653 = vunpack.c.l.b16 %v484
    %v6654 = vunpack.c.h.b16 %v484
    %v6655 = vpack.c.b16 %v6625, %v6623
    %v6656 = vpack.c.b16 %v6626, %v6624
    %v6657 = vpack.c.b16 %v6629, %v6627
    %v6658 = vpack.c.b16 %v6630, %v6628
    %v6659 = vpack.c.b16 %v6633, %v6631
    %v6660 = vpack.c.b16 %v6634, %v6632
    %v6661 = vpack.c.b16 %v6637, %v6635
    %v6662 = vpack.c.b16 %v6638, %v6636
    %v6663 = vpack.c.b16 %v6641, %v6639
    %v6664 = vpack.c.b16 %v6642, %v6640
    %v6665 = vpack.c.b16 %v6645, %v6643
    %v6666 = vpack.c.b16 %v6646, %v6644
    %v6667 = vpack.c.b16 %v6649, %v6647
    %v6668 = vpack.c.b16 %v6650, %v6648
    %v6669 = vpack.c.b16 %v6653, %v6651
    %v6670 = vpack.c.b16 %v6654, %v6652
    %6687 = vmatprep.subr.bf16.mxu0 %v6670
    %6688 = vmatpush1.bf16.msra.mxu0 %v6669
    %6689 = vmatprep.subr.bf16.mxu0 %v6668
    %6690 = vmatpush1.bf16.msra.mxu0 %v6667
    %6691 = vmatprep.subr.bf16.mxu0 %v6666
    %6692 = vmatpush1.bf16.msra.mxu0 %v6665
    %6693 = vmatprep.subr.bf16.mxu0 %v6664
    %6694 = vmatpush1.bf16.msra.mxu0 %v6663
    %6695 = vmatprep.subr.bf16.mxu0 %v6662
    %6696 = vmatpush1.bf16.msra.mxu0 %v6661
    %6697 = vmatprep.subr.bf16.mxu0 %v6660
    %6698 = vmatpush1.bf16.msra.mxu0 %v6659
    %6699 = vmatprep.subr.bf16.mxu0 %v6658
    %6700 = vmatpush1.bf16.msra.mxu0 %v6657
    %6701 = vmatprep.subr.bf16.mxu0 %v6656
    %6702 = vmatpush1.bf16.msra.mxu0 %v6655
    %6703 = vmatprep.subr.bf16.mxu0 0
    %6704 = vmatpush2.bf16.msra.mxu0 0
    %6705 = vmatprep.subr.bf16.mxu0 0
    %6706 = vmatpush2.bf16.msra.mxu0 0
    %6707 = vmatprep.subr.bf16.mxu0 0
    %6708 = vmatpush2.bf16.msra.mxu0 0
    %6709 = vmatprep.subr.bf16.mxu0 0
    %6710 = vmatpush2.bf16.msra.mxu0 0
    %6711 = vmatprep.subr.bf16.mxu0 0
    %6712 = vmatpush2.bf16.msra.mxu0 0
    %6713 = vmatprep.subr.bf16.mxu0 0
    %6714 = vmatpush2.bf16.msra.mxu0 0
    %6715 = vmatprep.subr.bf16.mxu0 0
    %6716 = vmatpush2.bf16.msra.mxu0 0
    %6717 = vmatprep.subr.bf16.mxu0 0
    %6718 = vmatpush2.bf16.msra.mxu0 0
    %6719 = vmatprep.mubr.bf16.mxu0 0
    %6720 = vmatmul.mubr.bf16.gmra.mxu0 %v6605
    %v6721 = vpop.f32.mrf.mxu0
    %v6722 = vadd.f32 %v6570, %v6721
    %v6723 = vpop.f32.mrf.mxu0
    %v6724 = vadd.f32 %v6574, %v6723
    %v6725 = vpop.f32.mrf.mxu0
    %v6726 = vpop.f32.mrf.mxu0
    %6727 = vdwg.mxu0
    %v6728 = vmax.f32 %v6722, 0.0
    %v6729 = vmax.f32 %v6724, 0.0
    %v6730 = vpack.c.bf16 %v6728, %v6728
    %v6731 = vpack.c.bf16 %v6729, %v6729
    %v6732 = vlaneseq
    %v6733 = vshrl.u32 %v6732, 7
    %v6734 = vsub.s32 1, %v6733
    %v6735 = vrot.slane %v701, %v6734
    %v6768 = vunpack.c.l.b16 %v629
    %v6769 = vunpack.c.l.b16 %v630
    %v6770 = vunpack.c.l.b16 %v631
    %v6771 = vunpack.c.l.b16 %v632
    %v6772 = vunpack.c.l.b16 %v633
    %v6773 = vunpack.c.l.b16 %v634
    %v6774 = vunpack.c.l.b16 %v635
    %v6775 = vunpack.c.l.b16 %v636
    %v6776 = vunpack.c.l.b16 %v637
    %v6777 = vunpack.c.l.b16 %v638
    %v6778 = vunpack.c.l.b16 %v639
    %v6779 = vunpack.c.l.b16 %v640
    %v6780 = vunpack.c.l.b16 %v641
    %v6781 = vunpack.c.l.b16 %v642
    %v6782 = vunpack.c.l.b16 %v643
    %v6783 = vunpack.c.l.b16 %v644
    %v6784 = vunpack.c.l.b16 %v645
    %v6785 = vunpack.c.l.b16 %v646
    %v6786 = vunpack.c.l.b16 %v647
    %v6787 = vunpack.c.l.b16 %v648
    %v6788 = vunpack.c.l.b16 %v649
    %v6789 = vunpack.c.l.b16 %v650
    %v6790 = vunpack.c.l.b16 %v651
    %v6791 = vunpack.c.l.b16 %v652
    %v6792 = vunpack.c.l.b16 %v653
    %v6793 = vunpack.c.l.b16 %v654
    %v6794 = vunpack.c.l.b16 %v655
    %v6795 = vunpack.c.l.b16 %v656
    %v6796 = vunpack.c.l.b16 %v657
    %v6797 = vunpack.c.l.b16 %v658
    %v6798 = vunpack.c.l.b16 %v659
    %v6799 = vunpack.c.l.b16 %v660
    %v6800 = vpack.c.b16 %v6769, %v6768
    %v6801 = vpack.c.b16 %v6771, %v6770
    %v6802 = vpack.c.b16 %v6773, %v6772
    %v6803 = vpack.c.b16 %v6775, %v6774
    %v6804 = vpack.c.b16 %v6777, %v6776
    %v6805 = vpack.c.b16 %v6779, %v6778
    %v6806 = vpack.c.b16 %v6781, %v6780
    %v6807 = vpack.c.b16 %v6783, %v6782
    %v6808 = vpack.c.b16 %v6785, %v6784
    %v6809 = vpack.c.b16 %v6787, %v6786
    %v6810 = vpack.c.b16 %v6789, %v6788
    %v6811 = vpack.c.b16 %v6791, %v6790
    %v6812 = vpack.c.b16 %v6793, %v6792
    %v6813 = vpack.c.b16 %v6795, %v6794
    %v6814 = vpack.c.b16 %v6797, %v6796
    %v6815 = vpack.c.b16 %v6799, %v6798
    %6832 = vmatprep.subr.bf16.mxu0 0
    %6833 = vmatpush1.bf16.msra.mxu0 %v6807
    %6834 = vmatprep.subr.bf16.mxu0 0
    %6835 = vmatpush1.bf16.msra.mxu0 %v6806
    %6836 = vmatprep.subr.bf16.mxu0 0
    %6837 = vmatpush1.bf16.msra.mxu0 %v6805
    %6838 = vmatprep.subr.bf16.mxu0 0
    %6839 = vmatpush1.bf16.msra.mxu0 %v6804
    %6840 = vmatprep.subr.bf16.mxu0 0
    %6841 = vmatpush1.bf16.msra.mxu0 %v6803
    %6842 = vmatprep.subr.bf16.mxu0 0
    %6843 = vmatpush1.bf16.msra.mxu0 %v6802
    %6844 = vmatprep.subr.bf16.mxu0 0
    %6845 = vmatpush1.bf16.msra.mxu0 %v6801
    %6846 = vmatprep.subr.bf16.mxu0 0
    %6847 = vmatpush1.bf16.msra.mxu0 %v6800
    %6848 = vmatprep.subr.bf16.mxu0 0
    %6849 = vmatpush2.bf16.msra.mxu0 %v6815
    %6850 = vmatprep.subr.bf16.mxu0 0
    %6851 = vmatpush2.bf16.msra.mxu0 %v6814
    %6852 = vmatprep.subr.bf16.mxu0 0
    %6853 = vmatpush2.bf16.msra.mxu0 %v6813
    %6854 = vmatprep.subr.bf16.mxu0 0
    %6855 = vmatpush2.bf16.msra.mxu0 %v6812
    %6856 = vmatprep.subr.bf16.mxu0 0
    %6857 = vmatpush2.bf16.msra.mxu0 %v6811
    %6858 = vmatprep.subr.bf16.mxu0 0
    %6859 = vmatpush2.bf16.msra.mxu0 %v6810
    %6860 = vmatprep.subr.bf16.mxu0 0
    %6861 = vmatpush2.bf16.msra.mxu0 %v6809
    %6862 = vmatprep.subr.bf16.mxu0 0
    %6863 = vmatpush2.bf16.msra.mxu0 %v6808
    %6864 = vmatprep.mubr.bf16.mxu0 %v6731
    %6865 = vmatmul.mubr.bf16.gmra.mxu0 %v6730
    %v6866 = vpop.f32.mrf.mxu0
    %v6867 = vadd.f32 %v6735, %v6866
    %v6868 = vpop.f32.mrf.mxu0
    %v6869 = vpop.f32.mrf.mxu0
    %v6870 = vpop.f32.mrf.mxu0
    %6871 = vdwg.mxu0
    %v6873 = vrot.slane %v6867, 1
    %v6874 = vrot.slane %v6867, 2
    %v6875 = vrot.slane %v6867, 3
    %v6876 = vrot.slane %v6867, 4
    %v6877 = vrot.slane %v6867, 5
    %v6878 = vrot.slane %v6867, 6
    %v6879 = vrot.slane %v6867, 7
    %v6888 = vadd.f32 %v6551, %v6867
    %v6889 = vadd.f32 %v6552, %v6873
    %v6890 = vadd.f32 %v6553, %v6874
    %v6891 = vadd.f32 %v6554, %v6875
    %v6892 = vadd.f32 %v6555, %v6876
    %v6893 = vadd.f32 %v6556, %v6877
    %v6894 = vadd.f32 %v6557, %v6878
    %v6895 = vadd.f32 %v6558, %v6879
    %v6904 = vrot.slane %v6889, 7
    %v6905 = vsel %vm3252, %v6904, %v6888
    %v6906 = vrot.slane %v6890, 6
    %v6907 = vsel %vm3254, %v6906, %v6905
    %v6908 = vrot.slane %v6891, 5
    %v6909 = vsel %vm3256, %v6908, %v6907
    %v6910 = vrot.slane %v6892, 4
    %v6911 = vsel %vm3258, %v6910, %v6909
    %v6912 = vrot.slane %v6893, 3
    %v6913 = vsel %vm3260, %v6912, %v6911
    %v6914 = vrot.slane %v6894, 2
    %v6915 = vsel %vm3262, %v6914, %v6913
    %v6916 = vrot.slane %v6895, 1
    %v6917 = vsel %vm3264, %v6916, %v6915
    %6919 = vadd.xlane.f32.xlu0 %v6917
    %v6920 = vpop.xlane.xlu0 %6919
    %v6921 = vmul.f32 %v6920, %v3405
    %v6923 = vrot.slane %v6921, 1
    %v6924 = vrot.slane %v6921, 2
    %v6925 = vrot.slane %v6921, 3
    %v6926 = vrot.slane %v6921, 4
    %v6927 = vrot.slane %v6921, 5
    %v6928 = vrot.slane %v6921, 6
    %v6929 = vrot.slane %v6921, 7
    %v6938 = vsub.f32 %v6888, %v6921
    %v6939 = vsub.f32 %v6889, %v6923
    %v6940 = vsub.f32 %v6890, %v6924
    %v6941 = vsub.f32 %v6891, %v6925
    %v6942 = vsub.f32 %v6892, %v6926
    %v6943 = vsub.f32 %v6893, %v6927
    %v6944 = vsub.f32 %v6894, %v6928
    %v6945 = vsub.f32 %v6895, %v6929
    %v6946 = vmul.f32 %v6938, %v6938
    %v6947 = vmul.f32 %v6939, %v6939
    %v6948 = vmul.f32 %v6940, %v6940
    %v6949 = vmul.f32 %v6941, %v6941
    %v6950 = vmul.f32 %v6942, %v6942
    %v6951 = vmul.f32 %v6943, %v6943
    %v6952 = vmul.f32 %v6944, %v6944
    %v6953 = vmul.f32 %v6945, %v6945
    %v6962 = vrot.slane %v6947, 7
    %v6963 = vsel %vm3252, %v6962, %v6946
    %v6964 = vrot.slane %v6948, 6
    %v6965 = vsel %vm3254, %v6964, %v6963
    %v6966 = vrot.slane %v6949, 5
    %v6967 = vsel %vm3256, %v6966, %v6965
    %v6968 = vrot.slane %v6950, 4
    %v6969 = vsel %vm3258, %v6968, %v6967
    %v6970 = vrot.slane %v6951, 3
    %v6971 = vsel %vm3260, %v6970, %v6969
    %v6972 = vrot.slane %v6952, 2
    %v6973 = vsel %vm3262, %v6972, %v6971
    %v6974 = vrot.slane %v6953, 1
    %v6975 = vsel %vm3264, %v6974, %v6973
    %6977 = vadd.xlane.f32.xlu0 %v6975
    %v6978 = vpop.xlane.xlu0 %6977
    %v6979 = vmul.f32 %v6978, %v3405
    %v6980 = vadd.f32 %v6979, 1e-05
    %v6981 = vrsqrt.pop %v6980
    %v6983 = vrot.slane %v6981, 1
    %v6984 = vrot.slane %v6981, 2
    %v6985 = vrot.slane %v6981, 3
    %v6986 = vrot.slane %v6981, 4
    %v6987 = vrot.slane %v6981, 5
    %v6988 = vrot.slane %v6981, 6
    %v6989 = vrot.slane %v6981, 7
    %v6998 = vmul.f32 %v6938, %v6981
    %v6999 = vmul.f32 %v6939, %v6983
    %v7000 = vmul.f32 %v6940, %v6984
    %v7001 = vmul.f32 %v6941, %v6985
    %v7002 = vmul.f32 %v6942, %v6986
    %v7003 = vmul.f32 %v6943, %v6987
    %v7004 = vmul.f32 %v6944, %v6988
    %v7005 = vmul.f32 %v6945, %v6989
    %v7006 = vlaneseq
    %v7007 = vshrl.u32 %v7006, 7
    %v7008 = vsub.s32 4, %v7007
    %v7009 = vrot.slane %v701, %v7008
    %v7010 = vmul.f32 %v6998, %v7009
    %v7011 = vmul.f32 %v6999, %v7009
    %v7012 = vmul.f32 %v7000, %v7009
    %v7013 = vmul.f32 %v7001, %v7009
    %v7014 = vmul.f32 %v7002, %v7009
    %v7015 = vmul.f32 %v7003, %v7009
    %v7016 = vmul.f32 %v7004, %v7009
    %v7017 = vmul.f32 %v7005, %v7009
    %v7018 = vlaneseq
    %v7019 = vshrl.u32 %v7018, 7
    %v7020 = vsub.s32 5, %v7019
    %v7021 = vrot.slane %v701, %v7020
    %v7022 = vadd.f32 %v7010, %v7021
    %v7023 = vadd.f32 %v7011, %v7021
    %v7024 = vadd.f32 %v7012, %v7021
    %v7025 = vadd.f32 %v7013, %v7021
    %v7026 = vadd.f32 %v7014, %v7021
    %v7027 = vadd.f32 %v7015, %v7021
    %v7028 = vadd.f32 %v7016, %v7021
    %v7029 = vadd.f32 %v7017, %v7021
    %v7030 = vpack.c.bf16 %v7022, %v7022
    %v7031 = vpack.c.bf16 %v7023, %v7023
    %v7032 = vpack.c.bf16 %v7024, %v7024
    %v7033 = vpack.c.bf16 %v7025, %v7025
    %v7034 = vpack.c.bf16 %v7026, %v7026
    %v7035 = vpack.c.bf16 %v7027, %v7027
    %v7036 = vpack.c.bf16 %v7028, %v7028
    %v7037 = vpack.c.bf16 %v7029, %v7029
    %v7038 = vlaneseq
    %v7039 = vshrl.u32 %v7038, 7
    %v7040 = vsub.s32 0, %v7039
    %v7041 = vrot.slane %v703, %v7040
    %v7050 = vunpack.c.l.b16 %v7030
    %v7051 = vunpack.c.l.b16 %v7031
    %v7052 = vunpack.c.l.b16 %v7032
    %v7053 = vunpack.c.l.b16 %v7033
    %v7054 = vunpack.c.l.b16 %v7034
    %v7055 = vunpack.c.l.b16 %v7035
    %v7056 = vunpack.c.l.b16 %v7036
    %v7057 = vunpack.c.l.b16 %v7037
    %v7058 = vrot.slane %v7051, 7
    %v7059 = vsel %vm3252, %v7058, %v7050
    %v7060 = vrot.slane %v7052, 6
    %v7061 = vsel %vm3254, %v7060, %v7059
    %v7062 = vrot.slane %v7053, 5
    %v7063 = vsel %vm3256, %v7062, %v7061
    %v7064 = vrot.slane %v7054, 4
    %v7065 = vsel %vm3258, %v7064, %v7063
    %v7066 = vrot.slane %v7055, 3
    %v7067 = vsel %vm3260, %v7066, %v7065
    %v7068 = vrot.slane %v7056, 2
    %v7069 = vsel %vm3262, %v7068, %v7067
    %v7070 = vrot.slane %v7057, 1
    %v7071 = vsel %vm3264, %v7070, %v7069
    %v7072 = vpack.c.b16 %v7071, %v7071
    %v7090 = vunpack.c.l.b16 %v389
    %v7091 = vunpack.c.l.b16 %v390
    %v7092 = vunpack.c.l.b16 %v391
    %v7093 = vunpack.c.l.b16 %v392
    %v7094 = vunpack.c.l.b16 %v393
    %v7095 = vunpack.c.l.b16 %v394
    %v7096 = vunpack.c.l.b16 %v395
    %v7097 = vunpack.c.l.b16 %v396
    %v7098 = vunpack.c.l.b16 %v397
    %v7099 = vunpack.c.l.b16 %v398
    %v7100 = vunpack.c.l.b16 %v399
    %v7101 = vunpack.c.l.b16 %v400
    %v7102 = vunpack.c.l.b16 %v401
    %v7103 = vunpack.c.l.b16 %v402
    %v7104 = vunpack.c.l.b16 %v403
    %v7105 = vunpack.c.l.b16 %v404
    %v7106 = vpack.c.b16 %v7091, %v7090
    %v7107 = vpack.c.b16 %v7093, %v7092
    %v7108 = vpack.c.b16 %v7095, %v7094
    %v7109 = vpack.c.b16 %v7097, %v7096
    %v7110 = vpack.c.b16 %v7099, %v7098
    %v7111 = vpack.c.b16 %v7101, %v7100
    %v7112 = vpack.c.b16 %v7103, %v7102
    %v7113 = vpack.c.b16 %v7105, %v7104
    %7122 = vmatprep.subr.bf16.mxu0 0
    %7123 = vmatpush1.bf16.msra.mxu0 %v7113
    %7124 = vmatprep.subr.bf16.mxu0 0
    %7125 = vmatpush1.bf16.msra.mxu0 %v7112
    %7126 = vmatprep.subr.bf16.mxu0 0
    %7127 = vmatpush1.bf16.msra.mxu0 %v7111
    %7128 = vmatprep.subr.bf16.mxu0 0
    %7129 = vmatpush1.bf16.msra.mxu0 %v7110
    %7130 = vmatprep.subr.bf16.mxu0 0
    %7131 = vmatpush1.bf16.msra.mxu0 %v7109
    %7132 = vmatprep.subr.bf16.mxu0 0
    %7133 = vmatpush1.bf16.msra.mxu0 %v7108
    %7134 = vmatprep.subr.bf16.mxu0 0
    %7135 = vmatpush1.bf16.msra.mxu0 %v7107
    %7136 = vmatprep.subr.bf16.mxu0 0
    %7137 = vmatpush1.bf16.msra.mxu0 %v7106
    %7138 = vmatprep.subr.bf16.mxu0 0
    %7139 = vmatpush2.bf16.msra.mxu0 0
    %7140 = vmatprep.subr.bf16.mxu0 0
    %7141 = vmatpush2.bf16.msra.mxu0 0
    %7142 = vmatprep.subr.bf16.mxu0 0
    %7143 = vmatpush2.bf16.msra.mxu0 0
    %7144 = vmatprep.subr.bf16.mxu0 0
    %7145 = vmatpush2.bf16.msra.mxu0 0
    %7146 = vmatprep.subr.bf16.mxu0 0
    %7147 = vmatpush2.bf16.msra.mxu0 0
    %7148 = vmatprep.subr.bf16.mxu0 0
    %7149 = vmatpush2.bf16.msra.mxu0 0
    %7150 = vmatprep.subr.bf16.mxu0 0
    %7151 = vmatpush2.bf16.msra.mxu0 0
    %7152 = vmatprep.subr.bf16.mxu0 0
    %7153 = vmatpush2.bf16.msra.mxu0 0
    %7154 = vmatprep.mubr.bf16.mxu0 0
    %7155 = vmatmul.mubr.bf16.gmra.mxu0 %v7072
    %v7156 = vpop.f32.mrf.mxu0
    %v7157 = vadd.f32 %v7041, %v7156
    %v7158 = vpop.f32.mrf.mxu0
    %v7159 = vpop.f32.mrf.mxu0
    %v7160 = vpop.f32.mrf.mxu0
    %7161 = vdwg.mxu0
    %v7163 = vrot.slane %v7157, 1
    %v7164 = vrot.slane %v7157, 2
    %v7165 = vrot.slane %v7157, 3
    %v7166 = vrot.slane %v7157, 4
    %v7167 = vrot.slane %v7157, 5
    %v7168 = vrot.slane %v7157, 6
    %v7169 = vrot.slane %v7157, 7
    %v7178 = vadd.f32 %v7022, %v7157
    %v7179 = vadd.f32 %v7023, %v7163
    %v7180 = vadd.f32 %v7024, %v7164
    %v7181 = vadd.f32 %v7025, %v7165
    %v7182 = vadd.f32 %v7026, %v7166
    %v7183 = vadd.f32 %v7027, %v7167
    %v7184 = vadd.f32 %v7028, %v7168
    %v7185 = vadd.f32 %v7029, %v7169
    %v7194 = vrot.slane %v7179, 7
    %v7195 = vsel %vm3252, %v7194, %v7178
    %v7196 = vrot.slane %v7180, 6
    %v7197 = vsel %vm3254, %v7196, %v7195
    %v7198 = vrot.slane %v7181, 5
    %v7199 = vsel %vm3256, %v7198, %v7197
    %v7200 = vrot.slane %v7182, 4
    %v7201 = vsel %vm3258, %v7200, %v7199
    %v7202 = vrot.slane %v7183, 3
    %v7203 = vsel %vm3260, %v7202, %v7201
    %v7204 = vrot.slane %v7184, 2
    %v7205 = vsel %vm3262, %v7204, %v7203
    %v7206 = vrot.slane %v7185, 1
    %v7207 = vsel %vm3264, %v7206, %v7205
    %7209 = vadd.xlane.f32.xlu0 %v7207
    %v7210 = vpop.xlane.xlu0 %7209
    %v7211 = vmul.f32 %v7210, %v3405
    %v7213 = vrot.slane %v7211, 1
    %v7214 = vrot.slane %v7211, 2
    %v7215 = vrot.slane %v7211, 3
    %v7216 = vrot.slane %v7211, 4
    %v7217 = vrot.slane %v7211, 5
    %v7218 = vrot.slane %v7211, 6
    %v7219 = vrot.slane %v7211, 7
    %v7228 = vsub.f32 %v7178, %v7211
    %v7229 = vsub.f32 %v7179, %v7213
    %v7230 = vsub.f32 %v7180, %v7214
    %v7231 = vsub.f32 %v7181, %v7215
    %v7232 = vsub.f32 %v7182, %v7216
    %v7233 = vsub.f32 %v7183, %v7217
    %v7234 = vsub.f32 %v7184, %v7218
    %v7235 = vsub.f32 %v7185, %v7219
    %v7236 = vmul.f32 %v7228, %v7228
    %v7237 = vmul.f32 %v7229, %v7229
    %v7238 = vmul.f32 %v7230, %v7230
    %v7239 = vmul.f32 %v7231, %v7231
    %v7240 = vmul.f32 %v7232, %v7232
    %v7241 = vmul.f32 %v7233, %v7233
    %v7242 = vmul.f32 %v7234, %v7234
    %v7243 = vmul.f32 %v7235, %v7235
    %v7252 = vrot.slane %v7237, 7
    %v7253 = vsel %vm3252, %v7252, %v7236
    %v7254 = vrot.slane %v7238, 6
    %v7255 = vsel %vm3254, %v7254, %v7253
    %v7256 = vrot.slane %v7239, 5
    %v7257 = vsel %vm3256, %v7256, %v7255
    %v7258 = vrot.slane %v7240, 4
    %v7259 = vsel %vm3258, %v7258, %v7257
    %v7260 = vrot.slane %v7241, 3
    %v7261 = vsel %vm3260, %v7260, %v7259
    %v7262 = vrot.slane %v7242, 2
    %v7263 = vsel %vm3262, %v7262, %v7261
    %v7264 = vrot.slane %v7243, 1
    %v7265 = vsel %vm3264, %v7264, %v7263
    %7267 = vadd.xlane.f32.xlu0 %v7265
    %v7268 = vpop.xlane.xlu0 %7267
    %v7269 = vmul.f32 %v7268, %v3405
    %v7270 = vadd.f32 %v7269, 1e-05
    %v7271 = vrsqrt.pop %v7270
    %v7273 = vrot.slane %v7271, 1
    %v7274 = vrot.slane %v7271, 2
    %v7275 = vrot.slane %v7271, 3
    %v7276 = vrot.slane %v7271, 4
    %v7277 = vrot.slane %v7271, 5
    %v7278 = vrot.slane %v7271, 6
    %v7279 = vrot.slane %v7271, 7
    %v7288 = vmul.f32 %v7228, %v7271
    %v7289 = vmul.f32 %v7229, %v7273
    %v7290 = vmul.f32 %v7230, %v7274
    %v7291 = vmul.f32 %v7231, %v7275
    %v7292 = vmul.f32 %v7232, %v7276
    %v7293 = vmul.f32 %v7233, %v7277
    %v7294 = vmul.f32 %v7234, %v7278
    %v7295 = vmul.f32 %v7235, %v7279
    %v7296 = vlaneseq
    %v7297 = vshrl.u32 %v7296, 7
    %v7298 = vsub.s32 2, %v7297
    %v7299 = vrot.slane %v703, %v7298
    %v7300 = vmul.f32 %v7288, %v7299
    %v7301 = vmul.f32 %v7289, %v7299
    %v7302 = vmul.f32 %v7290, %v7299
    %v7303 = vmul.f32 %v7291, %v7299
    %v7304 = vmul.f32 %v7292, %v7299
    %v7305 = vmul.f32 %v7293, %v7299
    %v7306 = vmul.f32 %v7294, %v7299
    %v7307 = vmul.f32 %v7295, %v7299
    %v7308 = vlaneseq
    %v7309 = vshrl.u32 %v7308, 7
    %v7310 = vsub.s32 3, %v7309
    %v7311 = vrot.slane %v703, %v7310
    %v7312 = vadd.f32 %v7300, %v7311
    %v7313 = vadd.f32 %v7301, %v7311
    %v7314 = vadd.f32 %v7302, %v7311
    %v7315 = vadd.f32 %v7303, %v7311
    %v7316 = vadd.f32 %v7304, %v7311
    %v7317 = vadd.f32 %v7305, %v7311
    %v7318 = vadd.f32 %v7306, %v7311
    %v7319 = vadd.f32 %v7307, %v7311
    %v7320 = vpack.c.bf16 %v7312, %v7312
    %v7321 = vpack.c.bf16 %v7313, %v7313
    %v7322 = vpack.c.bf16 %v7314, %v7314
    %v7323 = vpack.c.bf16 %v7315, %v7315
    %v7324 = vpack.c.bf16 %v7316, %v7316
    %v7325 = vpack.c.bf16 %v7317, %v7317
    %v7326 = vpack.c.bf16 %v7318, %v7318
    %v7327 = vpack.c.bf16 %v7319, %v7319
    %v7328 = vlaneseq
    %v7329 = vshrl.u32 %v7328, 7
    %v7330 = vsub.s32 6, %v7329
    %v7331 = vrot.slane %v703, %v7330
    %v7332 = vlaneseq
    %v7333 = vshrl.u32 %v7332, 7
    %v7334 = vsub.s32 6, %v7333
    %v7335 = vrot.slane %v704, %v7334
    %v7344 = vunpack.c.l.b16 %v7320
    %v7345 = vunpack.c.l.b16 %v7321
    %v7346 = vunpack.c.l.b16 %v7322
    %v7347 = vunpack.c.l.b16 %v7323
    %v7348 = vunpack.c.l.b16 %v7324
    %v7349 = vunpack.c.l.b16 %v7325
    %v7350 = vunpack.c.l.b16 %v7326
    %v7351 = vunpack.c.l.b16 %v7327
    %v7352 = vrot.slane %v7345, 7
    %v7353 = vsel %vm3252, %v7352, %v7344
    %v7354 = vrot.slane %v7346, 6
    %v7355 = vsel %vm3254, %v7354, %v7353
    %v7356 = vrot.slane %v7347, 5
    %v7357 = vsel %vm3256, %v7356, %v7355
    %v7358 = vrot.slane %v7348, 4
    %v7359 = vsel %vm3258, %v7358, %v7357
    %v7360 = vrot.slane %v7349, 3
    %v7361 = vsel %vm3260, %v7360, %v7359
    %v7362 = vrot.slane %v7350, 2
    %v7363 = vsel %vm3262, %v7362, %v7361
    %v7364 = vrot.slane %v7351, 1
    %v7365 = vsel %vm3264, %v7364, %v7363
    %v7366 = vpack.c.b16 %v7365, %v7365
    %v7384 = vunpack.c.l.b16 %v485
    %v7385 = vunpack.c.h.b16 %v485
    %v7386 = vunpack.c.l.b16 %v486
    %v7387 = vunpack.c.h.b16 %v486
    %v7388 = vunpack.c.l.b16 %v487
    %v7389 = vunpack.c.h.b16 %v487
    %v7390 = vunpack.c.l.b16 %v488
    %v7391 = vunpack.c.h.b16 %v488
    %v7392 = vunpack.c.l.b16 %v489
    %v7393 = vunpack.c.h.b16 %v489
    %v7394 = vunpack.c.l.b16 %v490
    %v7395 = vunpack.c.h.b16 %v490
    %v7396 = vunpack.c.l.b16 %v491
    %v7397 = vunpack.c.h.b16 %v491
    %v7398 = vunpack.c.l.b16 %v492
    %v7399 = vunpack.c.h.b16 %v492
    %v7400 = vunpack.c.l.b16 %v493
    %v7401 = vunpack.c.h.b16 %v493
    %v7402 = vunpack.c.l.b16 %v494
    %v7403 = vunpack.c.h.b16 %v494
    %v7404 = vunpack.c.l.b16 %v495
    %v7405 = vunpack.c.h.b16 %v495
    %v7406 = vunpack.c.l.b16 %v496
    %v7407 = vunpack.c.h.b16 %v496
    %v7408 = vunpack.c.l.b16 %v497
    %v7409 = vunpack.c.h.b16 %v497
    %v7410 = vunpack.c.l.b16 %v498
    %v7411 = vunpack.c.h.b16 %v498
    %v7412 = vunpack.c.l.b16 %v499
    %v7413 = vunpack.c.h.b16 %v499
    %v7414 = vunpack.c.l.b16 %v500
    %v7415 = vunpack.c.h.b16 %v500
    %v7416 = vpack.c.b16 %v7386, %v7384
    %v7417 = vpack.c.b16 %v7387, %v7385
    %v7418 = vpack.c.b16 %v7390, %v7388
    %v7419 = vpack.c.b16 %v7391, %v7389
    %v7420 = vpack.c.b16 %v7394, %v7392
    %v7421 = vpack.c.b16 %v7395, %v7393
    %v7422 = vpack.c.b16 %v7398, %v7396
    %v7423 = vpack.c.b16 %v7399, %v7397
    %v7424 = vpack.c.b16 %v7402, %v7400
    %v7425 = vpack.c.b16 %v7403, %v7401
    %v7426 = vpack.c.b16 %v7406, %v7404
    %v7427 = vpack.c.b16 %v7407, %v7405
    %v7428 = vpack.c.b16 %v7410, %v7408
    %v7429 = vpack.c.b16 %v7411, %v7409
    %v7430 = vpack.c.b16 %v7414, %v7412
    %v7431 = vpack.c.b16 %v7415, %v7413
    %7448 = vmatprep.subr.bf16.mxu0 %v7431
    %7449 = vmatpush1.bf16.msra.mxu0 %v7430
    %7450 = vmatprep.subr.bf16.mxu0 %v7429
    %7451 = vmatpush1.bf16.msra.mxu0 %v7428
    %7452 = vmatprep.subr.bf16.mxu0 %v7427
    %7453 = vmatpush1.bf16.msra.mxu0 %v7426
    %7454 = vmatprep.subr.bf16.mxu0 %v7425
    %7455 = vmatpush1.bf16.msra.mxu0 %v7424
    %7456 = vmatprep.subr.bf16.mxu0 %v7423
    %7457 = vmatpush1.bf16.msra.mxu0 %v7422
    %7458 = vmatprep.subr.bf16.mxu0 %v7421
    %7459 = vmatpush1.bf16.msra.mxu0 %v7420
    %7460 = vmatprep.subr.bf16.mxu0 %v7419
    %7461 = vmatpush1.bf16.msra.mxu0 %v7418
    %7462 = vmatprep.subr.bf16.mxu0 %v7417
    %7463 = vmatpush1.bf16.msra.mxu0 %v7416
    %7464 = vmatprep.subr.bf16.mxu0 0
    %7465 = vmatpush2.bf16.msra.mxu0 0
    %7466 = vmatprep.subr.bf16.mxu0 0
    %7467 = vmatpush2.bf16.msra.mxu0 0
    %7468 = vmatprep.subr.bf16.mxu0 0
    %7469 = vmatpush2.bf16.msra.mxu0 0
    %7470 = vmatprep.subr.bf16.mxu0 0
    %7471 = vmatpush2.bf16.msra.mxu0 0
    %7472 = vmatprep.subr.bf16.mxu0 0
    %7473 = vmatpush2.bf16.msra.mxu0 0
    %7474 = vmatprep.subr.bf16.mxu0 0
    %7475 = vmatpush2.bf16.msra.mxu0 0
    %7476 = vmatprep.subr.bf16.mxu0 0
    %7477 = vmatpush2.bf16.msra.mxu0 0
    %7478 = vmatprep.subr.bf16.mxu0 0
    %7479 = vmatpush2.bf16.msra.mxu0 0
    %7480 = vmatprep.mubr.bf16.mxu0 0
    %7481 = vmatmul.mubr.bf16.gmra.mxu0 %v7366
    %v7482 = vpop.f32.mrf.mxu0
    %v7483 = vadd.f32 %v7331, %v7482
    %v7484 = vpop.f32.mrf.mxu0
    %v7485 = vadd.f32 %v7335, %v7484
    %v7486 = vpop.f32.mrf.mxu0
    %v7487 = vpop.f32.mrf.mxu0
    %7488 = vdwg.mxu0
    %v7489 = vmax.f32 %v7483, 0.0
    %v7490 = vmax.f32 %v7485, 0.0
    %v7491 = vpack.c.bf16 %v7489, %v7489
    %v7492 = vpack.c.bf16 %v7490, %v7490
    %v7493 = vlaneseq
    %v7494 = vshrl.u32 %v7493, 7
    %v7495 = vsub.s32 1, %v7494
    %v7496 = vrot.slane %v703, %v7495
    %v7529 = vunpack.c.l.b16 %v661
    %v7530 = vunpack.c.l.b16 %v662
    %v7531 = vunpack.c.l.b16 %v663
    %v7532 = vunpack.c.l.b16 %v664
    %v7533 = vunpack.c.l.b16 %v665
    %v7534 = vunpack.c.l.b16 %v666
    %v7535 = vunpack.c.l.b16 %v667
    %v7536 = vunpack.c.l.b16 %v668
    %v7537 = vunpack.c.l.b16 %v669
    %v7538 = vunpack.c.l.b16 %v670
    %v7539 = vunpack.c.l.b16 %v671
    %v7540 = vunpack.c.l.b16 %v672
    %v7541 = vunpack.c.l.b16 %v673
    %v7542 = vunpack.c.l.b16 %v674
    %v7543 = vunpack.c.l.b16 %v675
    %v7544 = vunpack.c.l.b16 %v676
    %v7545 = vunpack.c.l.b16 %v677
    %v7546 = vunpack.c.l.b16 %v678
    %v7547 = vunpack.c.l.b16 %v679
    %v7548 = vunpack.c.l.b16 %v680
    %v7549 = vunpack.c.l.b16 %v681
    %v7550 = vunpack.c.l.b16 %v682
    %v7551 = vunpack.c.l.b16 %v683
    %v7552 = vunpack.c.l.b16 %v684
    %v7553 = vunpack.c.l.b16 %v685
    %v7554 = vunpack.c.l.b16 %v686
    %v7555 = vunpack.c.l.b16 %v687
    %v7556 = vunpack.c.l.b16 %v688
    %v7557 = vunpack.c.l.b16 %v689
    %v7558 = vunpack.c.l.b16 %v690
    %v7559 = vunpack.c.l.b16 %v691
    %v7560 = vunpack.c.l.b16 %v692
    %v7561 = vpack.c.b16 %v7530, %v7529
    %v7562 = vpack.c.b16 %v7532, %v7531
    %v7563 = vpack.c.b16 %v7534, %v7533
    %v7564 = vpack.c.b16 %v7536, %v7535
    %v7565 = vpack.c.b16 %v7538, %v7537
    %v7566 = vpack.c.b16 %v7540, %v7539
    %v7567 = vpack.c.b16 %v7542, %v7541
    %v7568 = vpack.c.b16 %v7544, %v7543
    %v7569 = vpack.c.b16 %v7546, %v7545
    %v7570 = vpack.c.b16 %v7548, %v7547
    %v7571 = vpack.c.b16 %v7550, %v7549
    %v7572 = vpack.c.b16 %v7552, %v7551
    %v7573 = vpack.c.b16 %v7554, %v7553
    %v7574 = vpack.c.b16 %v7556, %v7555
    %v7575 = vpack.c.b16 %v7558, %v7557
    %v7576 = vpack.c.b16 %v7560, %v7559
    %7593 = vmatprep.subr.bf16.mxu0 0
    %7594 = vmatpush1.bf16.msra.mxu0 %v7568
    %7595 = vmatprep.subr.bf16.mxu0 0
    %7596 = vmatpush1.bf16.msra.mxu0 %v7567
    %7597 = vmatprep.subr.bf16.mxu0 0
    %7598 = vmatpush1.bf16.msra.mxu0 %v7566
    %7599 = vmatprep.subr.bf16.mxu0 0
    %7600 = vmatpush1.bf16.msra.mxu0 %v7565
    %7601 = vmatprep.subr.bf16.mxu0 0
    %7602 = vmatpush1.bf16.msra.mxu0 %v7564
    %7603 = vmatprep.subr.bf16.mxu0 0
    %7604 = vmatpush1.bf16.msra.mxu0 %v7563
    %7605 = vmatprep.subr.bf16.mxu0 0
    %7606 = vmatpush1.bf16.msra.mxu0 %v7562
    %7607 = vmatprep.subr.bf16.mxu0 0
    %7608 = vmatpush1.bf16.msra.mxu0 %v7561
    %7609 = vmatprep.subr.bf16.mxu0 0
    %7610 = vmatpush2.bf16.msra.mxu0 %v7576
    %7611 = vmatprep.subr.bf16.mxu0 0
    %7612 = vmatpush2.bf16.msra.mxu0 %v7575
    %7613 = vmatprep.subr.bf16.mxu0 0
    %7614 = vmatpush2.bf16.msra.mxu0 %v7574
    %7615 = vmatprep.subr.bf16.mxu0 0
    %7616 = vmatpush2.bf16.msra.mxu0 %v7573
    %7617 = vmatprep.subr.bf16.mxu0 0
    %7618 = vmatpush2.bf16.msra.mxu0 %v7572
    %7619 = vmatprep.subr.bf16.mxu0 0
    %7620 = vmatpush2.bf16.msra.mxu0 %v7571
    %7621 = vmatprep.subr.bf16.mxu0 0
    %7622 = vmatpush2.bf16.msra.mxu0 %v7570
    %7623 = vmatprep.subr.bf16.mxu0 0
    %7624 = vmatpush2.bf16.msra.mxu0 %v7569
    %7625 = vmatprep.mubr.bf16.mxu0 %v7492
    %7626 = vmatmul.mubr.bf16.gmra.mxu0 %v7491
    %v7627 = vpop.f32.mrf.mxu0
    %v7628 = vadd.f32 %v7496, %v7627
    %v7629 = vpop.f32.mrf.mxu0
    %v7630 = vpop.f32.mrf.mxu0
    %v7631 = vpop.f32.mrf.mxu0
    %7632 = vdwg.mxu0
    %v7634 = vrot.slane %v7628, 1
    %v7635 = vrot.slane %v7628, 2
    %v7636 = vrot.slane %v7628, 3
    %v7637 = vrot.slane %v7628, 4
    %v7638 = vrot.slane %v7628, 5
    %v7639 = vrot.slane %v7628, 6
    %v7640 = vrot.slane %v7628, 7
    %v7649 = vadd.f32 %v7312, %v7628
    %v7650 = vadd.f32 %v7313, %v7634
    %v7651 = vadd.f32 %v7314, %v7635
    %v7652 = vadd.f32 %v7315, %v7636
    %v7653 = vadd.f32 %v7316, %v7637
    %v7654 = vadd.f32 %v7317, %v7638
    %v7655 = vadd.f32 %v7318, %v7639
    %v7656 = vadd.f32 %v7319, %v7640
    %v7665 = vrot.slane %v7650, 7
    %v7666 = vsel %vm3252, %v7665, %v7649
    %v7667 = vrot.slane %v7651, 6
    %v7668 = vsel %vm3254, %v7667, %v7666
    %v7669 = vrot.slane %v7652, 5
    %v7670 = vsel %vm3256, %v7669, %v7668
    %v7671 = vrot.slane %v7653, 4
    %v7672 = vsel %vm3258, %v7671, %v7670
    %v7673 = vrot.slane %v7654, 3
    %v7674 = vsel %vm3260, %v7673, %v7672
    %v7675 = vrot.slane %v7655, 2
    %v7676 = vsel %vm3262, %v7675, %v7674
    %v7677 = vrot.slane %v7656, 1
    %v7678 = vsel %vm3264, %v7677, %v7676
    %7680 = vadd.xlane.f32.xlu0 %v7678
    %v7681 = vpop.xlane.xlu0 %7680
    %v7682 = vmul.f32 %v7681, %v3405
    %v7684 = vrot.slane %v7682, 1
    %v7685 = vrot.slane %v7682, 2
    %v7686 = vrot.slane %v7682, 3
    %v7687 = vrot.slane %v7682, 4
    %v7688 = vrot.slane %v7682, 5
    %v7689 = vrot.slane %v7682, 6
    %v7690 = vrot.slane %v7682, 7
    %v7699 = vsub.f32 %v7649, %v7682
    %v7700 = vsub.f32 %v7650, %v7684
    %v7701 = vsub.f32 %v7651, %v7685
    %v7702 = vsub.f32 %v7652, %v7686
    %v7703 = vsub.f32 %v7653, %v7687
    %v7704 = vsub.f32 %v7654, %v7688
    %v7705 = vsub.f32 %v7655, %v7689
    %v7706 = vsub.f32 %v7656, %v7690
    %v7707 = vmul.f32 %v7699, %v7699
    %v7708 = vmul.f32 %v7700, %v7700
    %v7709 = vmul.f32 %v7701, %v7701
    %v7710 = vmul.f32 %v7702, %v7702
    %v7711 = vmul.f32 %v7703, %v7703
    %v7712 = vmul.f32 %v7704, %v7704
    %v7713 = vmul.f32 %v7705, %v7705
    %v7714 = vmul.f32 %v7706, %v7706
    %v7723 = vrot.slane %v7708, 7
    %v7724 = vsel %vm3252, %v7723, %v7707
    %v7725 = vrot.slane %v7709, 6
    %v7726 = vsel %vm3254, %v7725, %v7724
    %v7727 = vrot.slane %v7710, 5
    %v7728 = vsel %vm3256, %v7727, %v7726
    %v7729 = vrot.slane %v7711, 4
    %v7730 = vsel %vm3258, %v7729, %v7728
    %v7731 = vrot.slane %v7712, 3
    %v7732 = vsel %vm3260, %v7731, %v7730
    %v7733 = vrot.slane %v7713, 2
    %v7734 = vsel %vm3262, %v7733, %v7732
    %v7735 = vrot.slane %v7714, 1
    %v7736 = vsel %vm3264, %v7735, %v7734
    %7738 = vadd.xlane.f32.xlu0 %v7736
    %v7739 = vpop.xlane.xlu0 %7738
    %v7740 = vmul.f32 %v7739, %v3405
    %v7741 = vadd.f32 %v7740, 1e-05
    %v7742 = vrsqrt.pop %v7741
    %v7744 = vrot.slane %v7742, 1
    %v7745 = vrot.slane %v7742, 2
    %v7746 = vrot.slane %v7742, 3
    %v7747 = vrot.slane %v7742, 4
    %v7748 = vrot.slane %v7742, 5
    %v7749 = vrot.slane %v7742, 6
    %v7750 = vrot.slane %v7742, 7
    %v7759 = vmul.f32 %v7699, %v7742
    %v7760 = vmul.f32 %v7700, %v7744
    %v7761 = vmul.f32 %v7701, %v7745
    %v7762 = vmul.f32 %v7702, %v7746
    %v7763 = vmul.f32 %v7703, %v7747
    %v7764 = vmul.f32 %v7704, %v7748
    %v7765 = vmul.f32 %v7705, %v7749
    %v7766 = vmul.f32 %v7706, %v7750
    %v7767 = vlaneseq
    %v7768 = vshrl.u32 %v7767, 7
    %v7769 = vsub.s32 4, %v7768
    %v7770 = vrot.slane %v703, %v7769
    %v7771 = vmul.f32 %v7759, %v7770
    %v7772 = vmul.f32 %v7760, %v7770
    %v7773 = vmul.f32 %v7761, %v7770
    %v7774 = vmul.f32 %v7762, %v7770
    %v7775 = vmul.f32 %v7763, %v7770
    %v7776 = vmul.f32 %v7764, %v7770
    %v7777 = vmul.f32 %v7765, %v7770
    %v7778 = vmul.f32 %v7766, %v7770
    %v7779 = vlaneseq
    %v7780 = vshrl.u32 %v7779, 7
    %v7781 = vsub.s32 5, %v7780
    %v7782 = vrot.slane %v703, %v7781
    %v7783 = vadd.f32 %v7771, %v7782
    %v7784 = vadd.f32 %v7772, %v7782
    %v7785 = vadd.f32 %v7773, %v7782
    %v7786 = vadd.f32 %v7774, %v7782
    %v7787 = vadd.f32 %v7775, %v7782
    %v7788 = vadd.f32 %v7776, %v7782
    %v7789 = vadd.f32 %v7777, %v7782
    %v7790 = vadd.f32 %v7778, %v7782
    %v7791 = vpack.c.bf16 %v7783, %v7783
    %v7792 = vpack.c.bf16 %v7784, %v7784
    %v7793 = vpack.c.bf16 %v7785, %v7785
    %v7794 = vpack.c.bf16 %v7786, %v7786
    %v7795 = vpack.c.bf16 %v7787, %v7787
    %v7796 = vpack.c.bf16 %v7788, %v7788
    %v7797 = vpack.c.bf16 %v7789, %v7789
    %v7798 = vpack.c.bf16 %v7790, %v7790
    %v7807 = vunpack.c.l.b16 %v7791
    %v7808 = vunpack.c.l.b16 %v7792
    %v7809 = vunpack.c.l.b16 %v7793
    %v7810 = vunpack.c.l.b16 %v7794
    %v7811 = vunpack.c.l.b16 %v7795
    %v7812 = vunpack.c.l.b16 %v7796
    %v7813 = vunpack.c.l.b16 %v7797
    %v7814 = vunpack.c.l.b16 %v7798
    %v7815 = vrot.slane %v7808, 7
    %v7816 = vsel %vm3252, %v7815, %v7807
    %v7817 = vrot.slane %v7809, 6
    %v7818 = vsel %vm3254, %v7817, %v7816
    %v7819 = vrot.slane %v7810, 5
    %v7820 = vsel %vm3256, %v7819, %v7818
    %v7821 = vrot.slane %v7811, 4
    %v7822 = vsel %vm3258, %v7821, %v7820
    %v7823 = vrot.slane %v7812, 3
    %v7824 = vsel %vm3260, %v7823, %v7822
    %v7825 = vrot.slane %v7813, 2
    %v7826 = vsel %vm3262, %v7825, %v7824
    %v7827 = vrot.slane %v7814, 1
    %v7828 = vsel %vm3264, %v7827, %v7826
    %v7829 = vpack.c.b16 %v7828, %v7828
    %v7863 = vunpack.c.l.b16 %v705
    %v7864 = vunpack.c.h.b16 %v705
    %v7865 = vunpack.c.l.b16 %v706
    %v7866 = vunpack.c.l.b16 %v707
    %v7867 = vunpack.c.h.b16 %v707
    %v7868 = vunpack.c.l.b16 %v708
    %v7869 = vunpack.c.l.b16 %v709
    %v7870 = vunpack.c.h.b16 %v709
    %v7871 = vunpack.c.l.b16 %v710
    %v7872 = vunpack.c.l.b16 %v711
    %v7873 = vunpack.c.h.b16 %v711
    %v7874 = vunpack.c.l.b16 %v712
    %v7875 = vunpack.c.l.b16 %v713
    %v7876 = vunpack.c.h.b16 %v713
    %v7877 = vunpack.c.l.b16 %v714
    %v7878 = vunpack.c.l.b16 %v715
    %v7879 = vunpack.c.h.b16 %v715
    %v7880 = vunpack.c.l.b16 %v716
    %v7881 = vunpack.c.l.b16 %v717
    %v7882 = vunpack.c.h.b16 %v717
    %v7883 = vunpack.c.l.b16 %v718
    %v7884 = vunpack.c.l.b16 %v719
    %v7885 = vunpack.c.h.b16 %v719
    %v7886 = vunpack.c.l.b16 %v720
    %v7887 = vunpack.c.l.b16 %v721
    %v7888 = vunpack.c.h.b16 %v721
    %v7889 = vunpack.c.l.b16 %v722
    %v7890 = vunpack.c.l.b16 %v723
    %v7891 = vunpack.c.h.b16 %v723
    %v7892 = vunpack.c.l.b16 %v724
    %v7893 = vunpack.c.l.b16 %v725
    %v7894 = vunpack.c.h.b16 %v725
    %v7895 = vunpack.c.l.b16 %v726
    %v7896 = vunpack.c.l.b16 %v727
    %v7897 = vunpack.c.h.b16 %v727
    %v7898 = vunpack.c.l.b16 %v728
    %v7899 = vunpack.c.l.b16 %v729
    %v7900 = vunpack.c.h.b16 %v729
    %v7901 = vunpack.c.l.b16 %v730
    %v7902 = vunpack.c.l.b16 %v731
    %v7903 = vunpack.c.h.b16 %v731
    %v7904 = vunpack.c.l.b16 %v732
    %v7905 = vunpack.c.l.b16 %v733
    %v7906 = vunpack.c.h.b16 %v733
    %v7907 = vunpack.c.l.b16 %v734
    %v7908 = vunpack.c.l.b16 %v735
    %v7909 = vunpack.c.h.b16 %v735
    %v7910 = vunpack.c.l.b16 %v736
    %v7911 = vpack.c.b16 %v7866, %v7863
    %v7912 = vpack.c.b16 %v7867, %v7864
    %v7913 = vpack.c.b16 %v7868, %v7865
    %v7914 = vpack.c.b16 %v7872, %v7869
    %v7915 = vpack.c.b16 %v7873, %v7870
    %v7916 = vpack.c.b16 %v7874, %v7871
    %v7917 = vpack.c.b16 %v7878, %v7875
    %v7918 = vpack.c.b16 %v7879, %v7876
    %v7919 = vpack.c.b16 %v7880, %v7877
    %v7920 = vpack.c.b16 %v7884, %v7881
    %v7921 = vpack.c.b16 %v7885, %v7882
    %v7922 = vpack.c.b16 %v7886, %v7883
    %v7923 = vpack.c.b16 %v7890, %v7887
    %v7924 = vpack.c.b16 %v7891, %v7888
    %v7925 = vpack.c.b16 %v7892, %v7889
    %v7926 = vpack.c.b16 %v7896, %v7893
    %v7927 = vpack.c.b16 %v7897, %v7894
    %v7928 = vpack.c.b16 %v7898, %v7895
    %v7929 = vpack.c.b16 %v7902, %v7899
    %v7930 = vpack.c.b16 %v7903, %v7900
    %v7931 = vpack.c.b16 %v7904, %v7901
    %v7932 = vpack.c.b16 %v7908, %v7905
    %v7933 = vpack.c.b16 %v7909, %v7906
    %v7934 = vpack.c.b16 %v7910, %v7907
    %7959 = vmatprep.subr.bf16.mxu0 %v7933
    %7960 = vmatpush1.bf16.msra.mxu0 %v7932
    %7961 = vmatprep.subr.bf16.mxu0 %v7930
    %7962 = vmatpush1.bf16.msra.mxu0 %v7929
    %7963 = vmatprep.subr.bf16.mxu0 %v7927
    %7964 = vmatpush1.bf16.msra.mxu0 %v7926
    %7965 = vmatprep.subr.bf16.mxu0 %v7924
    %7966 = vmatpush1.bf16.msra.mxu0 %v7923
    %7967 = vmatprep.subr.bf16.mxu0 %v7921
    %7968 = vmatpush1.bf16.msra.mxu0 %v7920
    %7969 = vmatprep.subr.bf16.mxu0 %v7918
    %7970 = vmatpush1.bf16.msra.mxu0 %v7917
    %7971 = vmatprep.subr.bf16.mxu0 %v7915
    %7972 = vmatpush1.bf16.msra.mxu0 %v7914
    %7973 = vmatprep.subr.bf16.mxu0 %v7912
    %7974 = vmatpush1.bf16.msra.mxu0 %v7911
    %7975 = vmatprep.subr.bf16.mxu0 0
    %7976 = vmatpush2.bf16.msra.mxu0 0
    %7977 = vmatprep.subr.bf16.mxu0 0
    %7978 = vmatpush2.bf16.msra.mxu0 0
    %7979 = vmatprep.subr.bf16.mxu0 0
    %7980 = vmatpush2.bf16.msra.mxu0 0
    %7981 = vmatprep.subr.bf16.mxu0 0
    %7982 = vmatpush2.bf16.msra.mxu0 0
    %7983 = vmatprep.subr.bf16.mxu0 0
    %7984 = vmatpush2.bf16.msra.mxu0 0
    %7985 = vmatprep.subr.bf16.mxu0 0
    %7986 = vmatpush2.bf16.msra.mxu0 0
    %7987 = vmatprep.subr.bf16.mxu0 0
    %7988 = vmatpush2.bf16.msra.mxu0 0
    %7989 = vmatprep.subr.bf16.mxu0 0
    %7990 = vmatpush2.bf16.msra.mxu0 0
    %7991 = vmatprep.mubr.bf16.mxu0 0
    %7992 = vmatmul.mubr.bf16.gmra.mxu0 %v7829
    %v7993 = vpop.f32.mrf.mxu0
    %v7994 = vadd.f32 0.0, %v7993
    %v7995 = vpop.f32.mrf.mxu0
    %v7996 = vadd.f32 0.0, %v7995
    %v7997 = vpop.f32.mrf.mxu0
    %v7998 = vpop.f32.mrf.mxu0
    %7999 = vdwg.mxu0
    %8000 = vmatprep.subr.bf16.mxu0 0
    %8001 = vmatpush1.bf16.msra.mxu0 %v7934
    %8002 = vmatprep.subr.bf16.mxu0 0
    %8003 = vmatpush1.bf16.msra.mxu0 %v7931
    %8004 = vmatprep.subr.bf16.mxu0 0
    %8005 = vmatpush1.bf16.msra.mxu0 %v7928
    %8006 = vmatprep.subr.bf16.mxu0 0
    %8007 = vmatpush1.bf16.msra.mxu0 %v7925
    %8008 = vmatprep.subr.bf16.mxu0 0
    %8009 = vmatpush1.bf16.msra.mxu0 %v7922
    %8010 = vmatprep.subr.bf16.mxu0 0
    %8011 = vmatpush1.bf16.msra.mxu0 %v7919
    %8012 = vmatprep.subr.bf16.mxu0 0
    %8013 = vmatpush1.bf16.msra.mxu0 %v7916
    %8014 = vmatprep.subr.bf16.mxu0 0
    %8015 = vmatpush1.bf16.msra.mxu0 %v7913
    %8016 = vmatprep.subr.bf16.mxu0 0
    %8017 = vmatpush2.bf16.msra.mxu0 0
    %8018 = vmatprep.subr.bf16.mxu0 0
    %8019 = vmatpush2.bf16.msra.mxu0 0
    %8020 = vmatprep.subr.bf16.mxu0 0
    %8021 = vmatpush2.bf16.msra.mxu0 0
    %8022 = vmatprep.subr.bf16.mxu0 0
    %8023 = vmatpush2.bf16.msra.mxu0 0
    %8024 = vmatprep.subr.bf16.mxu0 0
    %8025 = vmatpush2.bf16.msra.mxu0 0
    %8026 = vmatprep.subr.bf16.mxu0 0
    %8027 = vmatpush2.bf16.msra.mxu0 0
    %8028 = vmatprep.subr.bf16.mxu0 0
    %8029 = vmatpush2.bf16.msra.mxu0 0
    %8030 = vmatprep.subr.bf16.mxu0 0
    %8031 = vmatpush2.bf16.msra.mxu0 0
    %8032 = vmatprep.mubr.bf16.mxu0 0
    %8033 = vmatmul.mubr.bf16.gmra.mxu0 %v7829
    %v8034 = vpop.f32.mrf.mxu0
    %v8035 = vadd.f32 0.0, %v8034
    %v8036 = vpop.f32.mrf.mxu0
    %v8037 = vpop.f32.mrf.mxu0
    %v8038 = vpop.f32.mrf.mxu0
    %8039 = vdwg.mxu0
    %v8041 = vrot.slane %v785, 2
    %v8043 = vadd.f32 %v7994, %v8041
    %v8044 = vrot.slane %v785, 5
    %v8046 = vadd.f32 %v8043, %v8044
    %v8047 = vxor.u32 %v8046, 2147483648
    %v8048 = vmul.f32 %v8047, 1.442695
    %v8049 = vpow.pop %v8048
    %v8050 = vadd.f32 %v8049, 1.0
    %v8051 = vrcp.pop %v8050
    %v8052 = vmul.f32 1.0, %v8051
    %v8053 = vrot.slane %v785, 3
    %v8055 = vadd.f32 %v7996, %v8053
    %v8056 = vrot.slane %v785, 6
    %v8058 = vadd.f32 %v8055, %v8056
    %v8059 = vxor.u32 %v8058, 2147483648
    %v8060 = vmul.f32 %v8059, 1.442695
    %v8061 = vpow.pop %v8060
    %v8062 = vadd.f32 %v8061, 1.0
    %v8063 = vrcp.pop %v8062
    %v8064 = vmul.f32 1.0, %v8063
    %v8065 = vrot.slane %v785, 4
    %v8067 = vadd.f32 %v8035, %v8065
    %v8068 = vrot.slane %v785, 7
    %v8070 = vmul.f32 %v8052, %v8068
    %v8071 = vadd.f32 %v8067, %v8070
    %v8072 = vtanh.pop %v8071
    %v8073 = vsub.f32 1.0, %v8064
    %v8074 = vmul.f32 %v8073, %v8072
    %v8075 = vpack.c.bf16 %v8074, %v8074
    %v8108 = vunpack.c.l.b16 %v737
    %v8109 = vunpack.c.h.b16 %v737
    %v8110 = vunpack.c.l.b16 %v738
    %v8111 = vunpack.c.l.b16 %v739
    %v8112 = vunpack.c.h.b16 %v739
    %v8113 = vunpack.c.l.b16 %v740
    %v8114 = vunpack.c.l.b16 %v741
    %v8115 = vunpack.c.h.b16 %v741
    %v8116 = vunpack.c.l.b16 %v742
    %v8117 = vunpack.c.l.b16 %v743
    %v8118 = vunpack.c.h.b16 %v743
    %v8119 = vunpack.c.l.b16 %v744
    %v8120 = vunpack.c.l.b16 %v745
    %v8121 = vunpack.c.h.b16 %v745
    %v8122 = vunpack.c.l.b16 %v746
    %v8123 = vunpack.c.l.b16 %v747
    %v8124 = vunpack.c.h.b16 %v747
    %v8125 = vunpack.c.l.b16 %v748
    %v8126 = vunpack.c.l.b16 %v749
    %v8127 = vunpack.c.h.b16 %v749
    %v8128 = vunpack.c.l.b16 %v750
    %v8129 = vunpack.c.l.b16 %v751
    %v8130 = vunpack.c.h.b16 %v751
    %v8131 = vunpack.c.l.b16 %v752
    %v8132 = vunpack.c.l.b16 %v753
    %v8133 = vunpack.c.h.b16 %v753
    %v8134 = vunpack.c.l.b16 %v754
    %v8135 = vunpack.c.l.b16 %v755
    %v8136 = vunpack.c.h.b16 %v755
    %v8137 = vunpack.c.l.b16 %v756
    %v8138 = vunpack.c.l.b16 %v757
    %v8139 = vunpack.c.h.b16 %v757
    %v8140 = vunpack.c.l.b16 %v758
    %v8141 = vunpack.c.l.b16 %v759
    %v8142 = vunpack.c.h.b16 %v759
    %v8143 = vunpack.c.l.b16 %v760
    %v8144 = vunpack.c.l.b16 %v761
    %v8145 = vunpack.c.h.b16 %v761
    %v8146 = vunpack.c.l.b16 %v762
    %v8147 = vunpack.c.l.b16 %v763
    %v8148 = vunpack.c.h.b16 %v763
    %v8149 = vunpack.c.l.b16 %v764
    %v8150 = vunpack.c.l.b16 %v765
    %v8151 = vunpack.c.h.b16 %v765
    %v8152 = vunpack.c.l.b16 %v766
    %v8153 = vunpack.c.l.b16 %v767
    %v8154 = vunpack.c.h.b16 %v767
    %v8155 = vunpack.c.l.b16 %v768
    %v8156 = vpack.c.b16 %v8111, %v8108
    %v8157 = vpack.c.b16 %v8112, %v8109
    %v8158 = vpack.c.b16 %v8113, %v8110
    %v8159 = vpack.c.b16 %v8117, %v8114
    %v8160 = vpack.c.b16 %v8118, %v8115
    %v8161 = vpack.c.b16 %v8119, %v8116
    %v8162 = vpack.c.b16 %v8123, %v8120
    %v8163 = vpack.c.b16 %v8124, %v8121
    %v8164 = vpack.c.b16 %v8125, %v8122
    %v8165 = vpack.c.b16 %v8129, %v8126
    %v8166 = vpack.c.b16 %v8130, %v8127
    %v8167 = vpack.c.b16 %v8131, %v8128
    %v8168 = vpack.c.b16 %v8135, %v8132
    %v8169 = vpack.c.b16 %v8136, %v8133
    %v8170 = vpack.c.b16 %v8137, %v8134
    %v8171 = vpack.c.b16 %v8141, %v8138
    %v8172 = vpack.c.b16 %v8142, %v8139
    %v8173 = vpack.c.b16 %v8143, %v8140
    %v8174 = vpack.c.b16 %v8147, %v8144
    %v8175 = vpack.c.b16 %v8148, %v8145
    %v8176 = vpack.c.b16 %v8149, %v8146
    %v8177 = vpack.c.b16 %v8153, %v8150
    %v8178 = vpack.c.b16 %v8154, %v8151
    %v8179 = vpack.c.b16 %v8155, %v8152
    %8204 = vmatprep.subr.bf16.mxu0 %v8178
    %8205 = vmatpush1.bf16.msra.mxu0 %v8177
    %8206 = vmatprep.subr.bf16.mxu0 %v8175
    %8207 = vmatpush1.bf16.msra.mxu0 %v8174
    %8208 = vmatprep.subr.bf16.mxu0 %v8172
    %8209 = vmatpush1.bf16.msra.mxu0 %v8171
    %8210 = vmatprep.subr.bf16.mxu0 %v8169
    %8211 = vmatpush1.bf16.msra.mxu0 %v8168
    %8212 = vmatprep.subr.bf16.mxu0 %v8166
    %8213 = vmatpush1.bf16.msra.mxu0 %v8165
    %8214 = vmatprep.subr.bf16.mxu0 %v8163
    %8215 = vmatpush1.bf16.msra.mxu0 %v8162
    %8216 = vmatprep.subr.bf16.mxu0 %v8160
    %8217 = vmatpush1.bf16.msra.mxu0 %v8159
    %8218 = vmatprep.subr.bf16.mxu0 %v8157
    %8219 = vmatpush1.bf16.msra.mxu0 %v8156
    %8220 = vmatprep.subr.bf16.mxu0 0
    %8221 = vmatpush2.bf16.msra.mxu0 0
    %8222 = vmatprep.subr.bf16.mxu0 0
    %8223 = vmatpush2.bf16.msra.mxu0 0
    %8224 = vmatprep.subr.bf16.mxu0 0
    %8225 = vmatpush2.bf16.msra.mxu0 0
    %8226 = vmatprep.subr.bf16.mxu0 0
    %8227 = vmatpush2.bf16.msra.mxu0 0
    %8228 = vmatprep.subr.bf16.mxu0 0
    %8229 = vmatpush2.bf16.msra.mxu0 0
    %8230 = vmatprep.subr.bf16.mxu0 0
    %8231 = vmatpush2.bf16.msra.mxu0 0
    %8232 = vmatprep.subr.bf16.mxu0 0
    %8233 = vmatpush2.bf16.msra.mxu0 0
    %8234 = vmatprep.subr.bf16.mxu0 0
    %8235 = vmatpush2.bf16.msra.mxu0 0
    %8236 = vmatprep.mubr.bf16.mxu0 0
    %8237 = vmatmul.mubr.bf16.gmra.mxu0 %v8075
    %v8238 = vpop.f32.mrf.mxu0
    %v8239 = vadd.f32 0.0, %v8238
    %v8240 = vpop.f32.mrf.mxu0
    %v8241 = vadd.f32 0.0, %v8240
    %v8242 = vpop.f32.mrf.mxu0
    %v8243 = vpop.f32.mrf.mxu0
    %8244 = vdwg.mxu0
    %8245 = vmatprep.subr.bf16.mxu0 0
    %8246 = vmatpush1.bf16.msra.mxu0 %v8179
    %8247 = vmatprep.subr.bf16.mxu0 0
    %8248 = vmatpush1.bf16.msra.mxu0 %v8176
    %8249 = vmatprep.subr.bf16.mxu0 0
    %8250 = vmatpush1.bf16.msra.mxu0 %v8173
    %8251 = vmatprep.subr.bf16.mxu0 0
    %8252 = vmatpush1.bf16.msra.mxu0 %v8170
    %8253 = vmatprep.subr.bf16.mxu0 0
    %8254 = vmatpush1.bf16.msra.mxu0 %v8167
    %8255 = vmatprep.subr.bf16.mxu0 0
    %8256 = vmatpush1.bf16.msra.mxu0 %v8164
    %8257 = vmatprep.subr.bf16.mxu0 0
    %8258 = vmatpush1.bf16.msra.mxu0 %v8161
    %8259 = vmatprep.subr.bf16.mxu0 0
    %8260 = vmatpush1.bf16.msra.mxu0 %v8158
    %8261 = vmatprep.subr.bf16.mxu0 0
    %8262 = vmatpush2.bf16.msra.mxu0 0
    %8263 = vmatprep.subr.bf16.mxu0 0
    %8264 = vmatpush2.bf16.msra.mxu0 0
    %8265 = vmatprep.subr.bf16.mxu0 0
    %8266 = vmatpush2.bf16.msra.mxu0 0
    %8267 = vmatprep.subr.bf16.mxu0 0
    %8268 = vmatpush2.bf16.msra.mxu0 0
    %8269 = vmatprep.subr.bf16.mxu0 0
    %8270 = vmatpush2.bf16.msra.mxu0 0
    %8271 = vmatprep.subr.bf16.mxu0 0
    %8272 = vmatpush2.bf16.msra.mxu0 0
    %8273 = vmatprep.subr.bf16.mxu0 0
    %8274 = vmatpush2.bf16.msra.mxu0 0
    %8275 = vmatprep.subr.bf16.mxu0 0
    %8276 = vmatpush2.bf16.msra.mxu0 0
    %8277 = vmatprep.mubr.bf16.mxu0 0
    %8278 = vmatmul.mubr.bf16.gmra.mxu0 %v8075
    %v8279 = vpop.f32.mrf.mxu0
    %v8280 = vadd.f32 0.0, %v8279
    %v8281 = vpop.f32.mrf.mxu0
    %v8282 = vpop.f32.mrf.mxu0
    %v8283 = vpop.f32.mrf.mxu0
    %8284 = vdwg.mxu0
    %v8285 = vadd.f32 %v8239, %v8044
    %v8286 = vadd.f32 %v8241, %v8056
    %v8287 = vadd.f32 %v8280, %v8068
    %v8288 = vrot.slane %v785, 1
    %v8290 = vadd.f32 %v7994, %v8288
    %v8292 = vrot.slane %v8285, 7
    %v8294 = vadd.f32 %v8290, %v8292
    %v8295 = vxor.u32 %v8294, 2147483648
    %v8296 = vmul.f32 %v8295, 1.442695
    %v8297 = vpow.pop %v8296
    %v8298 = vadd.f32 %v8297, 1.0
    %v8299 = vrcp.pop %v8298
    %v8300 = vmul.f32 1.0, %v8299
    %v8301 = vadd.f32 %v7996, %v8041
    %v8303 = vrot.slane %v8286, 7
    %v8305 = vadd.f32 %v8301, %v8303
    %v8306 = vxor.u32 %v8305, 2147483648
    %v8307 = vmul.f32 %v8306, 1.442695
    %v8308 = vpow.pop %v8307
    %v8309 = vadd.f32 %v8308, 1.0
    %v8310 = vrcp.pop %v8309
    %v8311 = vmul.f32 1.0, %v8310
    %v8312 = vadd.f32 %v8035, %v8053
    %v8314 = vrot.slane %v8287, 7
    %v8316 = vmul.f32 %v8300, %v8314
    %v8317 = vadd.f32 %v8312, %v8316
    %v8318 = vtanh.pop %v8317
    %v8319 = vsub.f32 1.0, %v8311
    %v8320 = vmul.f32 %v8319, %v8318
    %v8322 = vrot.slane %v8074, 7
    %v8324 = vmul.f32 %v8311, %v8322
    %v8325 = vadd.f32 %v8320, %v8324
    %v8326 = vpack.c.bf16 %v8325, %v8325
    %v8328 = vshrl.u32 %v8326, 16
    %8331 = vmatprep.subr.bf16.mxu0 %v8178
    %8332 = vmatpush1.bf16.msra.mxu0 %v8177
    %8333 = vmatprep.subr.bf16.mxu0 %v8175
    %8334 = vmatpush1.bf16.msra.mxu0 %v8174
    %8335 = vmatprep.subr.bf16.mxu0 %v8172
    %8336 = vmatpush1.bf16.msra.mxu0 %v8171
    %8337 = vmatprep.subr.bf16.mxu0 %v8169
    %8338 = vmatpush1.bf16.msra.mxu0 %v8168
    %8339 = vmatprep.subr.bf16.mxu0 %v8166
    %8340 = vmatpush1.bf16.msra.mxu0 %v8165
    %8341 = vmatprep.subr.bf16.mxu0 %v8163
    %8342 = vmatpush1.bf16.msra.mxu0 %v8162
    %8343 = vmatprep.subr.bf16.mxu0 %v8160
    %8344 = vmatpush1.bf16.msra.mxu0 %v8159
    %8345 = vmatprep.subr.bf16.mxu0 %v8157
    %8346 = vmatpush1.bf16.msra.mxu0 %v8156
    %8347 = vmatprep.subr.bf16.mxu0 0
    %8348 = vmatpush2.bf16.msra.mxu0 0
    %8349 = vmatprep.subr.bf16.mxu0 0
    %8350 = vmatpush2.bf16.msra.mxu0 0
    %8351 = vmatprep.subr.bf16.mxu0 0
    %8352 = vmatpush2.bf16.msra.mxu0 0
    %8353 = vmatprep.subr.bf16.mxu0 0
    %8354 = vmatpush2.bf16.msra.mxu0 0
    %8355 = vmatprep.subr.bf16.mxu0 0
    %8356 = vmatpush2.bf16.msra.mxu0 0
    %8357 = vmatprep.subr.bf16.mxu0 0
    %8358 = vmatpush2.bf16.msra.mxu0 0
    %8359 = vmatprep.subr.bf16.mxu0 0
    %8360 = vmatpush2.bf16.msra.mxu0 0
    %8361 = vmatprep.subr.bf16.mxu0 0
    %8362 = vmatpush2.bf16.msra.mxu0 0
    %8363 = vmatprep.mubr.bf16.mxu0 0
    %8364 = vmatmul.mubr.bf16.gmra.mxu0 %v8328
    %v8365 = vpop.f32.mrf.mxu0
    %v8366 = vadd.f32 0.0, %v8365
    %v8367 = vpop.f32.mrf.mxu0
    %v8368 = vadd.f32 0.0, %v8367
    %v8369 = vpop.f32.mrf.mxu0
    %v8370 = vpop.f32.mrf.mxu0
    %8371 = vdwg.mxu0
    %8372 = vmatprep.subr.bf16.mxu0 0
    %8373 = vmatpush1.bf16.msra.mxu0 %v8179
    %8374 = vmatprep.subr.bf16.mxu0 0
    %8375 = vmatpush1.bf16.msra.mxu0 %v8176
    %8376 = vmatprep.subr.bf16.mxu0 0
    %8377 = vmatpush1.bf16.msra.mxu0 %v8173
    %8378 = vmatprep.subr.bf16.mxu0 0
    %8379 = vmatpush1.bf16.msra.mxu0 %v8170
    %8380 = vmatprep.subr.bf16.mxu0 0
    %8381 = vmatpush1.bf16.msra.mxu0 %v8167
    %8382 = vmatprep.subr.bf16.mxu0 0
    %8383 = vmatpush1.bf16.msra.mxu0 %v8164
    %8384 = vmatprep.subr.bf16.mxu0 0
    %8385 = vmatpush1.bf16.msra.mxu0 %v8161
    %8386 = vmatprep.subr.bf16.mxu0 0
    %8387 = vmatpush1.bf16.msra.mxu0 %v8158
    %8388 = vmatprep.subr.bf16.mxu0 0
    %8389 = vmatpush2.bf16.msra.mxu0 0
    %8390 = vmatprep.subr.bf16.mxu0 0
    %8391 = vmatpush2.bf16.msra.mxu0 0
    %8392 = vmatprep.subr.bf16.mxu0 0
    %8393 = vmatpush2.bf16.msra.mxu0 0
    %8394 = vmatprep.subr.bf16.mxu0 0
    %8395 = vmatpush2.bf16.msra.mxu0 0
    %8396 = vmatprep.subr.bf16.mxu0 0
    %8397 = vmatpush2.bf16.msra.mxu0 0
    %8398 = vmatprep.subr.bf16.mxu0 0
    %8399 = vmatpush2.bf16.msra.mxu0 0
    %8400 = vmatprep.subr.bf16.mxu0 0
    %8401 = vmatpush2.bf16.msra.mxu0 0
    %8402 = vmatprep.subr.bf16.mxu0 0
    %8403 = vmatpush2.bf16.msra.mxu0 0
    %8404 = vmatprep.mubr.bf16.mxu0 0
    %8405 = vmatmul.mubr.bf16.gmra.mxu0 %v8328
    %v8406 = vpop.f32.mrf.mxu0
    %v8407 = vadd.f32 0.0, %v8406
    %v8408 = vpop.f32.mrf.mxu0
    %v8409 = vpop.f32.mrf.mxu0
    %v8410 = vpop.f32.mrf.mxu0
    %8411 = vdwg.mxu0
    %v8412 = vadd.f32 %v8366, %v8044
    %v8413 = vadd.f32 %v8368, %v8056
    %v8414 = vadd.f32 %v8407, %v8068
    %v8415 = vadd.f32 %v7994, %v785
    %v8417 = vrot.slane %v8412, 6
    %v8419 = vadd.f32 %v8415, %v8417
    %v8420 = vxor.u32 %v8419, 2147483648
    %v8421 = vmul.f32 %v8420, 1.442695
    %v8422 = vpow.pop %v8421
    %v8423 = vadd.f32 %v8422, 1.0
    %v8424 = vrcp.pop %v8423
    %v8425 = vmul.f32 1.0, %v8424
    %v8426 = vadd.f32 %v7996, %v8288
    %v8428 = vrot.slane %v8413, 6
    %v8430 = vadd.f32 %v8426, %v8428
    %v8431 = vxor.u32 %v8430, 2147483648
    %v8432 = vmul.f32 %v8431, 1.442695
    %v8433 = vpow.pop %v8432
    %v8434 = vadd.f32 %v8433, 1.0
    %v8435 = vrcp.pop %v8434
    %v8436 = vmul.f32 1.0, %v8435
    %v8437 = vadd.f32 %v8035, %v8041
    %v8439 = vrot.slane %v8414, 6
    %v8441 = vmul.f32 %v8425, %v8439
    %v8442 = vadd.f32 %v8437, %v8441
    %v8443 = vtanh.pop %v8442
    %v8444 = vsub.f32 1.0, %v8436
    %v8445 = vmul.f32 %v8444, %v8443
    %v8447 = vrot.slane %v8325, 7
    %v8449 = vmul.f32 %v8436, %v8447
    %v8450 = vadd.f32 %v8445, %v8449
    %v8451 = vpack.c.bf16 %v8450, %v8450
    %v8453 = vrot.slane %v8451, 1
    %8455 = vmatprep.subr.bf16.mxu0 %v8178
    %8456 = vmatpush1.bf16.msra.mxu0 %v8177
    %8457 = vmatprep.subr.bf16.mxu0 %v8175
    %8458 = vmatpush1.bf16.msra.mxu0 %v8174
    %8459 = vmatprep.subr.bf16.mxu0 %v8172
    %8460 = vmatpush1.bf16.msra.mxu0 %v8171
    %8461 = vmatprep.subr.bf16.mxu0 %v8169
    %8462 = vmatpush1.bf16.msra.mxu0 %v8168
    %8463 = vmatprep.subr.bf16.mxu0 %v8166
    %8464 = vmatpush1.bf16.msra.mxu0 %v8165
    %8465 = vmatprep.subr.bf16.mxu0 %v8163
    %8466 = vmatpush1.bf16.msra.mxu0 %v8162
    %8467 = vmatprep.subr.bf16.mxu0 %v8160
    %8468 = vmatpush1.bf16.msra.mxu0 %v8159
    %8469 = vmatprep.subr.bf16.mxu0 %v8157
    %8470 = vmatpush1.bf16.msra.mxu0 %v8156
    %8471 = vmatprep.subr.bf16.mxu0 0
    %8472 = vmatpush2.bf16.msra.mxu0 0
    %8473 = vmatprep.subr.bf16.mxu0 0
    %8474 = vmatpush2.bf16.msra.mxu0 0
    %8475 = vmatprep.subr.bf16.mxu0 0
    %8476 = vmatpush2.bf16.msra.mxu0 0
    %8477 = vmatprep.subr.bf16.mxu0 0
    %8478 = vmatpush2.bf16.msra.mxu0 0
    %8479 = vmatprep.subr.bf16.mxu0 0
    %8480 = vmatpush2.bf16.msra.mxu0 0
    %8481 = vmatprep.subr.bf16.mxu0 0
    %8482 = vmatpush2.bf16.msra.mxu0 0
    %8483 = vmatprep.subr.bf16.mxu0 0
    %8484 = vmatpush2.bf16.msra.mxu0 0
    %8485 = vmatprep.subr.bf16.mxu0 0
    %8486 = vmatpush2.bf16.msra.mxu0 0
    %8487 = vmatprep.mubr.bf16.mxu0 0
    %8488 = vmatmul.mubr.bf16.gmra.mxu0 %v8453
    %v8489 = vpop.f32.mrf.mxu0
    %v8490 = vadd.f32 0.0, %v8489
    %v8491 = vpop.f32.mrf.mxu0
    %v8492 = vadd.f32 0.0, %v8491
    %v8493 = vpop.f32.mrf.mxu0
    %v8494 = vpop.f32.mrf.mxu0
    %8495 = vdwg.mxu0
    %8496 = vmatprep.subr.bf16.mxu0 0
    %8497 = vmatpush1.bf16.msra.mxu0 %v8179
    %8498 = vmatprep.subr.bf16.mxu0 0
    %8499 = vmatpush1.bf16.msra.mxu0 %v8176
    %8500 = vmatprep.subr.bf16.mxu0 0
    %8501 = vmatpush1.bf16.msra.mxu0 %v8173
    %8502 = vmatprep.subr.bf16.mxu0 0
    %8503 = vmatpush1.bf16.msra.mxu0 %v8170
    %8504 = vmatprep.subr.bf16.mxu0 0
    %8505 = vmatpush1.bf16.msra.mxu0 %v8167
    %8506 = vmatprep.subr.bf16.mxu0 0
    %8507 = vmatpush1.bf16.msra.mxu0 %v8164
    %8508 = vmatprep.subr.bf16.mxu0 0
    %8509 = vmatpush1.bf16.msra.mxu0 %v8161
    %8510 = vmatprep.subr.bf16.mxu0 0
    %8511 = vmatpush1.bf16.msra.mxu0 %v8158
    %8512 = vmatprep.subr.bf16.mxu0 0
    %8513 = vmatpush2.bf16.msra.mxu0 0
    %8514 = vmatprep.subr.bf16.mxu0 0
    %8515 = vmatpush2.bf16.msra.mxu0 0
    %8516 = vmatprep.subr.bf16.mxu0 0
    %8517 = vmatpush2.bf16.msra.mxu0 0
    %8518 = vmatprep.subr.bf16.mxu0 0
    %8519 = vmatpush2.bf16.msra.mxu0 0
    %8520 = vmatprep.subr.bf16.mxu0 0
    %8521 = vmatpush2.bf16.msra.mxu0 0
    %8522 = vmatprep.subr.bf16.mxu0 0
    %8523 = vmatpush2.bf16.msra.mxu0 0
    %8524 = vmatprep.subr.bf16.mxu0 0
    %8525 = vmatpush2.bf16.msra.mxu0 0
    %8526 = vmatprep.subr.bf16.mxu0 0
    %8527 = vmatpush2.bf16.msra.mxu0 0
    %8528 = vmatprep.mubr.bf16.mxu0 0
    %8529 = vmatmul.mubr.bf16.gmra.mxu0 %v8453
    %v8530 = vpop.f32.mrf.mxu0
    %v8531 = vadd.f32 0.0, %v8530
    %v8532 = vpop.f32.mrf.mxu0
    %v8533 = vpop.f32.mrf.mxu0
    %v8534 = vpop.f32.mrf.mxu0
    %8535 = vdwg.mxu0
    %v8536 = vadd.f32 %v8490, %v8044
    %v8537 = vadd.f32 %v8492, %v8056
    %v8538 = vadd.f32 %v8531, %v8068
    %v8539 = vadd.f32 %v7994, %v8068
    %v8541 = vrot.slane %v8536, 5
    %v8543 = vadd.f32 %v8539, %v8541
    %v8544 = vxor.u32 %v8543, 2147483648
    %v8545 = vmul.f32 %v8544, 1.442695
    %v8546 = vpow.pop %v8545
    %v8547 = vadd.f32 %v8546, 1.0
    %v8548 = vrcp.pop %v8547
    %v8549 = vmul.f32 1.0, %v8548
    %v8550 = vadd.f32 %v7996, %v785
    %v8552 = vrot.slane %v8537, 5
    %v8554 = vadd.f32 %v8550, %v8552
    %v8555 = vxor.u32 %v8554, 2147483648
    %v8556 = vmul.f32 %v8555, 1.442695
    %v8557 = vpow.pop %v8556
    %v8558 = vadd.f32 %v8557, 1.0
    %v8559 = vrcp.pop %v8558
    %v8560 = vmul.f32 1.0, %v8559
    %v8561 = vadd.f32 %v8035, %v8288
    %v8563 = vrot.slane %v8538, 5
    %v8565 = vmul.f32 %v8549, %v8563
    %v8566 = vadd.f32 %v8561, %v8565
    %v8567 = vtanh.pop %v8566
    %v8568 = vsub.f32 1.0, %v8560
    %v8569 = vmul.f32 %v8568, %v8567
    %v8571 = vrot.slane %v8450, 7
    %v8573 = vmul.f32 %v8560, %v8571
    %v8574 = vadd.f32 %v8569, %v8573
    %v8575 = vpack.c.bf16 %v8574, %v8574
    %v8577 = vshrl.u32 %v8575, 16
    %v8579 = vrot.slane %v8577, 1
    %8581 = vmatprep.subr.bf16.mxu0 %v8178
    %8582 = vmatpush1.bf16.msra.mxu0 %v8177
    %8583 = vmatprep.subr.bf16.mxu0 %v8175
    %8584 = vmatpush1.bf16.msra.mxu0 %v8174
    %8585 = vmatprep.subr.bf16.mxu0 %v8172
    %8586 = vmatpush1.bf16.msra.mxu0 %v8171
    %8587 = vmatprep.subr.bf16.mxu0 %v8169
    %8588 = vmatpush1.bf16.msra.mxu0 %v8168
    %8589 = vmatprep.subr.bf16.mxu0 %v8166
    %8590 = vmatpush1.bf16.msra.mxu0 %v8165
    %8591 = vmatprep.subr.bf16.mxu0 %v8163
    %8592 = vmatpush1.bf16.msra.mxu0 %v8162
    %8593 = vmatprep.subr.bf16.mxu0 %v8160
    %8594 = vmatpush1.bf16.msra.mxu0 %v8159
    %8595 = vmatprep.subr.bf16.mxu0 %v8157
    %8596 = vmatpush1.bf16.msra.mxu0 %v8156
    %8597 = vmatprep.subr.bf16.mxu0 0
    %8598 = vmatpush2.bf16.msra.mxu0 0
    %8599 = vmatprep.subr.bf16.mxu0 0
    %8600 = vmatpush2.bf16.msra.mxu0 0
    %8601 = vmatprep.subr.bf16.mxu0 0
    %8602 = vmatpush2.bf16.msra.mxu0 0
    %8603 = vmatprep.subr.bf16.mxu0 0
    %8604 = vmatpush2.bf16.msra.mxu0 0
    %8605 = vmatprep.subr.bf16.mxu0 0
    %8606 = vmatpush2.bf16.msra.mxu0 0
    %8607 = vmatprep.subr.bf16.mxu0 0
    %8608 = vmatpush2.bf16.msra.mxu0 0
    %8609 = vmatprep.subr.bf16.mxu0 0
    %8610 = vmatpush2.bf16.msra.mxu0 0
    %8611 = vmatprep.subr.bf16.mxu0 0
    %8612 = vmatpush2.bf16.msra.mxu0 0
    %8613 = vmatprep.mubr.bf16.mxu0 0
    %8614 = vmatmul.mubr.bf16.gmra.mxu0 %v8579
    %v8615 = vpop.f32.mrf.mxu0
    %v8616 = vadd.f32 0.0, %v8615
    %v8617 = vpop.f32.mrf.mxu0
    %v8618 = vadd.f32 0.0, %v8617
    %v8619 = vpop.f32.mrf.mxu0
    %v8620 = vpop.f32.mrf.mxu0
    %8621 = vdwg.mxu0
    %8622 = vmatprep.subr.bf16.mxu0 0
    %8623 = vmatpush1.bf16.msra.mxu0 %v8179
    %8624 = vmatprep.subr.bf16.mxu0 0
    %8625 = vmatpush1.bf16.msra.mxu0 %v8176
    %8626 = vmatprep.subr.bf16.mxu0 0
    %8627 = vmatpush1.bf16.msra.mxu0 %v8173
    %8628 = vmatprep.subr.bf16.mxu0 0
    %8629 = vmatpush1.bf16.msra.mxu0 %v8170
    %8630 = vmatprep.subr.bf16.mxu0 0
    %8631 = vmatpush1.bf16.msra.mxu0 %v8167
    %8632 = vmatprep.subr.bf16.mxu0 0
    %8633 = vmatpush1.bf16.msra.mxu0 %v8164
    %8634 = vmatprep.subr.bf16.mxu0 0
    %8635 = vmatpush1.bf16.msra.mxu0 %v8161
    %8636 = vmatprep.subr.bf16.mxu0 0
    %8637 = vmatpush1.bf16.msra.mxu0 %v8158
    %8638 = vmatprep.subr.bf16.mxu0 0
    %8639 = vmatpush2.bf16.msra.mxu0 0
    %8640 = vmatprep.subr.bf16.mxu0 0
    %8641 = vmatpush2.bf16.msra.mxu0 0
    %8642 = vmatprep.subr.bf16.mxu0 0
    %8643 = vmatpush2.bf16.msra.mxu0 0
    %8644 = vmatprep.subr.bf16.mxu0 0
    %8645 = vmatpush2.bf16.msra.mxu0 0
    %8646 = vmatprep.subr.bf16.mxu0 0
    %8647 = vmatpush2.bf16.msra.mxu0 0
    %8648 = vmatprep.subr.bf16.mxu0 0
    %8649 = vmatpush2.bf16.msra.mxu0 0
    %8650 = vmatprep.subr.bf16.mxu0 0
    %8651 = vmatpush2.bf16.msra.mxu0 0
    %8652 = vmatprep.subr.bf16.mxu0 0
    %8653 = vmatpush2.bf16.msra.mxu0 0
    %8654 = vmatprep.mubr.bf16.mxu0 0
    %8655 = vmatmul.mubr.bf16.gmra.mxu0 %v8579
    %v8656 = vpop.f32.mrf.mxu0
    %v8657 = vadd.f32 0.0, %v8656
    %v8658 = vpop.f32.mrf.mxu0
    %v8659 = vpop.f32.mrf.mxu0
    %v8660 = vpop.f32.mrf.mxu0
    %8661 = vdwg.mxu0
    %v8662 = vadd.f32 %v8616, %v8044
    %v8663 = vadd.f32 %v8618, %v8056
    %v8664 = vadd.f32 %v8657, %v8068
    %v8665 = vadd.f32 %v7994, %v8056
    %v8667 = vrot.slane %v8662, 4
    %v8669 = vadd.f32 %v8665, %v8667
    %v8670 = vxor.u32 %v8669, 2147483648
    %v8671 = vmul.f32 %v8670, 1.442695
    %v8672 = vpow.pop %v8671
    %v8673 = vadd.f32 %v8672, 1.0
    %v8674 = vrcp.pop %v8673
    %v8675 = vmul.f32 1.0, %v8674
    %v8676 = vadd.f32 %v7996, %v8068
    %v8678 = vrot.slane %v8663, 4
    %v8680 = vadd.f32 %v8676, %v8678
    %v8681 = vxor.u32 %v8680, 2147483648
    %v8682 = vmul.f32 %v8681, 1.442695
    %v8683 = vpow.pop %v8682
    %v8684 = vadd.f32 %v8683, 1.0
    %v8685 = vrcp.pop %v8684
    %v8686 = vmul.f32 1.0, %v8685
    %v8687 = vadd.f32 %v8035, %v785
    %v8689 = vrot.slane %v8664, 4
    %v8691 = vmul.f32 %v8675, %v8689
    %v8692 = vadd.f32 %v8687, %v8691
    %v8693 = vtanh.pop %v8692
    %v8694 = vsub.f32 1.0, %v8686
    %v8695 = vmul.f32 %v8694, %v8693
    %v8697 = vrot.slane %v8574, 7
    %v8699 = vmul.f32 %v8686, %v8697
    %v8700 = vadd.f32 %v8695, %v8699
    %v8701 = vpack.c.bf16 %v8700, %v8700
    %v8703 = vrot.slane %v8701, 2
    %8705 = vmatprep.subr.bf16.mxu0 %v8178
    %8706 = vmatpush1.bf16.msra.mxu0 %v8177
    %8707 = vmatprep.subr.bf16.mxu0 %v8175
    %8708 = vmatpush1.bf16.msra.mxu0 %v8174
    %8709 = vmatprep.subr.bf16.mxu0 %v8172
    %8710 = vmatpush1.bf16.msra.mxu0 %v8171
    %8711 = vmatprep.subr.bf16.mxu0 %v8169
    %8712 = vmatpush1.bf16.msra.mxu0 %v8168
    %8713 = vmatprep.subr.bf16.mxu0 %v8166
    %8714 = vmatpush1.bf16.msra.mxu0 %v8165
    %8715 = vmatprep.subr.bf16.mxu0 %v8163
    %8716 = vmatpush1.bf16.msra.mxu0 %v8162
    %8717 = vmatprep.subr.bf16.mxu0 %v8160
    %8718 = vmatpush1.bf16.msra.mxu0 %v8159
    %8719 = vmatprep.subr.bf16.mxu0 %v8157
    %8720 = vmatpush1.bf16.msra.mxu0 %v8156
    %8721 = vmatprep.subr.bf16.mxu0 0
    %8722 = vmatpush2.bf16.msra.mxu0 0
    %8723 = vmatprep.subr.bf16.mxu0 0
    %8724 = vmatpush2.bf16.msra.mxu0 0
    %8725 = vmatprep.subr.bf16.mxu0 0
    %8726 = vmatpush2.bf16.msra.mxu0 0
    %8727 = vmatprep.subr.bf16.mxu0 0
    %8728 = vmatpush2.bf16.msra.mxu0 0
    %8729 = vmatprep.subr.bf16.mxu0 0
    %8730 = vmatpush2.bf16.msra.mxu0 0
    %8731 = vmatprep.subr.bf16.mxu0 0
    %8732 = vmatpush2.bf16.msra.mxu0 0
    %8733 = vmatprep.subr.bf16.mxu0 0
    %8734 = vmatpush2.bf16.msra.mxu0 0
    %8735 = vmatprep.subr.bf16.mxu0 0
    %8736 = vmatpush2.bf16.msra.mxu0 0
    %8737 = vmatprep.mubr.bf16.mxu0 0
    %8738 = vmatmul.mubr.bf16.gmra.mxu0 %v8703
    %v8739 = vpop.f32.mrf.mxu0
    %v8740 = vadd.f32 0.0, %v8739
    %v8741 = vpop.f32.mrf.mxu0
    %v8742 = vadd.f32 0.0, %v8741
    %v8743 = vpop.f32.mrf.mxu0
    %v8744 = vpop.f32.mrf.mxu0
    %8745 = vdwg.mxu0
    %8746 = vmatprep.subr.bf16.mxu0 0
    %8747 = vmatpush1.bf16.msra.mxu0 %v8179
    %8748 = vmatprep.subr.bf16.mxu0 0
    %8749 = vmatpush1.bf16.msra.mxu0 %v8176
    %8750 = vmatprep.subr.bf16.mxu0 0
    %8751 = vmatpush1.bf16.msra.mxu0 %v8173
    %8752 = vmatprep.subr.bf16.mxu0 0
    %8753 = vmatpush1.bf16.msra.mxu0 %v8170
    %8754 = vmatprep.subr.bf16.mxu0 0
    %8755 = vmatpush1.bf16.msra.mxu0 %v8167
    %8756 = vmatprep.subr.bf16.mxu0 0
    %8757 = vmatpush1.bf16.msra.mxu0 %v8164
    %8758 = vmatprep.subr.bf16.mxu0 0
    %8759 = vmatpush1.bf16.msra.mxu0 %v8161
    %8760 = vmatprep.subr.bf16.mxu0 0
    %8761 = vmatpush1.bf16.msra.mxu0 %v8158
    %8762 = vmatprep.subr.bf16.mxu0 0
    %8763 = vmatpush2.bf16.msra.mxu0 0
    %8764 = vmatprep.subr.bf16.mxu0 0
    %8765 = vmatpush2.bf16.msra.mxu0 0
    %8766 = vmatprep.subr.bf16.mxu0 0
    %8767 = vmatpush2.bf16.msra.mxu0 0
    %8768 = vmatprep.subr.bf16.mxu0 0
    %8769 = vmatpush2.bf16.msra.mxu0 0
    %8770 = vmatprep.subr.bf16.mxu0 0
    %8771 = vmatpush2.bf16.msra.mxu0 0
    %8772 = vmatprep.subr.bf16.mxu0 0
    %8773 = vmatpush2.bf16.msra.mxu0 0
    %8774 = vmatprep.subr.bf16.mxu0 0
    %8775 = vmatpush2.bf16.msra.mxu0 0
    %8776 = vmatprep.subr.bf16.mxu0 0
    %8777 = vmatpush2.bf16.msra.mxu0 0
    %8778 = vmatprep.mubr.bf16.mxu0 0
    %8779 = vmatmul.mubr.bf16.gmra.mxu0 %v8703
    %v8780 = vpop.f32.mrf.mxu0
    %v8781 = vadd.f32 0.0, %v8780
    %v8782 = vpop.f32.mrf.mxu0
    %v8783 = vpop.f32.mrf.mxu0
    %v8784 = vpop.f32.mrf.mxu0
    %8785 = vdwg.mxu0
    %v8786 = vadd.f32 %v8740, %v8044
    %v8787 = vadd.f32 %v8742, %v8056
    %v8788 = vadd.f32 %v8781, %v8068
    %v8789 = vadd.f32 %v7994, %v8044
    %v8791 = vrot.slane %v8786, 3
    %v8793 = vadd.f32 %v8789, %v8791
    %v8794 = vxor.u32 %v8793, 2147483648
    %v8795 = vmul.f32 %v8794, 1.442695
    %v8796 = vpow.pop %v8795
    %v8797 = vadd.f32 %v8796, 1.0
    %v8798 = vrcp.pop %v8797
    %v8799 = vmul.f32 1.0, %v8798
    %v8800 = vadd.f32 %v7996, %v8056
    %v8802 = vrot.slane %v8787, 3
    %v8804 = vadd.f32 %v8800, %v8802
    %v8805 = vxor.u32 %v8804, 2147483648
    %v8806 = vmul.f32 %v8805, 1.442695
    %v8807 = vpow.pop %v8806
    %v8808 = vadd.f32 %v8807, 1.0
    %v8809 = vrcp.pop %v8808
    %v8810 = vmul.f32 1.0, %v8809
    %v8811 = vadd.f32 %v8035, %v8068
    %v8813 = vrot.slane %v8788, 3
    %v8815 = vmul.f32 %v8799, %v8813
    %v8816 = vadd.f32 %v8811, %v8815
    %v8817 = vtanh.pop %v8816
    %v8818 = vsub.f32 1.0, %v8810
    %v8819 = vmul.f32 %v8818, %v8817
    %v8821 = vrot.slane %v8700, 7
    %v8823 = vmul.f32 %v8810, %v8821
    %v8824 = vadd.f32 %v8819, %v8823
    %v8825 = vpack.c.bf16 %v8824, %v8824
    %v8827 = vshrl.u32 %v8825, 16
    %v8829 = vrot.slane %v8827, 2
    %8831 = vmatprep.subr.bf16.mxu0 %v8178
    %8832 = vmatpush1.bf16.msra.mxu0 %v8177
    %8833 = vmatprep.subr.bf16.mxu0 %v8175
    %8834 = vmatpush1.bf16.msra.mxu0 %v8174
    %8835 = vmatprep.subr.bf16.mxu0 %v8172
    %8836 = vmatpush1.bf16.msra.mxu0 %v8171
    %8837 = vmatprep.subr.bf16.mxu0 %v8169
    %8838 = vmatpush1.bf16.msra.mxu0 %v8168
    %8839 = vmatprep.subr.bf16.mxu0 %v8166
    %8840 = vmatpush1.bf16.msra.mxu0 %v8165
    %8841 = vmatprep.subr.bf16.mxu0 %v8163
    %8842 = vmatpush1.bf16.msra.mxu0 %v8162
    %8843 = vmatprep.subr.bf16.mxu0 %v8160
    %8844 = vmatpush1.bf16.msra.mxu0 %v8159
    %8845 = vmatprep.subr.bf16.mxu0 %v8157
    %8846 = vmatpush1.bf16.msra.mxu0 %v8156
    %8847 = vmatprep.subr.bf16.mxu0 0
    %8848 = vmatpush2.bf16.msra.mxu0 0
    %8849 = vmatprep.subr.bf16.mxu0 0
    %8850 = vmatpush2.bf16.msra.mxu0 0
    %8851 = vmatprep.subr.bf16.mxu0 0
    %8852 = vmatpush2.bf16.msra.mxu0 0
    %8853 = vmatprep.subr.bf16.mxu0 0
    %8854 = vmatpush2.bf16.msra.mxu0 0
    %8855 = vmatprep.subr.bf16.mxu0 0
    %8856 = vmatpush2.bf16.msra.mxu0 0
    %8857 = vmatprep.subr.bf16.mxu0 0
    %8858 = vmatpush2.bf16.msra.mxu0 0
    %8859 = vmatprep.subr.bf16.mxu0 0
    %8860 = vmatpush2.bf16.msra.mxu0 0
    %8861 = vmatprep.subr.bf16.mxu0 0
    %8862 = vmatpush2.bf16.msra.mxu0 0
    %8863 = vmatprep.mubr.bf16.mxu0 0
    %8864 = vmatmul.mubr.bf16.gmra.mxu0 %v8829
    %v8865 = vpop.f32.mrf.mxu0
    %v8866 = vadd.f32 0.0, %v8865
    %v8867 = vpop.f32.mrf.mxu0
    %v8868 = vadd.f32 0.0, %v8867
    %v8869 = vpop.f32.mrf.mxu0
    %v8870 = vpop.f32.mrf.mxu0
    %8871 = vdwg.mxu0
    %8872 = vmatprep.subr.bf16.mxu0 0
    %8873 = vmatpush1.bf16.msra.mxu0 %v8179
    %8874 = vmatprep.subr.bf16.mxu0 0
    %8875 = vmatpush1.bf16.msra.mxu0 %v8176
    %8876 = vmatprep.subr.bf16.mxu0 0
    %8877 = vmatpush1.bf16.msra.mxu0 %v8173
    %8878 = vmatprep.subr.bf16.mxu0 0
    %8879 = vmatpush1.bf16.msra.mxu0 %v8170
    %8880 = vmatprep.subr.bf16.mxu0 0
    %8881 = vmatpush1.bf16.msra.mxu0 %v8167
    %8882 = vmatprep.subr.bf16.mxu0 0
    %8883 = vmatpush1.bf16.msra.mxu0 %v8164
    %8884 = vmatprep.subr.bf16.mxu0 0
    %8885 = vmatpush1.bf16.msra.mxu0 %v8161
    %8886 = vmatprep.subr.bf16.mxu0 0
    %8887 = vmatpush1.bf16.msra.mxu0 %v8158
    %8888 = vmatprep.subr.bf16.mxu0 0
    %8889 = vmatpush2.bf16.msra.mxu0 0
    %8890 = vmatprep.subr.bf16.mxu0 0
    %8891 = vmatpush2.bf16.msra.mxu0 0
    %8892 = vmatprep.subr.bf16.mxu0 0
    %8893 = vmatpush2.bf16.msra.mxu0 0
    %8894 = vmatprep.subr.bf16.mxu0 0
    %8895 = vmatpush2.bf16.msra.mxu0 0
    %8896 = vmatprep.subr.bf16.mxu0 0
    %8897 = vmatpush2.bf16.msra.mxu0 0
    %8898 = vmatprep.subr.bf16.mxu0 0
    %8899 = vmatpush2.bf16.msra.mxu0 0
    %8900 = vmatprep.subr.bf16.mxu0 0
    %8901 = vmatpush2.bf16.msra.mxu0 0
    %8902 = vmatprep.subr.bf16.mxu0 0
    %8903 = vmatpush2.bf16.msra.mxu0 0
    %8904 = vmatprep.mubr.bf16.mxu0 0
    %8905 = vmatmul.mubr.bf16.gmra.mxu0 %v8829
    %v8906 = vpop.f32.mrf.mxu0
    %v8907 = vadd.f32 0.0, %v8906
    %v8908 = vpop.f32.mrf.mxu0
    %v8909 = vpop.f32.mrf.mxu0
    %v8910 = vpop.f32.mrf.mxu0
    %8911 = vdwg.mxu0
    %v8912 = vadd.f32 %v8866, %v8044
    %v8913 = vadd.f32 %v8868, %v8056
    %v8914 = vadd.f32 %v8907, %v8068
    %v8915 = vadd.f32 %v7994, %v8065
    %v8917 = vrot.slane %v8912, 2
    %v8919 = vadd.f32 %v8915, %v8917
    %v8920 = vxor.u32 %v8919, 2147483648
    %v8921 = vmul.f32 %v8920, 1.442695
    %v8922 = vpow.pop %v8921
    %v8923 = vadd.f32 %v8922, 1.0
    %v8924 = vrcp.pop %v8923
    %v8925 = vmul.f32 1.0, %v8924
    %v8926 = vadd.f32 %v7996, %v8044
    %v8928 = vrot.slane %v8913, 2
    %v8930 = vadd.f32 %v8926, %v8928
    %v8931 = vxor.u32 %v8930, 2147483648
    %v8932 = vmul.f32 %v8931, 1.442695
    %v8933 = vpow.pop %v8932
    %v8934 = vadd.f32 %v8933, 1.0
    %v8935 = vrcp.pop %v8934
    %v8936 = vmul.f32 1.0, %v8935
    %v8937 = vadd.f32 %v8035, %v8056
    %v8939 = vrot.slane %v8914, 2
    %v8941 = vmul.f32 %v8925, %v8939
    %v8942 = vadd.f32 %v8937, %v8941
    %v8943 = vtanh.pop %v8942
    %v8944 = vsub.f32 1.0, %v8936
    %v8945 = vmul.f32 %v8944, %v8943
    %v8947 = vrot.slane %v8824, 7
    %v8949 = vmul.f32 %v8936, %v8947
    %v8950 = vadd.f32 %v8945, %v8949
    %v8951 = vpack.c.bf16 %v8950, %v8950
    %v8953 = vrot.slane %v8951, 3
    %8955 = vmatprep.subr.bf16.mxu0 %v8178
    %8956 = vmatpush1.bf16.msra.mxu0 %v8177
    %8957 = vmatprep.subr.bf16.mxu0 %v8175
    %8958 = vmatpush1.bf16.msra.mxu0 %v8174
    %8959 = vmatprep.subr.bf16.mxu0 %v8172
    %8960 = vmatpush1.bf16.msra.mxu0 %v8171
    %8961 = vmatprep.subr.bf16.mxu0 %v8169
    %8962 = vmatpush1.bf16.msra.mxu0 %v8168
    %8963 = vmatprep.subr.bf16.mxu0 %v8166
    %8964 = vmatpush1.bf16.msra.mxu0 %v8165
    %8965 = vmatprep.subr.bf16.mxu0 %v8163
    %8966 = vmatpush1.bf16.msra.mxu0 %v8162
    %8967 = vmatprep.subr.bf16.mxu0 %v8160
    %8968 = vmatpush1.bf16.msra.mxu0 %v8159
    %8969 = vmatprep.subr.bf16.mxu0 %v8157
    %8970 = vmatpush1.bf16.msra.mxu0 %v8156
    %8971 = vmatprep.subr.bf16.mxu0 0
    %8972 = vmatpush2.bf16.msra.mxu0 0
    %8973 = vmatprep.subr.bf16.mxu0 0
    %8974 = vmatpush2.bf16.msra.mxu0 0
    %8975 = vmatprep.subr.bf16.mxu0 0
    %8976 = vmatpush2.bf16.msra.mxu0 0
    %8977 = vmatprep.subr.bf16.mxu0 0
    %8978 = vmatpush2.bf16.msra.mxu0 0
    %8979 = vmatprep.subr.bf16.mxu0 0
    %8980 = vmatpush2.bf16.msra.mxu0 0
    %8981 = vmatprep.subr.bf16.mxu0 0
    %8982 = vmatpush2.bf16.msra.mxu0 0
    %8983 = vmatprep.subr.bf16.mxu0 0
    %8984 = vmatpush2.bf16.msra.mxu0 0
    %8985 = vmatprep.subr.bf16.mxu0 0
    %8986 = vmatpush2.bf16.msra.mxu0 0
    %8987 = vmatprep.mubr.bf16.mxu0 0
    %8988 = vmatmul.mubr.bf16.gmra.mxu0 %v8953
    %v8989 = vpop.f32.mrf.mxu0
    %v8990 = vadd.f32 0.0, %v8989
    %v8991 = vpop.f32.mrf.mxu0
    %v8992 = vadd.f32 0.0, %v8991
    %v8993 = vpop.f32.mrf.mxu0
    %v8994 = vpop.f32.mrf.mxu0
    %8995 = vdwg.mxu0
    %8996 = vmatprep.subr.bf16.mxu0 0
    %8997 = vmatpush1.bf16.msra.mxu0 %v8179
    %8998 = vmatprep.subr.bf16.mxu0 0
    %8999 = vmatpush1.bf16.msra.mxu0 %v8176
    %9000 = vmatprep.subr.bf16.mxu0 0
    %9001 = vmatpush1.bf16.msra.mxu0 %v8173
    %9002 = vmatprep.subr.bf16.mxu0 0
    %9003 = vmatpush1.bf16.msra.mxu0 %v8170
    %9004 = vmatprep.subr.bf16.mxu0 0
    %9005 = vmatpush1.bf16.msra.mxu0 %v8167
    %9006 = vmatprep.subr.bf16.mxu0 0
    %9007 = vmatpush1.bf16.msra.mxu0 %v8164
    %9008 = vmatprep.subr.bf16.mxu0 0
    %9009 = vmatpush1.bf16.msra.mxu0 %v8161
    %9010 = vmatprep.subr.bf16.mxu0 0
    %9011 = vmatpush1.bf16.msra.mxu0 %v8158
    %9012 = vmatprep.subr.bf16.mxu0 0
    %9013 = vmatpush2.bf16.msra.mxu0 0
    %9014 = vmatprep.subr.bf16.mxu0 0
    %9015 = vmatpush2.bf16.msra.mxu0 0
    %9016 = vmatprep.subr.bf16.mxu0 0
    %9017 = vmatpush2.bf16.msra.mxu0 0
    %9018 = vmatprep.subr.bf16.mxu0 0
    %9019 = vmatpush2.bf16.msra.mxu0 0
    %9020 = vmatprep.subr.bf16.mxu0 0
    %9021 = vmatpush2.bf16.msra.mxu0 0
    %9022 = vmatprep.subr.bf16.mxu0 0
    %9023 = vmatpush2.bf16.msra.mxu0 0
    %9024 = vmatprep.subr.bf16.mxu0 0
    %9025 = vmatpush2.bf16.msra.mxu0 0
    %9026 = vmatprep.subr.bf16.mxu0 0
    %9027 = vmatpush2.bf16.msra.mxu0 0
    %9028 = vmatprep.mubr.bf16.mxu0 0
    %9029 = vmatmul.mubr.bf16.gmra.mxu0 %v8953
    %v9030 = vpop.f32.mrf.mxu0
    %v9031 = vadd.f32 0.0, %v9030
    %v9032 = vpop.f32.mrf.mxu0
    %v9033 = vpop.f32.mrf.mxu0
    %v9034 = vpop.f32.mrf.mxu0
    %9035 = vdwg.mxu0
    %v9036 = vadd.f32 %v8990, %v8044
    %v9037 = vadd.f32 %v8992, %v8056
    %v9038 = vadd.f32 %v9031, %v8068
    %v9039 = vadd.f32 %v7994, %v8053
    %v9041 = vrot.slane %v9036, 1
    %v9043 = vadd.f32 %v9039, %v9041
    %v9044 = vxor.u32 %v9043, 2147483648
    %v9045 = vmul.f32 %v9044, 1.442695
    %v9046 = vpow.pop %v9045
    %v9047 = vadd.f32 %v9046, 1.0
    %v9048 = vrcp.pop %v9047
    %v9049 = vmul.f32 1.0, %v9048
    %v9050 = vadd.f32 %v7996, %v8065
    %v9052 = vrot.slane %v9037, 1
    %v9054 = vadd.f32 %v9050, %v9052
    %v9055 = vxor.u32 %v9054, 2147483648
    %v9056 = vmul.f32 %v9055, 1.442695
    %v9057 = vpow.pop %v9056
    %v9058 = vadd.f32 %v9057, 1.0
    %v9059 = vrcp.pop %v9058
    %v9060 = vmul.f32 1.0, %v9059
    %v9061 = vadd.f32 %v8035, %v8044
    %v9063 = vrot.slane %v9038, 1
    %v9065 = vmul.f32 %v9049, %v9063
    %v9066 = vadd.f32 %v9061, %v9065
    %v9067 = vtanh.pop %v9066
    %v9068 = vsub.f32 1.0, %v9060
    %v9069 = vmul.f32 %v9068, %v9067
    %v9071 = vrot.slane %v8950, 7
    %v9073 = vmul.f32 %v9060, %v9071
    %v9074 = vadd.f32 %v9069, %v9073
    %vm9075 = vcmask 1040384
    %v9076 = vsel %vm9075, %v8074, %v8325
    %vm9077 = vcmask 1041408
    %v9078 = vsel %vm9077, %v9076, %v8450
    %vm9079 = vcmask 1042432
    %v9080 = vsel %vm9079, %v9078, %v8574
    %vm9081 = vcmask 1043456
    %v9082 = vsel %vm9081, %v9080, %v8700
    %vm9083 = vcmask 1044480
    %v9084 = vsel %vm9083, %v9082, %v8824
    %vm9085 = vcmask 1045504
    %v9086 = vsel %vm9085, %v9084, %v8950
    %vm9087 = vcmask 1046528
    %v9088 = vsel %vm9087, %v9086, %v9074
    %v9089 = vpack.c.bf16 %v9088, %v9088
    %v9090 = vlaneseq
    %v9091 = vshrl.u32 %v9090, 7
    %v9092 = vsub.s32 1, %v9091
    %v9093 = vrot.slane %v785, %v9092
    %v9110 = vunpack.c.l.b16 %v769
    %v9111 = vunpack.c.l.b16 %v770
    %v9112 = vunpack.c.l.b16 %v771
    %v9113 = vunpack.c.l.b16 %v772
    %v9114 = vunpack.c.l.b16 %v773
    %v9115 = vunpack.c.l.b16 %v774
    %v9116 = vunpack.c.l.b16 %v775
    %v9117 = vunpack.c.l.b16 %v776
    %v9118 = vunpack.c.l.b16 %v777
    %v9119 = vunpack.c.l.b16 %v778
    %v9120 = vunpack.c.l.b16 %v779
    %v9121 = vunpack.c.l.b16 %v780
    %v9122 = vunpack.c.l.b16 %v781
    %v9123 = vunpack.c.l.b16 %v782
    %v9124 = vunpack.c.l.b16 %v783
    %v9125 = vunpack.c.l.b16 %v784
    %v9126 = vpack.c.b16 %v9111, %v9110
    %v9127 = vpack.c.b16 %v9113, %v9112
    %v9128 = vpack.c.b16 %v9115, %v9114
    %v9129 = vpack.c.b16 %v9117, %v9116
    %v9130 = vpack.c.b16 %v9119, %v9118
    %v9131 = vpack.c.b16 %v9121, %v9120
    %v9132 = vpack.c.b16 %v9123, %v9122
    %v9133 = vpack.c.b16 %v9125, %v9124
    %9142 = vmatprep.subr.bf16.mxu0 0
    %9143 = vmatpush1.bf16.msra.mxu0 %v9133
    %9144 = vmatprep.subr.bf16.mxu0 0
    %9145 = vmatpush1.bf16.msra.mxu0 %v9132
    %9146 = vmatprep.subr.bf16.mxu0 0
    %9147 = vmatpush1.bf16.msra.mxu0 %v9131
    %9148 = vmatprep.subr.bf16.mxu0 0
    %9149 = vmatpush1.bf16.msra.mxu0 %v9130
    %9150 = vmatprep.subr.bf16.mxu0 0
    %9151 = vmatpush1.bf16.msra.mxu0 %v9129
    %9152 = vmatprep.subr.bf16.mxu0 0
    %9153 = vmatpush1.bf16.msra.mxu0 %v9128
    %9154 = vmatprep.subr.bf16.mxu0 0
    %9155 = vmatpush1.bf16.msra.mxu0 %v9127
    %9156 = vmatprep.subr.bf16.mxu0 0
    %9157 = vmatpush1.bf16.msra.mxu0 %v9126
    %9158 = vmatprep.subr.bf16.mxu0 0
    %9159 = vmatpush2.bf16.msra.mxu0 0
    %9160 = vmatprep.subr.bf16.mxu0 0
    %9161 = vmatpush2.bf16.msra.mxu0 0
    %9162 = vmatprep.subr.bf16.mxu0 0
    %9163 = vmatpush2.bf16.msra.mxu0 0
    %9164 = vmatprep.subr.bf16.mxu0 0
    %9165 = vmatpush2.bf16.msra.mxu0 0
    %9166 = vmatprep.subr.bf16.mxu0 0
    %9167 = vmatpush2.bf16.msra.mxu0 0
    %9168 = vmatprep.subr.bf16.mxu0 0
    %9169 = vmatpush2.bf16.msra.mxu0 0
    %9170 = vmatprep.subr.bf16.mxu0 0
    %9171 = vmatpush2.bf16.msra.mxu0 0
    %9172 = vmatprep.subr.bf16.mxu0 0
    %9173 = vmatpush2.bf16.msra.mxu0 0
    %9174 = vmatprep.mubr.bf16.mxu0 0
    %9175 = vmatmul.mubr.bf16.gmra.mxu0 %v9089
    %v9176 = vpop.f32.mrf.mxu0
    %v9177 = vadd.f32 %v9093, %v9176
    %v9178 = vpop.f32.mrf.mxu0
    %v9179 = vpop.f32.mrf.mxu0
    %v9180 = vpop.f32.mrf.mxu0
    %9181 = vdwg.mxu0
    %9182 = vst [vmem:[#allocation2] sm:$0xff] %v9177
    // Predicated region
    $region42: #{forward.1} parent=1 // pred_check
      _
    $region43: #{forward.1} parent=1 // pred_check_branch
      %9184 = sbr.rel (0) target = $region45
    $region44: #{forward.1} parent=1 // pred_region
      %s9186 = ssub.s32 128, 128
      %9187 = vsyncadd [#allocation3], %s9186
      %s9189 = sshll.u32 [#allocation2], 4
      %s9190 = int_to_ptr.vmem [resolvable:$true] %s9189
      %9192 = dma.vmem_to_hbm [thread:$0]  %s9190, 128, %s10, [#allocation3]
    $region45: #{forward.1} parent=1 // pred_fallthru
      _
    // Predicated region
    $region46: #{forward.1} parent=1 // pred_check
      _
    $region47: #{forward.1} parent=1 // pred_check_branch
      %9194 = sbr.rel (0) target = $region49
    $region48: #{forward.1} parent=1 // pred_region
      %9195 = dma.done [#allocation3], 128
    $region49: #{forward.1} parent=1 // pred_fallthru
      _
    %9196 = vsyncpa [#allocation3], 1

</llo_original>
